<compile_context>
chip_gen: v5e
topology: v5e:2x2
jax: 0.10.0
libtpu: 0.0.40
codegen_flags: <defaults>
</compile_context>

<pallas_src>
import functools

import jax
import jax.numpy as jnp
from jax.experimental import pallas as pl
from jax.experimental.pallas import tpu as pltpu


# ----------------------------------------------------------------------------- helpers
def _zero_halo(ref, r0, nr, c0, nc):
    """Zero only the halo of a padded (Nb, R, Ccol, Ch) scratch; the interior
    [r0:r0+nr, c0:c0+nc] is fully overwritten each grid step.  Done every step (not
    @pl.when(program_id==0)) so it stays correct when the batch grid axis is sharded
    across TensorCores ("parallel" semantics)."""
    Nb, R, Ccol, Ch = ref.shape
    dt = ref.dtype
    if r0 > 0:
        ref[:, :r0, :, :] = jnp.zeros((Nb, r0, Ccol, Ch), dt)
    if r0 + nr < R:
        ref[:, r0 + nr:, :, :] = jnp.zeros((Nb, R - r0 - nr, Ccol, Ch), dt)
    if c0 > 0:
        ref[:, r0:r0 + nr, :c0, :] = jnp.zeros((Nb, nr, c0, Ch), dt)
    if c0 + nc < Ccol:
        ref[:, r0:r0 + nr, c0 + nc:, :] = jnp.zeros((Nb, nr, Ccol - c0 - nc, Ch), dt)


def _vmem_limits():
    """(per-step working-set budget, explicit vmem_limit_bytes), generation-aware.
    Conservative 64 MiB fallback (v7x-sized) if the query is unavailable."""
    cap = 64 * 1024 * 1024
    try:
        cap = int(pltpu.get_tpu_info().vmem_capacity_bytes)
    except Exception:
        pass
    budget = int(cap * 0.35)
    limit = int(min(cap - (16 << 20), 100 << 20))
    limit = max(limit, 32 << 20)
    return budget, limit


def _pick_batch_block(N, per_image_bytes, budget_bytes):
    """Largest divisor of N whose per-step footprint (inputs/outputs double-buffered,
    scratch, in-kernel f32 temporaries) fits the budget, capped so the batch grid has
    at least 2 steps (keeps both v7x TensorCores busy)."""
    fixed = 4 << 20                       # weights + compiler-internal headroom
    avail = max(budget_bytes - fixed, per_image_bytes)
    nb_cap = max(1, N // 2)
    nb = int(max(1, min(nb_cap, avail // max(per_image_bytes, 1))))
    while N % nb:
        nb -= 1
    return nb


def _wspec(shape):
    """Full-block BlockSpec for a (small) weight tensor, replicated across the grid."""
    nd = len(shape)

    def imap(n):
        return (0,) * nd

    return pl.BlockSpec(shape, imap)


# ----------------------------------------------------------------------------- kernels
def _block_kernel_s1(x2_ref, wb_ref, s1_ref, b1_ref, wdw_ref, b2_ref,
                     wpl_ref, s3_ref, b3_ref, out_ref, pad_ref,
                     *, H, W, K, Cb, Nb):
    """Stride-1 branch only: 1x1+BN+ReLU -> KxK depthwise (BN scale pre-folded into
    wdw_ref) -> +b2 -> 1x1+BN+ReLU.  x2: (Nb,H,W,Cb) act dtype, out: (Nb,H,W,Cb).
    The x1 passthrough / channel shuffle are handled wrapper-side (exact, free)."""
    P = K // 2
    f32 = jnp.float32

    # halo of the padded scratch must be zero; interior is overwritten below
    _zero_halo(pad_ref, P, H, P, W)

    # bottleneck: 1x1 conv + BN + ReLU as one flattened matmul on the MXU
    x2 = x2_ref[...].astype(f32).reshape(Nb * H * W, Cb)
    y = jnp.dot(x2, wb_ref[...], preferred_element_type=f32)
    y = jnp.maximum(y * s1_ref[...] + b1_ref[...], 0.0)
    pad_ref[:, P:P + H, P:P + W, :] = y.reshape(Nb, H, W, Cb)

    # KxK depthwise conv, stride 1, padding K//2 (BN scale already folded into wdw)
    acc = jnp.zeros((Nb, H, W, Cb), f32)
    for ki in range(K):
        for kj in range(K):
            acc = acc + pad_ref[:, ki:ki + H, kj:kj + W, :] * wdw_ref[ki * K + kj]

    # point-linear 1x1 + BN + ReLU at natural (Cb,Cb) width
    br = jnp.dot((acc + b2_ref[...]).reshape(Nb * H * W, Cb), wpl_ref[...],
                 preferred_element_type=f32)
    br = jnp.maximum(br * s3_ref[...] + b3_ref[...], 0.0)
    out_ref[...] = br.reshape(Nb, H, W, Cb).astype(out_ref.dtype)


def _block_kernel_s2(xps_ref,
                     wb_ref, s1_ref, b1_ref, wdw_ref, b2_ref,
                     wpl_ref, s3_ref, b3_ref,
                     wdwsc_ref, bsc1_ref, wplsc_ref, ssc2_ref, bsc2_ref,
                     out_sc_ref, out_br_ref,
                     xp00, xp01, xp10, xp11, bp00, bp01, bp10, bp11,
                     *, H, W, K, C, Cb, Nb):
    """Stride-2 block.  xps: parity-packed input (Nb, 2, H/2, W/2, 2C) with
    xps[n, t, i, j, u*C + c] = x[n, 2i+t, 2j+u, c] (t/u = ORIGINAL row/col parity).
    Zero padding and the four (padded-row-parity, padded-col-parity) planes are built
    in VMEM; the strided depthwise is then evaluated directly at the Ho x Wo output
    positions: padded row 2*io+ki lives in plane ki&1 at index io + ki//2 (same for
    columns), so every tap is a contiguous slice."""
    P = K // 2
    Ho, Wo = H // 2, W // 2
    f32 = jnp.float32
    xp = ((xp00, xp01), (xp10, xp11))     # shortcut input planes, C channels
    bp = ((bp00, bp01), (bp10, bp11))     # branch bottleneck planes, Cb channels
    # padded-parity-a plane holds original rows/cols of parity (a+P)&1 starting at
    # plane index off[a]
    off = tuple((P - a + ((a + P) & 1)) // 2 for a in (0, 1))

    xv = xps_ref[...]                     # one load of the input block

    # ---- parity-plane scratches: zero halos + copy the raw-input interiors --------
    for s in (0, 1):
        t = (s + P) & 1                   # original row parity stored in plane s
        for q in (0, 1):
            u = (q + P) & 1               # original col parity stored in plane q
            _zero_halo(xp[s][q], off[s], Ho, off[q], Wo)
            _zero_halo(bp[s][q], off[s], Ho, off[q], Wo)
            xp[s][q][:, off[s]:off[s] + Ho, off[q]:off[q] + Wo, :] = (
                xv[:, t, :, :, u * C:(u + 1) * C].astype(f32))

    # ---- branch bottleneck: ONE fused (Nb*H*W, C) @ (C, Cb) matmul ----------------
    flat = xv.astype(f32).reshape(Nb * 2 * Ho * Wo, 2 * C)
    xall = jnp.concatenate([flat[:, :C], flat[:, C:]], axis=0)  # col-parity 0, then 1
    y = jnp.dot(xall, wb_ref[...], preferred_element_type=f32)
    y = jnp.maximum(y * s1_ref[...] + b1_ref[...], 0.0)
    M2 = Nb * 2 * Ho * Wo
    y_by_u = (y[:M2].reshape(Nb, 2, Ho, Wo, Cb),
              y[M2:].reshape(Nb, 2, Ho, Wo, Cb))
    for s in (0, 1):
        t = (s + P) & 1
        for q in (0, 1):
            u = (q + P) & 1
            bp[s][q][:, off[s]:off[s] + Ho, off[q]:off[q] + Wo, :] = y_by_u[u][:, t]

    # ---- KxK depthwise, stride 2, evaluated directly at Ho x Wo -------------------
    # (post-depthwise BN scales are pre-folded into wdw_ref / wdwsc_ref)
    acc_b = jnp.zeros((Nb, Ho, Wo, Cb), f32)      # branch path
    acc_s = jnp.zeros((Nb, Ho, Wo, C), f32)       # shortcut path
    for ki in range(K):
        s, r = ki & 1, ki >> 1
        for kj in range(K):
            q, m = kj & 1, kj >> 1
            tap = ki * K + kj
            acc_b = acc_b + bp[s][q][:, r:r + Ho, m:m + Wo, :] * wdw_ref[tap]
            acc_s = acc_s + xp[s][q][:, r:r + Ho, m:m + Wo, :] * wdwsc_ref[tap]

    # ---- branch tail: +b2 -> 1x1 -> BN -> ReLU ------------------------------------
    br = jnp.dot((acc_b + b2_ref[...]).reshape(Nb * Ho * Wo, Cb), wpl_ref[...],
                 preferred_element_type=f32)
    br = jnp.maximum(br * s3_ref[...] + b3_ref[...], 0.0)
    out_br_ref[...] = br.reshape(Nb, Ho, Wo, Cb).astype(out_br_ref.dtype)

    # ---- shortcut tail: +bsc1 -> 1x1 -> BN -> ReLU --------------------------------
    sc = jnp.dot((acc_s + bsc1_ref[...]).reshape(Nb * Ho * Wo, C), wplsc_ref[...],
                 preferred_element_type=f32)
    sc = jnp.maximum(sc * ssc2_ref[...] + bsc2_ref[...], 0.0)
    out_sc_ref[...] = sc.reshape(Nb, Ho, Wo, Cb).astype(out_sc_ref.dtype)


# ----------------------------------------------------------------------------- wrapper
def flexible_shufflenet_v2_block(x_nchw, params, *, C_out, stride, kernel_size=7,
                                 act_dtype=jnp.float32):
    """Forward pass.  x_nchw: (N, C, H, W) float32.  Returns (N, C_out, H//s, W//s).
    act_dtype controls the dtype activations are DMA'd in/out of the kernel
    (jnp.bfloat16 halves HBM traffic on v6e/v7x; compute stays f32 in-kernel)."""
    K = kernel_size
    assert K % 2 == 1, "FlexibleDepthWiseConv uses odd kernel sizes (3/5/7)"
    P = K // 2
    Cb = C_out // 2
    f32 = jnp.float32
    x_nchw = x_nchw.astype(f32)
    N, C, H, W = x_nchw.shape

    budget, vmem_limit = _vmem_limits()
    cparams = pltpu.CompilerParams(dimension_semantics=("parallel",),
                                   vmem_limit_bytes=vmem_limit)
    ab = jnp.dtype(act_dtype).itemsize
    fb = 4

    # fold the post-depthwise BN scale into the depthwise weights (bias stays in-kernel)
    wdw_eff = (params["wdw"] * params["s2"].reshape(1, 1, Cb)
               ).reshape(K * K, 1, Cb).astype(f32)

    if stride == 1:
        assert C == 2 * Cb, "stride==1 requires C == 2 * C_branch"
        assert W % 8 == 0, "layout-friendly in-kernel reshapes assume W % 8 == 0"
        # only the branch half (x2) enters the kernel; the x1 passthrough is
        # interleaved wrapper-side (bit-exact, fused into the output transpose)
        x2 = jnp.transpose(x_nchw[:, Cb:], (0, 2, 3, 1)).astype(act_dtype)
        per_img = (2 * 2 * H * W * Cb * ab                 # in + out, double-buffered
                   + (H + 2 * P) * (W + 2 * P) * Cb * fb   # padded scratch
                   + 6 * H * W * Cb * fb)                  # in-kernel f32 temporaries
        Nb = _pick_batch_block(N, per_img, budget)
        kern = functools.partial(_block_kernel_s1, H=H, W=W, K=K, Cb=Cb, Nb=Nb)
        br = pl.pallas_call(
            kern,
            out_shape=jax.ShapeDtypeStruct((N, H, W, Cb), act_dtype),
            grid_spec=pltpu.PrefetchScalarGridSpec(
                num_scalar_prefetch=0,
                grid=(N // Nb,),
                in_specs=[
                    pl.BlockSpec((Nb, H, W, Cb), lambda n: (n, 0, 0, 0)),   # x2
                    _wspec((Cb, Cb)),        # wb
                    _wspec((1, Cb)),         # s1
                    _wspec((1, Cb)),         # b1
                    _wspec((K * K, 1, Cb)),  # wdw (s2 folded)
                    _wspec((1, Cb)),         # b2
                    _wspec((Cb, Cb)),        # wpl
                    _wspec((1, Cb)),         # s3
                    _wspec((1, Cb)),         # b3
                ],
                out_specs=pl.BlockSpec((Nb, H, W, Cb), lambda n: (n, 0, 0, 0)),
                scratch_shapes=[pltpu.VMEM((Nb, H + 2 * P, W + 2 * P, Cb), f32)],
            ),
            compiler_params=cparams,
        )(x2, params["wb"], params["s1"], params["b1"], wdw_eff,
          params["b2"], params["wpl"], params["s3"], params["b3"])

        # channel_shuffle(groups=2): even channels = x1 (exact), odd = branch
        x1_nchw = x_nchw[:, :Cb]
        br_nchw = jnp.transpose(br, (0, 3, 1, 2)).astype(f32)
        return jnp.stack([x1_nchw, br_nchw], axis=2).reshape(N, 2 * Cb, H, W)

    # ------------------------------------------------------------------ stride == 2
    assert H % 2 == 0 and W % 16 == 0, \
        "stride-2 layout assumes even H and W a multiple of 16"
    Ho, Wo = H // 2, W // 2
    Lp, Wp = Ho + P, Wo + P
    # parity-packed input (single fused XLA transpose; no pad pass, no plane arrays):
    #   xps[n, t, i, j, u*C + c] = x[n, c, 2i+t, 2j+u]
    xps = (x_nchw.reshape(N, C, Ho, 2, Wo, 2)
           .transpose(0, 3, 2, 4, 5, 1)
           .reshape(N, 2, Ho, Wo, 2 * C)
           .astype(act_dtype))
    wdwsc_eff = (params["wdw_sc"] * params["ssc1"].reshape(1, 1, C)
                 ).reshape(K * K, 1, C).astype(f32)

    per_img = (2 * H * W * C * ab + H * W * Cb * ab        # in + 2 outs, double-buffered
               + 4 * Lp * Wp * (C + Cb) * fb               # parity-plane scratches
               + 2 * H * W * (C + Cb) * fb)                # in-kernel f32 temporaries
    Nb = _pick_batch_block(N, per_img, budget)
    kern = functools.partial(_block_kernel_s2, H=H, W=W, K=K, C=C, Cb=Cb, Nb=Nb)
    out_spec = pl.BlockSpec((Nb, Ho, Wo, Cb), lambda n: (n, 0, 0, 0))
    sc, br = pl.pallas_call(
        kern,
        out_shape=(jax.ShapeDtypeStruct((N, Ho, Wo, Cb), act_dtype),
                   jax.ShapeDtypeStruct((N, Ho, Wo, Cb), act_dtype)),
        grid_spec=pltpu.PrefetchScalarGridSpec(
            num_scalar_prefetch=0,
            grid=(N // Nb,),
            in_specs=[
                pl.BlockSpec((Nb, 2, Ho, Wo, 2 * C), lambda n: (n, 0, 0, 0, 0)),
                _wspec((C, Cb)),         # wb
                _wspec((1, Cb)),         # s1
                _wspec((1, Cb)),         # b1
                _wspec((K * K, 1, Cb)),  # wdw (s2 folded)
                _wspec((1, Cb)),         # b2
                _wspec((Cb, Cb)),        # wpl
                _wspec((1, Cb)),         # s3
                _wspec((1, Cb)),         # b3
                _wspec((K * K, 1, C)),   # wdw_sc (ssc1 folded)
                _wspec((1, C)),          # bsc1
                _wspec((C, Cb)),         # wpl_sc
                _wspec((1, Cb)),         # ssc2
                _wspec((1, Cb)),         # bsc2
            ],
            out_specs=[out_spec, out_spec],
            scratch_shapes=[pltpu.VMEM((Nb, Lp, Wp, C), f32) for _ in range(4)]
                         + [pltpu.VMEM((Nb, Lp, Wp, Cb), f32) for _ in range(4)],
        ),
        compiler_params=cparams,
    )(xps, params["wb"], params["s1"], params["b1"], wdw_eff, params["b2"],
      params["wpl"], params["s3"], params["b3"],
      wdwsc_eff, params["bsc1"], params["wpl_sc"], params["ssc2"], params["bsc2"])

    # channel_shuffle(groups=2): even channels = shortcut, odd = branch
    sc_nchw = jnp.transpose(sc, (0, 3, 1, 2)).astype(f32)
    br_nchw = jnp.transpose(br, (0, 3, 1, 2)).astype(f32)
    return jnp.stack([sc_nchw, br_nchw], axis=2).reshape(N, 2 * Cb, Ho, Wo)


# ----------------------------------------------------------------------------- params
def init_params(key, C, C_out, stride, K=7):
    """Deterministic synthetic parameters; BN folded to per-channel scale/bias (1, ch)."""
    Cb = C_out // 2
    Cin_b = C if stride > 1 else Cb
    keys = jax.random.split(key, 10)

    def bn_params(k, ch):
        k1, k2, k3, k4 = jax.random.split(k, 4)
        gamma = 1.0 + 0.1 * jax.random.normal(k1, (ch,), jnp.float32)
        beta = 0.1 * jax.random.normal(k2, (ch,), jnp.float32)
        mean = 0.1 * jax.random.normal(k3, (ch,), jnp.float32)
        var = 1.0 + 0.1 * jax.random.uniform(k4, (ch,), jnp.float32)
        scale = gamma / jnp.sqrt(var + 1e-5)
        bias = beta - mean * scale
        return scale.reshape(1, ch), bias.reshape(1, ch)

    p = {}
    p["wb"] = 0.3 * jax.random.normal(keys[0], (Cin_b, Cb), jnp.float32)
    p["s1"], p["b1"] = bn_params(keys[1], Cb)
    p["wdw"] = 0.3 * jax.random.normal(keys[2], (K, K, Cb), jnp.float32)
    p["s2"], p["b2"] = bn_params(keys[3], Cb)
    p["wpl"] = 0.3 * jax.random.normal(keys[4], (Cb, Cb), jnp.float32)
    p["s3"], p["b3"] = bn_params(keys[5], Cb)
    if stride > 1:
        p["wdw_sc"] = 0.3 * jax.random.normal(keys[6], (K, K, C), jnp.float32)
        p["ssc1"], p["bsc1"] = bn_params(keys[7], C)
        p["wpl_sc"] = 0.3 * jax.random.normal(keys[8], (C, Cb), jnp.float32)
        p["ssc2"], p["bsc2"] = bn_params(keys[9], Cb)
    return p


# ----------------------------------------------------------------------------- reference
def _ref_forward(x_nchw, params, *, C_out, stride, kernel_size=7):
    HIGH = jax.lax.Precision.HIGHEST
    K = kernel_size
    P = K // 2
    Cb = C_out // 2
    C = x_nchw.shape[1]

    def conv(x, w_oihw, s, pad, groups=1):
        return jax.lax.conv_general_dilated(
            x, w_oihw, window_strides=(s, s),
            padding=[(pad, pad), (pad, pad)],
            dimension_numbers=("NCHW", "OIHW", "NCHW"),
            feature_group_count=groups, precision=HIGH)

    def bn(y, scale, bias):
        return y * scale.reshape(1, -1, 1, 1) + bias.reshape(1, -1, 1, 1)

    relu = lambda y: jnp.maximum(y, 0.0)

    def branch(z):
        y = conv(z, jnp.transpose(params["wb"])[:, :, None, None], 1, 0)
        y = relu(bn(y, params["s1"], params["b1"]))
        wdw = jnp.transpose(params["wdw"], (2, 0, 1))[:, None, :, :]
        y = conv(y, wdw, stride, P, groups=Cb)
        y = bn(y, params["s2"], params["b2"])
        y = conv(y, jnp.transpose(params["wpl"])[:, :, None, None], 1, 0)
        y = relu(bn(y, params["s3"], params["b3"]))
        return y

    if stride == 1:
        x1, x2 = jnp.split(x_nchw, 2, axis=1)
        out = jnp.concatenate([x1, branch(x2)], axis=1)
    else:
        wsc = jnp.transpose(params["wdw_sc"], (2, 0, 1))[:, None, :, :]
        sh = conv(x_nchw, wsc, stride, P, groups=C)
        sh = bn(sh, params["ssc1"], params["bsc1"])
        sh = conv(sh, jnp.transpose(params["wpl_sc"])[:, :, None, None], 1, 0)
        sh = relu(bn(sh, params["ssc2"], params["bsc2"]))
        out = jnp.concatenate([sh, branch(x_nchw)], axis=1)

    n, c, h, w = out.shape
    out = out.reshape(n, 2, c // 2, h, w).transpose(0, 2, 1, 3, 4).reshape(n, c, h, w)
    return out


# ----------------------------------------------------------------------------- main
if __name__ == "__main__":
    key = jax.random.PRNGKey(0)
    kx, kp1, kp2 = jax.random.split(key, 3)

    N, C, H, W = 2, 4, 16, 16
    x = jax.random.normal(kx, (N, C, H, W), dtype=jnp.float32)

    # Kernel compute matmuls run at default (bf16-input) MXU precision while the
    # reference uses f32 HIGHEST, so tolerate ~1e-2 level differences on O(1) values.
    TOL_F32 = 5e-2
    TOL_BF16 = 2e-1

    # stride=1 block (module assert requires C == 2 * C_branch, i.e. C_out == C)
    params1 = init_params(kp1, C, C, stride=1)
    ref1 = _ref_forward(x, params1, C_out=C, stride=1)
    out1 = jax.block_until_ready(
        flexible_shufflenet_v2_block(x, params1, C_out=C, stride=1))
    assert out1.shape == (N, C, H, W), out1.shape
    err1 = float(jnp.max(jnp.abs(out1 - ref1)))
    assert err1 < TOL_F32, f"stride=1 mismatch: {err1}"

    # stride=2 block (exercises the shortcut path; spatial halved, channels doubled)
    C_out2 = 2 * C
    params2 = init_params(kp2, C, C_out2, stride=2)
    ref2 = _ref_forward(x, params2, C_out=C_out2, stride=2)
    out2 = jax.block_until_ready(
        flexible_shufflenet_v2_block(x, params2, C_out=C_out2, stride=2))
    assert out2.shape == (N, C_out2, H // 2, W // 2), out2.shape
    err2 = float(jnp.max(jnp.abs(out2 - ref2)))
    assert err2 < TOL_F32, f"stride=2 mismatch: {err2}"

    # bf16 activation-I/O path (halves HBM traffic on v6e/v7x; compute stays f32)
    out1b = jax.block_until_ready(
        flexible_shufflenet_v2_block(x, params1, C_out=C, stride=1,
                                     act_dtype=jnp.bfloat16))
    err1b = float(jnp.max(jnp.abs(out1b - ref1)))
    assert err1b < TOL_BF16, f"stride=1 bf16 mismatch: {err1b}"

    out2b = jax.block_until_ready(
        flexible_shufflenet_v2_block(x, params2, C_out=C_out2, stride=2,
                                     act_dtype=jnp.bfloat16))
    err2b = float(jnp.max(jnp.abs(out2b - ref2)))
    assert err2b < TOL_BF16, f"stride=2 bf16 mismatch: {err2b}"

    print("KERNEL_OK")
</pallas_src>

<mosaic_0001>
module attributes {stable_mosaic.version = 11 : i64} {
  func.func @_block_kernel_s1(%arg0: i32, %arg1: memref<1x16x16x2xf32, #tpu.memory_space<vmem>>, %arg2: memref<2x2xf32, #tpu.memory_space<vmem>>, %arg3: memref<1x2xf32, #tpu.memory_space<vmem>>, %arg4: memref<1x2xf32, #tpu.memory_space<vmem>>, %arg5: memref<49x1x2xf32, #tpu.memory_space<vmem>>, %arg6: memref<1x2xf32, #tpu.memory_space<vmem>>, %arg7: memref<2x2xf32, #tpu.memory_space<vmem>>, %arg8: memref<1x2xf32, #tpu.memory_space<vmem>>, %arg9: memref<1x2xf32, #tpu.memory_space<vmem>>, %arg10: memref<1x16x16x2xf32, #tpu.memory_space<vmem>>, %arg11: memref<1x22x22x2xf32, #tpu.memory_space<vmem>>) attributes {dimension_semantics = [#tpu.dimension_semantics<parallel>], iteration_bounds = array<i64: 2>, scalar_prefetch = 0 : i64, scratch_operands = 1 : i64, tpu.core_type = #tpu.core_type<tc>, window_params = [{transform_indices = @transform_0, window_bounds = array<i64: 1, 16, 16, 2>}, {pipeline_mode = #tpu.pipeline_mode<synchronous>, transform_indices = @transform_1, window_bounds = array<i64: 2, 2>}, {pipeline_mode = #tpu.pipeline_mode<synchronous>, transform_indices = @transform_2, window_bounds = array<i64: 1, 2>}, {pipeline_mode = #tpu.pipeline_mode<synchronous>, transform_indices = @transform_3, window_bounds = array<i64: 1, 2>}, {pipeline_mode = #tpu.pipeline_mode<synchronous>, transform_indices = @transform_4, window_bounds = array<i64: 49, 1, 2>}, {pipeline_mode = #tpu.pipeline_mode<synchronous>, transform_indices = @transform_5, window_bounds = array<i64: 1, 2>}, {pipeline_mode = #tpu.pipeline_mode<synchronous>, transform_indices = @transform_6, window_bounds = array<i64: 2, 2>}, {pipeline_mode = #tpu.pipeline_mode<synchronous>, transform_indices = @transform_7, window_bounds = array<i64: 1, 2>}, {pipeline_mode = #tpu.pipeline_mode<synchronous>, transform_indices = @transform_8, window_bounds = array<i64: 1, 2>}, {transform_indices = @transform_9, window_bounds = array<i64: 1, 16, 16, 2>}]} {
    %cst = arith.constant 0.000000e+00 : f32
    %0 = vector.broadcast %cst : f32 to vector<1x3x22x2xf32>
    %c0 = arith.constant 0 : index
    %c0_0 = arith.constant 0 : index
    %c0_1 = arith.constant 0 : index
    %c0_2 = arith.constant 0 : index
    %1 = vector.load %arg11[%c0, %c0_0, %c0_1, %c0_2] : memref<1x22x22x2xf32, #tpu.memory_space<vmem>>, vector<1x3x22x2xf32>
    tpu.vector_store %arg11[%c0, %c0_0, %c0_1, %c0_2], %0 {strides = array<i32>} : memref<1x22x22x2xf32, #tpu.memory_space<vmem>>, vector<1x3x22x2xf32>,
    %cst_3 = arith.constant 0.000000e+00 : f32
    %2 = vector.broadcast %cst_3 : f32 to vector<1x3x22x2xf32>
    %c0_4 = arith.constant 0 : index
    %c19 = arith.constant 19 : index
    %c0_5 = arith.constant 0 : index
    %c0_6 = arith.constant 0 : index
    %3 = vector.load %arg11[%c0_4, %c19, %c0_5, %c0_6] : memref<1x22x22x2xf32, #tpu.memory_space<vmem>>, vector<1x3x22x2xf32>
    tpu.vector_store %arg11[%c0_4, %c19, %c0_5, %c0_6], %2 {strides = array<i32>} : memref<1x22x22x2xf32, #tpu.memory_space<vmem>>, vector<1x3x22x2xf32>,
    %cst_7 = arith.constant 0.000000e+00 : f32
    %4 = vector.broadcast %cst_7 : f32 to vector<1x16x3x2xf32>
    %c0_8 = arith.constant 0 : index
    %c3 = arith.constant 3 : index
    %c0_9 = arith.constant 0 : index
    %c0_10 = arith.constant 0 : index
    %5 = vector.load %arg11[%c0_8, %c3, %c0_9, %c0_10] : memref<1x22x22x2xf32, #tpu.memory_space<vmem>>, vector<1x16x3x2xf32>
    tpu.vector_store %arg11[%c0_8, %c3, %c0_9, %c0_10], %4 {strides = array<i32>} : memref<1x22x22x2xf32, #tpu.memory_space<vmem>>, vector<1x16x3x2xf32>,
    %cst_11 = arith.constant 0.000000e+00 : f32
    %6 = vector.broadcast %cst_11 : f32 to vector<1x16x3x2xf32>
    %c0_12 = arith.constant 0 : index
    %c3_13 = arith.constant 3 : index
    %c19_14 = arith.constant 19 : index
    %c0_15 = arith.constant 0 : index
    %7 = vector.load %arg11[%c0_12, %c3_13, %c19_14, %c0_15] : memref<1x22x22x2xf32, #tpu.memory_space<vmem>>, vector<1x16x3x2xf32>
    tpu.vector_store %arg11[%c0_12, %c3_13, %c19_14, %c0_15], %6 {strides = array<i32>} : memref<1x22x22x2xf32, #tpu.memory_space<vmem>>, vector<1x16x3x2xf32>,
    %c0_16 = arith.constant 0 : index
    %c0_17 = arith.constant 0 : index
    %c0_18 = arith.constant 0 : index
    %c0_19 = arith.constant 0 : index
    %8 = vector.load %arg1[%c0_16, %c0_17, %c0_18, %c0_19] : memref<1x16x16x2xf32, #tpu.memory_space<vmem>>, vector<1x16x16x2xf32>
    %9 = vector.shape_cast %8 : vector<1x16x16x2xf32> to vector<256x2xf32>
    %c0_20 = arith.constant 0 : index
    %c0_21 = arith.constant 0 : index
    %10 = vector.load %arg2[%c0_20, %c0_21] : memref<2x2xf32, #tpu.memory_space<vmem>>, vector<2x2xf32>
    %cst_22 = arith.constant dense<0.000000e+00> : vector<256x2xf32>
    %11 = tpu.matmul %9, %10, %cst_22 {dimension_numbers = #tpu.dot_dimension_numbers<[1], [0], [0], [1], [0, 0, 1, 1], [], []>} : vector<256x2xf32>, vector<2x2xf32>, vector<256x2xf32> -> vector<256x2xf32>
    %c0_23 = arith.constant 0 : index
    %c0_24 = arith.constant 0 : index
    %12 = vector.load %arg3[%c0_23, %c0_24] : memref<1x2xf32, #tpu.memory_space<vmem>>, vector<1x2xf32>
    %13 = vector.broadcast %12 : vector<1x2xf32> to vector<256x2xf32>
    %14 = arith.mulf %11, %13 : vector<256x2xf32>
    %c0_25 = arith.constant 0 : index
    %c0_26 = arith.constant 0 : index
    %15 = vector.load %arg4[%c0_25, %c0_26] : memref<1x2xf32, #tpu.memory_space<vmem>>, vector<1x2xf32>
    %16 = vector.broadcast %15 : vector<1x2xf32> to vector<256x2xf32>
    %17 = arith.addf %14, %16 : vector<256x2xf32>
    %cst_27 = arith.constant 0.000000e+00 : f32
    %18 = vector.broadcast %cst_27 : f32 to vector<256x2xf32>
    %19 = arith.maximumf %17, %18 : vector<256x2xf32>
    %20 = vector.shape_cast %19 : vector<256x2xf32> to vector<1x16x16x2xf32>
    %c0_28 = arith.constant 0 : index
    %c3_29 = arith.constant 3 : index
    %c3_30 = arith.constant 3 : index
    %c0_31 = arith.constant 0 : index
    %21 = vector.load %arg11[%c0_28, %c3_29, %c3_30, %c0_31] : memref<1x22x22x2xf32, #tpu.memory_space<vmem>>, vector<1x16x16x2xf32>
    tpu.vector_store %arg11[%c0_28, %c3_29, %c3_30, %c0_31], %20 {strides = array<i32>} : memref<1x22x22x2xf32, #tpu.memory_space<vmem>>, vector<1x16x16x2xf32>,
    %cst_32 = arith.constant 0.000000e+00 : f32
    %22 = vector.broadcast %cst_32 : f32 to vector<1x16x16x2xf32>
    %c0_33 = arith.constant 0 : index
    %c0_34 = arith.constant 0 : index
    %c0_35 = arith.constant 0 : index
    %c0_36 = arith.constant 0 : index
    %23 = vector.load %arg11[%c0_33, %c0_34, %c0_35, %c0_36] : memref<1x22x22x2xf32, #tpu.memory_space<vmem>>, vector<1x16x16x2xf32>
    %c0_37 = arith.constant 0 : index
    %c0_38 = arith.constant 0 : index
    %c0_39 = arith.constant 0 : index
    %24 = vector.load %arg5[%c0_37, %c0_38, %c0_39] : memref<49x1x2xf32, #tpu.memory_space<vmem>>, vector<1x1x2xf32>
    %25 = vector.shape_cast %24 : vector<1x1x2xf32> to vector<1x2xf32>
    %26 = vector.shape_cast %25 : vector<1x2xf32> to vector<1x1x1x2xf32>
    %27 = vector.broadcast %26 : vector<1x1x1x2xf32> to vector<1x16x16x2xf32>
    %28 = arith.mulf %23, %27 : vector<1x16x16x2xf32>
    %29 = arith.addf %22, %28 : vector<1x16x16x2xf32>
    %c0_40 = arith.constant 0 : index
    %c0_41 = arith.constant 0 : index
    %c1 = arith.constant 1 : index
    %c0_42 = arith.constant 0 : index
    %30 = vector.load %arg11[%c0_40, %c0_41, %c1, %c0_42] : memref<1x22x22x2xf32, #tpu.memory_space<vmem>>, vector<1x16x16x2xf32>
    %c1_43 = arith.constant 1 : index
    %c0_44 = arith.constant 0 : index
    %c0_45 = arith.constant 0 : index
    %31 = vector.load %arg5[%c1_43, %c0_44, %c0_45] : memref<49x1x2xf32, #tpu.memory_space<vmem>>, vector<1x1x2xf32>
    %32 = vector.shape_cast %31 : vector<1x1x2xf32> to vector<1x2xf32>
    %33 = vector.shape_cast %32 : vector<1x2xf32> to vector<1x1x1x2xf32>
    %34 = vector.broadcast %33 : vector<1x1x1x2xf32> to vector<1x16x16x2xf32>
    %35 = arith.mulf %30, %34 : vector<1x16x16x2xf32>
    %36 = arith.addf %29, %35 : vector<1x16x16x2xf32>
    %c0_46 = arith.constant 0 : index
    %c0_47 = arith.constant 0 : index
    %c2 = arith.constant 2 : index
    %c0_48 = arith.constant 0 : index
    %37 = vector.load %arg11[%c0_46, %c0_47, %c2, %c0_48] : memref<1x22x22x2xf32, #tpu.memory_space<vmem>>, vector<1x16x16x2xf32>
    %c2_49 = arith.constant 2 : index
    %c0_50 = arith.constant 0 : index
    %c0_51 = arith.constant 0 : index
    %38 = vector.load %arg5[%c2_49, %c0_50, %c0_51] : memref<49x1x2xf32, #tpu.memory_space<vmem>>, vector<1x1x2xf32>
    %39 = vector.shape_cast %38 : vector<1x1x2xf32> to vector<1x2xf32>
    %40 = vector.shape_cast %39 : vector<1x2xf32> to vector<1x1x1x2xf32>
    %41 = vector.broadcast %40 : vector<1x1x1x2xf32> to vector<1x16x16x2xf32>
    %42 = arith.mulf %37, %41 : vector<1x16x16x2xf32>
    %43 = arith.addf %36, %42 : vector<1x16x16x2xf32>
    %c0_52 = arith.constant 0 : index
    %c0_53 = arith.constant 0 : index
    %c3_54 = arith.constant 3 : index
    %c0_55 = arith.constant 0 : index
    %44 = vector.load %arg11[%c0_52, %c0_53, %c3_54, %c0_55] : memref<1x22x22x2xf32, #tpu.memory_space<vmem>>, vector<1x16x16x2xf32>
    %c3_56 = arith.constant 3 : index
    %c0_57 = arith.constant 0 : index
    %c0_58 = arith.constant 0 : index
    %45 = vector.load %arg5[%c3_56, %c0_57, %c0_58] : memref<49x1x2xf32, #tpu.memory_space<vmem>>, vector<1x1x2xf32>
    %46 = vector.shape_cast %45 : vector<1x1x2xf32> to vector<1x2xf32>
    %47 = vector.shape_cast %46 : vector<1x2xf32> to vector<1x1x1x2xf32>
    %48 = vector.broadcast %47 : vector<1x1x1x2xf32> to vector<1x16x16x2xf32>
    %49 = arith.mulf %44, %48 : vector<1x16x16x2xf32>
    %50 = arith.addf %43, %49 : vector<1x16x16x2xf32>
    %c0_59 = arith.constant 0 : index
    %c0_60 = arith.constant 0 : index
    %c4 = arith.constant 4 : index
    %c0_61 = arith.constant 0 : index
    %51 = vector.load %arg11[%c0_59, %c0_60, %c4, %c0_61] : memref<1x22x22x2xf32, #tpu.memory_space<vmem>>, vector<1x16x16x2xf32>
    %c4_62 = arith.constant 4 : index
    %c0_63 = arith.constant 0 : index
    %c0_64 = arith.constant 0 : index
    %52 = vector.load %arg5[%c4_62, %c0_63, %c0_64] : memref<49x1x2xf32, #tpu.memory_space<vmem>>, vector<1x1x2xf32>
    %53 = vector.shape_cast %52 : vector<1x1x2xf32> to vector<1x2xf32>
    %54 = vector.shape_cast %53 : vector<1x2xf32> to vector<1x1x1x2xf32>
    %55 = vector.broadcast %54 : vector<1x1x1x2xf32> to vector<1x16x16x2xf32>
    %56 = arith.mulf %51, %55 : vector<1x16x16x2xf32>
    %57 = arith.addf %50, %56 : vector<1x16x16x2xf32>
    %c0_65 = arith.constant 0 : index
    %c0_66 = arith.constant 0 : index
    %c5 = arith.constant 5 : index
    %c0_67 = arith.constant 0 : index
    %58 = vector.load %arg11[%c0_65, %c0_66, %c5, %c0_67] : memref<1x22x22x2xf32, #tpu.memory_space<vmem>>, vector<1x16x16x2xf32>
    %c5_68 = arith.constant 5 : index
    %c0_69 = arith.constant 0 : index
    %c0_70 = arith.constant 0 : index
    %59 = vector.load %arg5[%c5_68, %c0_69, %c0_70] : memref<49x1x2xf32, #tpu.memory_space<vmem>>, vector<1x1x2xf32>
    %60 = vector.shape_cast %59 : vector<1x1x2xf32> to vector<1x2xf32>
    %61 = vector.shape_cast %60 : vector<1x2xf32> to vector<1x1x1x2xf32>
    %62 = vector.broadcast %61 : vector<1x1x1x2xf32> to vector<1x16x16x2xf32>
    %63 = arith.mulf %58, %62 : vector<1x16x16x2xf32>
    %64 = arith.addf %57, %63 : vector<1x16x16x2xf32>
    %c0_71 = arith.constant 0 : index
    %c0_72 = arith.constant 0 : index
    %c6 = arith.constant 6 : index
    %c0_73 = arith.constant 0 : index
    %65 = vector.load %arg11[%c0_71, %c0_72, %c6, %c0_73] : memref<1x22x22x2xf32, #tpu.memory_space<vmem>>, vector<1x16x16x2xf32>
    %c6_74 = arith.constant 6 : index
    %c0_75 = arith.constant 0 : index
    %c0_76 = arith.constant 0 : index
    %66 = vector.load %arg5[%c6_74, %c0_75, %c0_76] : memref<49x1x2xf32, #tpu.memory_space<vmem>>, vector<1x1x2xf32>
    %67 = vector.shape_cast %66 : vector<1x1x2xf32> to vector<1x2xf32>
    %68 = vector.shape_cast %67 : vector<1x2xf32> to vector<1x1x1x2xf32>
    %69 = vector.broadcast %68 : vector<1x1x1x2xf32> to vector<1x16x16x2xf32>
    %70 = arith.mulf %65, %69 : vector<1x16x16x2xf32>
    %71 = arith.addf %64, %70 : vector<1x16x16x2xf32>
    %c0_77 = arith.constant 0 : index
    %c1_78 = arith.constant 1 : index
    %c0_79 = arith.constant 0 : index
    %c0_80 = arith.constant 0 : index
    %72 = vector.load %arg11[%c0_77, %c1_78, %c0_79, %c0_80] : memref<1x22x22x2xf32, #tpu.memory_space<vmem>>, vector<1x16x16x2xf32>
    %c7 = arith.constant 7 : index
    %c0_81 = arith.constant 0 : index
    %c0_82 = arith.constant 0 : index
    %73 = vector.load %arg5[%c7, %c0_81, %c0_82] : memref<49x1x2xf32, #tpu.memory_space<vmem>>, vector<1x1x2xf32>
    %74 = vector.shape_cast %73 : vector<1x1x2xf32> to vector<1x2xf32>
    %75 = vector.shape_cast %74 : vector<1x2xf32> to vector<1x1x1x2xf32>
    %76 = vector.broadcast %75 : vector<1x1x1x2xf32> to vector<1x16x16x2xf32>
    %77 = arith.mulf %72, %76 : vector<1x16x16x2xf32>
    %78 = arith.addf %71, %77 : vector<1x16x16x2xf32>
    %c0_83 = arith.constant 0 : index
    %c1_84 = arith.constant 1 : index
    %c1_85 = arith.constant 1 : index
    %c0_86 = arith.constant 0 : index
    %79 = vector.load %arg11[%c0_83, %c1_84, %c1_85, %c0_86] : memref<1x22x22x2xf32, #tpu.memory_space<vmem>>, vector<1x16x16x2xf32>
    %c8 = arith.constant 8 : index
    %c0_87 = arith.constant 0 : index
    %c0_88 = arith.constant 0 : index
    %80 = vector.load %arg5[%c8, %c0_87, %c0_88] : memref<49x1x2xf32, #tpu.memory_space<vmem>>, vector<1x1x2xf32>
    %81 = vector.shape_cast %80 : vector<1x1x2xf32> to vector<1x2xf32>
    %82 = vector.shape_cast %81 : vector<1x2xf32> to vector<1x1x1x2xf32>
    %83 = vector.broadcast %82 : vector<1x1x1x2xf32> to vector<1x16x16x2xf32>
    %84 = arith.mulf %79, %83 : vector<1x16x16x2xf32>
    %85 = arith.addf %78, %84 : vector<1x16x16x2xf32>
    %c0_89 = arith.constant 0 : index
    %c1_90 = arith.constant 1 : index
    %c2_91 = arith.constant 2 : index
    %c0_92 = arith.constant 0 : index
    %86 = vector.load %arg11[%c0_89, %c1_90, %c2_91, %c0_92] : memref<1x22x22x2xf32, #tpu.memory_space<vmem>>, vector<1x16x16x2xf32>
    %c9 = arith.constant 9 : index
    %c0_93 = arith.constant 0 : index
    %c0_94 = arith.constant 0 : index
    %87 = vector.load %arg5[%c9, %c0_93, %c0_94] : memref<49x1x2xf32, #tpu.memory_space<vmem>>, vector<1x1x2xf32>
    %88 = vector.shape_cast %87 : vector<1x1x2xf32> to vector<1x2xf32>
    %89 = vector.shape_cast %88 : vector<1x2xf32> to vector<1x1x1x2xf32>
    %90 = vector.broadcast %89 : vector<1x1x1x2xf32> to vector<1x16x16x2xf32>
    %91 = arith.mulf %86, %90 : vector<1x16x16x2xf32>
    %92 = arith.addf %85, %91 : vector<1x16x16x2xf32>
    %c0_95 = arith.constant 0 : index
    %c1_96 = arith.constant 1 : index
    %c3_97 = arith.constant 3 : index
    %c0_98 = arith.constant 0 : index
    %93 = vector.load %arg11[%c0_95, %c1_96, %c3_97, %c0_98] : memref<1x22x22x2xf32, #tpu.memory_space<vmem>>, vector<1x16x16x2xf32>
    %c10 = arith.constant 10 : index
    %c0_99 = arith.constant 0 : index
    %c0_100 = arith.constant 0 : index
    %94 = vector.load %arg5[%c10, %c0_99, %c0_100] : memref<49x1x2xf32, #tpu.memory_space<vmem>>, vector<1x1x2xf32>
    %95 = vector.shape_cast %94 : vector<1x1x2xf32> to vector<1x2xf32>
    %96 = vector.shape_cast %95 : vector<1x2xf32> to vector<1x1x1x2xf32>
    %97 = vector.broadcast %96 : vector<1x1x1x2xf32> to vector<1x16x16x2xf32>
    %98 = arith.mulf %93, %97 : vector<1x16x16x2xf32>
    %99 = arith.addf %92, %98 : vector<1x16x16x2xf32>
    %c0_101 = arith.constant 0 : index
    %c1_102 = arith.constant 1 : index
    %c4_103 = arith.constant 4 : index
    %c0_104 = arith.constant 0 : index
    %100 = vector.load %arg11[%c0_101, %c1_102, %c4_103, %c0_104] : memref<1x22x22x2xf32, #tpu.memory_space<vmem>>, vector<1x16x16x2xf32>
    %c11 = arith.constant 11 : index
    %c0_105 = arith.constant 0 : index
    %c0_106 = arith.constant 0 : index
    %101 = vector.load %arg5[%c11, %c0_105, %c0_106] : memref<49x1x2xf32, #tpu.memory_space<vmem>>, vector<1x1x2xf32>
    %102 = vector.shape_cast %101 : vector<1x1x2xf32> to vector<1x2xf32>
    %103 = vector.shape_cast %102 : vector<1x2xf32> to vector<1x1x1x2xf32>
    %104 = vector.broadcast %103 : vector<1x1x1x2xf32> to vector<1x16x16x2xf32>
    %105 = arith.mulf %100, %104 : vector<1x16x16x2xf32>
    %106 = arith.addf %99, %105 : vector<1x16x16x2xf32>
    %c0_107 = arith.constant 0 : index
    %c1_108 = arith.constant 1 : index
    %c5_109 = arith.constant 5 : index
    %c0_110 = arith.constant 0 : index
    %107 = vector.load %arg11[%c0_107, %c1_108, %c5_109, %c0_110] : memref<1x22x22x2xf32, #tpu.memory_space<vmem>>, vector<1x16x16x2xf32>
    %c12 = arith.constant 12 : index
    %c0_111 = arith.constant 0 : index
    %c0_112 = arith.constant 0 : index
    %108 = vector.load %arg5[%c12, %c0_111, %c0_112] : memref<49x1x2xf32, #tpu.memory_space<vmem>>, vector<1x1x2xf32>
    %109 = vector.shape_cast %108 : vector<1x1x2xf32> to vector<1x2xf32>
    %110 = vector.shape_cast %109 : vector<1x2xf32> to vector<1x1x1x2xf32>
    %111 = vector.broadcast %110 : vector<1x1x1x2xf32> to vector<1x16x16x2xf32>
    %112 = arith.mulf %107, %111 : vector<1x16x16x2xf32>
    %113 = arith.addf %106, %112 : vector<1x16x16x2xf32>
    %c0_113 = arith.constant 0 : index
    %c1_114 = arith.constant 1 : index
    %c6_115 = arith.constant 6 : index
    %c0_116 = arith.constant 0 : index
    %114 = vector.load %arg11[%c0_113, %c1_114, %c6_115, %c0_116] : memref<1x22x22x2xf32, #tpu.memory_space<vmem>>, vector<1x16x16x2xf32>
    %c13 = arith.constant 13 : index
    %c0_117 = arith.constant 0 : index
    %c0_118 = arith.constant 0 : index
    %115 = vector.load %arg5[%c13, %c0_117, %c0_118] : memref<49x1x2xf32, #tpu.memory_space<vmem>>, vector<1x1x2xf32>
    %116 = vector.shape_cast %115 : vector<1x1x2xf32> to vector<1x2xf32>
    %117 = vector.shape_cast %116 : vector<1x2xf32> to vector<1x1x1x2xf32>
    %118 = vector.broadcast %117 : vector<1x1x1x2xf32> to vector<1x16x16x2xf32>
    %119 = arith.mulf %114, %118 : vector<1x16x16x2xf32>
    %120 = arith.addf %113, %119 : vector<1x16x16x2xf32>
    %c0_119 = arith.constant 0 : index
    %c2_120 = arith.constant 2 : index
    %c0_121 = arith.constant 0 : index
    %c0_122 = arith.constant 0 : index
    %121 = vector.load %arg11[%c0_119, %c2_120, %c0_121, %c0_122] : memref<1x22x22x2xf32, #tpu.memory_space<vmem>>, vector<1x16x16x2xf32>
    %c14 = arith.constant 14 : index
    %c0_123 = arith.constant 0 : index
    %c0_124 = arith.constant 0 : index
    %122 = vector.load %arg5[%c14, %c0_123, %c0_124] : memref<49x1x2xf32, #tpu.memory_space<vmem>>, vector<1x1x2xf32>
    %123 = vector.shape_cast %122 : vector<1x1x2xf32> to vector<1x2xf32>
    %124 = vector.shape_cast %123 : vector<1x2xf32> to vector<1x1x1x2xf32>
    %125 = vector.broadcast %124 : vector<1x1x1x2xf32> to vector<1x16x16x2xf32>
    %126 = arith.mulf %121, %125 : vector<1x16x16x2xf32>
    %127 = arith.addf %120, %126 : vector<1x16x16x2xf32>
    %c0_125 = arith.constant 0 : index
    %c2_126 = arith.constant 2 : index
    %c1_127 = arith.constant 1 : index
    %c0_128 = arith.constant 0 : index
    %128 = vector.load %arg11[%c0_125, %c2_126, %c1_127, %c0_128] : memref<1x22x22x2xf32, #tpu.memory_space<vmem>>, vector<1x16x16x2xf32>
    %c15 = arith.constant 15 : index
    %c0_129 = arith.constant 0 : index
    %c0_130 = arith.constant 0 : index
    %129 = vector.load %arg5[%c15, %c0_129, %c0_130] : memref<49x1x2xf32, #tpu.memory_space<vmem>>, vector<1x1x2xf32>
    %130 = vector.shape_cast %129 : vector<1x1x2xf32> to vector<1x2xf32>
    %131 = vector.shape_cast %130 : vector<1x2xf32> to vector<1x1x1x2xf32>
    %132 = vector.broadcast %131 : vector<1x1x1x2xf32> to vector<1x16x16x2xf32>
    %133 = arith.mulf %128, %132 : vector<1x16x16x2xf32>
    %134 = arith.addf %127, %133 : vector<1x16x16x2xf32>
    %c0_131 = arith.constant 0 : index
    %c2_132 = arith.constant 2 : index
    %c2_133 = arith.constant 2 : index
    %c0_134 = arith.constant 0 : index
    %135 = vector.load %arg11[%c0_131, %c2_132, %c2_133, %c0_134] : memref<1x22x22x2xf32, #tpu.memory_space<vmem>>, vector<1x16x16x2xf32>
    %c16 = arith.constant 16 : index
    %c0_135 = arith.constant 0 : index
    %c0_136 = arith.constant 0 : index
    %136 = vector.load %arg5[%c16, %c0_135, %c0_136] : memref<49x1x2xf32, #tpu.memory_space<vmem>>, vector<1x1x2xf32>
    %137 = vector.shape_cast %136 : vector<1x1x2xf32> to vector<1x2xf32>
    %138 = vector.shape_cast %137 : vector<1x2xf32> to vector<1x1x1x2xf32>
    %139 = vector.broadcast %138 : vector<1x1x1x2xf32> to vector<1x16x16x2xf32>
    %140 = arith.mulf %135, %139 : vector<1x16x16x2xf32>
    %141 = arith.addf %134, %140 : vector<1x16x16x2xf32>
    %c0_137 = arith.constant 0 : index
    %c2_138 = arith.constant 2 : index
    %c3_139 = arith.constant 3 : index
    %c0_140 = arith.constant 0 : index
    %142 = vector.load %arg11[%c0_137, %c2_138, %c3_139, %c0_140] : memref<1x22x22x2xf32, #tpu.memory_space<vmem>>, vector<1x16x16x2xf32>
    %c17 = arith.constant 17 : index
    %c0_141 = arith.constant 0 : index
    %c0_142 = arith.constant 0 : index
    %143 = vector.load %arg5[%c17, %c0_141, %c0_142] : memref<49x1x2xf32, #tpu.memory_space<vmem>>, vector<1x1x2xf32>
    %144 = vector.shape_cast %143 : vector<1x1x2xf32> to vector<1x2xf32>
    %145 = vector.shape_cast %144 : vector<1x2xf32> to vector<1x1x1x2xf32>
    %146 = vector.broadcast %145 : vector<1x1x1x2xf32> to vector<1x16x16x2xf32>
    %147 = arith.mulf %142, %146 : vector<1x16x16x2xf32>
    %148 = arith.addf %141, %147 : vector<1x16x16x2xf32>
    %c0_143 = arith.constant 0 : index
    %c2_144 = arith.constant 2 : index
    %c4_145 = arith.constant 4 : index
    %c0_146 = arith.constant 0 : index
    %149 = vector.load %arg11[%c0_143, %c2_144, %c4_145, %c0_146] : memref<1x22x22x2xf32, #tpu.memory_space<vmem>>, vector<1x16x16x2xf32>
    %c18 = arith.constant 18 : index
    %c0_147 = arith.constant 0 : index
    %c0_148 = arith.constant 0 : index
    %150 = vector.load %arg5[%c18, %c0_147, %c0_148] : memref<49x1x2xf32, #tpu.memory_space<vmem>>, vector<1x1x2xf32>
    %151 = vector.shape_cast %150 : vector<1x1x2xf32> to vector<1x2xf32>
    %152 = vector.shape_cast %151 : vector<1x2xf32> to vector<1x1x1x2xf32>
    %153 = vector.broadcast %152 : vector<1x1x1x2xf32> to vector<1x16x16x2xf32>
    %154 = arith.mulf %149, %153 : vector<1x16x16x2xf32>
    %155 = arith.addf %148, %154 : vector<1x16x16x2xf32>
    %c0_149 = arith.constant 0 : index
    %c2_150 = arith.constant 2 : index
    %c5_151 = arith.constant 5 : index
    %c0_152 = arith.constant 0 : index
    %156 = vector.load %arg11[%c0_149, %c2_150, %c5_151, %c0_152] : memref<1x22x22x2xf32, #tpu.memory_space<vmem>>, vector<1x16x16x2xf32>
    %c19_153 = arith.constant 19 : index
    %c0_154 = arith.constant 0 : index
    %c0_155 = arith.constant 0 : index
    %157 = vector.load %arg5[%c19_153, %c0_154, %c0_155] : memref<49x1x2xf32, #tpu.memory_space<vmem>>, vector<1x1x2xf32>
    %158 = vector.shape_cast %157 : vector<1x1x2xf32> to vector<1x2xf32>
    %159 = vector.shape_cast %158 : vector<1x2xf32> to vector<1x1x1x2xf32>
    %160 = vector.broadcast %159 : vector<1x1x1x2xf32> to vector<1x16x16x2xf32>
    %161 = arith.mulf %156, %160 : vector<1x16x16x2xf32>
    %162 = arith.addf %155, %161 : vector<1x16x16x2xf32>
    %c0_156 = arith.constant 0 : index
    %c2_157 = arith.constant 2 : index
    %c6_158 = arith.constant 6 : index
    %c0_159 = arith.constant 0 : index
    %163 = vector.load %arg11[%c0_156, %c2_157, %c6_158, %c0_159] : memref<1x22x22x2xf32, #tpu.memory_space<vmem>>, vector<1x16x16x2xf32>
    %c20 = arith.constant 20 : index
    %c0_160 = arith.constant 0 : index
    %c0_161 = arith.constant 0 : index
    %164 = vector.load %arg5[%c20, %c0_160, %c0_161] : memref<49x1x2xf32, #tpu.memory_space<vmem>>, vector<1x1x2xf32>
    %165 = vector.shape_cast %164 : vector<1x1x2xf32> to vector<1x2xf32>
    %166 = vector.shape_cast %165 : vector<1x2xf32> to vector<1x1x1x2xf32>
    %167 = vector.broadcast %166 : vector<1x1x1x2xf32> to vector<1x16x16x2xf32>
    %168 = arith.mulf %163, %167 : vector<1x16x16x2xf32>
    %169 = arith.addf %162, %168 : vector<1x16x16x2xf32>
    %c0_162 = arith.constant 0 : index
    %c3_163 = arith.constant 3 : index
    %c0_164 = arith.constant 0 : index
    %c0_165 = arith.constant 0 : index
    %170 = vector.load %arg11[%c0_162, %c3_163, %c0_164, %c0_165] : memref<1x22x22x2xf32, #tpu.memory_space<vmem>>, vector<1x16x16x2xf32>
    %c21 = arith.constant 21 : index
    %c0_166 = arith.constant 0 : index
    %c0_167 = arith.constant 0 : index
    %171 = vector.load %arg5[%c21, %c0_166, %c0_167] : memref<49x1x2xf32, #tpu.memory_space<vmem>>, vector<1x1x2xf32>
    %172 = vector.shape_cast %171 : vector<1x1x2xf32> to vector<1x2xf32>
    %173 = vector.shape_cast %172 : vector<1x2xf32> to vector<1x1x1x2xf32>
    %174 = vector.broadcast %173 : vector<1x1x1x2xf32> to vector<1x16x16x2xf32>
    %175 = arith.mulf %170, %174 : vector<1x16x16x2xf32>
    %176 = arith.addf %169, %175 : vector<1x16x16x2xf32>
    %c0_168 = arith.constant 0 : index
    %c3_169 = arith.constant 3 : index
    %c1_170 = arith.constant 1 : index
    %c0_171 = arith.constant 0 : index
    %177 = vector.load %arg11[%c0_168, %c3_169, %c1_170, %c0_171] : memref<1x22x22x2xf32, #tpu.memory_space<vmem>>, vector<1x16x16x2xf32>
    %c22 = arith.constant 22 : index
    %c0_172 = arith.constant 0 : index
    %c0_173 = arith.constant 0 : index
    %178 = vector.load %arg5[%c22, %c0_172, %c0_173] : memref<49x1x2xf32, #tpu.memory_space<vmem>>, vector<1x1x2xf32>
    %179 = vector.shape_cast %178 : vector<1x1x2xf32> to vector<1x2xf32>
    %180 = vector.shape_cast %179 : vector<1x2xf32> to vector<1x1x1x2xf32>
    %181 = vector.broadcast %180 : vector<1x1x1x2xf32> to vector<1x16x16x2xf32>
    %182 = arith.mulf %177, %181 : vector<1x16x16x2xf32>
    %183 = arith.addf %176, %182 : vector<1x16x16x2xf32>
    %c0_174 = arith.constant 0 : index
    %c3_175 = arith.constant 3 : index
    %c2_176 = arith.constant 2 : index
    %c0_177 = arith.constant 0 : index
    %184 = vector.load %arg11[%c0_174, %c3_175, %c2_176, %c0_177] : memref<1x22x22x2xf32, #tpu.memory_space<vmem>>, vector<1x16x16x2xf32>
    %c23 = arith.constant 23 : index
    %c0_178 = arith.constant 0 : index
    %c0_179 = arith.constant 0 : index
    %185 = vector.load %arg5[%c23, %c0_178, %c0_179] : memref<49x1x2xf32, #tpu.memory_space<vmem>>, vector<1x1x2xf32>
    %186 = vector.shape_cast %185 : vector<1x1x2xf32> to vector<1x2xf32>
    %187 = vector.shape_cast %186 : vector<1x2xf32> to vector<1x1x1x2xf32>
    %188 = vector.broadcast %187 : vector<1x1x1x2xf32> to vector<1x16x16x2xf32>
    %189 = arith.mulf %184, %188 : vector<1x16x16x2xf32>
    %190 = arith.addf %183, %189 : vector<1x16x16x2xf32>
    %c0_180 = arith.constant 0 : index
    %c3_181 = arith.constant 3 : index
    %c3_182 = arith.constant 3 : index
    %c0_183 = arith.constant 0 : index
    %191 = vector.load %arg11[%c0_180, %c3_181, %c3_182, %c0_183] : memref<1x22x22x2xf32, #tpu.memory_space<vmem>>, vector<1x16x16x2xf32>
    %c24 = arith.constant 24 : index
    %c0_184 = arith.constant 0 : index
    %c0_185 = arith.constant 0 : index
    %192 = vector.load %arg5[%c24, %c0_184, %c0_185] : memref<49x1x2xf32, #tpu.memory_space<vmem>>, vector<1x1x2xf32>
    %193 = vector.shape_cast %192 : vector<1x1x2xf32> to vector<1x2xf32>
    %194 = vector.shape_cast %193 : vector<1x2xf32> to vector<1x1x1x2xf32>
    %195 = vector.broadcast %194 : vector<1x1x1x2xf32> to vector<1x16x16x2xf32>
    %196 = arith.mulf %191, %195 : vector<1x16x16x2xf32>
    %197 = arith.addf %190, %196 : vector<1x16x16x2xf32>
    %c0_186 = arith.constant 0 : index
    %c3_187 = arith.constant 3 : index
    %c4_188 = arith.constant 4 : index
    %c0_189 = arith.constant 0 : index
    %198 = vector.load %arg11[%c0_186, %c3_187, %c4_188, %c0_189] : memref<1x22x22x2xf32, #tpu.memory_space<vmem>>, vector<1x16x16x2xf32>
    %c25 = arith.constant 25 : index
    %c0_190 = arith.constant 0 : index
    %c0_191 = arith.constant 0 : index
    %199 = vector.load %arg5[%c25, %c0_190, %c0_191] : memref<49x1x2xf32, #tpu.memory_space<vmem>>, vector<1x1x2xf32>
    %200 = vector.shape_cast %199 : vector<1x1x2xf32> to vector<1x2xf32>
    %201 = vector.shape_cast %200 : vector<1x2xf32> to vector<1x1x1x2xf32>
    %202 = vector.broadcast %201 : vector<1x1x1x2xf32> to vector<1x16x16x2xf32>
    %203 = arith.mulf %198, %202 : vector<1x16x16x2xf32>
    %204 = arith.addf %197, %203 : vector<1x16x16x2xf32>
    %c0_192 = arith.constant 0 : index
    %c3_193 = arith.constant 3 : index
    %c5_194 = arith.constant 5 : index
    %c0_195 = arith.constant 0 : index
    %205 = vector.load %arg11[%c0_192, %c3_193, %c5_194, %c0_195] : memref<1x22x22x2xf32, #tpu.memory_space<vmem>>, vector<1x16x16x2xf32>
    %c26 = arith.constant 26 : index
    %c0_196 = arith.constant 0 : index
    %c0_197 = arith.constant 0 : index
    %206 = vector.load %arg5[%c26, %c0_196, %c0_197] : memref<49x1x2xf32, #tpu.memory_space<vmem>>, vector<1x1x2xf32>
    %207 = vector.shape_cast %206 : vector<1x1x2xf32> to vector<1x2xf32>
    %208 = vector.shape_cast %207 : vector<1x2xf32> to vector<1x1x1x2xf32>
    %209 = vector.broadcast %208 : vector<1x1x1x2xf32> to vector<1x16x16x2xf32>
    %210 = arith.mulf %205, %209 : vector<1x16x16x2xf32>
    %211 = arith.addf %204, %210 : vector<1x16x16x2xf32>
    %c0_198 = arith.constant 0 : index
    %c3_199 = arith.constant 3 : index
    %c6_200 = arith.constant 6 : index
    %c0_201 = arith.constant 0 : index
    %212 = vector.load %arg11[%c0_198, %c3_199, %c6_200, %c0_201] : memref<1x22x22x2xf32, #tpu.memory_space<vmem>>, vector<1x16x16x2xf32>
    %c27 = arith.constant 27 : index
    %c0_202 = arith.constant 0 : index
    %c0_203 = arith.constant 0 : index
    %213 = vector.load %arg5[%c27, %c0_202, %c0_203] : memref<49x1x2xf32, #tpu.memory_space<vmem>>, vector<1x1x2xf32>
    %214 = vector.shape_cast %213 : vector<1x1x2xf32> to vector<1x2xf32>
    %215 = vector.shape_cast %214 : vector<1x2xf32> to vector<1x1x1x2xf32>
    %216 = vector.broadcast %215 : vector<1x1x1x2xf32> to vector<1x16x16x2xf32>
    %217 = arith.mulf %212, %216 : vector<1x16x16x2xf32>
    %218 = arith.addf %211, %217 : vector<1x16x16x2xf32>
    %c0_204 = arith.constant 0 : index
    %c4_205 = arith.constant 4 : index
    %c0_206 = arith.constant 0 : index
    %c0_207 = arith.constant 0 : index
    %219 = vector.load %arg11[%c0_204, %c4_205, %c0_206, %c0_207] : memref<1x22x22x2xf32, #tpu.memory_space<vmem>>, vector<1x16x16x2xf32>
    %c28 = arith.constant 28 : index
    %c0_208 = arith.constant 0 : index
    %c0_209 = arith.constant 0 : index
    %220 = vector.load %arg5[%c28, %c0_208, %c0_209] : memref<49x1x2xf32, #tpu.memory_space<vmem>>, vector<1x1x2xf32>
    %221 = vector.shape_cast %220 : vector<1x1x2xf32> to vector<1x2xf32>
    %222 = vector.shape_cast %221 : vector<1x2xf32> to vector<1x1x1x2xf32>
    %223 = vector.broadcast %222 : vector<1x1x1x2xf32> to vector<1x16x16x2xf32>
    %224 = arith.mulf %219, %223 : vector<1x16x16x2xf32>
    %225 = arith.addf %218, %224 : vector<1x16x16x2xf32>
    %c0_210 = arith.constant 0 : index
    %c4_211 = arith.constant 4 : index
    %c1_212 = arith.constant 1 : index
    %c0_213 = arith.constant 0 : index
    %226 = vector.load %arg11[%c0_210, %c4_211, %c1_212, %c0_213] : memref<1x22x22x2xf32, #tpu.memory_space<vmem>>, vector<1x16x16x2xf32>
    %c29 = arith.constant 29 : index
    %c0_214 = arith.constant 0 : index
    %c0_215 = arith.constant 0 : index
    %227 = vector.load %arg5[%c29, %c0_214, %c0_215] : memref<49x1x2xf32, #tpu.memory_space<vmem>>, vector<1x1x2xf32>
    %228 = vector.shape_cast %227 : vector<1x1x2xf32> to vector<1x2xf32>
    %229 = vector.shape_cast %228 : vector<1x2xf32> to vector<1x1x1x2xf32>
    %230 = vector.broadcast %229 : vector<1x1x1x2xf32> to vector<1x16x16x2xf32>
    %231 = arith.mulf %226, %230 : vector<1x16x16x2xf32>
    %232 = arith.addf %225, %231 : vector<1x16x16x2xf32>
    %c0_216 = arith.constant 0 : index
    %c4_217 = arith.constant 4 : index
    %c2_218 = arith.constant 2 : index
    %c0_219 = arith.constant 0 : index
    %233 = vector.load %arg11[%c0_216, %c4_217, %c2_218, %c0_219] : memref<1x22x22x2xf32, #tpu.memory_space<vmem>>, vector<1x16x16x2xf32>
    %c30 = arith.constant 30 : index
    %c0_220 = arith.constant 0 : index
    %c0_221 = arith.constant 0 : index
    %234 = vector.load %arg5[%c30, %c0_220, %c0_221] : memref<49x1x2xf32, #tpu.memory_space<vmem>>, vector<1x1x2xf32>
    %235 = vector.shape_cast %234 : vector<1x1x2xf32> to vector<1x2xf32>
    %236 = vector.shape_cast %235 : vector<1x2xf32> to vector<1x1x1x2xf32>
    %237 = vector.broadcast %236 : vector<1x1x1x2xf32> to vector<1x16x16x2xf32>
    %238 = arith.mulf %233, %237 : vector<1x16x16x2xf32>
    %239 = arith.addf %232, %238 : vector<1x16x16x2xf32>
    %c0_222 = arith.constant 0 : index
    %c4_223 = arith.constant 4 : index
    %c3_224 = arith.constant 3 : index
    %c0_225 = arith.constant 0 : index
    %240 = vector.load %arg11[%c0_222, %c4_223, %c3_224, %c0_225] : memref<1x22x22x2xf32, #tpu.memory_space<vmem>>, vector<1x16x16x2xf32>
    %c31 = arith.constant 31 : index
    %c0_226 = arith.constant 0 : index
    %c0_227 = arith.constant 0 : index
    %241 = vector.load %arg5[%c31, %c0_226, %c0_227] : memref<49x1x2xf32, #tpu.memory_space<vmem>>, vector<1x1x2xf32>
    %242 = vector.shape_cast %241 : vector<1x1x2xf32> to vector<1x2xf32>
    %243 = vector.shape_cast %242 : vector<1x2xf32> to vector<1x1x1x2xf32>
    %244 = vector.broadcast %243 : vector<1x1x1x2xf32> to vector<1x16x16x2xf32>
    %245 = arith.mulf %240, %244 : vector<1x16x16x2xf32>
    %246 = arith.addf %239, %245 : vector<1x16x16x2xf32>
    %c0_228 = arith.constant 0 : index
    %c4_229 = arith.constant 4 : index
    %c4_230 = arith.constant 4 : index
    %c0_231 = arith.constant 0 : index
    %247 = vector.load %arg11[%c0_228, %c4_229, %c4_230, %c0_231] : memref<1x22x22x2xf32, #tpu.memory_space<vmem>>, vector<1x16x16x2xf32>
    %c32 = arith.constant 32 : index
    %c0_232 = arith.constant 0 : index
    %c0_233 = arith.constant 0 : index
    %248 = vector.load %arg5[%c32, %c0_232, %c0_233] : memref<49x1x2xf32, #tpu.memory_space<vmem>>, vector<1x1x2xf32>
    %249 = vector.shape_cast %248 : vector<1x1x2xf32> to vector<1x2xf32>
    %250 = vector.shape_cast %249 : vector<1x2xf32> to vector<1x1x1x2xf32>
    %251 = vector.broadcast %250 : vector<1x1x1x2xf32> to vector<1x16x16x2xf32>
    %252 = arith.mulf %247, %251 : vector<1x16x16x2xf32>
    %253 = arith.addf %246, %252 : vector<1x16x16x2xf32>
    %c0_234 = arith.constant 0 : index
    %c4_235 = arith.constant 4 : index
    %c5_236 = arith.constant 5 : index
    %c0_237 = arith.constant 0 : index
    %254 = vector.load %arg11[%c0_234, %c4_235, %c5_236, %c0_237] : memref<1x22x22x2xf32, #tpu.memory_space<vmem>>, vector<1x16x16x2xf32>
    %c33 = arith.constant 33 : index
    %c0_238 = arith.constant 0 : index
    %c0_239 = arith.constant 0 : index
    %255 = vector.load %arg5[%c33, %c0_238, %c0_239] : memref<49x1x2xf32, #tpu.memory_space<vmem>>, vector<1x1x2xf32>
    %256 = vector.shape_cast %255 : vector<1x1x2xf32> to vector<1x2xf32>
    %257 = vector.shape_cast %256 : vector<1x2xf32> to vector<1x1x1x2xf32>
    %258 = vector.broadcast %257 : vector<1x1x1x2xf32> to vector<1x16x16x2xf32>
    %259 = arith.mulf %254, %258 : vector<1x16x16x2xf32>
    %260 = arith.addf %253, %259 : vector<1x16x16x2xf32>
    %c0_240 = arith.constant 0 : index
    %c4_241 = arith.constant 4 : index
    %c6_242 = arith.constant 6 : index
    %c0_243 = arith.constant 0 : index
    %261 = vector.load %arg11[%c0_240, %c4_241, %c6_242, %c0_243] : memref<1x22x22x2xf32, #tpu.memory_space<vmem>>, vector<1x16x16x2xf32>
    %c34 = arith.constant 34 : index
    %c0_244 = arith.constant 0 : index
    %c0_245 = arith.constant 0 : index
    %262 = vector.load %arg5[%c34, %c0_244, %c0_245] : memref<49x1x2xf32, #tpu.memory_space<vmem>>, vector<1x1x2xf32>
    %263 = vector.shape_cast %262 : vector<1x1x2xf32> to vector<1x2xf32>
    %264 = vector.shape_cast %263 : vector<1x2xf32> to vector<1x1x1x2xf32>
    %265 = vector.broadcast %264 : vector<1x1x1x2xf32> to vector<1x16x16x2xf32>
    %266 = arith.mulf %261, %265 : vector<1x16x16x2xf32>
    %267 = arith.addf %260, %266 : vector<1x16x16x2xf32>
    %c0_246 = arith.constant 0 : index
    %c5_247 = arith.constant 5 : index
    %c0_248 = arith.constant 0 : index
    %c0_249 = arith.constant 0 : index
    %268 = vector.load %arg11[%c0_246, %c5_247, %c0_248, %c0_249] : memref<1x22x22x2xf32, #tpu.memory_space<vmem>>, vector<1x16x16x2xf32>
    %c35 = arith.constant 35 : index
    %c0_250 = arith.constant 0 : index
    %c0_251 = arith.constant 0 : index
    %269 = vector.load %arg5[%c35, %c0_250, %c0_251] : memref<49x1x2xf32, #tpu.memory_space<vmem>>, vector<1x1x2xf32>
    %270 = vector.shape_cast %269 : vector<1x1x2xf32> to vector<1x2xf32>
    %271 = vector.shape_cast %270 : vector<1x2xf32> to vector<1x1x1x2xf32>
    %272 = vector.broadcast %271 : vector<1x1x1x2xf32> to vector<1x16x16x2xf32>
    %273 = arith.mulf %268, %272 : vector<1x16x16x2xf32>
    %274 = arith.addf %267, %273 : vector<1x16x16x2xf32>
    %c0_252 = arith.constant 0 : index
    %c5_253 = arith.constant 5 : index
    %c1_254 = arith.constant 1 : index
    %c0_255 = arith.constant 0 : index
    %275 = vector.load %arg11[%c0_252, %c5_253, %c1_254, %c0_255] : memref<1x22x22x2xf32, #tpu.memory_space<vmem>>, vector<1x16x16x2xf32>
    %c36 = arith.constant 36 : index
    %c0_256 = arith.constant 0 : index
    %c0_257 = arith.constant 0 : index
    %276 = vector.load %arg5[%c36, %c0_256, %c0_257] : memref<49x1x2xf32, #tpu.memory_space<vmem>>, vector<1x1x2xf32>
    %277 = vector.shape_cast %276 : vector<1x1x2xf32> to vector<1x2xf32>
    %278 = vector.shape_cast %277 : vector<1x2xf32> to vector<1x1x1x2xf32>
    %279 = vector.broadcast %278 : vector<1x1x1x2xf32> to vector<1x16x16x2xf32>
    %280 = arith.mulf %275, %279 : vector<1x16x16x2xf32>
    %281 = arith.addf %274, %280 : vector<1x16x16x2xf32>
    %c0_258 = arith.constant 0 : index
    %c5_259 = arith.constant 5 : index
    %c2_260 = arith.constant 2 : index
    %c0_261 = arith.constant 0 : index
    %282 = vector.load %arg11[%c0_258, %c5_259, %c2_260, %c0_261] : memref<1x22x22x2xf32, #tpu.memory_space<vmem>>, vector<1x16x16x2xf32>
    %c37 = arith.constant 37 : index
    %c0_262 = arith.constant 0 : index
    %c0_263 = arith.constant 0 : index
    %283 = vector.load %arg5[%c37, %c0_262, %c0_263] : memref<49x1x2xf32, #tpu.memory_space<vmem>>, vector<1x1x2xf32>
    %284 = vector.shape_cast %283 : vector<1x1x2xf32> to vector<1x2xf32>
    %285 = vector.shape_cast %284 : vector<1x2xf32> to vector<1x1x1x2xf32>
    %286 = vector.broadcast %285 : vector<1x1x1x2xf32> to vector<1x16x16x2xf32>
    %287 = arith.mulf %282, %286 : vector<1x16x16x2xf32>
    %288 = arith.addf %281, %287 : vector<1x16x16x2xf32>
    %c0_264 = arith.constant 0 : index
    %c5_265 = arith.constant 5 : index
    %c3_266 = arith.constant 3 : index
    %c0_267 = arith.constant 0 : index
    %289 = vector.load %arg11[%c0_264, %c5_265, %c3_266, %c0_267] : memref<1x22x22x2xf32, #tpu.memory_space<vmem>>, vector<1x16x16x2xf32>
    %c38 = arith.constant 38 : index
    %c0_268 = arith.constant 0 : index
    %c0_269 = arith.constant 0 : index
    %290 = vector.load %arg5[%c38, %c0_268, %c0_269] : memref<49x1x2xf32, #tpu.memory_space<vmem>>, vector<1x1x2xf32>
    %291 = vector.shape_cast %290 : vector<1x1x2xf32> to vector<1x2xf32>
    %292 = vector.shape_cast %291 : vector<1x2xf32> to vector<1x1x1x2xf32>
    %293 = vector.broadcast %292 : vector<1x1x1x2xf32> to vector<1x16x16x2xf32>
    %294 = arith.mulf %289, %293 : vector<1x16x16x2xf32>
    %295 = arith.addf %288, %294 : vector<1x16x16x2xf32>
    %c0_270 = arith.constant 0 : index
    %c5_271 = arith.constant 5 : index
    %c4_272 = arith.constant 4 : index
    %c0_273 = arith.constant 0 : index
    %296 = vector.load %arg11[%c0_270, %c5_271, %c4_272, %c0_273] : memref<1x22x22x2xf32, #tpu.memory_space<vmem>>, vector<1x16x16x2xf32>
    %c39 = arith.constant 39 : index
    %c0_274 = arith.constant 0 : index
    %c0_275 = arith.constant 0 : index
    %297 = vector.load %arg5[%c39, %c0_274, %c0_275] : memref<49x1x2xf32, #tpu.memory_space<vmem>>, vector<1x1x2xf32>
    %298 = vector.shape_cast %297 : vector<1x1x2xf32> to vector<1x2xf32>
    %299 = vector.shape_cast %298 : vector<1x2xf32> to vector<1x1x1x2xf32>
    %300 = vector.broadcast %299 : vector<1x1x1x2xf32> to vector<1x16x16x2xf32>
    %301 = arith.mulf %296, %300 : vector<1x16x16x2xf32>
    %302 = arith.addf %295, %301 : vector<1x16x16x2xf32>
    %c0_276 = arith.constant 0 : index
    %c5_277 = arith.constant 5 : index
    %c5_278 = arith.constant 5 : index
    %c0_279 = arith.constant 0 : index
    %303 = vector.load %arg11[%c0_276, %c5_277, %c5_278, %c0_279] : memref<1x22x22x2xf32, #tpu.memory_space<vmem>>, vector<1x16x16x2xf32>
    %c40 = arith.constant 40 : index
    %c0_280 = arith.constant 0 : index
    %c0_281 = arith.constant 0 : index
    %304 = vector.load %arg5[%c40, %c0_280, %c0_281] : memref<49x1x2xf32, #tpu.memory_space<vmem>>, vector<1x1x2xf32>
    %305 = vector.shape_cast %304 : vector<1x1x2xf32> to vector<1x2xf32>
    %306 = vector.shape_cast %305 : vector<1x2xf32> to vector<1x1x1x2xf32>
    %307 = vector.broadcast %306 : vector<1x1x1x2xf32> to vector<1x16x16x2xf32>
    %308 = arith.mulf %303, %307 : vector<1x16x16x2xf32>
    %309 = arith.addf %302, %308 : vector<1x16x16x2xf32>
    %c0_282 = arith.constant 0 : index
    %c5_283 = arith.constant 5 : index
    %c6_284 = arith.constant 6 : index
    %c0_285 = arith.constant 0 : index
    %310 = vector.load %arg11[%c0_282, %c5_283, %c6_284, %c0_285] : memref<1x22x22x2xf32, #tpu.memory_space<vmem>>, vector<1x16x16x2xf32>
    %c41 = arith.constant 41 : index
    %c0_286 = arith.constant 0 : index
    %c0_287 = arith.constant 0 : index
    %311 = vector.load %arg5[%c41, %c0_286, %c0_287] : memref<49x1x2xf32, #tpu.memory_space<vmem>>, vector<1x1x2xf32>
    %312 = vector.shape_cast %311 : vector<1x1x2xf32> to vector<1x2xf32>
    %313 = vector.shape_cast %312 : vector<1x2xf32> to vector<1x1x1x2xf32>
    %314 = vector.broadcast %313 : vector<1x1x1x2xf32> to vector<1x16x16x2xf32>
    %315 = arith.mulf %310, %314 : vector<1x16x16x2xf32>
    %316 = arith.addf %309, %315 : vector<1x16x16x2xf32>
    %c0_288 = arith.constant 0 : index
    %c6_289 = arith.constant 6 : index
    %c0_290 = arith.constant 0 : index
    %c0_291 = arith.constant 0 : index
    %317 = vector.load %arg11[%c0_288, %c6_289, %c0_290, %c0_291] : memref<1x22x22x2xf32, #tpu.memory_space<vmem>>, vector<1x16x16x2xf32>
    %c42 = arith.constant 42 : index
    %c0_292 = arith.constant 0 : index
    %c0_293 = arith.constant 0 : index
    %318 = vector.load %arg5[%c42, %c0_292, %c0_293] : memref<49x1x2xf32, #tpu.memory_space<vmem>>, vector<1x1x2xf32>
    %319 = vector.shape_cast %318 : vector<1x1x2xf32> to vector<1x2xf32>
    %320 = vector.shape_cast %319 : vector<1x2xf32> to vector<1x1x1x2xf32>
    %321 = vector.broadcast %320 : vector<1x1x1x2xf32> to vector<1x16x16x2xf32>
    %322 = arith.mulf %317, %321 : vector<1x16x16x2xf32>
    %323 = arith.addf %316, %322 : vector<1x16x16x2xf32>
    %c0_294 = arith.constant 0 : index
    %c6_295 = arith.constant 6 : index
    %c1_296 = arith.constant 1 : index
    %c0_297 = arith.constant 0 : index
    %324 = vector.load %arg11[%c0_294, %c6_295, %c1_296, %c0_297] : memref<1x22x22x2xf32, #tpu.memory_space<vmem>>, vector<1x16x16x2xf32>
    %c43 = arith.constant 43 : index
    %c0_298 = arith.constant 0 : index
    %c0_299 = arith.constant 0 : index
    %325 = vector.load %arg5[%c43, %c0_298, %c0_299] : memref<49x1x2xf32, #tpu.memory_space<vmem>>, vector<1x1x2xf32>
    %326 = vector.shape_cast %325 : vector<1x1x2xf32> to vector<1x2xf32>
    %327 = vector.shape_cast %326 : vector<1x2xf32> to vector<1x1x1x2xf32>
    %328 = vector.broadcast %327 : vector<1x1x1x2xf32> to vector<1x16x16x2xf32>
    %329 = arith.mulf %324, %328 : vector<1x16x16x2xf32>
    %330 = arith.addf %323, %329 : vector<1x16x16x2xf32>
    %c0_300 = arith.constant 0 : index
    %c6_301 = arith.constant 6 : index
    %c2_302 = arith.constant 2 : index
    %c0_303 = arith.constant 0 : index
    %331 = vector.load %arg11[%c0_300, %c6_301, %c2_302, %c0_303] : memref<1x22x22x2xf32, #tpu.memory_space<vmem>>, vector<1x16x16x2xf32>
    %c44 = arith.constant 44 : index
    %c0_304 = arith.constant 0 : index
    %c0_305 = arith.constant 0 : index
    %332 = vector.load %arg5[%c44, %c0_304, %c0_305] : memref<49x1x2xf32, #tpu.memory_space<vmem>>, vector<1x1x2xf32>
    %333 = vector.shape_cast %332 : vector<1x1x2xf32> to vector<1x2xf32>
    %334 = vector.shape_cast %333 : vector<1x2xf32> to vector<1x1x1x2xf32>
    %335 = vector.broadcast %334 : vector<1x1x1x2xf32> to vector<1x16x16x2xf32>
    %336 = arith.mulf %331, %335 : vector<1x16x16x2xf32>
    %337 = arith.addf %330, %336 : vector<1x16x16x2xf32>
    %c0_306 = arith.constant 0 : index
    %c6_307 = arith.constant 6 : index
    %c3_308 = arith.constant 3 : index
    %c0_309 = arith.constant 0 : index
    %338 = vector.load %arg11[%c0_306, %c6_307, %c3_308, %c0_309] : memref<1x22x22x2xf32, #tpu.memory_space<vmem>>, vector<1x16x16x2xf32>
    %c45 = arith.constant 45 : index
    %c0_310 = arith.constant 0 : index
    %c0_311 = arith.constant 0 : index
    %339 = vector.load %arg5[%c45, %c0_310, %c0_311] : memref<49x1x2xf32, #tpu.memory_space<vmem>>, vector<1x1x2xf32>
    %340 = vector.shape_cast %339 : vector<1x1x2xf32> to vector<1x2xf32>
    %341 = vector.shape_cast %340 : vector<1x2xf32> to vector<1x1x1x2xf32>
    %342 = vector.broadcast %341 : vector<1x1x1x2xf32> to vector<1x16x16x2xf32>
    %343 = arith.mulf %338, %342 : vector<1x16x16x2xf32>
    %344 = arith.addf %337, %343 : vector<1x16x16x2xf32>
    %c0_312 = arith.constant 0 : index
    %c6_313 = arith.constant 6 : index
    %c4_314 = arith.constant 4 : index
    %c0_315 = arith.constant 0 : index
    %345 = vector.load %arg11[%c0_312, %c6_313, %c4_314, %c0_315] : memref<1x22x22x2xf32, #tpu.memory_space<vmem>>, vector<1x16x16x2xf32>
    %c46 = arith.constant 46 : index
    %c0_316 = arith.constant 0 : index
    %c0_317 = arith.constant 0 : index
    %346 = vector.load %arg5[%c46, %c0_316, %c0_317] : memref<49x1x2xf32, #tpu.memory_space<vmem>>, vector<1x1x2xf32>
    %347 = vector.shape_cast %346 : vector<1x1x2xf32> to vector<1x2xf32>
    %348 = vector.shape_cast %347 : vector<1x2xf32> to vector<1x1x1x2xf32>
    %349 = vector.broadcast %348 : vector<1x1x1x2xf32> to vector<1x16x16x2xf32>
    %350 = arith.mulf %345, %349 : vector<1x16x16x2xf32>
    %351 = arith.addf %344, %350 : vector<1x16x16x2xf32>
    %c0_318 = arith.constant 0 : index
    %c6_319 = arith.constant 6 : index
    %c5_320 = arith.constant 5 : index
    %c0_321 = arith.constant 0 : index
    %352 = vector.load %arg11[%c0_318, %c6_319, %c5_320, %c0_321] : memref<1x22x22x2xf32, #tpu.memory_space<vmem>>, vector<1x16x16x2xf32>
    %c47 = arith.constant 47 : index
    %c0_322 = arith.constant 0 : index
    %c0_323 = arith.constant 0 : index
    %353 = vector.load %arg5[%c47, %c0_322, %c0_323] : memref<49x1x2xf32, #tpu.memory_space<vmem>>, vector<1x1x2xf32>
    %354 = vector.shape_cast %353 : vector<1x1x2xf32> to vector<1x2xf32>
    %355 = vector.shape_cast %354 : vector<1x2xf32> to vector<1x1x1x2xf32>
    %356 = vector.broadcast %355 : vector<1x1x1x2xf32> to vector<1x16x16x2xf32>
    %357 = arith.mulf %352, %356 : vector<1x16x16x2xf32>
    %358 = arith.addf %351, %357 : vector<1x16x16x2xf32>
    %c0_324 = arith.constant 0 : index
    %c6_325 = arith.constant 6 : index
    %c6_326 = arith.constant 6 : index
    %c0_327 = arith.constant 0 : index
    %359 = vector.load %arg11[%c0_324, %c6_325, %c6_326, %c0_327] : memref<1x22x22x2xf32, #tpu.memory_space<vmem>>, vector<1x16x16x2xf32>
    %c48 = arith.constant 48 : index
    %c0_328 = arith.constant 0 : index
    %c0_329 = arith.constant 0 : index
    %360 = vector.load %arg5[%c48, %c0_328, %c0_329] : memref<49x1x2xf32, #tpu.memory_space<vmem>>, vector<1x1x2xf32>
    %361 = vector.shape_cast %360 : vector<1x1x2xf32> to vector<1x2xf32>
    %362 = vector.shape_cast %361 : vector<1x2xf32> to vector<1x1x1x2xf32>
    %363 = vector.broadcast %362 : vector<1x1x1x2xf32> to vector<1x16x16x2xf32>
    %364 = arith.mulf %359, %363 : vector<1x16x16x2xf32>
    %365 = arith.addf %358, %364 : vector<1x16x16x2xf32>
    %c0_330 = arith.constant 0 : index
    %c0_331 = arith.constant 0 : index
    %366 = vector.load %arg6[%c0_330, %c0_331] : memref<1x2xf32, #tpu.memory_space<vmem>>, vector<1x2xf32>
    %367 = vector.shape_cast %366 : vector<1x2xf32> to vector<1x1x1x2xf32>
    %368 = vector.broadcast %367 : vector<1x1x1x2xf32> to vector<1x16x16x2xf32>
    %369 = arith.addf %365, %368 : vector<1x16x16x2xf32>
    %370 = vector.shape_cast %369 : vector<1x16x16x2xf32> to vector<256x2xf32>
    %c0_332 = arith.constant 0 : index
    %c0_333 = arith.constant 0 : index
    %371 = vector.load %arg7[%c0_332, %c0_333] : memref<2x2xf32, #tpu.memory_space<vmem>>, vector<2x2xf32>
    %cst_334 = arith.constant dense<0.000000e+00> : vector<256x2xf32>
    %372 = tpu.matmul %370, %371, %cst_334 {dimension_numbers = #tpu.dot_dimension_numbers<[1], [0], [0], [1], [0, 0, 1, 1], [], []>} : vector<256x2xf32>, vector<2x2xf32>, vector<256x2xf32> -> vector<256x2xf32>
    %c0_335 = arith.constant 0 : index
    %c0_336 = arith.constant 0 : index
    %373 = vector.load %arg8[%c0_335, %c0_336] : memref<1x2xf32, #tpu.memory_space<vmem>>, vector<1x2xf32>
    %374 = vector.broadcast %373 : vector<1x2xf32> to vector<256x2xf32>
    %375 = arith.mulf %372, %374 : vector<256x2xf32>
    %c0_337 = arith.constant 0 : index
    %c0_338 = arith.constant 0 : index
    %376 = vector.load %arg9[%c0_337, %c0_338] : memref<1x2xf32, #tpu.memory_space<vmem>>, vector<1x2xf32>
    %377 = vector.broadcast %376 : vector<1x2xf32> to vector<256x2xf32>
    %378 = arith.addf %375, %377 : vector<256x2xf32>
    %cst_339 = arith.constant 0.000000e+00 : f32
    %379 = vector.broadcast %cst_339 : f32 to vector<256x2xf32>
    %380 = arith.maximumf %378, %379 : vector<256x2xf32>
    %381 = vector.shape_cast %380 : vector<256x2xf32> to vector<1x16x16x2xf32>
    %c0_340 = arith.constant 0 : index
    %c0_341 = arith.constant 0 : index
    %c0_342 = arith.constant 0 : index
    %c0_343 = arith.constant 0 : index
    %382 = vector.load %arg10[%c0_340, %c0_341, %c0_342, %c0_343] : memref<1x16x16x2xf32, #tpu.memory_space<vmem>>, vector<1x16x16x2xf32>
    tpu.vector_store %arg10[%c0_340, %c0_341, %c0_342, %c0_343], %381 {strides = array<i32>} : memref<1x16x16x2xf32, #tpu.memory_space<vmem>>, vector<1x16x16x2xf32>,
    return
  }
  func.func @transform_0(%arg0: i32) -> (i32, i32, i32, i32) {
    %c0_i32 = arith.constant 0 : i32
    %c0_i32_0 = arith.constant 0 : i32
    %c0_i32_1 = arith.constant 0 : i32
    %c0_i32_2 = arith.constant 0 : i32
    return %arg0, %c0_i32, %c0_i32_0, %c0_i32_1 : i32, i32, i32, i32
  }
  func.func @transform_1(%arg0: i32) -> (i32, i32) {
    %c0_i32 = arith.constant 0 : i32
    %c0_i32_0 = arith.constant 0 : i32
    %c0_i32_1 = arith.constant 0 : i32
    return %c0_i32, %c0_i32_0 : i32, i32
  }
  func.func @transform_2(%arg0: i32) -> (i32, i32) {
    %c0_i32 = arith.constant 0 : i32
    %c0_i32_0 = arith.constant 0 : i32
    %c0_i32_1 = arith.constant 0 : i32
    return %c0_i32, %c0_i32_0 : i32, i32
  }
  func.func @transform_3(%arg0: i32) -> (i32, i32) {
    %c0_i32 = arith.constant 0 : i32
    %c0_i32_0 = arith.constant 0 : i32
    %c0_i32_1 = arith.constant 0 : i32
    return %c0_i32, %c0_i32_0 : i32, i32
  }
  func.func @transform_4(%arg0: i32) -> (i32, i32, i32) {
    %c0_i32 = arith.constant 0 : i32
    %c0_i32_0 = arith.constant 0 : i32
    %c0_i32_1 = arith.constant 0 : i32
    %c0_i32_2 = arith.constant 0 : i32
    return %c0_i32, %c0_i32_0, %c0_i32_1 : i32, i32, i32
  }
  func.func @transform_5(%arg0: i32) -> (i32, i32) {
    %c0_i32 = arith.constant 0 : i32
    %c0_i32_0 = arith.constant 0 : i32
    %c0_i32_1 = arith.constant 0 : i32
    return %c0_i32, %c0_i32_0 : i32, i32
  }
  func.func @transform_6(%arg0: i32) -> (i32, i32) {
    %c0_i32 = arith.constant 0 : i32
    %c0_i32_0 = arith.constant 0 : i32
    %c0_i32_1 = arith.constant 0 : i32
    return %c0_i32, %c0_i32_0 : i32, i32
  }
  func.func @transform_7(%arg0: i32) -> (i32, i32) {
    %c0_i32 = arith.constant 0 : i32
    %c0_i32_0 = arith.constant 0 : i32
    %c0_i32_1 = arith.constant 0 : i32
    return %c0_i32, %c0_i32_0 : i32, i32
  }
  func.func @transform_8(%arg0: i32) -> (i32, i32) {
    %c0_i32 = arith.constant 0 : i32
    %c0_i32_0 = arith.constant 0 : i32
    %c0_i32_1 = arith.constant 0 : i32
    return %c0_i32, %c0_i32_0 : i32, i32
  }
  func.func @transform_9(%arg0: i32) -> (i32, i32, i32, i32) {
    %c0_i32 = arith.constant 0 : i32
    %c0_i32_0 = arith.constant 0 : i32
    %c0_i32_1 = arith.constant 0 : i32
    %c0_i32_2 = arith.constant 0 : i32
    return %arg0, %c0_i32, %c0_i32_0, %c0_i32_1 : i32, i32, i32, i32
  }
}

</mosaic_0001>

<llo_original>
// kernel: tpu_custom_call.1
$region0: #{tpu_custom_call.1}
  #allocation0 [shape = 'u32[]', space=smem, size = 0x4, offset = 0x4, fixed_abs, tag = 'smem constant byte address 0x4 - core index']
  #allocation1 [shape = 'u32[72,128]{1,0:T(1,128)}', space=vmem, size = 0x9000, scoped, tag = 'internal scratch']
  #allocation2 [shape = 'f32[1,22,22,2]{3,2,1,0:T(8,128)}', space=vmem, size = 0x42000, scoped, tag = 'scratch operand']
  %s0 = inlined_call_operand.vmem [shape: f32[2,16,16,2], index: 0, kind: input, shape index: {}]
  %s1 = inlined_call_operand.vmem [shape: f32[2,2], index: 1, kind: input, shape index: {}]
  %s2 = inlined_call_operand.vmem [shape: f32[1,2], index: 2, kind: input, shape index: {}]
  %s3 = inlined_call_operand.vmem [shape: f32[1,2], index: 3, kind: input, shape index: {}]
  %s4 = inlined_call_operand.vmem [shape: f32[49,1,2], index: 4, kind: input, shape index: {}]
  %s5 = inlined_call_operand.vmem [shape: f32[1,2], index: 5, kind: input, shape index: {}]
  %s6 = inlined_call_operand.vmem [shape: f32[2,2], index: 6, kind: input, shape index: {}]
  %s7 = inlined_call_operand.vmem [shape: f32[1,2], index: 7, kind: input, shape index: {}]
  %s8 = inlined_call_operand.vmem [shape: f32[1,2], index: 8, kind: input, shape index: {}]
  %s9 = inlined_call_operand.vmem [shape: f32[2,16,16,2], index: 9, kind: output, shape index: {}]
  %s10 = sld [smem:[#allocation0]]
  $region69: #{tpu_custom_call.1} parent=0
    _
  %s12 = ssub.s32 1, %s10
  %s13 = scalar_select 0, %s12, %s10
  loop: start=0, step=1, limit=4
  $region2: #{tpu_custom_call.1} parent=0 // loop_pre_header
    _
  $region3: #{tpu_custom_call.1} parent=0 // loop_header
    %s15 = sphi 0, %s19
    %p16 = scmp.ge.s32.totalorder %s15, 4
    %s25 = sphi 0, %s27
    %s28 = sphi 0, %s25
    %s29 = sphi 0, %s28
    %s45 = sphi 0, %s29
    %s49 = sphi 0, %s49
    %s51 = sphi 0, %s49
    %s52 = sphi 0, %s51
    %s66 = sphi 0, %s52
    %s70 = sphi 0, %s70
    %s72 = sphi 0, %s70
    %s73 = sphi 0, %s72
    %s87 = sphi 0, %s73
    %s91 = sphi 0, %s91
    %s93 = sphi 0, %s91
    %s94 = sphi 0, %s93
    %s108 = sphi 0, %s94
    %s112 = sphi 0, %s112
    %s114 = sphi 0, %s112
    %s115 = sphi 0, %s114
    %s129 = sphi 0, %s115
    %s133 = sphi 0, %s133
    %s135 = sphi 0, %s133
    %s136 = sphi 0, %s135
    %s150 = sphi 0, %s136
    %s154 = sphi 0, %s154
    %s156 = sphi 0, %s154
    %s157 = sphi 0, %s156
    %s171 = sphi 0, %s157
    %s175 = sphi 0, %s175
    %s177 = sphi 0, %s175
    %s178 = sphi 0, %s177
    %s192 = sphi 0, %s178
    %s196 = sphi 0, %s196
    %s198 = sphi 0, %s196
    %s199 = sphi 0, %s198
    %s213 = sphi 0, %s199
    %s219 = sphi 0, %s221
    %s222 = sphi 0, %s219
    %s223 = sphi 0, %s222
    %s239 = sphi 0, %s223
  $region4: #{tpu_custom_call.1} parent=0 // loop_header_branch
    %18 = sbr.rel (%p16) target = $region8
  $region5: #{tpu_custom_call.1} parent=0 // loop_body
    %s20 = ssub.s32 %s15, 1
    %s21 = ssub.s32 %s15, 2
    %s22 = sadd.s32 %s15, 1
    %s23 = ssub.s32 %s15, %s22
    %p24 = scmp.eq.s32.totalorder %s23, 0
    %s26 = sadd.s32 %s25, 1
    %s27 = scalar_select %p24, %s25, %s26
    %p30 = pneg %p24
    %p31 = scmp.eq.s32.totalorder %s15, 1
    %p32 = por %p30, %p31
    %p33 = scmp.ne.s32.totalorder %s25, %s28
    %p34 = scmp.eq.s32.totalorder %s15, 0
    %p35 = por %p33, %p34
    %p36 = scmp.ne.s32.totalorder %s25, %s28
    %p37 = scmp.eq.s32.totalorder %s20, 1
    %p38 = por %p36, %p37
    %p39 = scmp.ne.s32.totalorder %s28, %s29
    %p40 = scmp.eq.s32.totalorder %s20, 0
    %p41 = por %p39, %p40
    %p42 = scmp.ne.s32.totalorder %s28, %s29
    %p43 = scmp.eq.s32.totalorder %s21, 1
    %p44 = por %p42, %p43
    %p46 = scmp.ne.s32.totalorder %s29, %s45
    %p47 = scmp.eq.s32.totalorder %s21, 0
    %p48 = por %p46, %p47
    %s50 = sadd.s32 %s49, 1
    %p53 = scmp.eq.s32.totalorder %s15, 1
    %p54 = scmp.ne.s32.totalorder %s49, %s51
    %p55 = scmp.eq.s32.totalorder %s15, 0
    %p56 = por %p54, %p55
    %p57 = scmp.ne.s32.totalorder %s49, %s51
    %p58 = scmp.eq.s32.totalorder %s20, 1
    %p59 = por %p57, %p58
    %p60 = scmp.ne.s32.totalorder %s51, %s52
    %p61 = scmp.eq.s32.totalorder %s20, 0
    %p62 = por %p60, %p61
    %p63 = scmp.ne.s32.totalorder %s51, %s52
    %p64 = scmp.eq.s32.totalorder %s21, 1
    %p65 = por %p63, %p64
    %p67 = scmp.ne.s32.totalorder %s52, %s66
    %p68 = scmp.eq.s32.totalorder %s21, 0
    %p69 = por %p67, %p68
    %s71 = sadd.s32 %s70, 1
    %p74 = scmp.eq.s32.totalorder %s15, 1
    %p75 = scmp.ne.s32.totalorder %s70, %s72
    %p76 = scmp.eq.s32.totalorder %s15, 0
    %p77 = por %p75, %p76
    %p78 = scmp.ne.s32.totalorder %s70, %s72
    %p79 = scmp.eq.s32.totalorder %s20, 1
    %p80 = por %p78, %p79
    %p81 = scmp.ne.s32.totalorder %s72, %s73
    %p82 = scmp.eq.s32.totalorder %s20, 0
    %p83 = por %p81, %p82
    %p84 = scmp.ne.s32.totalorder %s72, %s73
    %p85 = scmp.eq.s32.totalorder %s21, 1
    %p86 = por %p84, %p85
    %p88 = scmp.ne.s32.totalorder %s73, %s87
    %p89 = scmp.eq.s32.totalorder %s21, 0
    %p90 = por %p88, %p89
    %s92 = sadd.s32 %s91, 1
    %p95 = scmp.eq.s32.totalorder %s15, 1
    %p96 = scmp.ne.s32.totalorder %s91, %s93
    %p97 = scmp.eq.s32.totalorder %s15, 0
    %p98 = por %p96, %p97
    %p99 = scmp.ne.s32.totalorder %s91, %s93
    %p100 = scmp.eq.s32.totalorder %s20, 1
    %p101 = por %p99, %p100
    %p102 = scmp.ne.s32.totalorder %s93, %s94
    %p103 = scmp.eq.s32.totalorder %s20, 0
    %p104 = por %p102, %p103
    %p105 = scmp.ne.s32.totalorder %s93, %s94
    %p106 = scmp.eq.s32.totalorder %s21, 1
    %p107 = por %p105, %p106
    %p109 = scmp.ne.s32.totalorder %s94, %s108
    %p110 = scmp.eq.s32.totalorder %s21, 0
    %p111 = por %p109, %p110
    %s113 = sadd.s32 %s112, 1
    %p116 = scmp.eq.s32.totalorder %s15, 1
    %p117 = scmp.ne.s32.totalorder %s112, %s114
    %p118 = scmp.eq.s32.totalorder %s15, 0
    %p119 = por %p117, %p118
    %p120 = scmp.ne.s32.totalorder %s112, %s114
    %p121 = scmp.eq.s32.totalorder %s20, 1
    %p122 = por %p120, %p121
    %p123 = scmp.ne.s32.totalorder %s114, %s115
    %p124 = scmp.eq.s32.totalorder %s20, 0
    %p125 = por %p123, %p124
    %p126 = scmp.ne.s32.totalorder %s114, %s115
    %p127 = scmp.eq.s32.totalorder %s21, 1
    %p128 = por %p126, %p127
    %p130 = scmp.ne.s32.totalorder %s115, %s129
    %p131 = scmp.eq.s32.totalorder %s21, 0
    %p132 = por %p130, %p131
    %s134 = sadd.s32 %s133, 1
    %p137 = scmp.eq.s32.totalorder %s15, 1
    %p138 = scmp.ne.s32.totalorder %s133, %s135
    %p139 = scmp.eq.s32.totalorder %s15, 0
    %p140 = por %p138, %p139
    %p141 = scmp.ne.s32.totalorder %s133, %s135
    %p142 = scmp.eq.s32.totalorder %s20, 1
    %p143 = por %p141, %p142
    %p144 = scmp.ne.s32.totalorder %s135, %s136
    %p145 = scmp.eq.s32.totalorder %s20, 0
    %p146 = por %p144, %p145
    %p147 = scmp.ne.s32.totalorder %s135, %s136
    %p148 = scmp.eq.s32.totalorder %s21, 1
    %p149 = por %p147, %p148
    %p151 = scmp.ne.s32.totalorder %s136, %s150
    %p152 = scmp.eq.s32.totalorder %s21, 0
    %p153 = por %p151, %p152
    %s155 = sadd.s32 %s154, 1
    %p158 = scmp.eq.s32.totalorder %s15, 1
    %p159 = scmp.ne.s32.totalorder %s154, %s156
    %p160 = scmp.eq.s32.totalorder %s15, 0
    %p161 = por %p159, %p160
    %p162 = scmp.ne.s32.totalorder %s154, %s156
    %p163 = scmp.eq.s32.totalorder %s20, 1
    %p164 = por %p162, %p163
    %p165 = scmp.ne.s32.totalorder %s156, %s157
    %p166 = scmp.eq.s32.totalorder %s20, 0
    %p167 = por %p165, %p166
    %p168 = scmp.ne.s32.totalorder %s156, %s157
    %p169 = scmp.eq.s32.totalorder %s21, 1
    %p170 = por %p168, %p169
    %p172 = scmp.ne.s32.totalorder %s157, %s171
    %p173 = scmp.eq.s32.totalorder %s21, 0
    %p174 = por %p172, %p173
    %s176 = sadd.s32 %s175, 1
    %p179 = scmp.eq.s32.totalorder %s15, 1
    %p180 = scmp.ne.s32.totalorder %s175, %s177
    %p181 = scmp.eq.s32.totalorder %s15, 0
    %p182 = por %p180, %p181
    %p183 = scmp.ne.s32.totalorder %s175, %s177
    %p184 = scmp.eq.s32.totalorder %s20, 1
    %p185 = por %p183, %p184
    %p186 = scmp.ne.s32.totalorder %s177, %s178
    %p187 = scmp.eq.s32.totalorder %s20, 0
    %p188 = por %p186, %p187
    %p189 = scmp.ne.s32.totalorder %s177, %s178
    %p190 = scmp.eq.s32.totalorder %s21, 1
    %p191 = por %p189, %p190
    %p193 = scmp.ne.s32.totalorder %s178, %s192
    %p194 = scmp.eq.s32.totalorder %s21, 0
    %p195 = por %p193, %p194
    %s197 = sadd.s32 %s196, 1
    %p200 = scmp.eq.s32.totalorder %s15, 1
    %p201 = scmp.ne.s32.totalorder %s196, %s198
    %p202 = scmp.eq.s32.totalorder %s15, 0
    %p203 = por %p201, %p202
    %p204 = scmp.ne.s32.totalorder %s196, %s198
    %p205 = scmp.eq.s32.totalorder %s20, 1
    %p206 = por %p204, %p205
    %p207 = scmp.ne.s32.totalorder %s198, %s199
    %p208 = scmp.eq.s32.totalorder %s20, 0
    %p209 = por %p207, %p208
    %p210 = scmp.ne.s32.totalorder %s198, %s199
    %p211 = scmp.eq.s32.totalorder %s21, 1
    %p212 = por %p210, %p211
    %p214 = scmp.ne.s32.totalorder %s199, %s213
    %p215 = scmp.eq.s32.totalorder %s21, 0
    %p216 = por %p214, %p215
    %s217 = ssub.s32 %s15, %s22
    %p218 = scmp.eq.s32.totalorder %s217, 0
    %s220 = sadd.s32 %s219, 1
    %s221 = scalar_select %p218, %s219, %s220
    %p224 = pneg %p218
    %p225 = scmp.eq.s32.totalorder %s15, 1
    %p226 = por %p224, %p225
    %p227 = scmp.ne.s32.totalorder %s219, %s222
    %p228 = scmp.eq.s32.totalorder %s15, 0
    %p229 = por %p227, %p228
    %p230 = scmp.ne.s32.totalorder %s219, %s222
    %p231 = scmp.eq.s32.totalorder %s20, 1
    %p232 = por %p230, %p231
    %p233 = scmp.ne.s32.totalorder %s222, %s223
    %p234 = scmp.eq.s32.totalorder %s20, 0
    %p235 = por %p233, %p234
    %p236 = scmp.ne.s32.totalorder %s222, %s223
    %p237 = scmp.eq.s32.totalorder %s21, 1
    %p238 = por %p236, %p237
    %p240 = scmp.ne.s32.totalorder %s223, %s239
    %p241 = scmp.eq.s32.totalorder %s21, 0
    %p242 = por %p240, %p241
    %p243 = scmp.le.s32.totalorder 1, %s15
    %p244 = scmp.lt.s32.totalorder %s15, 3
    %p245 = pnand %p243, %p244
    %p246 = pneg %p245
    // Predicated region
    $region9: #{tpu_custom_call.1} parent=5 // pred_check
      _
    $region10: #{tpu_custom_call.1} parent=5 // pred_check_branch
      %248 = sbr.rel (%p245) target = $region12
    $region11: #{tpu_custom_call.1} parent=5 // pred_region
      %s249 = ssub.s32 %s15, 1
      // Predicated region
      $region13: #{tpu_custom_call.1} parent=11 // pred_check
        %p250 = pneg %p62
      $region14: #{tpu_custom_call.1} parent=11 // pred_check_branch
        %252 = sbr.rel (%p250) target = $region16
      $region15: #{tpu_custom_call.1} parent=11 // pred_region
        _
      $region16: #{tpu_custom_call.1} parent=11 // pred_fallthru
        _
      // Predicated region
      $region17: #{tpu_custom_call.1} parent=11 // pred_check
        %p253 = pneg %p83
      $region18: #{tpu_custom_call.1} parent=11 // pred_check_branch
        %255 = sbr.rel (%p253) target = $region20
      $region19: #{tpu_custom_call.1} parent=11 // pred_region
        _
      $region20: #{tpu_custom_call.1} parent=11 // pred_fallthru
        _
      // Predicated region
      $region21: #{tpu_custom_call.1} parent=11 // pred_check
        %p256 = pneg %p104
      $region22: #{tpu_custom_call.1} parent=11 // pred_check_branch
        %258 = sbr.rel (%p256) target = $region24
      $region23: #{tpu_custom_call.1} parent=11 // pred_region
        _
      $region24: #{tpu_custom_call.1} parent=11 // pred_fallthru
        _
      // Predicated region
      $region25: #{tpu_custom_call.1} parent=11 // pred_check
        %p259 = pneg %p125
      $region26: #{tpu_custom_call.1} parent=11 // pred_check_branch
        %261 = sbr.rel (%p259) target = $region28
      $region27: #{tpu_custom_call.1} parent=11 // pred_region
        _
      $region28: #{tpu_custom_call.1} parent=11 // pred_fallthru
        _
      // Predicated region
      $region29: #{tpu_custom_call.1} parent=11 // pred_check
        %p262 = pneg %p146
      $region30: #{tpu_custom_call.1} parent=11 // pred_check_branch
        %264 = sbr.rel (%p262) target = $region32
      $region31: #{tpu_custom_call.1} parent=11 // pred_region
        _
      $region32: #{tpu_custom_call.1} parent=11 // pred_fallthru
        _
      // Predicated region
      $region33: #{tpu_custom_call.1} parent=11 // pred_check
        %p265 = pneg %p167
      $region34: #{tpu_custom_call.1} parent=11 // pred_check_branch
        %267 = sbr.rel (%p265) target = $region36
      $region35: #{tpu_custom_call.1} parent=11 // pred_region
        _
      $region36: #{tpu_custom_call.1} parent=11 // pred_fallthru
        _
      // Predicated region
      $region37: #{tpu_custom_call.1} parent=11 // pred_check
        %p268 = pneg %p188
      $region38: #{tpu_custom_call.1} parent=11 // pred_check_branch
        %270 = sbr.rel (%p268) target = $region40
      $region39: #{tpu_custom_call.1} parent=11 // pred_region
        _
      $region40: #{tpu_custom_call.1} parent=11 // pred_fallthru
        _
      // Predicated region
      $region41: #{tpu_custom_call.1} parent=11 // pred_check
        %p271 = pneg %p209
      $region42: #{tpu_custom_call.1} parent=11 // pred_check_branch
        %273 = sbr.rel (%p271) target = $region44
      $region43: #{tpu_custom_call.1} parent=11 // pred_region
        _
      $region44: #{tpu_custom_call.1} parent=11 // pred_fallthru
        _
    $region12: #{tpu_custom_call.1} parent=5 // pred_fallthru
      _
    %p274 = scmp.lt.s32.totalorder %s15, 2
    // Predicated region
    $region45: #{tpu_custom_call.1} parent=5 // pred_check
      %p275 = pneg %p274
    $region46: #{tpu_custom_call.1} parent=5 // pred_check_branch
      %277 = sbr.rel (%p275) target = $region48
    $region47: #{tpu_custom_call.1} parent=5 // pred_region
      // Predicated region
      $region49: #{tpu_custom_call.1} parent=47 // pred_check
        %p278 = pneg %p35
      $region50: #{tpu_custom_call.1} parent=47 // pred_check_branch
        %280 = sbr.rel (%p278) target = $region52
      $region51: #{tpu_custom_call.1} parent=47 // pred_region
        %p281 = scmp.lt.s32.totalorder %s15, 1
        %s282 = scalar_select %p281, %s15, 1
        %s283 = smul.addr %s282, 32
        %s284 = smul.addr %s283, 8
        %s285 = scalar_lea.vmem %s0, %s284
      $region52: #{tpu_custom_call.1} parent=47 // pred_fallthru
        _
    $region48: #{tpu_custom_call.1} parent=5 // pred_fallthru
      _
    %p286 = scmp.le.s32.totalorder 1, %s15
    %p287 = scmp.lt.s32.totalorder %s15, 3
    %p288 = pnand %p286, %p287
    %p289 = pneg %p288
    // Predicated region
    $region53: #{tpu_custom_call.1} parent=5 // pred_check
      _
    $region54: #{tpu_custom_call.1} parent=5 // pred_check_branch
      %291 = sbr.rel (%p288) target = $region56
    $region55: #{tpu_custom_call.1} parent=5 // pred_region
      %s292 = ssub.s32 %s15, 1
      %p293 = scmp.lt.s32.totalorder %s20, 1
      %s294 = scalar_select %p293, %s20, 1
      %s295 = smul.addr %s294, 32
      %s296 = smul.addr %s295, 8
      %s297 = scalar_lea.vmem %s0, %s296
      %p298 = pneg %p41
      %p299 = pneg %p38
      %p300 = pneg %p62
      %p301 = pneg %p59
      %p302 = pneg %p83
      %p303 = pneg %p80
      %p304 = pneg %p104
      %p305 = pneg %p101
      %p306 = pneg %p125
      %p307 = pneg %p122
      %p308 = pneg %p146
      %p309 = pneg %p143
      %p310 = pneg %p167
      %p311 = pneg %p164
      %p312 = pneg %p188
      %p313 = pneg %p185
      %p314 = pneg %p209
      %p315 = pneg %p206
      %p316 = pneg %p235
      %p317 = pneg %p232
      %p318 = scmp.lt.s32.totalorder %s20, 1
      %s319 = scalar_select %p318, %s20, 1
      %s320 = smul.addr %s319, 32
      %s321 = smul.addr %s320, 8
      %s322 = scalar_lea.vmem %s9, %s321
      %p323 = scmp.lt.s32.totalorder %s20, 1
      %s324 = scalar_select %p323, %s20, 1
      %s325 = smul.addr %s324, 32
      %s326 = smul.addr %s325, 8
      %s327 = scalar_lea.vmem %s0, %s326
      %p328 = scmp.lt.s32.totalorder %s20, 1
      %s329 = scalar_select %p328, %s20, 1
      %s330 = smul.addr %s329, 32
      %s331 = smul.addr %s330, 8
      %s332 = scalar_lea.vmem %s9, %s331
      %vm333 = vcmask 15360
      %334 = vst.msk [vmem:[#allocation2] sm:$0xff] %vm333, 0.0
      %335 = vst.msk [vmem:[#allocation2 + $0x8] sm:$0xff] %vm333, 0.0
      %vm336 = vcmask 13312
      %337 = vst.msk [vmem:[#allocation2 + $0x10] sm:$0x3f] %vm336, 0.0
      %338 = vst.msk [vmem:[#allocation2 + $0x18] sm:$0xff] %vm333, 0.0
      %339 = vst.msk [vmem:[#allocation2 + $0x20] sm:$0xff] %vm333, 0.0
      %340 = vst.msk [vmem:[#allocation2 + $0x28] sm:$0x3f] %vm336, 0.0
      %341 = vst.msk [vmem:[#allocation2 + $0x30] sm:$0xff] %vm333, 0.0
      %342 = vst.msk [vmem:[#allocation2 + $0x38] sm:$0xff] %vm333, 0.0
      %343 = vst.msk [vmem:[#allocation2 + $0x40] sm:$0x3f] %vm336, 0.0
      %s344 = scalar_lea.vmem [#allocation2], 456
      %345 = vst.msk [vmem:[%s344] sm:$0xff] %vm333, 0.0
      %346 = vst.msk [vmem:[%s344 + $0x8] sm:$0xff] %vm333, 0.0
      %347 = vst.msk [vmem:[%s344 + $0x10] sm:$0x3f] %vm336, 0.0
      %348 = vst.msk [vmem:[%s344 + $0x18] sm:$0xff] %vm333, 0.0
      %349 = vst.msk [vmem:[%s344 + $0x20] sm:$0xff] %vm333, 0.0
      %350 = vst.msk [vmem:[%s344 + $0x28] sm:$0x3f] %vm336, 0.0
      %351 = vst.msk [vmem:[%s344 + $0x30] sm:$0xff] %vm333, 0.0
      %352 = vst.msk [vmem:[%s344 + $0x38] sm:$0xff] %vm333, 0.0
      %353 = vst.msk [vmem:[%s344 + $0x40] sm:$0x3f] %vm336, 0.0
      %s354 = scalar_lea.vmem [#allocation2], 72
      %vm355 = vcmask 10240
      %356 = vst.msk [vmem:[%s354] sm:$0x7] %vm355, 0.0
      %357 = vst.msk [vmem:[%s354 + $0x18] sm:$0x7] %vm355, 0.0
      %358 = vst.msk [vmem:[%s354 + $0x30] sm:$0x7] %vm355, 0.0
      %359 = vst.msk [vmem:[%s354 + $0x48] sm:$0x7] %vm355, 0.0
      %360 = vst.msk [vmem:[%s354 + $0x60] sm:$0x7] %vm355, 0.0
      %361 = vst.msk [vmem:[%s354 + $0x78] sm:$0x7] %vm355, 0.0
      %362 = vst.msk [vmem:[%s354 + $0x90] sm:$0x7] %vm355, 0.0
      %363 = vst.msk [vmem:[%s354 + $0xa8] sm:$0x7] %vm355, 0.0
      %364 = vst.msk [vmem:[%s354 + $0xc0] sm:$0x7] %vm355, 0.0
      %365 = vst.msk [vmem:[%s354 + $0xd8] sm:$0x7] %vm355, 0.0
      %366 = vst.msk [vmem:[%s354 + $0xf0] sm:$0x7] %vm355, 0.0
      %367 = vst.msk [vmem:[%s354 + $0x108] sm:$0x7] %vm355, 0.0
      %368 = vst.msk [vmem:[%s354 + $0x120] sm:$0x7] %vm355, 0.0
      %369 = vst.msk [vmem:[%s354 + $0x138] sm:$0x7] %vm355, 0.0
      %370 = vst.msk [vmem:[%s354 + $0x150] sm:$0x7] %vm355, 0.0
      %371 = vst.msk [vmem:[%s354 + $0x168] sm:$0x7] %vm355, 0.0
      %372 = vst.msk [vmem:[%s354 + $0x13] sm:$0x7] %vm355, 0.0
      %373 = vst.msk [vmem:[%s354 + $0x2b] sm:$0x7] %vm355, 0.0
      %374 = vst.msk [vmem:[%s354 + $0x43] sm:$0x7] %vm355, 0.0
      %375 = vst.msk [vmem:[%s354 + $0x5b] sm:$0x7] %vm355, 0.0
      %376 = vst.msk [vmem:[%s354 + $0x73] sm:$0x7] %vm355, 0.0
      %377 = vst.msk [vmem:[%s354 + $0x8b] sm:$0x7] %vm355, 0.0
      %378 = vst.msk [vmem:[%s354 + $0xa3] sm:$0x7] %vm355, 0.0
      %379 = vst.msk [vmem:[%s354 + $0xbb] sm:$0x7] %vm355, 0.0
      %380 = vst.msk [vmem:[%s354 + $0xd3] sm:$0x7] %vm355, 0.0
      %381 = vst.msk [vmem:[%s354 + $0xeb] sm:$0x7] %vm355, 0.0
      %382 = vst.msk [vmem:[%s354 + $0x103] sm:$0x7] %vm355, 0.0
      %383 = vst.msk [vmem:[%s354 + $0x11b] sm:$0x7] %vm355, 0.0
      %384 = vst.msk [vmem:[%s354 + $0x133] sm:$0x7] %vm355, 0.0
      %385 = vst.msk [vmem:[%s354 + $0x14b] sm:$0x7] %vm355, 0.0
      %386 = vst.msk [vmem:[%s354 + $0x163] sm:$0x7] %vm355, 0.0
      %387 = vst.msk [vmem:[%s354 + $0x17b] sm:$0x7] %vm355, 0.0
      %v388 = vld [vmem:[%s327] sm:$0xff]
      %v389 = vld [vmem:[%s327 + $0x8] sm:$0xff]
      %v390 = vld [vmem:[%s327 + $0x10] sm:$0xff]
      %v391 = vld [vmem:[%s327 + $0x18] sm:$0xff]
      %v392 = vld [vmem:[%s327 + $0x20] sm:$0xff]
      %v393 = vld [vmem:[%s327 + $0x28] sm:$0xff]
      %v394 = vld [vmem:[%s327 + $0x30] sm:$0xff]
      %v395 = vld [vmem:[%s327 + $0x38] sm:$0xff]
      %v396 = vld [vmem:[%s327 + $0x40] sm:$0xff]
      %v397 = vld [vmem:[%s327 + $0x48] sm:$0xff]
      %v398 = vld [vmem:[%s327 + $0x50] sm:$0xff]
      %v399 = vld [vmem:[%s327 + $0x58] sm:$0xff]
      %v400 = vld [vmem:[%s327 + $0x60] sm:$0xff]
      %v401 = vld [vmem:[%s327 + $0x68] sm:$0xff]
      %v402 = vld [vmem:[%s327 + $0x70] sm:$0xff]
      %v403 = vld [vmem:[%s327 + $0x78] sm:$0xff]
      %v404 = vld [vmem:[%s327 + $0x80] sm:$0xff]
      %v405 = vld [vmem:[%s327 + $0x88] sm:$0xff]
      %v406 = vld [vmem:[%s327 + $0x90] sm:$0xff]
      %v407 = vld [vmem:[%s327 + $0x98] sm:$0xff]
      %v408 = vld [vmem:[%s327 + $0xa0] sm:$0xff]
      %v409 = vld [vmem:[%s327 + $0xa8] sm:$0xff]
      %v410 = vld [vmem:[%s327 + $0xb0] sm:$0xff]
      %v411 = vld [vmem:[%s327 + $0xb8] sm:$0xff]
      %v412 = vld [vmem:[%s327 + $0xc0] sm:$0xff]
      %v413 = vld [vmem:[%s327 + $0xc8] sm:$0xff]
      %v414 = vld [vmem:[%s327 + $0xd0] sm:$0xff]
      %v415 = vld [vmem:[%s327 + $0xd8] sm:$0xff]
      %v416 = vld [vmem:[%s327 + $0xe0] sm:$0xff]
      %v417 = vld [vmem:[%s327 + $0xe8] sm:$0xff]
      %v418 = vld [vmem:[%s327 + $0xf0] sm:$0xff]
      %v419 = vld [vmem:[%s327 + $0xf8] sm:$0xff]
      %v420 = vld [vmem:[%s1] sm:$0x3]
      %v422 = vsel %vm333, %v388, 0
      %v425 = vsel %vm333, %v389, 0
      %v428 = vsel %vm333, %v390, 0
      %v431 = vsel %vm333, %v391, 0
      %v434 = vsel %vm333, %v392, 0
      %v437 = vsel %vm333, %v393, 0
      %v440 = vsel %vm333, %v394, 0
      %v443 = vsel %vm333, %v395, 0
      %v446 = vsel %vm333, %v396, 0
      %v449 = vsel %vm333, %v397, 0
      %v452 = vsel %vm333, %v398, 0
      %v455 = vsel %vm333, %v399, 0
      %v458 = vsel %vm333, %v400, 0
      %v461 = vsel %vm333, %v401, 0
      %v464 = vsel %vm333, %v402, 0
      %v467 = vsel %vm333, %v403, 0
      %v470 = vsel %vm333, %v404, 0
      %v473 = vsel %vm333, %v405, 0
      %v476 = vsel %vm333, %v406, 0
      %v479 = vsel %vm333, %v407, 0
      %v482 = vsel %vm333, %v408, 0
      %v485 = vsel %vm333, %v409, 0
      %v488 = vsel %vm333, %v410, 0
      %v491 = vsel %vm333, %v411, 0
      %v494 = vsel %vm333, %v412, 0
      %v497 = vsel %vm333, %v413, 0
      %v500 = vsel %vm333, %v414, 0
      %v503 = vsel %vm333, %v415, 0
      %v506 = vsel %vm333, %v416, 0
      %v509 = vsel %vm333, %v417, 0
      %v512 = vsel %vm333, %v418, 0
      %v515 = vsel %vm333, %v419, 0
      %vm517 = vcmask 1041408
      %v519 = vsel %vm517, %v420, 0
      %521 = vmatpush.msra.mxu0 0.0
      %522 = vmatpush.msra.mxu0 0.0
      %523 = vmatpush.msra.mxu0 0.0
      %524 = vmatpush.msra.mxu0 0.0
      %525 = vmatpush.msra.mxu0 0.0
      %526 = vmatpush.msra.mxu0 0.0
      %527 = vmatpush.msra.mxu0 0.0
      %528 = vmatpush.msra.mxu0 0.0
      %529 = vmatpush.msra.mxu0 0.0
      %530 = vmatpush.msra.mxu0 0.0
      %531 = vmatpush.msra.mxu0 0.0
      %532 = vmatpush.msra.mxu0 0.0
      %533 = vmatpush.msra.mxu0 0.0
      %534 = vmatpush.msra.mxu0 0.0
      %535 = vmatpush.msra.mxu0 0.0
      %536 = vmatpush.msra.mxu0 %v519
      %537 = vmatmul.f32.gmra.mxu0 %v422
      %v538 = vpop.f32.mrf.mxu0
      %v539 = vadd.f32 0.0, %v538
      %540 = vmatmul.f32.gmra.mxu0 %v425
      %v541 = vpop.f32.mrf.mxu0
      %v542 = vadd.f32 0.0, %v541
      %543 = vmatmul.f32.gmra.mxu0 %v428
      %v544 = vpop.f32.mrf.mxu0
      %v545 = vadd.f32 0.0, %v544
      %546 = vmatmul.f32.gmra.mxu0 %v431
      %v547 = vpop.f32.mrf.mxu0
      %v548 = vadd.f32 0.0, %v547
      %549 = vmatmul.f32.gmra.mxu0 %v434
      %v550 = vpop.f32.mrf.mxu0
      %v551 = vadd.f32 0.0, %v550
      %552 = vmatmul.f32.gmra.mxu0 %v437
      %v553 = vpop.f32.mrf.mxu0
      %v554 = vadd.f32 0.0, %v553
      %555 = vmatmul.f32.gmra.mxu0 %v440
      %v556 = vpop.f32.mrf.mxu0
      %v557 = vadd.f32 0.0, %v556
      %558 = vmatmul.f32.gmra.mxu0 %v443
      %v559 = vpop.f32.mrf.mxu0
      %v560 = vadd.f32 0.0, %v559
      %561 = vmatmul.f32.gmra.mxu0 %v446
      %v562 = vpop.f32.mrf.mxu0
      %v563 = vadd.f32 0.0, %v562
      %564 = vmatmul.f32.gmra.mxu0 %v449
      %v565 = vpop.f32.mrf.mxu0
      %v566 = vadd.f32 0.0, %v565
      %567 = vmatmul.f32.gmra.mxu0 %v452
      %v568 = vpop.f32.mrf.mxu0
      %v569 = vadd.f32 0.0, %v568
      %570 = vmatmul.f32.gmra.mxu0 %v455
      %v571 = vpop.f32.mrf.mxu0
      %v572 = vadd.f32 0.0, %v571
      %573 = vmatmul.f32.gmra.mxu0 %v458
      %v574 = vpop.f32.mrf.mxu0
      %v575 = vadd.f32 0.0, %v574
      %576 = vmatmul.f32.gmra.mxu0 %v461
      %v577 = vpop.f32.mrf.mxu0
      %v578 = vadd.f32 0.0, %v577
      %579 = vmatmul.f32.gmra.mxu0 %v464
      %v580 = vpop.f32.mrf.mxu0
      %v581 = vadd.f32 0.0, %v580
      %582 = vmatmul.f32.gmra.mxu0 %v467
      %v583 = vpop.f32.mrf.mxu0
      %v584 = vadd.f32 0.0, %v583
      %585 = vmatmul.f32.gmra.mxu0 %v470
      %v586 = vpop.f32.mrf.mxu0
      %v587 = vadd.f32 0.0, %v586
      %588 = vmatmul.f32.gmra.mxu0 %v473
      %v589 = vpop.f32.mrf.mxu0
      %v590 = vadd.f32 0.0, %v589
      %591 = vmatmul.f32.gmra.mxu0 %v476
      %v592 = vpop.f32.mrf.mxu0
      %v593 = vadd.f32 0.0, %v592
      %594 = vmatmul.f32.gmra.mxu0 %v479
      %v595 = vpop.f32.mrf.mxu0
      %v596 = vadd.f32 0.0, %v595
      %597 = vmatmul.f32.gmra.mxu0 %v482
      %v598 = vpop.f32.mrf.mxu0
      %v599 = vadd.f32 0.0, %v598
      %600 = vmatmul.f32.gmra.mxu0 %v485
      %v601 = vpop.f32.mrf.mxu0
      %v602 = vadd.f32 0.0, %v601
      %603 = vmatmul.f32.gmra.mxu0 %v488
      %v604 = vpop.f32.mrf.mxu0
      %v605 = vadd.f32 0.0, %v604
      %606 = vmatmul.f32.gmra.mxu0 %v491
      %v607 = vpop.f32.mrf.mxu0
      %v608 = vadd.f32 0.0, %v607
      %609 = vmatmul.f32.gmra.mxu0 %v494
      %v610 = vpop.f32.mrf.mxu0
      %v611 = vadd.f32 0.0, %v610
      %612 = vmatmul.f32.gmra.mxu0 %v497
      %v613 = vpop.f32.mrf.mxu0
      %v614 = vadd.f32 0.0, %v613
      %615 = vmatmul.f32.gmra.mxu0 %v500
      %v616 = vpop.f32.mrf.mxu0
      %v617 = vadd.f32 0.0, %v616
      %618 = vmatmul.f32.gmra.mxu0 %v503
      %v619 = vpop.f32.mrf.mxu0
      %v620 = vadd.f32 0.0, %v619
      %621 = vmatmul.f32.gmra.mxu0 %v506
      %v622 = vpop.f32.mrf.mxu0
      %v623 = vadd.f32 0.0, %v622
      %624 = vmatmul.f32.gmra.mxu0 %v509
      %v625 = vpop.f32.mrf.mxu0
      %v626 = vadd.f32 0.0, %v625
      %627 = vmatmul.f32.gmra.mxu0 %v512
      %v628 = vpop.f32.mrf.mxu0
      %v629 = vadd.f32 0.0, %v628
      %630 = vmatmul.f32.gmra.mxu0 %v515
      %v631 = vpop.f32.mrf.mxu0
      %v632 = vadd.f32 0.0, %v631
      %633 = vdwg.mxu0
      %v634 = vld [vmem:[%s2] sm:$0x1]
      %v636 = vperm.slane %v634, 0
      %v638 = vmul.f32 %v539, %v636
      %v639 = vmul.f32 %v542, %v636
      %v640 = vmul.f32 %v545, %v636
      %v641 = vmul.f32 %v548, %v636
      %v642 = vmul.f32 %v551, %v636
      %v643 = vmul.f32 %v554, %v636
      %v644 = vmul.f32 %v557, %v636
      %v645 = vmul.f32 %v560, %v636
      %v646 = vmul.f32 %v563, %v636
      %v647 = vmul.f32 %v566, %v636
      %v648 = vmul.f32 %v569, %v636
      %v649 = vmul.f32 %v572, %v636
      %v650 = vmul.f32 %v575, %v636
      %v651 = vmul.f32 %v578, %v636
      %v652 = vmul.f32 %v581, %v636
      %v653 = vmul.f32 %v584, %v636
      %v654 = vmul.f32 %v587, %v636
      %v655 = vmul.f32 %v590, %v636
      %v656 = vmul.f32 %v593, %v636
      %v657 = vmul.f32 %v596, %v636
      %v658 = vmul.f32 %v599, %v636
      %v659 = vmul.f32 %v602, %v636
      %v660 = vmul.f32 %v605, %v636
      %v661 = vmul.f32 %v608, %v636
      %v662 = vmul.f32 %v611, %v636
      %v663 = vmul.f32 %v614, %v636
      %v664 = vmul.f32 %v617, %v636
      %v665 = vmul.f32 %v620, %v636
      %v666 = vmul.f32 %v623, %v636
      %v667 = vmul.f32 %v626, %v636
      %v668 = vmul.f32 %v629, %v636
      %v669 = vmul.f32 %v632, %v636
      %v670 = vld [vmem:[%s3] sm:$0x1]
      %v672 = vperm.slane %v670, 0
      %v674 = vadd.f32 %v638, %v672
      %v675 = vadd.f32 %v639, %v672
      %v676 = vadd.f32 %v640, %v672
      %v677 = vadd.f32 %v641, %v672
      %v678 = vadd.f32 %v642, %v672
      %v679 = vadd.f32 %v643, %v672
      %v680 = vadd.f32 %v644, %v672
      %v681 = vadd.f32 %v645, %v672
      %v682 = vadd.f32 %v646, %v672
      %v683 = vadd.f32 %v647, %v672
      %v684 = vadd.f32 %v648, %v672
      %v685 = vadd.f32 %v649, %v672
      %v686 = vadd.f32 %v650, %v672
      %v687 = vadd.f32 %v651, %v672
      %v688 = vadd.f32 %v652, %v672
      %v689 = vadd.f32 %v653, %v672
      %v690 = vadd.f32 %v654, %v672
      %v691 = vadd.f32 %v655, %v672
      %v692 = vadd.f32 %v656, %v672
      %v693 = vadd.f32 %v657, %v672
      %v694 = vadd.f32 %v658, %v672
      %v695 = vadd.f32 %v659, %v672
      %v696 = vadd.f32 %v660, %v672
      %v697 = vadd.f32 %v661, %v672
      %v698 = vadd.f32 %v662, %v672
      %v699 = vadd.f32 %v663, %v672
      %v700 = vadd.f32 %v664, %v672
      %v701 = vadd.f32 %v665, %v672
      %v702 = vadd.f32 %v666, %v672
      %v703 = vadd.f32 %v667, %v672
      %v704 = vadd.f32 %v668, %v672
      %v705 = vadd.f32 %v669, %v672
      %v706 = vmax.f32 %v674, 0.0
      %v707 = vmax.f32 %v675, 0.0
      %v708 = vmax.f32 %v676, 0.0
      %v709 = vmax.f32 %v677, 0.0
      %v710 = vmax.f32 %v678, 0.0
      %v711 = vmax.f32 %v679, 0.0
      %v712 = vmax.f32 %v680, 0.0
      %v713 = vmax.f32 %v681, 0.0
      %v714 = vmax.f32 %v682, 0.0
      %v715 = vmax.f32 %v683, 0.0
      %v716 = vmax.f32 %v684, 0.0
      %v717 = vmax.f32 %v685, 0.0
      %v718 = vmax.f32 %v686, 0.0
      %v719 = vmax.f32 %v687, 0.0
      %v720 = vmax.f32 %v688, 0.0
      %v721 = vmax.f32 %v689, 0.0
      %v722 = vmax.f32 %v690, 0.0
      %v723 = vmax.f32 %v691, 0.0
      %v724 = vmax.f32 %v692, 0.0
      %v725 = vmax.f32 %v693, 0.0
      %v726 = vmax.f32 %v694, 0.0
      %v727 = vmax.f32 %v695, 0.0
      %v728 = vmax.f32 %v696, 0.0
      %v729 = vmax.f32 %v697, 0.0
      %v730 = vmax.f32 %v698, 0.0
      %v731 = vmax.f32 %v699, 0.0
      %v732 = vmax.f32 %v700, 0.0
      %v733 = vmax.f32 %v701, 0.0
      %v734 = vmax.f32 %v702, 0.0
      %v735 = vmax.f32 %v703, 0.0
      %v736 = vmax.f32 %v704, 0.0
      %v737 = vmax.f32 %v705, 0.0
      %738 = vst.msk [vmem:[%s354 + $0x3] sm:$0xff] %vm333, %v706
      %739 = vst.msk [vmem:[%s354 + $0xb] sm:$0xff] %vm333, %v707
      %740 = vst.msk [vmem:[%s354 + $0x1b] sm:$0xff] %vm333, %v708
      %741 = vst.msk [vmem:[%s354 + $0x23] sm:$0xff] %vm333, %v709
      %742 = vst.msk [vmem:[%s354 + $0x33] sm:$0xff] %vm333, %v710
      %743 = vst.msk [vmem:[%s354 + $0x3b] sm:$0xff] %vm333, %v711
      %744 = vst.msk [vmem:[%s354 + $0x4b] sm:$0xff] %vm333, %v712
      %745 = vst.msk [vmem:[%s354 + $0x53] sm:$0xff] %vm333, %v713
      %746 = vst.msk [vmem:[%s354 + $0x63] sm:$0xff] %vm333, %v714
      %747 = vst.msk [vmem:[%s354 + $0x6b] sm:$0xff] %vm333, %v715
      %748 = vst.msk [vmem:[%s354 + $0x7b] sm:$0xff] %vm333, %v716
      %749 = vst.msk [vmem:[%s354 + $0x83] sm:$0xff] %vm333, %v717
      %750 = vst.msk [vmem:[%s354 + $0x93] sm:$0xff] %vm333, %v718
      %751 = vst.msk [vmem:[%s354 + $0x9b] sm:$0xff] %vm333, %v719
      %752 = vst.msk [vmem:[%s354 + $0xab] sm:$0xff] %vm333, %v720
      %753 = vst.msk [vmem:[%s354 + $0xb3] sm:$0xff] %vm333, %v721
      %754 = vst.msk [vmem:[%s354 + $0xc3] sm:$0xff] %vm333, %v722
      %755 = vst.msk [vmem:[%s354 + $0xcb] sm:$0xff] %vm333, %v723
      %756 = vst.msk [vmem:[%s354 + $0xdb] sm:$0xff] %vm333, %v724
      %757 = vst.msk [vmem:[%s354 + $0xe3] sm:$0xff] %vm333, %v725
      %758 = vst.msk [vmem:[%s354 + $0xf3] sm:$0xff] %vm333, %v726
      %759 = vst.msk [vmem:[%s354 + $0xfb] sm:$0xff] %vm333, %v727
      %760 = vst.msk [vmem:[%s354 + $0x10b] sm:$0xff] %vm333, %v728
      %761 = vst.msk [vmem:[%s354 + $0x113] sm:$0xff] %vm333, %v729
      %762 = vst.msk [vmem:[%s354 + $0x123] sm:$0xff] %vm333, %v730
      %763 = vst.msk [vmem:[%s354 + $0x12b] sm:$0xff] %vm333, %v731
      %764 = vst.msk [vmem:[%s354 + $0x13b] sm:$0xff] %vm333, %v732
      %765 = vst.msk [vmem:[%s354 + $0x143] sm:$0xff] %vm333, %v733
      %766 = vst.msk [vmem:[%s354 + $0x153] sm:$0xff] %vm333, %v734
      %767 = vst.msk [vmem:[%s354 + $0x15b] sm:$0xff] %vm333, %v735
      %768 = vst.msk [vmem:[%s354 + $0x16b] sm:$0xff] %vm333, %v736
      %769 = vst.msk [vmem:[%s354 + $0x173] sm:$0xff] %vm333, %v737
      %v770 = vld [vmem:[#allocation2] sm:$0xff]
      %v771 = vld [vmem:[#allocation2 + $0x8] sm:$0xff]
      %v772 = vld [vmem:[#allocation2 + $0x18] sm:$0xff]
      %v773 = vld [vmem:[#allocation2 + $0x20] sm:$0xff]
      %v774 = vld [vmem:[#allocation2 + $0x30] sm:$0xff]
      %v775 = vld [vmem:[#allocation2 + $0x38] sm:$0xff]
      %v776 = vld [vmem:[#allocation2 + $0x48] sm:$0xff]
      %v777 = vld [vmem:[#allocation2 + $0x50] sm:$0xff]
      %v778 = vld [vmem:[#allocation2 + $0x60] sm:$0xff]
      %v779 = vld [vmem:[#allocation2 + $0x68] sm:$0xff]
      %v780 = vld [vmem:[#allocation2 + $0x78] sm:$0xff]
      %v781 = vld [vmem:[#allocation2 + $0x80] sm:$0xff]
      %v782 = vld [vmem:[#allocation2 + $0x90] sm:$0xff]
      %v783 = vld [vmem:[#allocation2 + $0x98] sm:$0xff]
      %v784 = vld [vmem:[#allocation2 + $0xa8] sm:$0xff]
      %v785 = vld [vmem:[#allocation2 + $0xb0] sm:$0xff]
      %v786 = vld [vmem:[#allocation2 + $0xc0] sm:$0xff]
      %v787 = vld [vmem:[#allocation2 + $0xc8] sm:$0xff]
      %v788 = vld [vmem:[#allocation2 + $0xd8] sm:$0xff]
      %v789 = vld [vmem:[#allocation2 + $0xe0] sm:$0xff]
      %v790 = vld [vmem:[#allocation2 + $0xf0] sm:$0xff]
      %v791 = vld [vmem:[#allocation2 + $0xf8] sm:$0xff]
      %v792 = vld [vmem:[#allocation2 + $0x108] sm:$0xff]
      %v793 = vld [vmem:[#allocation2 + $0x110] sm:$0xff]
      %v794 = vld [vmem:[#allocation2 + $0x120] sm:$0xff]
      %v795 = vld [vmem:[#allocation2 + $0x128] sm:$0xff]
      %v796 = vld [vmem:[#allocation2 + $0x138] sm:$0xff]
      %v797 = vld [vmem:[#allocation2 + $0x140] sm:$0xff]
      %v798 = vld [vmem:[#allocation2 + $0x150] sm:$0xff]
      %v799 = vld [vmem:[#allocation2 + $0x158] sm:$0xff]
      %v800 = vld [vmem:[#allocation2 + $0x168] sm:$0xff]
      %v801 = vld [vmem:[#allocation2 + $0x170] sm:$0xff]
      %v802 = vld [vmem:[%s4] sm:$0x1]
      %v804 = vperm.slane %v802, 0
      %v806 = vmul.f32 %v770, %v804
      %v807 = vmul.f32 %v771, %v804
      %v808 = vmul.f32 %v772, %v804
      %v809 = vmul.f32 %v773, %v804
      %v810 = vmul.f32 %v774, %v804
      %v811 = vmul.f32 %v775, %v804
      %v812 = vmul.f32 %v776, %v804
      %v813 = vmul.f32 %v777, %v804
      %v814 = vmul.f32 %v778, %v804
      %v815 = vmul.f32 %v779, %v804
      %v816 = vmul.f32 %v780, %v804
      %v817 = vmul.f32 %v781, %v804
      %v818 = vmul.f32 %v782, %v804
      %v819 = vmul.f32 %v783, %v804
      %v820 = vmul.f32 %v784, %v804
      %v821 = vmul.f32 %v785, %v804
      %v822 = vmul.f32 %v786, %v804
      %v823 = vmul.f32 %v787, %v804
      %v824 = vmul.f32 %v788, %v804
      %v825 = vmul.f32 %v789, %v804
      %v826 = vmul.f32 %v790, %v804
      %v827 = vmul.f32 %v791, %v804
      %v828 = vmul.f32 %v792, %v804
      %v829 = vmul.f32 %v793, %v804
      %v830 = vmul.f32 %v794, %v804
      %v831 = vmul.f32 %v795, %v804
      %v832 = vmul.f32 %v796, %v804
      %v833 = vmul.f32 %v797, %v804
      %v834 = vmul.f32 %v798, %v804
      %v835 = vmul.f32 %v799, %v804
      %v836 = vmul.f32 %v800, %v804
      %v837 = vmul.f32 %v801, %v804
      %v838 = vadd.f32 %v806, 0.0
      %v839 = vadd.f32 %v807, 0.0
      %v840 = vadd.f32 %v808, 0.0
      %v841 = vadd.f32 %v809, 0.0
      %v842 = vadd.f32 %v810, 0.0
      %v843 = vadd.f32 %v811, 0.0
      %v844 = vadd.f32 %v812, 0.0
      %v845 = vadd.f32 %v813, 0.0
      %v846 = vadd.f32 %v814, 0.0
      %v847 = vadd.f32 %v815, 0.0
      %v848 = vadd.f32 %v816, 0.0
      %v849 = vadd.f32 %v817, 0.0
      %v850 = vadd.f32 %v818, 0.0
      %v851 = vadd.f32 %v819, 0.0
      %v852 = vadd.f32 %v820, 0.0
      %v853 = vadd.f32 %v821, 0.0
      %v854 = vadd.f32 %v822, 0.0
      %v855 = vadd.f32 %v823, 0.0
      %v856 = vadd.f32 %v824, 0.0
      %v857 = vadd.f32 %v825, 0.0
      %v858 = vadd.f32 %v826, 0.0
      %v859 = vadd.f32 %v827, 0.0
      %v860 = vadd.f32 %v828, 0.0
      %v861 = vadd.f32 %v829, 0.0
      %v862 = vadd.f32 %v830, 0.0
      %v863 = vadd.f32 %v831, 0.0
      %v864 = vadd.f32 %v832, 0.0
      %v865 = vadd.f32 %v833, 0.0
      %v866 = vadd.f32 %v834, 0.0
      %v867 = vadd.f32 %v835, 0.0
      %v868 = vadd.f32 %v836, 0.0
      %v869 = vadd.f32 %v837, 0.0
      %v870 = vld [vmem:[#allocation2 + $0x1] sm:$0xff]
      %v871 = vld [vmem:[#allocation2 + $0x9] sm:$0xff]
      %v872 = vld [vmem:[#allocation2 + $0x19] sm:$0xff]
      %v873 = vld [vmem:[#allocation2 + $0x21] sm:$0xff]
      %v874 = vld [vmem:[#allocation2 + $0x31] sm:$0xff]
      %v875 = vld [vmem:[#allocation2 + $0x39] sm:$0xff]
      %v876 = vld [vmem:[#allocation2 + $0x49] sm:$0xff]
      %v877 = vld [vmem:[#allocation2 + $0x51] sm:$0xff]
      %v878 = vld [vmem:[#allocation2 + $0x61] sm:$0xff]
      %v879 = vld [vmem:[#allocation2 + $0x69] sm:$0xff]
      %v880 = vld [vmem:[#allocation2 + $0x79] sm:$0xff]
      %v881 = vld [vmem:[#allocation2 + $0x81] sm:$0xff]
      %v882 = vld [vmem:[#allocation2 + $0x91] sm:$0xff]
      %v883 = vld [vmem:[#allocation2 + $0x99] sm:$0xff]
      %v884 = vld [vmem:[#allocation2 + $0xa9] sm:$0xff]
      %v885 = vld [vmem:[#allocation2 + $0xb1] sm:$0xff]
      %v886 = vld [vmem:[#allocation2 + $0xc1] sm:$0xff]
      %v887 = vld [vmem:[#allocation2 + $0xc9] sm:$0xff]
      %v888 = vld [vmem:[#allocation2 + $0xd9] sm:$0xff]
      %v889 = vld [vmem:[#allocation2 + $0xe1] sm:$0xff]
      %v890 = vld [vmem:[#allocation2 + $0xf1] sm:$0xff]
      %v891 = vld [vmem:[#allocation2 + $0xf9] sm:$0xff]
      %v892 = vld [vmem:[#allocation2 + $0x109] sm:$0xff]
      %v893 = vld [vmem:[#allocation2 + $0x111] sm:$0xff]
      %v894 = vld [vmem:[#allocation2 + $0x121] sm:$0xff]
      %v895 = vld [vmem:[#allocation2 + $0x129] sm:$0xff]
      %v896 = vld [vmem:[#allocation2 + $0x139] sm:$0xff]
      %v897 = vld [vmem:[#allocation2 + $0x141] sm:$0xff]
      %v898 = vld [vmem:[#allocation2 + $0x151] sm:$0xff]
      %v899 = vld [vmem:[#allocation2 + $0x159] sm:$0xff]
      %v900 = vld [vmem:[#allocation2 + $0x169] sm:$0xff]
      %v901 = vld [vmem:[#allocation2 + $0x171] sm:$0xff]
      %s902 = scalar_lea.vmem %s4, 1
      %v903 = vld [vmem:[%s902] sm:$0x1]
      %v905 = vperm.slane %v903, 0
      %v907 = vmul.f32 %v870, %v905
      %v908 = vmul.f32 %v871, %v905
      %v909 = vmul.f32 %v872, %v905
      %v910 = vmul.f32 %v873, %v905
      %v911 = vmul.f32 %v874, %v905
      %v912 = vmul.f32 %v875, %v905
      %v913 = vmul.f32 %v876, %v905
      %v914 = vmul.f32 %v877, %v905
      %v915 = vmul.f32 %v878, %v905
      %v916 = vmul.f32 %v879, %v905
      %v917 = vmul.f32 %v880, %v905
      %v918 = vmul.f32 %v881, %v905
      %v919 = vmul.f32 %v882, %v905
      %v920 = vmul.f32 %v883, %v905
      %v921 = vmul.f32 %v884, %v905
      %v922 = vmul.f32 %v885, %v905
      %v923 = vmul.f32 %v886, %v905
      %v924 = vmul.f32 %v887, %v905
      %v925 = vmul.f32 %v888, %v905
      %v926 = vmul.f32 %v889, %v905
      %v927 = vmul.f32 %v890, %v905
      %v928 = vmul.f32 %v891, %v905
      %v929 = vmul.f32 %v892, %v905
      %v930 = vmul.f32 %v893, %v905
      %v931 = vmul.f32 %v894, %v905
      %v932 = vmul.f32 %v895, %v905
      %v933 = vmul.f32 %v896, %v905
      %v934 = vmul.f32 %v897, %v905
      %v935 = vmul.f32 %v898, %v905
      %v936 = vmul.f32 %v899, %v905
      %v937 = vmul.f32 %v900, %v905
      %v938 = vmul.f32 %v901, %v905
      %v939 = vadd.f32 %v838, %v907
      %v940 = vadd.f32 %v839, %v908
      %v941 = vadd.f32 %v840, %v909
      %v942 = vadd.f32 %v841, %v910
      %v943 = vadd.f32 %v842, %v911
      %v944 = vadd.f32 %v843, %v912
      %v945 = vadd.f32 %v844, %v913
      %v946 = vadd.f32 %v845, %v914
      %v947 = vadd.f32 %v846, %v915
      %v948 = vadd.f32 %v847, %v916
      %v949 = vadd.f32 %v848, %v917
      %v950 = vadd.f32 %v849, %v918
      %v951 = vadd.f32 %v850, %v919
      %v952 = vadd.f32 %v851, %v920
      %v953 = vadd.f32 %v852, %v921
      %v954 = vadd.f32 %v853, %v922
      %v955 = vadd.f32 %v854, %v923
      %v956 = vadd.f32 %v855, %v924
      %v957 = vadd.f32 %v856, %v925
      %v958 = vadd.f32 %v857, %v926
      %v959 = vadd.f32 %v858, %v927
      %v960 = vadd.f32 %v859, %v928
      %v961 = vadd.f32 %v860, %v929
      %v962 = vadd.f32 %v861, %v930
      %v963 = vadd.f32 %v862, %v931
      %v964 = vadd.f32 %v863, %v932
      %v965 = vadd.f32 %v864, %v933
      %v966 = vadd.f32 %v865, %v934
      %v967 = vadd.f32 %v866, %v935
      %v968 = vadd.f32 %v867, %v936
      %v969 = vadd.f32 %v868, %v937
      %v970 = vadd.f32 %v869, %v938
      %v971 = vld [vmem:[#allocation2 + $0x2] sm:$0xff]
      %v972 = vld [vmem:[#allocation2 + $0xa] sm:$0xff]
      %v973 = vld [vmem:[#allocation2 + $0x1a] sm:$0xff]
      %v974 = vld [vmem:[#allocation2 + $0x22] sm:$0xff]
      %v975 = vld [vmem:[#allocation2 + $0x32] sm:$0xff]
      %v976 = vld [vmem:[#allocation2 + $0x3a] sm:$0xff]
      %v977 = vld [vmem:[#allocation2 + $0x4a] sm:$0xff]
      %v978 = vld [vmem:[#allocation2 + $0x52] sm:$0xff]
      %v979 = vld [vmem:[#allocation2 + $0x62] sm:$0xff]
      %v980 = vld [vmem:[#allocation2 + $0x6a] sm:$0xff]
      %v981 = vld [vmem:[#allocation2 + $0x7a] sm:$0xff]
      %v982 = vld [vmem:[#allocation2 + $0x82] sm:$0xff]
      %v983 = vld [vmem:[#allocation2 + $0x92] sm:$0xff]
      %v984 = vld [vmem:[#allocation2 + $0x9a] sm:$0xff]
      %v985 = vld [vmem:[#allocation2 + $0xaa] sm:$0xff]
      %v986 = vld [vmem:[#allocation2 + $0xb2] sm:$0xff]
      %v987 = vld [vmem:[#allocation2 + $0xc2] sm:$0xff]
      %v988 = vld [vmem:[#allocation2 + $0xca] sm:$0xff]
      %v989 = vld [vmem:[#allocation2 + $0xda] sm:$0xff]
      %v990 = vld [vmem:[#allocation2 + $0xe2] sm:$0xff]
      %v991 = vld [vmem:[#allocation2 + $0xf2] sm:$0xff]
      %v992 = vld [vmem:[#allocation2 + $0xfa] sm:$0xff]
      %v993 = vld [vmem:[#allocation2 + $0x10a] sm:$0xff]
      %v994 = vld [vmem:[#allocation2 + $0x112] sm:$0xff]
      %v995 = vld [vmem:[#allocation2 + $0x122] sm:$0xff]
      %v996 = vld [vmem:[#allocation2 + $0x12a] sm:$0xff]
      %v997 = vld [vmem:[#allocation2 + $0x13a] sm:$0xff]
      %v998 = vld [vmem:[#allocation2 + $0x142] sm:$0xff]
      %v999 = vld [vmem:[#allocation2 + $0x152] sm:$0xff]
      %v1000 = vld [vmem:[#allocation2 + $0x15a] sm:$0xff]
      %v1001 = vld [vmem:[#allocation2 + $0x16a] sm:$0xff]
      %v1002 = vld [vmem:[#allocation2 + $0x172] sm:$0xff]
      %s1003 = scalar_lea.vmem %s4, 2
      %v1004 = vld [vmem:[%s1003] sm:$0x1]
      %v1006 = vperm.slane %v1004, 0
      %v1008 = vmul.f32 %v971, %v1006
      %v1009 = vmul.f32 %v972, %v1006
      %v1010 = vmul.f32 %v973, %v1006
      %v1011 = vmul.f32 %v974, %v1006
      %v1012 = vmul.f32 %v975, %v1006
      %v1013 = vmul.f32 %v976, %v1006
      %v1014 = vmul.f32 %v977, %v1006
      %v1015 = vmul.f32 %v978, %v1006
      %v1016 = vmul.f32 %v979, %v1006
      %v1017 = vmul.f32 %v980, %v1006
      %v1018 = vmul.f32 %v981, %v1006
      %v1019 = vmul.f32 %v982, %v1006
      %v1020 = vmul.f32 %v983, %v1006
      %v1021 = vmul.f32 %v984, %v1006
      %v1022 = vmul.f32 %v985, %v1006
      %v1023 = vmul.f32 %v986, %v1006
      %v1024 = vmul.f32 %v987, %v1006
      %v1025 = vmul.f32 %v988, %v1006
      %v1026 = vmul.f32 %v989, %v1006
      %v1027 = vmul.f32 %v990, %v1006
      %v1028 = vmul.f32 %v991, %v1006
      %v1029 = vmul.f32 %v992, %v1006
      %v1030 = vmul.f32 %v993, %v1006
      %v1031 = vmul.f32 %v994, %v1006
      %v1032 = vmul.f32 %v995, %v1006
      %v1033 = vmul.f32 %v996, %v1006
      %v1034 = vmul.f32 %v997, %v1006
      %v1035 = vmul.f32 %v998, %v1006
      %v1036 = vmul.f32 %v999, %v1006
      %v1037 = vmul.f32 %v1000, %v1006
      %v1038 = vmul.f32 %v1001, %v1006
      %v1039 = vmul.f32 %v1002, %v1006
      %v1040 = vadd.f32 %v939, %v1008
      %v1041 = vadd.f32 %v940, %v1009
      %v1042 = vadd.f32 %v941, %v1010
      %v1043 = vadd.f32 %v942, %v1011
      %v1044 = vadd.f32 %v943, %v1012
      %v1045 = vadd.f32 %v944, %v1013
      %v1046 = vadd.f32 %v945, %v1014
      %v1047 = vadd.f32 %v946, %v1015
      %v1048 = vadd.f32 %v947, %v1016
      %v1049 = vadd.f32 %v948, %v1017
      %v1050 = vadd.f32 %v949, %v1018
      %v1051 = vadd.f32 %v950, %v1019
      %v1052 = vadd.f32 %v951, %v1020
      %v1053 = vadd.f32 %v952, %v1021
      %v1054 = vadd.f32 %v953, %v1022
      %v1055 = vadd.f32 %v954, %v1023
      %v1056 = vadd.f32 %v955, %v1024
      %v1057 = vadd.f32 %v956, %v1025
      %v1058 = vadd.f32 %v957, %v1026
      %v1059 = vadd.f32 %v958, %v1027
      %v1060 = vadd.f32 %v959, %v1028
      %v1061 = vadd.f32 %v960, %v1029
      %v1062 = vadd.f32 %v961, %v1030
      %v1063 = vadd.f32 %v962, %v1031
      %v1064 = vadd.f32 %v963, %v1032
      %v1065 = vadd.f32 %v964, %v1033
      %v1066 = vadd.f32 %v965, %v1034
      %v1067 = vadd.f32 %v966, %v1035
      %v1068 = vadd.f32 %v967, %v1036
      %v1069 = vadd.f32 %v968, %v1037
      %v1070 = vadd.f32 %v969, %v1038
      %v1071 = vadd.f32 %v970, %v1039
      %v1072 = vld [vmem:[#allocation2 + $0x3] sm:$0xff]
      %v1073 = vld [vmem:[#allocation2 + $0xb] sm:$0xff]
      %v1074 = vld [vmem:[#allocation2 + $0x1b] sm:$0xff]
      %v1075 = vld [vmem:[#allocation2 + $0x23] sm:$0xff]
      %v1076 = vld [vmem:[#allocation2 + $0x33] sm:$0xff]
      %v1077 = vld [vmem:[#allocation2 + $0x3b] sm:$0xff]
      %v1078 = vld [vmem:[#allocation2 + $0x4b] sm:$0xff]
      %v1079 = vld [vmem:[#allocation2 + $0x53] sm:$0xff]
      %v1080 = vld [vmem:[#allocation2 + $0x63] sm:$0xff]
      %v1081 = vld [vmem:[#allocation2 + $0x6b] sm:$0xff]
      %v1082 = vld [vmem:[#allocation2 + $0x7b] sm:$0xff]
      %v1083 = vld [vmem:[#allocation2 + $0x83] sm:$0xff]
      %v1084 = vld [vmem:[#allocation2 + $0x93] sm:$0xff]
      %v1085 = vld [vmem:[#allocation2 + $0x9b] sm:$0xff]
      %v1086 = vld [vmem:[#allocation2 + $0xab] sm:$0xff]
      %v1087 = vld [vmem:[#allocation2 + $0xb3] sm:$0xff]
      %v1088 = vld [vmem:[#allocation2 + $0xc3] sm:$0xff]
      %v1089 = vld [vmem:[#allocation2 + $0xcb] sm:$0xff]
      %v1090 = vld [vmem:[#allocation2 + $0xdb] sm:$0xff]
      %v1091 = vld [vmem:[#allocation2 + $0xe3] sm:$0xff]
      %v1092 = vld [vmem:[#allocation2 + $0xf3] sm:$0xff]
      %v1093 = vld [vmem:[#allocation2 + $0xfb] sm:$0xff]
      %v1094 = vld [vmem:[#allocation2 + $0x10b] sm:$0xff]
      %v1095 = vld [vmem:[#allocation2 + $0x113] sm:$0xff]
      %v1096 = vld [vmem:[#allocation2 + $0x123] sm:$0xff]
      %v1097 = vld [vmem:[#allocation2 + $0x12b] sm:$0xff]
      %v1098 = vld [vmem:[#allocation2 + $0x13b] sm:$0xff]
      %v1099 = vld [vmem:[#allocation2 + $0x143] sm:$0xff]
      %v1100 = vld [vmem:[#allocation2 + $0x153] sm:$0xff]
      %v1101 = vld [vmem:[#allocation2 + $0x15b] sm:$0xff]
      %v1102 = vld [vmem:[#allocation2 + $0x16b] sm:$0xff]
      %v1103 = vld [vmem:[#allocation2 + $0x173] sm:$0xff]
      %s1104 = scalar_lea.vmem %s4, 3
      %v1105 = vld [vmem:[%s1104] sm:$0x1]
      %v1107 = vperm.slane %v1105, 0
      %v1109 = vmul.f32 %v1072, %v1107
      %v1110 = vmul.f32 %v1073, %v1107
      %v1111 = vmul.f32 %v1074, %v1107
      %v1112 = vmul.f32 %v1075, %v1107
      %v1113 = vmul.f32 %v1076, %v1107
      %v1114 = vmul.f32 %v1077, %v1107
      %v1115 = vmul.f32 %v1078, %v1107
      %v1116 = vmul.f32 %v1079, %v1107
      %v1117 = vmul.f32 %v1080, %v1107
      %v1118 = vmul.f32 %v1081, %v1107
      %v1119 = vmul.f32 %v1082, %v1107
      %v1120 = vmul.f32 %v1083, %v1107
      %v1121 = vmul.f32 %v1084, %v1107
      %v1122 = vmul.f32 %v1085, %v1107
      %v1123 = vmul.f32 %v1086, %v1107
      %v1124 = vmul.f32 %v1087, %v1107
      %v1125 = vmul.f32 %v1088, %v1107
      %v1126 = vmul.f32 %v1089, %v1107
      %v1127 = vmul.f32 %v1090, %v1107
      %v1128 = vmul.f32 %v1091, %v1107
      %v1129 = vmul.f32 %v1092, %v1107
      %v1130 = vmul.f32 %v1093, %v1107
      %v1131 = vmul.f32 %v1094, %v1107
      %v1132 = vmul.f32 %v1095, %v1107
      %v1133 = vmul.f32 %v1096, %v1107
      %v1134 = vmul.f32 %v1097, %v1107
      %v1135 = vmul.f32 %v1098, %v1107
      %v1136 = vmul.f32 %v1099, %v1107
      %v1137 = vmul.f32 %v1100, %v1107
      %v1138 = vmul.f32 %v1101, %v1107
      %v1139 = vmul.f32 %v1102, %v1107
      %v1140 = vmul.f32 %v1103, %v1107
      %v1141 = vadd.f32 %v1040, %v1109
      %v1142 = vadd.f32 %v1041, %v1110
      %v1143 = vadd.f32 %v1042, %v1111
      %v1144 = vadd.f32 %v1043, %v1112
      %v1145 = vadd.f32 %v1044, %v1113
      %v1146 = vadd.f32 %v1045, %v1114
      %v1147 = vadd.f32 %v1046, %v1115
      %v1148 = vadd.f32 %v1047, %v1116
      %v1149 = vadd.f32 %v1048, %v1117
      %v1150 = vadd.f32 %v1049, %v1118
      %v1151 = vadd.f32 %v1050, %v1119
      %v1152 = vadd.f32 %v1051, %v1120
      %v1153 = vadd.f32 %v1052, %v1121
      %v1154 = vadd.f32 %v1053, %v1122
      %v1155 = vadd.f32 %v1054, %v1123
      %v1156 = vadd.f32 %v1055, %v1124
      %v1157 = vadd.f32 %v1056, %v1125
      %v1158 = vadd.f32 %v1057, %v1126
      %v1159 = vadd.f32 %v1058, %v1127
      %v1160 = vadd.f32 %v1059, %v1128
      %v1161 = vadd.f32 %v1060, %v1129
      %v1162 = vadd.f32 %v1061, %v1130
      %v1163 = vadd.f32 %v1062, %v1131
      %v1164 = vadd.f32 %v1063, %v1132
      %v1165 = vadd.f32 %v1064, %v1133
      %v1166 = vadd.f32 %v1065, %v1134
      %v1167 = vadd.f32 %v1066, %v1135
      %v1168 = vadd.f32 %v1067, %v1136
      %v1169 = vadd.f32 %v1068, %v1137
      %v1170 = vadd.f32 %v1069, %v1138
      %v1171 = vadd.f32 %v1070, %v1139
      %v1172 = vadd.f32 %v1071, %v1140
      %v1173 = vld [vmem:[#allocation2 + $0x4] sm:$0xff]
      %v1174 = vld [vmem:[#allocation2 + $0xc] sm:$0xff]
      %v1175 = vld [vmem:[#allocation2 + $0x1c] sm:$0xff]
      %v1176 = vld [vmem:[#allocation2 + $0x24] sm:$0xff]
      %v1177 = vld [vmem:[#allocation2 + $0x34] sm:$0xff]
      %v1178 = vld [vmem:[#allocation2 + $0x3c] sm:$0xff]
      %v1179 = vld [vmem:[#allocation2 + $0x4c] sm:$0xff]
      %v1180 = vld [vmem:[#allocation2 + $0x54] sm:$0xff]
      %v1181 = vld [vmem:[#allocation2 + $0x64] sm:$0xff]
      %v1182 = vld [vmem:[#allocation2 + $0x6c] sm:$0xff]
      %v1183 = vld [vmem:[#allocation2 + $0x7c] sm:$0xff]
      %v1184 = vld [vmem:[#allocation2 + $0x84] sm:$0xff]
      %v1185 = vld [vmem:[#allocation2 + $0x94] sm:$0xff]
      %v1186 = vld [vmem:[#allocation2 + $0x9c] sm:$0xff]
      %v1187 = vld [vmem:[#allocation2 + $0xac] sm:$0xff]
      %v1188 = vld [vmem:[#allocation2 + $0xb4] sm:$0xff]
      %v1189 = vld [vmem:[#allocation2 + $0xc4] sm:$0xff]
      %v1190 = vld [vmem:[#allocation2 + $0xcc] sm:$0xff]
      %v1191 = vld [vmem:[#allocation2 + $0xdc] sm:$0xff]
      %v1192 = vld [vmem:[#allocation2 + $0xe4] sm:$0xff]
      %v1193 = vld [vmem:[#allocation2 + $0xf4] sm:$0xff]
      %v1194 = vld [vmem:[#allocation2 + $0xfc] sm:$0xff]
      %v1195 = vld [vmem:[#allocation2 + $0x10c] sm:$0xff]
      %v1196 = vld [vmem:[#allocation2 + $0x114] sm:$0xff]
      %v1197 = vld [vmem:[#allocation2 + $0x124] sm:$0xff]
      %v1198 = vld [vmem:[#allocation2 + $0x12c] sm:$0xff]
      %v1199 = vld [vmem:[#allocation2 + $0x13c] sm:$0xff]
      %v1200 = vld [vmem:[#allocation2 + $0x144] sm:$0xff]
      %v1201 = vld [vmem:[#allocation2 + $0x154] sm:$0xff]
      %v1202 = vld [vmem:[#allocation2 + $0x15c] sm:$0xff]
      %v1203 = vld [vmem:[#allocation2 + $0x16c] sm:$0xff]
      %v1204 = vld [vmem:[#allocation2 + $0x174] sm:$0xff]
      %s1205 = scalar_lea.vmem %s4, 4
      %v1206 = vld [vmem:[%s1205] sm:$0x1]
      %v1208 = vperm.slane %v1206, 0
      %v1210 = vmul.f32 %v1173, %v1208
      %v1211 = vmul.f32 %v1174, %v1208
      %v1212 = vmul.f32 %v1175, %v1208
      %v1213 = vmul.f32 %v1176, %v1208
      %v1214 = vmul.f32 %v1177, %v1208
      %v1215 = vmul.f32 %v1178, %v1208
      %v1216 = vmul.f32 %v1179, %v1208
      %v1217 = vmul.f32 %v1180, %v1208
      %v1218 = vmul.f32 %v1181, %v1208
      %v1219 = vmul.f32 %v1182, %v1208
      %v1220 = vmul.f32 %v1183, %v1208
      %v1221 = vmul.f32 %v1184, %v1208
      %v1222 = vmul.f32 %v1185, %v1208
      %v1223 = vmul.f32 %v1186, %v1208
      %v1224 = vmul.f32 %v1187, %v1208
      %v1225 = vmul.f32 %v1188, %v1208
      %v1226 = vmul.f32 %v1189, %v1208
      %v1227 = vmul.f32 %v1190, %v1208
      %v1228 = vmul.f32 %v1191, %v1208
      %v1229 = vmul.f32 %v1192, %v1208
      %v1230 = vmul.f32 %v1193, %v1208
      %v1231 = vmul.f32 %v1194, %v1208
      %v1232 = vmul.f32 %v1195, %v1208
      %v1233 = vmul.f32 %v1196, %v1208
      %v1234 = vmul.f32 %v1197, %v1208
      %v1235 = vmul.f32 %v1198, %v1208
      %v1236 = vmul.f32 %v1199, %v1208
      %v1237 = vmul.f32 %v1200, %v1208
      %v1238 = vmul.f32 %v1201, %v1208
      %v1239 = vmul.f32 %v1202, %v1208
      %v1240 = vmul.f32 %v1203, %v1208
      %v1241 = vmul.f32 %v1204, %v1208
      %v1242 = vadd.f32 %v1141, %v1210
      %v1243 = vadd.f32 %v1142, %v1211
      %v1244 = vadd.f32 %v1143, %v1212
      %v1245 = vadd.f32 %v1144, %v1213
      %v1246 = vadd.f32 %v1145, %v1214
      %v1247 = vadd.f32 %v1146, %v1215
      %v1248 = vadd.f32 %v1147, %v1216
      %v1249 = vadd.f32 %v1148, %v1217
      %v1250 = vadd.f32 %v1149, %v1218
      %v1251 = vadd.f32 %v1150, %v1219
      %v1252 = vadd.f32 %v1151, %v1220
      %v1253 = vadd.f32 %v1152, %v1221
      %v1254 = vadd.f32 %v1153, %v1222
      %v1255 = vadd.f32 %v1154, %v1223
      %v1256 = vadd.f32 %v1155, %v1224
      %v1257 = vadd.f32 %v1156, %v1225
      %v1258 = vadd.f32 %v1157, %v1226
      %v1259 = vadd.f32 %v1158, %v1227
      %v1260 = vadd.f32 %v1159, %v1228
      %v1261 = vadd.f32 %v1160, %v1229
      %v1262 = vadd.f32 %v1161, %v1230
      %v1263 = vadd.f32 %v1162, %v1231
      %v1264 = vadd.f32 %v1163, %v1232
      %v1265 = vadd.f32 %v1164, %v1233
      %v1266 = vadd.f32 %v1165, %v1234
      %v1267 = vadd.f32 %v1166, %v1235
      %v1268 = vadd.f32 %v1167, %v1236
      %v1269 = vadd.f32 %v1168, %v1237
      %v1270 = vadd.f32 %v1169, %v1238
      %v1271 = vadd.f32 %v1170, %v1239
      %v1272 = vadd.f32 %v1171, %v1240
      %v1273 = vadd.f32 %v1172, %v1241
      %v1274 = vld [vmem:[#allocation2 + $0x5] sm:$0xff]
      %v1275 = vld [vmem:[#allocation2 + $0xd] sm:$0xff]
      %v1276 = vld [vmem:[#allocation2 + $0x1d] sm:$0xff]
      %v1277 = vld [vmem:[#allocation2 + $0x25] sm:$0xff]
      %v1278 = vld [vmem:[#allocation2 + $0x35] sm:$0xff]
      %v1279 = vld [vmem:[#allocation2 + $0x3d] sm:$0xff]
      %v1280 = vld [vmem:[#allocation2 + $0x4d] sm:$0xff]
      %v1281 = vld [vmem:[#allocation2 + $0x55] sm:$0xff]
      %v1282 = vld [vmem:[#allocation2 + $0x65] sm:$0xff]
      %v1283 = vld [vmem:[#allocation2 + $0x6d] sm:$0xff]
      %v1284 = vld [vmem:[#allocation2 + $0x7d] sm:$0xff]
      %v1285 = vld [vmem:[#allocation2 + $0x85] sm:$0xff]
      %v1286 = vld [vmem:[#allocation2 + $0x95] sm:$0xff]
      %v1287 = vld [vmem:[#allocation2 + $0x9d] sm:$0xff]
      %v1288 = vld [vmem:[#allocation2 + $0xad] sm:$0xff]
      %v1289 = vld [vmem:[#allocation2 + $0xb5] sm:$0xff]
      %v1290 = vld [vmem:[#allocation2 + $0xc5] sm:$0xff]
      %v1291 = vld [vmem:[#allocation2 + $0xcd] sm:$0xff]
      %v1292 = vld [vmem:[#allocation2 + $0xdd] sm:$0xff]
      %v1293 = vld [vmem:[#allocation2 + $0xe5] sm:$0xff]
      %v1294 = vld [vmem:[#allocation2 + $0xf5] sm:$0xff]
      %v1295 = vld [vmem:[#allocation2 + $0xfd] sm:$0xff]
      %v1296 = vld [vmem:[#allocation2 + $0x10d] sm:$0xff]
      %v1297 = vld [vmem:[#allocation2 + $0x115] sm:$0xff]
      %v1298 = vld [vmem:[#allocation2 + $0x125] sm:$0xff]
      %v1299 = vld [vmem:[#allocation2 + $0x12d] sm:$0xff]
      %v1300 = vld [vmem:[#allocation2 + $0x13d] sm:$0xff]
      %v1301 = vld [vmem:[#allocation2 + $0x145] sm:$0xff]
      %v1302 = vld [vmem:[#allocation2 + $0x155] sm:$0xff]
      %v1303 = vld [vmem:[#allocation2 + $0x15d] sm:$0xff]
      %v1304 = vld [vmem:[#allocation2 + $0x16d] sm:$0xff]
      %v1305 = vld [vmem:[#allocation2 + $0x175] sm:$0xff]
      %s1306 = scalar_lea.vmem %s4, 5
      %v1307 = vld [vmem:[%s1306] sm:$0x1]
      %v1309 = vperm.slane %v1307, 0
      %v1311 = vmul.f32 %v1274, %v1309
      %v1312 = vmul.f32 %v1275, %v1309
      %v1313 = vmul.f32 %v1276, %v1309
      %v1314 = vmul.f32 %v1277, %v1309
      %v1315 = vmul.f32 %v1278, %v1309
      %v1316 = vmul.f32 %v1279, %v1309
      %v1317 = vmul.f32 %v1280, %v1309
      %v1318 = vmul.f32 %v1281, %v1309
      %v1319 = vmul.f32 %v1282, %v1309
      %v1320 = vmul.f32 %v1283, %v1309
      %v1321 = vmul.f32 %v1284, %v1309
      %v1322 = vmul.f32 %v1285, %v1309
      %v1323 = vmul.f32 %v1286, %v1309
      %v1324 = vmul.f32 %v1287, %v1309
      %v1325 = vmul.f32 %v1288, %v1309
      %v1326 = vmul.f32 %v1289, %v1309
      %v1327 = vmul.f32 %v1290, %v1309
      %v1328 = vmul.f32 %v1291, %v1309
      %v1329 = vmul.f32 %v1292, %v1309
      %v1330 = vmul.f32 %v1293, %v1309
      %v1331 = vmul.f32 %v1294, %v1309
      %v1332 = vmul.f32 %v1295, %v1309
      %v1333 = vmul.f32 %v1296, %v1309
      %v1334 = vmul.f32 %v1297, %v1309
      %v1335 = vmul.f32 %v1298, %v1309
      %v1336 = vmul.f32 %v1299, %v1309
      %v1337 = vmul.f32 %v1300, %v1309
      %v1338 = vmul.f32 %v1301, %v1309
      %v1339 = vmul.f32 %v1302, %v1309
      %v1340 = vmul.f32 %v1303, %v1309
      %v1341 = vmul.f32 %v1304, %v1309
      %v1342 = vmul.f32 %v1305, %v1309
      %v1343 = vadd.f32 %v1242, %v1311
      %v1344 = vadd.f32 %v1243, %v1312
      %v1345 = vadd.f32 %v1244, %v1313
      %v1346 = vadd.f32 %v1245, %v1314
      %v1347 = vadd.f32 %v1246, %v1315
      %v1348 = vadd.f32 %v1247, %v1316
      %v1349 = vadd.f32 %v1248, %v1317
      %v1350 = vadd.f32 %v1249, %v1318
      %v1351 = vadd.f32 %v1250, %v1319
      %v1352 = vadd.f32 %v1251, %v1320
      %v1353 = vadd.f32 %v1252, %v1321
      %v1354 = vadd.f32 %v1253, %v1322
      %v1355 = vadd.f32 %v1254, %v1323
      %v1356 = vadd.f32 %v1255, %v1324
      %v1357 = vadd.f32 %v1256, %v1325
      %v1358 = vadd.f32 %v1257, %v1326
      %v1359 = vadd.f32 %v1258, %v1327
      %v1360 = vadd.f32 %v1259, %v1328
      %v1361 = vadd.f32 %v1260, %v1329
      %v1362 = vadd.f32 %v1261, %v1330
      %v1363 = vadd.f32 %v1262, %v1331
      %v1364 = vadd.f32 %v1263, %v1332
      %v1365 = vadd.f32 %v1264, %v1333
      %v1366 = vadd.f32 %v1265, %v1334
      %v1367 = vadd.f32 %v1266, %v1335
      %v1368 = vadd.f32 %v1267, %v1336
      %v1369 = vadd.f32 %v1268, %v1337
      %v1370 = vadd.f32 %v1269, %v1338
      %v1371 = vadd.f32 %v1270, %v1339
      %v1372 = vadd.f32 %v1271, %v1340
      %v1373 = vadd.f32 %v1272, %v1341
      %v1374 = vadd.f32 %v1273, %v1342
      %v1375 = vld [vmem:[#allocation2 + $0x6] sm:$0xff]
      %v1376 = vld [vmem:[#allocation2 + $0xe] sm:$0xff]
      %v1377 = vld [vmem:[#allocation2 + $0x1e] sm:$0xff]
      %v1378 = vld [vmem:[#allocation2 + $0x26] sm:$0xff]
      %v1379 = vld [vmem:[#allocation2 + $0x36] sm:$0xff]
      %v1380 = vld [vmem:[#allocation2 + $0x3e] sm:$0xff]
      %v1381 = vld [vmem:[#allocation2 + $0x4e] sm:$0xff]
      %v1382 = vld [vmem:[#allocation2 + $0x56] sm:$0xff]
      %v1383 = vld [vmem:[#allocation2 + $0x66] sm:$0xff]
      %v1384 = vld [vmem:[#allocation2 + $0x6e] sm:$0xff]
      %v1385 = vld [vmem:[#allocation2 + $0x7e] sm:$0xff]
      %v1386 = vld [vmem:[#allocation2 + $0x86] sm:$0xff]
      %v1387 = vld [vmem:[#allocation2 + $0x96] sm:$0xff]
      %v1388 = vld [vmem:[#allocation2 + $0x9e] sm:$0xff]
      %v1389 = vld [vmem:[#allocation2 + $0xae] sm:$0xff]
      %v1390 = vld [vmem:[#allocation2 + $0xb6] sm:$0xff]
      %v1391 = vld [vmem:[#allocation2 + $0xc6] sm:$0xff]
      %v1392 = vld [vmem:[#allocation2 + $0xce] sm:$0xff]
      %v1393 = vld [vmem:[#allocation2 + $0xde] sm:$0xff]
      %v1394 = vld [vmem:[#allocation2 + $0xe6] sm:$0xff]
      %v1395 = vld [vmem:[#allocation2 + $0xf6] sm:$0xff]
      %v1396 = vld [vmem:[#allocation2 + $0xfe] sm:$0xff]
      %v1397 = vld [vmem:[#allocation2 + $0x10e] sm:$0xff]
      %v1398 = vld [vmem:[#allocation2 + $0x116] sm:$0xff]
      %v1399 = vld [vmem:[#allocation2 + $0x126] sm:$0xff]
      %v1400 = vld [vmem:[#allocation2 + $0x12e] sm:$0xff]
      %v1401 = vld [vmem:[#allocation2 + $0x13e] sm:$0xff]
      %v1402 = vld [vmem:[#allocation2 + $0x146] sm:$0xff]
      %v1403 = vld [vmem:[#allocation2 + $0x156] sm:$0xff]
      %v1404 = vld [vmem:[#allocation2 + $0x15e] sm:$0xff]
      %v1405 = vld [vmem:[#allocation2 + $0x16e] sm:$0xff]
      %v1406 = vld [vmem:[#allocation2 + $0x176] sm:$0xff]
      %s1407 = scalar_lea.vmem %s4, 6
      %v1408 = vld [vmem:[%s1407] sm:$0x1]
      %v1410 = vperm.slane %v1408, 0
      %v1412 = vmul.f32 %v1375, %v1410
      %v1413 = vmul.f32 %v1376, %v1410
      %v1414 = vmul.f32 %v1377, %v1410
      %v1415 = vmul.f32 %v1378, %v1410
      %v1416 = vmul.f32 %v1379, %v1410
      %v1417 = vmul.f32 %v1380, %v1410
      %v1418 = vmul.f32 %v1381, %v1410
      %v1419 = vmul.f32 %v1382, %v1410
      %v1420 = vmul.f32 %v1383, %v1410
      %v1421 = vmul.f32 %v1384, %v1410
      %v1422 = vmul.f32 %v1385, %v1410
      %v1423 = vmul.f32 %v1386, %v1410
      %v1424 = vmul.f32 %v1387, %v1410
      %v1425 = vmul.f32 %v1388, %v1410
      %v1426 = vmul.f32 %v1389, %v1410
      %v1427 = vmul.f32 %v1390, %v1410
      %v1428 = vmul.f32 %v1391, %v1410
      %v1429 = vmul.f32 %v1392, %v1410
      %v1430 = vmul.f32 %v1393, %v1410
      %v1431 = vmul.f32 %v1394, %v1410
      %v1432 = vmul.f32 %v1395, %v1410
      %v1433 = vmul.f32 %v1396, %v1410
      %v1434 = vmul.f32 %v1397, %v1410
      %v1435 = vmul.f32 %v1398, %v1410
      %v1436 = vmul.f32 %v1399, %v1410
      %v1437 = vmul.f32 %v1400, %v1410
      %v1438 = vmul.f32 %v1401, %v1410
      %v1439 = vmul.f32 %v1402, %v1410
      %v1440 = vmul.f32 %v1403, %v1410
      %v1441 = vmul.f32 %v1404, %v1410
      %v1442 = vmul.f32 %v1405, %v1410
      %v1443 = vmul.f32 %v1406, %v1410
      %v1444 = vadd.f32 %v1343, %v1412
      %v1445 = vadd.f32 %v1344, %v1413
      %v1446 = vadd.f32 %v1345, %v1414
      %v1447 = vadd.f32 %v1346, %v1415
      %v1448 = vadd.f32 %v1347, %v1416
      %v1449 = vadd.f32 %v1348, %v1417
      %v1450 = vadd.f32 %v1349, %v1418
      %v1451 = vadd.f32 %v1350, %v1419
      %v1452 = vadd.f32 %v1351, %v1420
      %v1453 = vadd.f32 %v1352, %v1421
      %v1454 = vadd.f32 %v1353, %v1422
      %v1455 = vadd.f32 %v1354, %v1423
      %v1456 = vadd.f32 %v1355, %v1424
      %v1457 = vadd.f32 %v1356, %v1425
      %v1458 = vadd.f32 %v1357, %v1426
      %v1459 = vadd.f32 %v1358, %v1427
      %v1460 = vadd.f32 %v1359, %v1428
      %v1461 = vadd.f32 %v1360, %v1429
      %v1462 = vadd.f32 %v1361, %v1430
      %v1463 = vadd.f32 %v1362, %v1431
      %v1464 = vadd.f32 %v1363, %v1432
      %v1465 = vadd.f32 %v1364, %v1433
      %v1466 = vadd.f32 %v1365, %v1434
      %v1467 = vadd.f32 %v1366, %v1435
      %v1468 = vadd.f32 %v1367, %v1436
      %v1469 = vadd.f32 %v1368, %v1437
      %v1470 = vadd.f32 %v1369, %v1438
      %v1471 = vadd.f32 %v1370, %v1439
      %v1472 = vadd.f32 %v1371, %v1440
      %v1473 = vadd.f32 %v1372, %v1441
      %v1474 = vadd.f32 %v1373, %v1442
      %v1475 = vadd.f32 %v1374, %v1443
      %s1476 = scalar_lea.vmem [#allocation2], 24
      %v1477 = vld [vmem:[%s1476] sm:$0xff]
      %v1478 = vld [vmem:[%s1476 + $0x8] sm:$0xff]
      %v1479 = vld [vmem:[%s1476 + $0x18] sm:$0xff]
      %v1480 = vld [vmem:[%s1476 + $0x20] sm:$0xff]
      %v1481 = vld [vmem:[%s1476 + $0x30] sm:$0xff]
      %v1482 = vld [vmem:[%s1476 + $0x38] sm:$0xff]
      %v1483 = vld [vmem:[%s1476 + $0x48] sm:$0xff]
      %v1484 = vld [vmem:[%s1476 + $0x50] sm:$0xff]
      %v1485 = vld [vmem:[%s1476 + $0x60] sm:$0xff]
      %v1486 = vld [vmem:[%s1476 + $0x68] sm:$0xff]
      %v1487 = vld [vmem:[%s1476 + $0x78] sm:$0xff]
      %v1488 = vld [vmem:[%s1476 + $0x80] sm:$0xff]
      %v1489 = vld [vmem:[%s1476 + $0x90] sm:$0xff]
      %v1490 = vld [vmem:[%s1476 + $0x98] sm:$0xff]
      %v1491 = vld [vmem:[%s1476 + $0xa8] sm:$0xff]
      %v1492 = vld [vmem:[%s1476 + $0xb0] sm:$0xff]
      %v1493 = vld [vmem:[%s1476 + $0xc0] sm:$0xff]
      %v1494 = vld [vmem:[%s1476 + $0xc8] sm:$0xff]
      %v1495 = vld [vmem:[%s1476 + $0xd8] sm:$0xff]
      %v1496 = vld [vmem:[%s1476 + $0xe0] sm:$0xff]
      %v1497 = vld [vmem:[%s1476 + $0xf0] sm:$0xff]
      %v1498 = vld [vmem:[%s1476 + $0xf8] sm:$0xff]
      %v1499 = vld [vmem:[%s1476 + $0x108] sm:$0xff]
      %v1500 = vld [vmem:[%s1476 + $0x110] sm:$0xff]
      %v1501 = vld [vmem:[%s1476 + $0x120] sm:$0xff]
      %v1502 = vld [vmem:[%s1476 + $0x128] sm:$0xff]
      %v1503 = vld [vmem:[%s1476 + $0x138] sm:$0xff]
      %v1504 = vld [vmem:[%s1476 + $0x140] sm:$0xff]
      %v1505 = vld [vmem:[%s1476 + $0x150] sm:$0xff]
      %v1506 = vld [vmem:[%s1476 + $0x158] sm:$0xff]
      %v1507 = vld [vmem:[%s1476 + $0x168] sm:$0xff]
      %v1508 = vld [vmem:[%s1476 + $0x170] sm:$0xff]
      %s1509 = scalar_lea.vmem %s4, 7
      %v1510 = vld [vmem:[%s1509] sm:$0x1]
      %v1512 = vperm.slane %v1510, 0
      %v1514 = vmul.f32 %v1477, %v1512
      %v1515 = vmul.f32 %v1478, %v1512
      %v1516 = vmul.f32 %v1479, %v1512
      %v1517 = vmul.f32 %v1480, %v1512
      %v1518 = vmul.f32 %v1481, %v1512
      %v1519 = vmul.f32 %v1482, %v1512
      %v1520 = vmul.f32 %v1483, %v1512
      %v1521 = vmul.f32 %v1484, %v1512
      %v1522 = vmul.f32 %v1485, %v1512
      %v1523 = vmul.f32 %v1486, %v1512
      %v1524 = vmul.f32 %v1487, %v1512
      %v1525 = vmul.f32 %v1488, %v1512
      %v1526 = vmul.f32 %v1489, %v1512
      %v1527 = vmul.f32 %v1490, %v1512
      %v1528 = vmul.f32 %v1491, %v1512
      %v1529 = vmul.f32 %v1492, %v1512
      %v1530 = vmul.f32 %v1493, %v1512
      %v1531 = vmul.f32 %v1494, %v1512
      %v1532 = vmul.f32 %v1495, %v1512
      %v1533 = vmul.f32 %v1496, %v1512
      %v1534 = vmul.f32 %v1497, %v1512
      %v1535 = vmul.f32 %v1498, %v1512
      %v1536 = vmul.f32 %v1499, %v1512
      %v1537 = vmul.f32 %v1500, %v1512
      %v1538 = vmul.f32 %v1501, %v1512
      %v1539 = vmul.f32 %v1502, %v1512
      %v1540 = vmul.f32 %v1503, %v1512
      %v1541 = vmul.f32 %v1504, %v1512
      %v1542 = vmul.f32 %v1505, %v1512
      %v1543 = vmul.f32 %v1506, %v1512
      %v1544 = vmul.f32 %v1507, %v1512
      %v1545 = vmul.f32 %v1508, %v1512
      %v1546 = vadd.f32 %v1444, %v1514
      %v1547 = vadd.f32 %v1445, %v1515
      %v1548 = vadd.f32 %v1446, %v1516
      %v1549 = vadd.f32 %v1447, %v1517
      %v1550 = vadd.f32 %v1448, %v1518
      %v1551 = vadd.f32 %v1449, %v1519
      %v1552 = vadd.f32 %v1450, %v1520
      %v1553 = vadd.f32 %v1451, %v1521
      %v1554 = vadd.f32 %v1452, %v1522
      %v1555 = vadd.f32 %v1453, %v1523
      %v1556 = vadd.f32 %v1454, %v1524
      %v1557 = vadd.f32 %v1455, %v1525
      %v1558 = vadd.f32 %v1456, %v1526
      %v1559 = vadd.f32 %v1457, %v1527
      %v1560 = vadd.f32 %v1458, %v1528
      %v1561 = vadd.f32 %v1459, %v1529
      %v1562 = vadd.f32 %v1460, %v1530
      %v1563 = vadd.f32 %v1461, %v1531
      %v1564 = vadd.f32 %v1462, %v1532
      %v1565 = vadd.f32 %v1463, %v1533
      %v1566 = vadd.f32 %v1464, %v1534
      %v1567 = vadd.f32 %v1465, %v1535
      %v1568 = vadd.f32 %v1466, %v1536
      %v1569 = vadd.f32 %v1467, %v1537
      %v1570 = vadd.f32 %v1468, %v1538
      %v1571 = vadd.f32 %v1469, %v1539
      %v1572 = vadd.f32 %v1470, %v1540
      %v1573 = vadd.f32 %v1471, %v1541
      %v1574 = vadd.f32 %v1472, %v1542
      %v1575 = vadd.f32 %v1473, %v1543
      %v1576 = vadd.f32 %v1474, %v1544
      %v1577 = vadd.f32 %v1475, %v1545
      %v1578 = vld [vmem:[%s1476 + $0x1] sm:$0xff]
      %v1579 = vld [vmem:[%s1476 + $0x9] sm:$0xff]
      %v1580 = vld [vmem:[%s1476 + $0x19] sm:$0xff]
      %v1581 = vld [vmem:[%s1476 + $0x21] sm:$0xff]
      %v1582 = vld [vmem:[%s1476 + $0x31] sm:$0xff]
      %v1583 = vld [vmem:[%s1476 + $0x39] sm:$0xff]
      %v1584 = vld [vmem:[%s1476 + $0x49] sm:$0xff]
      %v1585 = vld [vmem:[%s1476 + $0x51] sm:$0xff]
      %v1586 = vld [vmem:[%s1476 + $0x61] sm:$0xff]
      %v1587 = vld [vmem:[%s1476 + $0x69] sm:$0xff]
      %v1588 = vld [vmem:[%s1476 + $0x79] sm:$0xff]
      %v1589 = vld [vmem:[%s1476 + $0x81] sm:$0xff]
      %v1590 = vld [vmem:[%s1476 + $0x91] sm:$0xff]
      %v1591 = vld [vmem:[%s1476 + $0x99] sm:$0xff]
      %v1592 = vld [vmem:[%s1476 + $0xa9] sm:$0xff]
      %v1593 = vld [vmem:[%s1476 + $0xb1] sm:$0xff]
      %v1594 = vld [vmem:[%s1476 + $0xc1] sm:$0xff]
      %v1595 = vld [vmem:[%s1476 + $0xc9] sm:$0xff]
      %v1596 = vld [vmem:[%s1476 + $0xd9] sm:$0xff]
      %v1597 = vld [vmem:[%s1476 + $0xe1] sm:$0xff]
      %v1598 = vld [vmem:[%s1476 + $0xf1] sm:$0xff]
      %v1599 = vld [vmem:[%s1476 + $0xf9] sm:$0xff]
      %v1600 = vld [vmem:[%s1476 + $0x109] sm:$0xff]
      %v1601 = vld [vmem:[%s1476 + $0x111] sm:$0xff]
      %v1602 = vld [vmem:[%s1476 + $0x121] sm:$0xff]
      %v1603 = vld [vmem:[%s1476 + $0x129] sm:$0xff]
      %v1604 = vld [vmem:[%s1476 + $0x139] sm:$0xff]
      %v1605 = vld [vmem:[%s1476 + $0x141] sm:$0xff]
      %v1606 = vld [vmem:[%s1476 + $0x151] sm:$0xff]
      %v1607 = vld [vmem:[%s1476 + $0x159] sm:$0xff]
      %v1608 = vld [vmem:[%s1476 + $0x169] sm:$0xff]
      %v1609 = vld [vmem:[%s1476 + $0x171] sm:$0xff]
      %s1610 = scalar_lea.vmem %s4, 8
      %v1611 = vld [vmem:[%s1610] sm:$0x1]
      %v1613 = vperm.slane %v1611, 0
      %v1615 = vmul.f32 %v1578, %v1613
      %v1616 = vmul.f32 %v1579, %v1613
      %v1617 = vmul.f32 %v1580, %v1613
      %v1618 = vmul.f32 %v1581, %v1613
      %v1619 = vmul.f32 %v1582, %v1613
      %v1620 = vmul.f32 %v1583, %v1613
      %v1621 = vmul.f32 %v1584, %v1613
      %v1622 = vmul.f32 %v1585, %v1613
      %v1623 = vmul.f32 %v1586, %v1613
      %v1624 = vmul.f32 %v1587, %v1613
      %v1625 = vmul.f32 %v1588, %v1613
      %v1626 = vmul.f32 %v1589, %v1613
      %v1627 = vmul.f32 %v1590, %v1613
      %v1628 = vmul.f32 %v1591, %v1613
      %v1629 = vmul.f32 %v1592, %v1613
      %v1630 = vmul.f32 %v1593, %v1613
      %v1631 = vmul.f32 %v1594, %v1613
      %v1632 = vmul.f32 %v1595, %v1613
      %v1633 = vmul.f32 %v1596, %v1613
      %v1634 = vmul.f32 %v1597, %v1613
      %v1635 = vmul.f32 %v1598, %v1613
      %v1636 = vmul.f32 %v1599, %v1613
      %v1637 = vmul.f32 %v1600, %v1613
      %v1638 = vmul.f32 %v1601, %v1613
      %v1639 = vmul.f32 %v1602, %v1613
      %v1640 = vmul.f32 %v1603, %v1613
      %v1641 = vmul.f32 %v1604, %v1613
      %v1642 = vmul.f32 %v1605, %v1613
      %v1643 = vmul.f32 %v1606, %v1613
      %v1644 = vmul.f32 %v1607, %v1613
      %v1645 = vmul.f32 %v1608, %v1613
      %v1646 = vmul.f32 %v1609, %v1613
      %v1647 = vadd.f32 %v1546, %v1615
      %v1648 = vadd.f32 %v1547, %v1616
      %v1649 = vadd.f32 %v1548, %v1617
      %v1650 = vadd.f32 %v1549, %v1618
      %v1651 = vadd.f32 %v1550, %v1619
      %v1652 = vadd.f32 %v1551, %v1620
      %v1653 = vadd.f32 %v1552, %v1621
      %v1654 = vadd.f32 %v1553, %v1622
      %v1655 = vadd.f32 %v1554, %v1623
      %v1656 = vadd.f32 %v1555, %v1624
      %v1657 = vadd.f32 %v1556, %v1625
      %v1658 = vadd.f32 %v1557, %v1626
      %v1659 = vadd.f32 %v1558, %v1627
      %v1660 = vadd.f32 %v1559, %v1628
      %v1661 = vadd.f32 %v1560, %v1629
      %v1662 = vadd.f32 %v1561, %v1630
      %v1663 = vadd.f32 %v1562, %v1631
      %v1664 = vadd.f32 %v1563, %v1632
      %v1665 = vadd.f32 %v1564, %v1633
      %v1666 = vadd.f32 %v1565, %v1634
      %v1667 = vadd.f32 %v1566, %v1635
      %v1668 = vadd.f32 %v1567, %v1636
      %v1669 = vadd.f32 %v1568, %v1637
      %v1670 = vadd.f32 %v1569, %v1638
      %v1671 = vadd.f32 %v1570, %v1639
      %v1672 = vadd.f32 %v1571, %v1640
      %v1673 = vadd.f32 %v1572, %v1641
      %v1674 = vadd.f32 %v1573, %v1642
      %v1675 = vadd.f32 %v1574, %v1643
      %v1676 = vadd.f32 %v1575, %v1644
      %v1677 = vadd.f32 %v1576, %v1645
      %v1678 = vadd.f32 %v1577, %v1646
      %v1679 = vld [vmem:[%s1476 + $0x2] sm:$0xff]
      %v1680 = vld [vmem:[%s1476 + $0xa] sm:$0xff]
      %v1681 = vld [vmem:[%s1476 + $0x1a] sm:$0xff]
      %v1682 = vld [vmem:[%s1476 + $0x22] sm:$0xff]
      %v1683 = vld [vmem:[%s1476 + $0x32] sm:$0xff]
      %v1684 = vld [vmem:[%s1476 + $0x3a] sm:$0xff]
      %v1685 = vld [vmem:[%s1476 + $0x4a] sm:$0xff]
      %v1686 = vld [vmem:[%s1476 + $0x52] sm:$0xff]
      %v1687 = vld [vmem:[%s1476 + $0x62] sm:$0xff]
      %v1688 = vld [vmem:[%s1476 + $0x6a] sm:$0xff]
      %v1689 = vld [vmem:[%s1476 + $0x7a] sm:$0xff]
      %v1690 = vld [vmem:[%s1476 + $0x82] sm:$0xff]
      %v1691 = vld [vmem:[%s1476 + $0x92] sm:$0xff]
      %v1692 = vld [vmem:[%s1476 + $0x9a] sm:$0xff]
      %v1693 = vld [vmem:[%s1476 + $0xaa] sm:$0xff]
      %v1694 = vld [vmem:[%s1476 + $0xb2] sm:$0xff]
      %v1695 = vld [vmem:[%s1476 + $0xc2] sm:$0xff]
      %v1696 = vld [vmem:[%s1476 + $0xca] sm:$0xff]
      %v1697 = vld [vmem:[%s1476 + $0xda] sm:$0xff]
      %v1698 = vld [vmem:[%s1476 + $0xe2] sm:$0xff]
      %v1699 = vld [vmem:[%s1476 + $0xf2] sm:$0xff]
      %v1700 = vld [vmem:[%s1476 + $0xfa] sm:$0xff]
      %v1701 = vld [vmem:[%s1476 + $0x10a] sm:$0xff]
      %v1702 = vld [vmem:[%s1476 + $0x112] sm:$0xff]
      %v1703 = vld [vmem:[%s1476 + $0x122] sm:$0xff]
      %v1704 = vld [vmem:[%s1476 + $0x12a] sm:$0xff]
      %v1705 = vld [vmem:[%s1476 + $0x13a] sm:$0xff]
      %v1706 = vld [vmem:[%s1476 + $0x142] sm:$0xff]
      %v1707 = vld [vmem:[%s1476 + $0x152] sm:$0xff]
      %v1708 = vld [vmem:[%s1476 + $0x15a] sm:$0xff]
      %v1709 = vld [vmem:[%s1476 + $0x16a] sm:$0xff]
      %v1710 = vld [vmem:[%s1476 + $0x172] sm:$0xff]
      %s1711 = scalar_lea.vmem %s4, 9
      %v1712 = vld [vmem:[%s1711] sm:$0x1]
      %v1714 = vperm.slane %v1712, 0
      %v1716 = vmul.f32 %v1679, %v1714
      %v1717 = vmul.f32 %v1680, %v1714
      %v1718 = vmul.f32 %v1681, %v1714
      %v1719 = vmul.f32 %v1682, %v1714
      %v1720 = vmul.f32 %v1683, %v1714
      %v1721 = vmul.f32 %v1684, %v1714
      %v1722 = vmul.f32 %v1685, %v1714
      %v1723 = vmul.f32 %v1686, %v1714
      %v1724 = vmul.f32 %v1687, %v1714
      %v1725 = vmul.f32 %v1688, %v1714
      %v1726 = vmul.f32 %v1689, %v1714
      %v1727 = vmul.f32 %v1690, %v1714
      %v1728 = vmul.f32 %v1691, %v1714
      %v1729 = vmul.f32 %v1692, %v1714
      %v1730 = vmul.f32 %v1693, %v1714
      %v1731 = vmul.f32 %v1694, %v1714
      %v1732 = vmul.f32 %v1695, %v1714
      %v1733 = vmul.f32 %v1696, %v1714
      %v1734 = vmul.f32 %v1697, %v1714
      %v1735 = vmul.f32 %v1698, %v1714
      %v1736 = vmul.f32 %v1699, %v1714
      %v1737 = vmul.f32 %v1700, %v1714
      %v1738 = vmul.f32 %v1701, %v1714
      %v1739 = vmul.f32 %v1702, %v1714
      %v1740 = vmul.f32 %v1703, %v1714
      %v1741 = vmul.f32 %v1704, %v1714
      %v1742 = vmul.f32 %v1705, %v1714
      %v1743 = vmul.f32 %v1706, %v1714
      %v1744 = vmul.f32 %v1707, %v1714
      %v1745 = vmul.f32 %v1708, %v1714
      %v1746 = vmul.f32 %v1709, %v1714
      %v1747 = vmul.f32 %v1710, %v1714
      %v1748 = vadd.f32 %v1647, %v1716
      %v1749 = vadd.f32 %v1648, %v1717
      %v1750 = vadd.f32 %v1649, %v1718
      %v1751 = vadd.f32 %v1650, %v1719
      %v1752 = vadd.f32 %v1651, %v1720
      %v1753 = vadd.f32 %v1652, %v1721
      %v1754 = vadd.f32 %v1653, %v1722
      %v1755 = vadd.f32 %v1654, %v1723
      %v1756 = vadd.f32 %v1655, %v1724
      %v1757 = vadd.f32 %v1656, %v1725
      %v1758 = vadd.f32 %v1657, %v1726
      %v1759 = vadd.f32 %v1658, %v1727
      %v1760 = vadd.f32 %v1659, %v1728
      %v1761 = vadd.f32 %v1660, %v1729
      %v1762 = vadd.f32 %v1661, %v1730
      %v1763 = vadd.f32 %v1662, %v1731
      %v1764 = vadd.f32 %v1663, %v1732
      %v1765 = vadd.f32 %v1664, %v1733
      %v1766 = vadd.f32 %v1665, %v1734
      %v1767 = vadd.f32 %v1666, %v1735
      %v1768 = vadd.f32 %v1667, %v1736
      %v1769 = vadd.f32 %v1668, %v1737
      %v1770 = vadd.f32 %v1669, %v1738
      %v1771 = vadd.f32 %v1670, %v1739
      %v1772 = vadd.f32 %v1671, %v1740
      %v1773 = vadd.f32 %v1672, %v1741
      %v1774 = vadd.f32 %v1673, %v1742
      %v1775 = vadd.f32 %v1674, %v1743
      %v1776 = vadd.f32 %v1675, %v1744
      %v1777 = vadd.f32 %v1676, %v1745
      %v1778 = vadd.f32 %v1677, %v1746
      %v1779 = vadd.f32 %v1678, %v1747
      %v1780 = vld [vmem:[%s1476 + $0x3] sm:$0xff]
      %v1781 = vld [vmem:[%s1476 + $0xb] sm:$0xff]
      %v1782 = vld [vmem:[%s1476 + $0x1b] sm:$0xff]
      %v1783 = vld [vmem:[%s1476 + $0x23] sm:$0xff]
      %v1784 = vld [vmem:[%s1476 + $0x33] sm:$0xff]
      %v1785 = vld [vmem:[%s1476 + $0x3b] sm:$0xff]
      %v1786 = vld [vmem:[%s1476 + $0x4b] sm:$0xff]
      %v1787 = vld [vmem:[%s1476 + $0x53] sm:$0xff]
      %v1788 = vld [vmem:[%s1476 + $0x63] sm:$0xff]
      %v1789 = vld [vmem:[%s1476 + $0x6b] sm:$0xff]
      %v1790 = vld [vmem:[%s1476 + $0x7b] sm:$0xff]
      %v1791 = vld [vmem:[%s1476 + $0x83] sm:$0xff]
      %v1792 = vld [vmem:[%s1476 + $0x93] sm:$0xff]
      %v1793 = vld [vmem:[%s1476 + $0x9b] sm:$0xff]
      %v1794 = vld [vmem:[%s1476 + $0xab] sm:$0xff]
      %v1795 = vld [vmem:[%s1476 + $0xb3] sm:$0xff]
      %v1796 = vld [vmem:[%s1476 + $0xc3] sm:$0xff]
      %v1797 = vld [vmem:[%s1476 + $0xcb] sm:$0xff]
      %v1798 = vld [vmem:[%s1476 + $0xdb] sm:$0xff]
      %v1799 = vld [vmem:[%s1476 + $0xe3] sm:$0xff]
      %v1800 = vld [vmem:[%s1476 + $0xf3] sm:$0xff]
      %v1801 = vld [vmem:[%s1476 + $0xfb] sm:$0xff]
      %v1802 = vld [vmem:[%s1476 + $0x10b] sm:$0xff]
      %v1803 = vld [vmem:[%s1476 + $0x113] sm:$0xff]
      %v1804 = vld [vmem:[%s1476 + $0x123] sm:$0xff]
      %v1805 = vld [vmem:[%s1476 + $0x12b] sm:$0xff]
      %v1806 = vld [vmem:[%s1476 + $0x13b] sm:$0xff]
      %v1807 = vld [vmem:[%s1476 + $0x143] sm:$0xff]
      %v1808 = vld [vmem:[%s1476 + $0x153] sm:$0xff]
      %v1809 = vld [vmem:[%s1476 + $0x15b] sm:$0xff]
      %v1810 = vld [vmem:[%s1476 + $0x16b] sm:$0xff]
      %v1811 = vld [vmem:[%s1476 + $0x173] sm:$0xff]
      %s1812 = scalar_lea.vmem %s4, 10
      %v1813 = vld [vmem:[%s1812] sm:$0x1]
      %v1815 = vperm.slane %v1813, 0
      %v1817 = vmul.f32 %v1780, %v1815
      %v1818 = vmul.f32 %v1781, %v1815
      %v1819 = vmul.f32 %v1782, %v1815
      %v1820 = vmul.f32 %v1783, %v1815
      %v1821 = vmul.f32 %v1784, %v1815
      %v1822 = vmul.f32 %v1785, %v1815
      %v1823 = vmul.f32 %v1786, %v1815
      %v1824 = vmul.f32 %v1787, %v1815
      %v1825 = vmul.f32 %v1788, %v1815
      %v1826 = vmul.f32 %v1789, %v1815
      %v1827 = vmul.f32 %v1790, %v1815
      %v1828 = vmul.f32 %v1791, %v1815
      %v1829 = vmul.f32 %v1792, %v1815
      %v1830 = vmul.f32 %v1793, %v1815
      %v1831 = vmul.f32 %v1794, %v1815
      %v1832 = vmul.f32 %v1795, %v1815
      %v1833 = vmul.f32 %v1796, %v1815
      %v1834 = vmul.f32 %v1797, %v1815
      %v1835 = vmul.f32 %v1798, %v1815
      %v1836 = vmul.f32 %v1799, %v1815
      %v1837 = vmul.f32 %v1800, %v1815
      %v1838 = vmul.f32 %v1801, %v1815
      %v1839 = vmul.f32 %v1802, %v1815
      %v1840 = vmul.f32 %v1803, %v1815
      %v1841 = vmul.f32 %v1804, %v1815
      %v1842 = vmul.f32 %v1805, %v1815
      %v1843 = vmul.f32 %v1806, %v1815
      %v1844 = vmul.f32 %v1807, %v1815
      %v1845 = vmul.f32 %v1808, %v1815
      %v1846 = vmul.f32 %v1809, %v1815
      %v1847 = vmul.f32 %v1810, %v1815
      %v1848 = vmul.f32 %v1811, %v1815
      %v1849 = vadd.f32 %v1748, %v1817
      %v1850 = vadd.f32 %v1749, %v1818
      %v1851 = vadd.f32 %v1750, %v1819
      %v1852 = vadd.f32 %v1751, %v1820
      %v1853 = vadd.f32 %v1752, %v1821
      %v1854 = vadd.f32 %v1753, %v1822
      %v1855 = vadd.f32 %v1754, %v1823
      %v1856 = vadd.f32 %v1755, %v1824
      %v1857 = vadd.f32 %v1756, %v1825
      %v1858 = vadd.f32 %v1757, %v1826
      %v1859 = vadd.f32 %v1758, %v1827
      %v1860 = vadd.f32 %v1759, %v1828
      %v1861 = vadd.f32 %v1760, %v1829
      %v1862 = vadd.f32 %v1761, %v1830
      %v1863 = vadd.f32 %v1762, %v1831
      %v1864 = vadd.f32 %v1763, %v1832
      %v1865 = vadd.f32 %v1764, %v1833
      %v1866 = vadd.f32 %v1765, %v1834
      %v1867 = vadd.f32 %v1766, %v1835
      %v1868 = vadd.f32 %v1767, %v1836
      %v1869 = vadd.f32 %v1768, %v1837
      %v1870 = vadd.f32 %v1769, %v1838
      %v1871 = vadd.f32 %v1770, %v1839
      %v1872 = vadd.f32 %v1771, %v1840
      %v1873 = vadd.f32 %v1772, %v1841
      %v1874 = vadd.f32 %v1773, %v1842
      %v1875 = vadd.f32 %v1774, %v1843
      %v1876 = vadd.f32 %v1775, %v1844
      %v1877 = vadd.f32 %v1776, %v1845
      %v1878 = vadd.f32 %v1777, %v1846
      %v1879 = vadd.f32 %v1778, %v1847
      %v1880 = vadd.f32 %v1779, %v1848
      %v1881 = vld [vmem:[%s1476 + $0x4] sm:$0xff]
      %v1882 = vld [vmem:[%s1476 + $0xc] sm:$0xff]
      %v1883 = vld [vmem:[%s1476 + $0x1c] sm:$0xff]
      %v1884 = vld [vmem:[%s1476 + $0x24] sm:$0xff]
      %v1885 = vld [vmem:[%s1476 + $0x34] sm:$0xff]
      %v1886 = vld [vmem:[%s1476 + $0x3c] sm:$0xff]
      %v1887 = vld [vmem:[%s1476 + $0x4c] sm:$0xff]
      %v1888 = vld [vmem:[%s1476 + $0x54] sm:$0xff]
      %v1889 = vld [vmem:[%s1476 + $0x64] sm:$0xff]
      %v1890 = vld [vmem:[%s1476 + $0x6c] sm:$0xff]
      %v1891 = vld [vmem:[%s1476 + $0x7c] sm:$0xff]
      %v1892 = vld [vmem:[%s1476 + $0x84] sm:$0xff]
      %v1893 = vld [vmem:[%s1476 + $0x94] sm:$0xff]
      %v1894 = vld [vmem:[%s1476 + $0x9c] sm:$0xff]
      %v1895 = vld [vmem:[%s1476 + $0xac] sm:$0xff]
      %v1896 = vld [vmem:[%s1476 + $0xb4] sm:$0xff]
      %v1897 = vld [vmem:[%s1476 + $0xc4] sm:$0xff]
      %v1898 = vld [vmem:[%s1476 + $0xcc] sm:$0xff]
      %v1899 = vld [vmem:[%s1476 + $0xdc] sm:$0xff]
      %v1900 = vld [vmem:[%s1476 + $0xe4] sm:$0xff]
      %v1901 = vld [vmem:[%s1476 + $0xf4] sm:$0xff]
      %v1902 = vld [vmem:[%s1476 + $0xfc] sm:$0xff]
      %v1903 = vld [vmem:[%s1476 + $0x10c] sm:$0xff]
      %v1904 = vld [vmem:[%s1476 + $0x114] sm:$0xff]
      %v1905 = vld [vmem:[%s1476 + $0x124] sm:$0xff]
      %v1906 = vld [vmem:[%s1476 + $0x12c] sm:$0xff]
      %v1907 = vld [vmem:[%s1476 + $0x13c] sm:$0xff]
      %v1908 = vld [vmem:[%s1476 + $0x144] sm:$0xff]
      %v1909 = vld [vmem:[%s1476 + $0x154] sm:$0xff]
      %v1910 = vld [vmem:[%s1476 + $0x15c] sm:$0xff]
      %v1911 = vld [vmem:[%s1476 + $0x16c] sm:$0xff]
      %v1912 = vld [vmem:[%s1476 + $0x174] sm:$0xff]
      %s1913 = scalar_lea.vmem %s4, 11
      %v1914 = vld [vmem:[%s1913] sm:$0x1]
      %v1916 = vperm.slane %v1914, 0
      %v1918 = vmul.f32 %v1881, %v1916
      %v1919 = vmul.f32 %v1882, %v1916
      %v1920 = vmul.f32 %v1883, %v1916
      %v1921 = vmul.f32 %v1884, %v1916
      %v1922 = vmul.f32 %v1885, %v1916
      %v1923 = vmul.f32 %v1886, %v1916
      %v1924 = vmul.f32 %v1887, %v1916
      %v1925 = vmul.f32 %v1888, %v1916
      %v1926 = vmul.f32 %v1889, %v1916
      %v1927 = vmul.f32 %v1890, %v1916
      %v1928 = vmul.f32 %v1891, %v1916
      %v1929 = vmul.f32 %v1892, %v1916
      %v1930 = vmul.f32 %v1893, %v1916
      %v1931 = vmul.f32 %v1894, %v1916
      %v1932 = vmul.f32 %v1895, %v1916
      %v1933 = vmul.f32 %v1896, %v1916
      %v1934 = vmul.f32 %v1897, %v1916
      %v1935 = vmul.f32 %v1898, %v1916
      %v1936 = vmul.f32 %v1899, %v1916
      %v1937 = vmul.f32 %v1900, %v1916
      %v1938 = vmul.f32 %v1901, %v1916
      %v1939 = vmul.f32 %v1902, %v1916
      %v1940 = vmul.f32 %v1903, %v1916
      %v1941 = vmul.f32 %v1904, %v1916
      %v1942 = vmul.f32 %v1905, %v1916
      %v1943 = vmul.f32 %v1906, %v1916
      %v1944 = vmul.f32 %v1907, %v1916
      %v1945 = vmul.f32 %v1908, %v1916
      %v1946 = vmul.f32 %v1909, %v1916
      %v1947 = vmul.f32 %v1910, %v1916
      %v1948 = vmul.f32 %v1911, %v1916
      %v1949 = vmul.f32 %v1912, %v1916
      %v1950 = vadd.f32 %v1849, %v1918
      %v1951 = vadd.f32 %v1850, %v1919
      %v1952 = vadd.f32 %v1851, %v1920
      %v1953 = vadd.f32 %v1852, %v1921
      %v1954 = vadd.f32 %v1853, %v1922
      %v1955 = vadd.f32 %v1854, %v1923
      %v1956 = vadd.f32 %v1855, %v1924
      %v1957 = vadd.f32 %v1856, %v1925
      %v1958 = vadd.f32 %v1857, %v1926
      %v1959 = vadd.f32 %v1858, %v1927
      %v1960 = vadd.f32 %v1859, %v1928
      %v1961 = vadd.f32 %v1860, %v1929
      %v1962 = vadd.f32 %v1861, %v1930
      %v1963 = vadd.f32 %v1862, %v1931
      %v1964 = vadd.f32 %v1863, %v1932
      %v1965 = vadd.f32 %v1864, %v1933
      %v1966 = vadd.f32 %v1865, %v1934
      %v1967 = vadd.f32 %v1866, %v1935
      %v1968 = vadd.f32 %v1867, %v1936
      %v1969 = vadd.f32 %v1868, %v1937
      %v1970 = vadd.f32 %v1869, %v1938
      %v1971 = vadd.f32 %v1870, %v1939
      %v1972 = vadd.f32 %v1871, %v1940
      %v1973 = vadd.f32 %v1872, %v1941
      %v1974 = vadd.f32 %v1873, %v1942
      %v1975 = vadd.f32 %v1874, %v1943
      %v1976 = vadd.f32 %v1875, %v1944
      %v1977 = vadd.f32 %v1876, %v1945
      %v1978 = vadd.f32 %v1877, %v1946
      %v1979 = vadd.f32 %v1878, %v1947
      %v1980 = vadd.f32 %v1879, %v1948
      %v1981 = vadd.f32 %v1880, %v1949
      %v1982 = vld [vmem:[%s1476 + $0x5] sm:$0xff]
      %v1983 = vld [vmem:[%s1476 + $0xd] sm:$0xff]
      %v1984 = vld [vmem:[%s1476 + $0x1d] sm:$0xff]
      %v1985 = vld [vmem:[%s1476 + $0x25] sm:$0xff]
      %v1986 = vld [vmem:[%s1476 + $0x35] sm:$0xff]
      %v1987 = vld [vmem:[%s1476 + $0x3d] sm:$0xff]
      %v1988 = vld [vmem:[%s1476 + $0x4d] sm:$0xff]
      %v1989 = vld [vmem:[%s1476 + $0x55] sm:$0xff]
      %v1990 = vld [vmem:[%s1476 + $0x65] sm:$0xff]
      %v1991 = vld [vmem:[%s1476 + $0x6d] sm:$0xff]
      %v1992 = vld [vmem:[%s1476 + $0x7d] sm:$0xff]
      %v1993 = vld [vmem:[%s1476 + $0x85] sm:$0xff]
      %v1994 = vld [vmem:[%s1476 + $0x95] sm:$0xff]
      %v1995 = vld [vmem:[%s1476 + $0x9d] sm:$0xff]
      %v1996 = vld [vmem:[%s1476 + $0xad] sm:$0xff]
      %v1997 = vld [vmem:[%s1476 + $0xb5] sm:$0xff]
      %v1998 = vld [vmem:[%s1476 + $0xc5] sm:$0xff]
      %v1999 = vld [vmem:[%s1476 + $0xcd] sm:$0xff]
      %v2000 = vld [vmem:[%s1476 + $0xdd] sm:$0xff]
      %v2001 = vld [vmem:[%s1476 + $0xe5] sm:$0xff]
      %v2002 = vld [vmem:[%s1476 + $0xf5] sm:$0xff]
      %v2003 = vld [vmem:[%s1476 + $0xfd] sm:$0xff]
      %v2004 = vld [vmem:[%s1476 + $0x10d] sm:$0xff]
      %v2005 = vld [vmem:[%s1476 + $0x115] sm:$0xff]
      %v2006 = vld [vmem:[%s1476 + $0x125] sm:$0xff]
      %v2007 = vld [vmem:[%s1476 + $0x12d] sm:$0xff]
      %v2008 = vld [vmem:[%s1476 + $0x13d] sm:$0xff]
      %v2009 = vld [vmem:[%s1476 + $0x145] sm:$0xff]
      %v2010 = vld [vmem:[%s1476 + $0x155] sm:$0xff]
      %v2011 = vld [vmem:[%s1476 + $0x15d] sm:$0xff]
      %v2012 = vld [vmem:[%s1476 + $0x16d] sm:$0xff]
      %v2013 = vld [vmem:[%s1476 + $0x175] sm:$0xff]
      %s2014 = scalar_lea.vmem %s4, 12
      %v2015 = vld [vmem:[%s2014] sm:$0x1]
      %v2017 = vperm.slane %v2015, 0
      %v2019 = vmul.f32 %v1982, %v2017
      %v2020 = vmul.f32 %v1983, %v2017
      %v2021 = vmul.f32 %v1984, %v2017
      %v2022 = vmul.f32 %v1985, %v2017
      %v2023 = vmul.f32 %v1986, %v2017
      %v2024 = vmul.f32 %v1987, %v2017
      %v2025 = vmul.f32 %v1988, %v2017
      %v2026 = vmul.f32 %v1989, %v2017
      %v2027 = vmul.f32 %v1990, %v2017
      %v2028 = vmul.f32 %v1991, %v2017
      %v2029 = vmul.f32 %v1992, %v2017
      %v2030 = vmul.f32 %v1993, %v2017
      %v2031 = vmul.f32 %v1994, %v2017
      %v2032 = vmul.f32 %v1995, %v2017
      %v2033 = vmul.f32 %v1996, %v2017
      %v2034 = vmul.f32 %v1997, %v2017
      %v2035 = vmul.f32 %v1998, %v2017
      %v2036 = vmul.f32 %v1999, %v2017
      %v2037 = vmul.f32 %v2000, %v2017
      %v2038 = vmul.f32 %v2001, %v2017
      %v2039 = vmul.f32 %v2002, %v2017
      %v2040 = vmul.f32 %v2003, %v2017
      %v2041 = vmul.f32 %v2004, %v2017
      %v2042 = vmul.f32 %v2005, %v2017
      %v2043 = vmul.f32 %v2006, %v2017
      %v2044 = vmul.f32 %v2007, %v2017
      %v2045 = vmul.f32 %v2008, %v2017
      %v2046 = vmul.f32 %v2009, %v2017
      %v2047 = vmul.f32 %v2010, %v2017
      %v2048 = vmul.f32 %v2011, %v2017
      %v2049 = vmul.f32 %v2012, %v2017
      %v2050 = vmul.f32 %v2013, %v2017
      %v2051 = vadd.f32 %v1950, %v2019
      %v2052 = vadd.f32 %v1951, %v2020
      %v2053 = vadd.f32 %v1952, %v2021
      %v2054 = vadd.f32 %v1953, %v2022
      %v2055 = vadd.f32 %v1954, %v2023
      %v2056 = vadd.f32 %v1955, %v2024
      %v2057 = vadd.f32 %v1956, %v2025
      %v2058 = vadd.f32 %v1957, %v2026
      %v2059 = vadd.f32 %v1958, %v2027
      %v2060 = vadd.f32 %v1959, %v2028
      %v2061 = vadd.f32 %v1960, %v2029
      %v2062 = vadd.f32 %v1961, %v2030
      %v2063 = vadd.f32 %v1962, %v2031
      %v2064 = vadd.f32 %v1963, %v2032
      %v2065 = vadd.f32 %v1964, %v2033
      %v2066 = vadd.f32 %v1965, %v2034
      %v2067 = vadd.f32 %v1966, %v2035
      %v2068 = vadd.f32 %v1967, %v2036
      %v2069 = vadd.f32 %v1968, %v2037
      %v2070 = vadd.f32 %v1969, %v2038
      %v2071 = vadd.f32 %v1970, %v2039
      %v2072 = vadd.f32 %v1971, %v2040
      %v2073 = vadd.f32 %v1972, %v2041
      %v2074 = vadd.f32 %v1973, %v2042
      %v2075 = vadd.f32 %v1974, %v2043
      %v2076 = vadd.f32 %v1975, %v2044
      %v2077 = vadd.f32 %v1976, %v2045
      %v2078 = vadd.f32 %v1977, %v2046
      %v2079 = vadd.f32 %v1978, %v2047
      %v2080 = vadd.f32 %v1979, %v2048
      %v2081 = vadd.f32 %v1980, %v2049
      %v2082 = vadd.f32 %v1981, %v2050
      %v2083 = vld [vmem:[%s1476 + $0x6] sm:$0xff]
      %v2084 = vld [vmem:[%s1476 + $0xe] sm:$0xff]
      %v2085 = vld [vmem:[%s1476 + $0x1e] sm:$0xff]
      %v2086 = vld [vmem:[%s1476 + $0x26] sm:$0xff]
      %v2087 = vld [vmem:[%s1476 + $0x36] sm:$0xff]
      %v2088 = vld [vmem:[%s1476 + $0x3e] sm:$0xff]
      %v2089 = vld [vmem:[%s1476 + $0x4e] sm:$0xff]
      %v2090 = vld [vmem:[%s1476 + $0x56] sm:$0xff]
      %v2091 = vld [vmem:[%s1476 + $0x66] sm:$0xff]
      %v2092 = vld [vmem:[%s1476 + $0x6e] sm:$0xff]
      %v2093 = vld [vmem:[%s1476 + $0x7e] sm:$0xff]
      %v2094 = vld [vmem:[%s1476 + $0x86] sm:$0xff]
      %v2095 = vld [vmem:[%s1476 + $0x96] sm:$0xff]
      %v2096 = vld [vmem:[%s1476 + $0x9e] sm:$0xff]
      %v2097 = vld [vmem:[%s1476 + $0xae] sm:$0xff]
      %v2098 = vld [vmem:[%s1476 + $0xb6] sm:$0xff]
      %v2099 = vld [vmem:[%s1476 + $0xc6] sm:$0xff]
      %v2100 = vld [vmem:[%s1476 + $0xce] sm:$0xff]
      %v2101 = vld [vmem:[%s1476 + $0xde] sm:$0xff]
      %v2102 = vld [vmem:[%s1476 + $0xe6] sm:$0xff]
      %v2103 = vld [vmem:[%s1476 + $0xf6] sm:$0xff]
      %v2104 = vld [vmem:[%s1476 + $0xfe] sm:$0xff]
      %v2105 = vld [vmem:[%s1476 + $0x10e] sm:$0xff]
      %v2106 = vld [vmem:[%s1476 + $0x116] sm:$0xff]
      %v2107 = vld [vmem:[%s1476 + $0x126] sm:$0xff]
      %v2108 = vld [vmem:[%s1476 + $0x12e] sm:$0xff]
      %v2109 = vld [vmem:[%s1476 + $0x13e] sm:$0xff]
      %v2110 = vld [vmem:[%s1476 + $0x146] sm:$0xff]
      %v2111 = vld [vmem:[%s1476 + $0x156] sm:$0xff]
      %v2112 = vld [vmem:[%s1476 + $0x15e] sm:$0xff]
      %v2113 = vld [vmem:[%s1476 + $0x16e] sm:$0xff]
      %v2114 = vld [vmem:[%s1476 + $0x176] sm:$0xff]
      %s2115 = scalar_lea.vmem %s4, 13
      %v2116 = vld [vmem:[%s2115] sm:$0x1]
      %v2118 = vperm.slane %v2116, 0
      %v2120 = vmul.f32 %v2083, %v2118
      %v2121 = vmul.f32 %v2084, %v2118
      %v2122 = vmul.f32 %v2085, %v2118
      %v2123 = vmul.f32 %v2086, %v2118
      %v2124 = vmul.f32 %v2087, %v2118
      %v2125 = vmul.f32 %v2088, %v2118
      %v2126 = vmul.f32 %v2089, %v2118
      %v2127 = vmul.f32 %v2090, %v2118
      %v2128 = vmul.f32 %v2091, %v2118
      %v2129 = vmul.f32 %v2092, %v2118
      %v2130 = vmul.f32 %v2093, %v2118
      %v2131 = vmul.f32 %v2094, %v2118
      %v2132 = vmul.f32 %v2095, %v2118
      %v2133 = vmul.f32 %v2096, %v2118
      %v2134 = vmul.f32 %v2097, %v2118
      %v2135 = vmul.f32 %v2098, %v2118
      %v2136 = vmul.f32 %v2099, %v2118
      %v2137 = vmul.f32 %v2100, %v2118
      %v2138 = vmul.f32 %v2101, %v2118
      %v2139 = vmul.f32 %v2102, %v2118
      %v2140 = vmul.f32 %v2103, %v2118
      %v2141 = vmul.f32 %v2104, %v2118
      %v2142 = vmul.f32 %v2105, %v2118
      %v2143 = vmul.f32 %v2106, %v2118
      %v2144 = vmul.f32 %v2107, %v2118
      %v2145 = vmul.f32 %v2108, %v2118
      %v2146 = vmul.f32 %v2109, %v2118
      %v2147 = vmul.f32 %v2110, %v2118
      %v2148 = vmul.f32 %v2111, %v2118
      %v2149 = vmul.f32 %v2112, %v2118
      %v2150 = vmul.f32 %v2113, %v2118
      %v2151 = vmul.f32 %v2114, %v2118
      %v2152 = vadd.f32 %v2051, %v2120
      %v2153 = vadd.f32 %v2052, %v2121
      %v2154 = vadd.f32 %v2053, %v2122
      %v2155 = vadd.f32 %v2054, %v2123
      %v2156 = vadd.f32 %v2055, %v2124
      %v2157 = vadd.f32 %v2056, %v2125
      %v2158 = vadd.f32 %v2057, %v2126
      %v2159 = vadd.f32 %v2058, %v2127
      %v2160 = vadd.f32 %v2059, %v2128
      %v2161 = vadd.f32 %v2060, %v2129
      %v2162 = vadd.f32 %v2061, %v2130
      %v2163 = vadd.f32 %v2062, %v2131
      %v2164 = vadd.f32 %v2063, %v2132
      %v2165 = vadd.f32 %v2064, %v2133
      %v2166 = vadd.f32 %v2065, %v2134
      %v2167 = vadd.f32 %v2066, %v2135
      %v2168 = vadd.f32 %v2067, %v2136
      %v2169 = vadd.f32 %v2068, %v2137
      %v2170 = vadd.f32 %v2069, %v2138
      %v2171 = vadd.f32 %v2070, %v2139
      %v2172 = vadd.f32 %v2071, %v2140
      %v2173 = vadd.f32 %v2072, %v2141
      %v2174 = vadd.f32 %v2073, %v2142
      %v2175 = vadd.f32 %v2074, %v2143
      %v2176 = vadd.f32 %v2075, %v2144
      %v2177 = vadd.f32 %v2076, %v2145
      %v2178 = vadd.f32 %v2077, %v2146
      %v2179 = vadd.f32 %v2078, %v2147
      %v2180 = vadd.f32 %v2079, %v2148
      %v2181 = vadd.f32 %v2080, %v2149
      %v2182 = vadd.f32 %v2081, %v2150
      %v2183 = vadd.f32 %v2082, %v2151
      %s2184 = scalar_lea.vmem [#allocation2], 48
      %v2185 = vld [vmem:[%s2184] sm:$0xff]
      %v2186 = vld [vmem:[%s2184 + $0x8] sm:$0xff]
      %v2187 = vld [vmem:[%s2184 + $0x18] sm:$0xff]
      %v2188 = vld [vmem:[%s2184 + $0x20] sm:$0xff]
      %v2189 = vld [vmem:[%s2184 + $0x30] sm:$0xff]
      %v2190 = vld [vmem:[%s2184 + $0x38] sm:$0xff]
      %v2191 = vld [vmem:[%s2184 + $0x48] sm:$0xff]
      %v2192 = vld [vmem:[%s2184 + $0x50] sm:$0xff]
      %v2193 = vld [vmem:[%s2184 + $0x60] sm:$0xff]
      %v2194 = vld [vmem:[%s2184 + $0x68] sm:$0xff]
      %v2195 = vld [vmem:[%s2184 + $0x78] sm:$0xff]
      %v2196 = vld [vmem:[%s2184 + $0x80] sm:$0xff]
      %v2197 = vld [vmem:[%s2184 + $0x90] sm:$0xff]
      %v2198 = vld [vmem:[%s2184 + $0x98] sm:$0xff]
      %v2199 = vld [vmem:[%s2184 + $0xa8] sm:$0xff]
      %v2200 = vld [vmem:[%s2184 + $0xb0] sm:$0xff]
      %v2201 = vld [vmem:[%s2184 + $0xc0] sm:$0xff]
      %v2202 = vld [vmem:[%s2184 + $0xc8] sm:$0xff]
      %v2203 = vld [vmem:[%s2184 + $0xd8] sm:$0xff]
      %v2204 = vld [vmem:[%s2184 + $0xe0] sm:$0xff]
      %v2205 = vld [vmem:[%s2184 + $0xf0] sm:$0xff]
      %v2206 = vld [vmem:[%s2184 + $0xf8] sm:$0xff]
      %v2207 = vld [vmem:[%s2184 + $0x108] sm:$0xff]
      %v2208 = vld [vmem:[%s2184 + $0x110] sm:$0xff]
      %v2209 = vld [vmem:[%s2184 + $0x120] sm:$0xff]
      %v2210 = vld [vmem:[%s2184 + $0x128] sm:$0xff]
      %v2211 = vld [vmem:[%s2184 + $0x138] sm:$0xff]
      %v2212 = vld [vmem:[%s2184 + $0x140] sm:$0xff]
      %v2213 = vld [vmem:[%s2184 + $0x150] sm:$0xff]
      %v2214 = vld [vmem:[%s2184 + $0x158] sm:$0xff]
      %v2215 = vld [vmem:[%s2184 + $0x168] sm:$0xff]
      %v2216 = vld [vmem:[%s2184 + $0x170] sm:$0xff]
      %s2217 = scalar_lea.vmem %s4, 14
      %v2218 = vld [vmem:[%s2217] sm:$0x1]
      %v2220 = vperm.slane %v2218, 0
      %v2222 = vmul.f32 %v2185, %v2220
      %v2223 = vmul.f32 %v2186, %v2220
      %v2224 = vmul.f32 %v2187, %v2220
      %v2225 = vmul.f32 %v2188, %v2220
      %v2226 = vmul.f32 %v2189, %v2220
      %v2227 = vmul.f32 %v2190, %v2220
      %v2228 = vmul.f32 %v2191, %v2220
      %v2229 = vmul.f32 %v2192, %v2220
      %v2230 = vmul.f32 %v2193, %v2220
      %v2231 = vmul.f32 %v2194, %v2220
      %v2232 = vmul.f32 %v2195, %v2220
      %v2233 = vmul.f32 %v2196, %v2220
      %v2234 = vmul.f32 %v2197, %v2220
      %v2235 = vmul.f32 %v2198, %v2220
      %v2236 = vmul.f32 %v2199, %v2220
      %v2237 = vmul.f32 %v2200, %v2220
      %v2238 = vmul.f32 %v2201, %v2220
      %v2239 = vmul.f32 %v2202, %v2220
      %v2240 = vmul.f32 %v2203, %v2220
      %v2241 = vmul.f32 %v2204, %v2220
      %v2242 = vmul.f32 %v2205, %v2220
      %v2243 = vmul.f32 %v2206, %v2220
      %v2244 = vmul.f32 %v2207, %v2220
      %v2245 = vmul.f32 %v2208, %v2220
      %v2246 = vmul.f32 %v2209, %v2220
      %v2247 = vmul.f32 %v2210, %v2220
      %v2248 = vmul.f32 %v2211, %v2220
      %v2249 = vmul.f32 %v2212, %v2220
      %v2250 = vmul.f32 %v2213, %v2220
      %v2251 = vmul.f32 %v2214, %v2220
      %v2252 = vmul.f32 %v2215, %v2220
      %v2253 = vmul.f32 %v2216, %v2220
      %v2254 = vadd.f32 %v2152, %v2222
      %v2255 = vadd.f32 %v2153, %v2223
      %v2256 = vadd.f32 %v2154, %v2224
      %v2257 = vadd.f32 %v2155, %v2225
      %v2258 = vadd.f32 %v2156, %v2226
      %v2259 = vadd.f32 %v2157, %v2227
      %v2260 = vadd.f32 %v2158, %v2228
      %v2261 = vadd.f32 %v2159, %v2229
      %v2262 = vadd.f32 %v2160, %v2230
      %v2263 = vadd.f32 %v2161, %v2231
      %v2264 = vadd.f32 %v2162, %v2232
      %v2265 = vadd.f32 %v2163, %v2233
      %v2266 = vadd.f32 %v2164, %v2234
      %v2267 = vadd.f32 %v2165, %v2235
      %v2268 = vadd.f32 %v2166, %v2236
      %v2269 = vadd.f32 %v2167, %v2237
      %v2270 = vadd.f32 %v2168, %v2238
      %v2271 = vadd.f32 %v2169, %v2239
      %v2272 = vadd.f32 %v2170, %v2240
      %v2273 = vadd.f32 %v2171, %v2241
      %v2274 = vadd.f32 %v2172, %v2242
      %v2275 = vadd.f32 %v2173, %v2243
      %v2276 = vadd.f32 %v2174, %v2244
      %v2277 = vadd.f32 %v2175, %v2245
      %v2278 = vadd.f32 %v2176, %v2246
      %v2279 = vadd.f32 %v2177, %v2247
      %v2280 = vadd.f32 %v2178, %v2248
      %v2281 = vadd.f32 %v2179, %v2249
      %v2282 = vadd.f32 %v2180, %v2250
      %v2283 = vadd.f32 %v2181, %v2251
      %v2284 = vadd.f32 %v2182, %v2252
      %v2285 = vadd.f32 %v2183, %v2253
      %v2286 = vld [vmem:[%s2184 + $0x1] sm:$0xff]
      %v2287 = vld [vmem:[%s2184 + $0x9] sm:$0xff]
      %v2288 = vld [vmem:[%s2184 + $0x19] sm:$0xff]
      %v2289 = vld [vmem:[%s2184 + $0x21] sm:$0xff]
      %v2290 = vld [vmem:[%s2184 + $0x31] sm:$0xff]
      %v2291 = vld [vmem:[%s2184 + $0x39] sm:$0xff]
      %v2292 = vld [vmem:[%s2184 + $0x49] sm:$0xff]
      %v2293 = vld [vmem:[%s2184 + $0x51] sm:$0xff]
      %v2294 = vld [vmem:[%s2184 + $0x61] sm:$0xff]
      %v2295 = vld [vmem:[%s2184 + $0x69] sm:$0xff]
      %v2296 = vld [vmem:[%s2184 + $0x79] sm:$0xff]
      %v2297 = vld [vmem:[%s2184 + $0x81] sm:$0xff]
      %v2298 = vld [vmem:[%s2184 + $0x91] sm:$0xff]
      %v2299 = vld [vmem:[%s2184 + $0x99] sm:$0xff]
      %v2300 = vld [vmem:[%s2184 + $0xa9] sm:$0xff]
      %v2301 = vld [vmem:[%s2184 + $0xb1] sm:$0xff]
      %v2302 = vld [vmem:[%s2184 + $0xc1] sm:$0xff]
      %v2303 = vld [vmem:[%s2184 + $0xc9] sm:$0xff]
      %v2304 = vld [vmem:[%s2184 + $0xd9] sm:$0xff]
      %v2305 = vld [vmem:[%s2184 + $0xe1] sm:$0xff]
      %v2306 = vld [vmem:[%s2184 + $0xf1] sm:$0xff]
      %v2307 = vld [vmem:[%s2184 + $0xf9] sm:$0xff]
      %v2308 = vld [vmem:[%s2184 + $0x109] sm:$0xff]
      %v2309 = vld [vmem:[%s2184 + $0x111] sm:$0xff]
      %v2310 = vld [vmem:[%s2184 + $0x121] sm:$0xff]
      %v2311 = vld [vmem:[%s2184 + $0x129] sm:$0xff]
      %v2312 = vld [vmem:[%s2184 + $0x139] sm:$0xff]
      %v2313 = vld [vmem:[%s2184 + $0x141] sm:$0xff]
      %v2314 = vld [vmem:[%s2184 + $0x151] sm:$0xff]
      %v2315 = vld [vmem:[%s2184 + $0x159] sm:$0xff]
      %v2316 = vld [vmem:[%s2184 + $0x169] sm:$0xff]
      %v2317 = vld [vmem:[%s2184 + $0x171] sm:$0xff]
      %s2318 = scalar_lea.vmem %s4, 15
      %v2319 = vld [vmem:[%s2318] sm:$0x1]
      %v2321 = vperm.slane %v2319, 0
      %v2323 = vmul.f32 %v2286, %v2321
      %v2324 = vmul.f32 %v2287, %v2321
      %v2325 = vmul.f32 %v2288, %v2321
      %v2326 = vmul.f32 %v2289, %v2321
      %v2327 = vmul.f32 %v2290, %v2321
      %v2328 = vmul.f32 %v2291, %v2321
      %v2329 = vmul.f32 %v2292, %v2321
      %v2330 = vmul.f32 %v2293, %v2321
      %v2331 = vmul.f32 %v2294, %v2321
      %v2332 = vmul.f32 %v2295, %v2321
      %v2333 = vmul.f32 %v2296, %v2321
      %v2334 = vmul.f32 %v2297, %v2321
      %v2335 = vmul.f32 %v2298, %v2321
      %v2336 = vmul.f32 %v2299, %v2321
      %v2337 = vmul.f32 %v2300, %v2321
      %v2338 = vmul.f32 %v2301, %v2321
      %v2339 = vmul.f32 %v2302, %v2321
      %v2340 = vmul.f32 %v2303, %v2321
      %v2341 = vmul.f32 %v2304, %v2321
      %v2342 = vmul.f32 %v2305, %v2321
      %v2343 = vmul.f32 %v2306, %v2321
      %v2344 = vmul.f32 %v2307, %v2321
      %v2345 = vmul.f32 %v2308, %v2321
      %v2346 = vmul.f32 %v2309, %v2321
      %v2347 = vmul.f32 %v2310, %v2321
      %v2348 = vmul.f32 %v2311, %v2321
      %v2349 = vmul.f32 %v2312, %v2321
      %v2350 = vmul.f32 %v2313, %v2321
      %v2351 = vmul.f32 %v2314, %v2321
      %v2352 = vmul.f32 %v2315, %v2321
      %v2353 = vmul.f32 %v2316, %v2321
      %v2354 = vmul.f32 %v2317, %v2321
      %v2355 = vadd.f32 %v2254, %v2323
      %v2356 = vadd.f32 %v2255, %v2324
      %v2357 = vadd.f32 %v2256, %v2325
      %v2358 = vadd.f32 %v2257, %v2326
      %v2359 = vadd.f32 %v2258, %v2327
      %v2360 = vadd.f32 %v2259, %v2328
      %v2361 = vadd.f32 %v2260, %v2329
      %v2362 = vadd.f32 %v2261, %v2330
      %v2363 = vadd.f32 %v2262, %v2331
      %v2364 = vadd.f32 %v2263, %v2332
      %v2365 = vadd.f32 %v2264, %v2333
      %v2366 = vadd.f32 %v2265, %v2334
      %v2367 = vadd.f32 %v2266, %v2335
      %v2368 = vadd.f32 %v2267, %v2336
      %v2369 = vadd.f32 %v2268, %v2337
      %v2370 = vadd.f32 %v2269, %v2338
      %v2371 = vadd.f32 %v2270, %v2339
      %v2372 = vadd.f32 %v2271, %v2340
      %v2373 = vadd.f32 %v2272, %v2341
      %v2374 = vadd.f32 %v2273, %v2342
      %v2375 = vadd.f32 %v2274, %v2343
      %v2376 = vadd.f32 %v2275, %v2344
      %v2377 = vadd.f32 %v2276, %v2345
      %v2378 = vadd.f32 %v2277, %v2346
      %v2379 = vadd.f32 %v2278, %v2347
      %v2380 = vadd.f32 %v2279, %v2348
      %v2381 = vadd.f32 %v2280, %v2349
      %v2382 = vadd.f32 %v2281, %v2350
      %v2383 = vadd.f32 %v2282, %v2351
      %v2384 = vadd.f32 %v2283, %v2352
      %v2385 = vadd.f32 %v2284, %v2353
      %v2386 = vadd.f32 %v2285, %v2354
      %v2387 = vld [vmem:[%s2184 + $0x2] sm:$0xff]
      %v2388 = vld [vmem:[%s2184 + $0xa] sm:$0xff]
      %v2389 = vld [vmem:[%s2184 + $0x1a] sm:$0xff]
      %v2390 = vld [vmem:[%s2184 + $0x22] sm:$0xff]
      %v2391 = vld [vmem:[%s2184 + $0x32] sm:$0xff]
      %v2392 = vld [vmem:[%s2184 + $0x3a] sm:$0xff]
      %v2393 = vld [vmem:[%s2184 + $0x4a] sm:$0xff]
      %v2394 = vld [vmem:[%s2184 + $0x52] sm:$0xff]
      %v2395 = vld [vmem:[%s2184 + $0x62] sm:$0xff]
      %v2396 = vld [vmem:[%s2184 + $0x6a] sm:$0xff]
      %v2397 = vld [vmem:[%s2184 + $0x7a] sm:$0xff]
      %v2398 = vld [vmem:[%s2184 + $0x82] sm:$0xff]
      %v2399 = vld [vmem:[%s2184 + $0x92] sm:$0xff]
      %v2400 = vld [vmem:[%s2184 + $0x9a] sm:$0xff]
      %v2401 = vld [vmem:[%s2184 + $0xaa] sm:$0xff]
      %v2402 = vld [vmem:[%s2184 + $0xb2] sm:$0xff]
      %v2403 = vld [vmem:[%s2184 + $0xc2] sm:$0xff]
      %v2404 = vld [vmem:[%s2184 + $0xca] sm:$0xff]
      %v2405 = vld [vmem:[%s2184 + $0xda] sm:$0xff]
      %v2406 = vld [vmem:[%s2184 + $0xe2] sm:$0xff]
      %v2407 = vld [vmem:[%s2184 + $0xf2] sm:$0xff]
      %v2408 = vld [vmem:[%s2184 + $0xfa] sm:$0xff]
      %v2409 = vld [vmem:[%s2184 + $0x10a] sm:$0xff]
      %v2410 = vld [vmem:[%s2184 + $0x112] sm:$0xff]
      %v2411 = vld [vmem:[%s2184 + $0x122] sm:$0xff]
      %v2412 = vld [vmem:[%s2184 + $0x12a] sm:$0xff]
      %v2413 = vld [vmem:[%s2184 + $0x13a] sm:$0xff]
      %v2414 = vld [vmem:[%s2184 + $0x142] sm:$0xff]
      %v2415 = vld [vmem:[%s2184 + $0x152] sm:$0xff]
      %v2416 = vld [vmem:[%s2184 + $0x15a] sm:$0xff]
      %v2417 = vld [vmem:[%s2184 + $0x16a] sm:$0xff]
      %v2418 = vld [vmem:[%s2184 + $0x172] sm:$0xff]
      %s2419 = scalar_lea.vmem %s4, 16
      %v2420 = vld [vmem:[%s2419] sm:$0x1]
      %v2422 = vperm.slane %v2420, 0
      %v2424 = vmul.f32 %v2387, %v2422
      %v2425 = vmul.f32 %v2388, %v2422
      %v2426 = vmul.f32 %v2389, %v2422
      %v2427 = vmul.f32 %v2390, %v2422
      %v2428 = vmul.f32 %v2391, %v2422
      %v2429 = vmul.f32 %v2392, %v2422
      %v2430 = vmul.f32 %v2393, %v2422
      %v2431 = vmul.f32 %v2394, %v2422
      %v2432 = vmul.f32 %v2395, %v2422
      %v2433 = vmul.f32 %v2396, %v2422
      %v2434 = vmul.f32 %v2397, %v2422
      %v2435 = vmul.f32 %v2398, %v2422
      %v2436 = vmul.f32 %v2399, %v2422
      %v2437 = vmul.f32 %v2400, %v2422
      %v2438 = vmul.f32 %v2401, %v2422
      %v2439 = vmul.f32 %v2402, %v2422
      %v2440 = vmul.f32 %v2403, %v2422
      %v2441 = vmul.f32 %v2404, %v2422
      %v2442 = vmul.f32 %v2405, %v2422
      %v2443 = vmul.f32 %v2406, %v2422
      %v2444 = vmul.f32 %v2407, %v2422
      %v2445 = vmul.f32 %v2408, %v2422
      %v2446 = vmul.f32 %v2409, %v2422
      %v2447 = vmul.f32 %v2410, %v2422
      %v2448 = vmul.f32 %v2411, %v2422
      %v2449 = vmul.f32 %v2412, %v2422
      %v2450 = vmul.f32 %v2413, %v2422
      %v2451 = vmul.f32 %v2414, %v2422
      %v2452 = vmul.f32 %v2415, %v2422
      %v2453 = vmul.f32 %v2416, %v2422
      %v2454 = vmul.f32 %v2417, %v2422
      %v2455 = vmul.f32 %v2418, %v2422
      %v2456 = vadd.f32 %v2355, %v2424
      %v2457 = vadd.f32 %v2356, %v2425
      %v2458 = vadd.f32 %v2357, %v2426
      %v2459 = vadd.f32 %v2358, %v2427
      %v2460 = vadd.f32 %v2359, %v2428
      %v2461 = vadd.f32 %v2360, %v2429
      %v2462 = vadd.f32 %v2361, %v2430
      %v2463 = vadd.f32 %v2362, %v2431
      %v2464 = vadd.f32 %v2363, %v2432
      %v2465 = vadd.f32 %v2364, %v2433
      %v2466 = vadd.f32 %v2365, %v2434
      %v2467 = vadd.f32 %v2366, %v2435
      %v2468 = vadd.f32 %v2367, %v2436
      %v2469 = vadd.f32 %v2368, %v2437
      %v2470 = vadd.f32 %v2369, %v2438
      %v2471 = vadd.f32 %v2370, %v2439
      %v2472 = vadd.f32 %v2371, %v2440
      %v2473 = vadd.f32 %v2372, %v2441
      %v2474 = vadd.f32 %v2373, %v2442
      %v2475 = vadd.f32 %v2374, %v2443
      %v2476 = vadd.f32 %v2375, %v2444
      %v2477 = vadd.f32 %v2376, %v2445
      %v2478 = vadd.f32 %v2377, %v2446
      %v2479 = vadd.f32 %v2378, %v2447
      %v2480 = vadd.f32 %v2379, %v2448
      %v2481 = vadd.f32 %v2380, %v2449
      %v2482 = vadd.f32 %v2381, %v2450
      %v2483 = vadd.f32 %v2382, %v2451
      %v2484 = vadd.f32 %v2383, %v2452
      %v2485 = vadd.f32 %v2384, %v2453
      %v2486 = vadd.f32 %v2385, %v2454
      %v2487 = vadd.f32 %v2386, %v2455
      %v2488 = vld [vmem:[%s2184 + $0x3] sm:$0xff]
      %v2489 = vld [vmem:[%s2184 + $0xb] sm:$0xff]
      %v2490 = vld [vmem:[%s2184 + $0x1b] sm:$0xff]
      %v2491 = vld [vmem:[%s2184 + $0x23] sm:$0xff]
      %v2492 = vld [vmem:[%s2184 + $0x33] sm:$0xff]
      %v2493 = vld [vmem:[%s2184 + $0x3b] sm:$0xff]
      %v2494 = vld [vmem:[%s2184 + $0x4b] sm:$0xff]
      %v2495 = vld [vmem:[%s2184 + $0x53] sm:$0xff]
      %v2496 = vld [vmem:[%s2184 + $0x63] sm:$0xff]
      %v2497 = vld [vmem:[%s2184 + $0x6b] sm:$0xff]
      %v2498 = vld [vmem:[%s2184 + $0x7b] sm:$0xff]
      %v2499 = vld [vmem:[%s2184 + $0x83] sm:$0xff]
      %v2500 = vld [vmem:[%s2184 + $0x93] sm:$0xff]
      %v2501 = vld [vmem:[%s2184 + $0x9b] sm:$0xff]
      %v2502 = vld [vmem:[%s2184 + $0xab] sm:$0xff]
      %v2503 = vld [vmem:[%s2184 + $0xb3] sm:$0xff]
      %v2504 = vld [vmem:[%s2184 + $0xc3] sm:$0xff]
      %v2505 = vld [vmem:[%s2184 + $0xcb] sm:$0xff]
      %v2506 = vld [vmem:[%s2184 + $0xdb] sm:$0xff]
      %v2507 = vld [vmem:[%s2184 + $0xe3] sm:$0xff]
      %v2508 = vld [vmem:[%s2184 + $0xf3] sm:$0xff]
      %v2509 = vld [vmem:[%s2184 + $0xfb] sm:$0xff]
      %v2510 = vld [vmem:[%s2184 + $0x10b] sm:$0xff]
      %v2511 = vld [vmem:[%s2184 + $0x113] sm:$0xff]
      %v2512 = vld [vmem:[%s2184 + $0x123] sm:$0xff]
      %v2513 = vld [vmem:[%s2184 + $0x12b] sm:$0xff]
      %v2514 = vld [vmem:[%s2184 + $0x13b] sm:$0xff]
      %v2515 = vld [vmem:[%s2184 + $0x143] sm:$0xff]
      %v2516 = vld [vmem:[%s2184 + $0x153] sm:$0xff]
      %v2517 = vld [vmem:[%s2184 + $0x15b] sm:$0xff]
      %v2518 = vld [vmem:[%s2184 + $0x16b] sm:$0xff]
      %v2519 = vld [vmem:[%s2184 + $0x173] sm:$0xff]
      %s2520 = scalar_lea.vmem %s4, 17
      %v2521 = vld [vmem:[%s2520] sm:$0x1]
      %v2523 = vperm.slane %v2521, 0
      %v2525 = vmul.f32 %v2488, %v2523
      %v2526 = vmul.f32 %v2489, %v2523
      %v2527 = vmul.f32 %v2490, %v2523
      %v2528 = vmul.f32 %v2491, %v2523
      %v2529 = vmul.f32 %v2492, %v2523
      %v2530 = vmul.f32 %v2493, %v2523
      %v2531 = vmul.f32 %v2494, %v2523
      %v2532 = vmul.f32 %v2495, %v2523
      %v2533 = vmul.f32 %v2496, %v2523
      %v2534 = vmul.f32 %v2497, %v2523
      %v2535 = vmul.f32 %v2498, %v2523
      %v2536 = vmul.f32 %v2499, %v2523
      %v2537 = vmul.f32 %v2500, %v2523
      %v2538 = vmul.f32 %v2501, %v2523
      %v2539 = vmul.f32 %v2502, %v2523
      %v2540 = vmul.f32 %v2503, %v2523
      %v2541 = vmul.f32 %v2504, %v2523
      %v2542 = vmul.f32 %v2505, %v2523
      %v2543 = vmul.f32 %v2506, %v2523
      %v2544 = vmul.f32 %v2507, %v2523
      %v2545 = vmul.f32 %v2508, %v2523
      %v2546 = vmul.f32 %v2509, %v2523
      %v2547 = vmul.f32 %v2510, %v2523
      %v2548 = vmul.f32 %v2511, %v2523
      %v2549 = vmul.f32 %v2512, %v2523
      %v2550 = vmul.f32 %v2513, %v2523
      %v2551 = vmul.f32 %v2514, %v2523
      %v2552 = vmul.f32 %v2515, %v2523
      %v2553 = vmul.f32 %v2516, %v2523
      %v2554 = vmul.f32 %v2517, %v2523
      %v2555 = vmul.f32 %v2518, %v2523
      %v2556 = vmul.f32 %v2519, %v2523
      %v2557 = vadd.f32 %v2456, %v2525
      %v2558 = vadd.f32 %v2457, %v2526
      %v2559 = vadd.f32 %v2458, %v2527
      %v2560 = vadd.f32 %v2459, %v2528
      %v2561 = vadd.f32 %v2460, %v2529
      %v2562 = vadd.f32 %v2461, %v2530
      %v2563 = vadd.f32 %v2462, %v2531
      %v2564 = vadd.f32 %v2463, %v2532
      %v2565 = vadd.f32 %v2464, %v2533
      %v2566 = vadd.f32 %v2465, %v2534
      %v2567 = vadd.f32 %v2466, %v2535
      %v2568 = vadd.f32 %v2467, %v2536
      %v2569 = vadd.f32 %v2468, %v2537
      %v2570 = vadd.f32 %v2469, %v2538
      %v2571 = vadd.f32 %v2470, %v2539
      %v2572 = vadd.f32 %v2471, %v2540
      %v2573 = vadd.f32 %v2472, %v2541
      %v2574 = vadd.f32 %v2473, %v2542
      %v2575 = vadd.f32 %v2474, %v2543
      %v2576 = vadd.f32 %v2475, %v2544
      %v2577 = vadd.f32 %v2476, %v2545
      %v2578 = vadd.f32 %v2477, %v2546
      %v2579 = vadd.f32 %v2478, %v2547
      %v2580 = vadd.f32 %v2479, %v2548
      %v2581 = vadd.f32 %v2480, %v2549
      %v2582 = vadd.f32 %v2481, %v2550
      %v2583 = vadd.f32 %v2482, %v2551
      %v2584 = vadd.f32 %v2483, %v2552
      %v2585 = vadd.f32 %v2484, %v2553
      %v2586 = vadd.f32 %v2485, %v2554
      %v2587 = vadd.f32 %v2486, %v2555
      %v2588 = vadd.f32 %v2487, %v2556
      %v2589 = vld [vmem:[%s2184 + $0x4] sm:$0xff]
      %v2590 = vld [vmem:[%s2184 + $0xc] sm:$0xff]
      %v2591 = vld [vmem:[%s2184 + $0x1c] sm:$0xff]
      %v2592 = vld [vmem:[%s2184 + $0x24] sm:$0xff]
      %v2593 = vld [vmem:[%s2184 + $0x34] sm:$0xff]
      %v2594 = vld [vmem:[%s2184 + $0x3c] sm:$0xff]
      %v2595 = vld [vmem:[%s2184 + $0x4c] sm:$0xff]
      %v2596 = vld [vmem:[%s2184 + $0x54] sm:$0xff]
      %v2597 = vld [vmem:[%s2184 + $0x64] sm:$0xff]
      %v2598 = vld [vmem:[%s2184 + $0x6c] sm:$0xff]
      %v2599 = vld [vmem:[%s2184 + $0x7c] sm:$0xff]
      %v2600 = vld [vmem:[%s2184 + $0x84] sm:$0xff]
      %v2601 = vld [vmem:[%s2184 + $0x94] sm:$0xff]
      %v2602 = vld [vmem:[%s2184 + $0x9c] sm:$0xff]
      %v2603 = vld [vmem:[%s2184 + $0xac] sm:$0xff]
      %v2604 = vld [vmem:[%s2184 + $0xb4] sm:$0xff]
      %v2605 = vld [vmem:[%s2184 + $0xc4] sm:$0xff]
      %v2606 = vld [vmem:[%s2184 + $0xcc] sm:$0xff]
      %v2607 = vld [vmem:[%s2184 + $0xdc] sm:$0xff]
      %v2608 = vld [vmem:[%s2184 + $0xe4] sm:$0xff]
      %v2609 = vld [vmem:[%s2184 + $0xf4] sm:$0xff]
      %v2610 = vld [vmem:[%s2184 + $0xfc] sm:$0xff]
      %v2611 = vld [vmem:[%s2184 + $0x10c] sm:$0xff]
      %v2612 = vld [vmem:[%s2184 + $0x114] sm:$0xff]
      %v2613 = vld [vmem:[%s2184 + $0x124] sm:$0xff]
      %v2614 = vld [vmem:[%s2184 + $0x12c] sm:$0xff]
      %v2615 = vld [vmem:[%s2184 + $0x13c] sm:$0xff]
      %v2616 = vld [vmem:[%s2184 + $0x144] sm:$0xff]
      %v2617 = vld [vmem:[%s2184 + $0x154] sm:$0xff]
      %v2618 = vld [vmem:[%s2184 + $0x15c] sm:$0xff]
      %v2619 = vld [vmem:[%s2184 + $0x16c] sm:$0xff]
      %v2620 = vld [vmem:[%s2184 + $0x174] sm:$0xff]
      %s2621 = scalar_lea.vmem %s4, 18
      %v2622 = vld [vmem:[%s2621] sm:$0x1]
      %v2624 = vperm.slane %v2622, 0
      %v2626 = vmul.f32 %v2589, %v2624
      %v2627 = vmul.f32 %v2590, %v2624
      %v2628 = vmul.f32 %v2591, %v2624
      %v2629 = vmul.f32 %v2592, %v2624
      %v2630 = vmul.f32 %v2593, %v2624
      %v2631 = vmul.f32 %v2594, %v2624
      %v2632 = vmul.f32 %v2595, %v2624
      %v2633 = vmul.f32 %v2596, %v2624
      %v2634 = vmul.f32 %v2597, %v2624
      %v2635 = vmul.f32 %v2598, %v2624
      %v2636 = vmul.f32 %v2599, %v2624
      %v2637 = vmul.f32 %v2600, %v2624
      %v2638 = vmul.f32 %v2601, %v2624
      %v2639 = vmul.f32 %v2602, %v2624
      %v2640 = vmul.f32 %v2603, %v2624
      %v2641 = vmul.f32 %v2604, %v2624
      %v2642 = vmul.f32 %v2605, %v2624
      %v2643 = vmul.f32 %v2606, %v2624
      %v2644 = vmul.f32 %v2607, %v2624
      %v2645 = vmul.f32 %v2608, %v2624
      %v2646 = vmul.f32 %v2609, %v2624
      %v2647 = vmul.f32 %v2610, %v2624
      %v2648 = vmul.f32 %v2611, %v2624
      %v2649 = vmul.f32 %v2612, %v2624
      %v2650 = vmul.f32 %v2613, %v2624
      %v2651 = vmul.f32 %v2614, %v2624
      %v2652 = vmul.f32 %v2615, %v2624
      %v2653 = vmul.f32 %v2616, %v2624
      %v2654 = vmul.f32 %v2617, %v2624
      %v2655 = vmul.f32 %v2618, %v2624
      %v2656 = vmul.f32 %v2619, %v2624
      %v2657 = vmul.f32 %v2620, %v2624
      %v2658 = vadd.f32 %v2557, %v2626
      %v2659 = vadd.f32 %v2558, %v2627
      %v2660 = vadd.f32 %v2559, %v2628
      %v2661 = vadd.f32 %v2560, %v2629
      %v2662 = vadd.f32 %v2561, %v2630
      %v2663 = vadd.f32 %v2562, %v2631
      %v2664 = vadd.f32 %v2563, %v2632
      %v2665 = vadd.f32 %v2564, %v2633
      %v2666 = vadd.f32 %v2565, %v2634
      %v2667 = vadd.f32 %v2566, %v2635
      %v2668 = vadd.f32 %v2567, %v2636
      %v2669 = vadd.f32 %v2568, %v2637
      %v2670 = vadd.f32 %v2569, %v2638
      %v2671 = vadd.f32 %v2570, %v2639
      %v2672 = vadd.f32 %v2571, %v2640
      %v2673 = vadd.f32 %v2572, %v2641
      %v2674 = vadd.f32 %v2573, %v2642
      %v2675 = vadd.f32 %v2574, %v2643
      %v2676 = vadd.f32 %v2575, %v2644
      %v2677 = vadd.f32 %v2576, %v2645
      %v2678 = vadd.f32 %v2577, %v2646
      %v2679 = vadd.f32 %v2578, %v2647
      %v2680 = vadd.f32 %v2579, %v2648
      %v2681 = vadd.f32 %v2580, %v2649
      %v2682 = vadd.f32 %v2581, %v2650
      %v2683 = vadd.f32 %v2582, %v2651
      %v2684 = vadd.f32 %v2583, %v2652
      %v2685 = vadd.f32 %v2584, %v2653
      %v2686 = vadd.f32 %v2585, %v2654
      %v2687 = vadd.f32 %v2586, %v2655
      %v2688 = vadd.f32 %v2587, %v2656
      %v2689 = vadd.f32 %v2588, %v2657
      %v2690 = vld [vmem:[%s2184 + $0x5] sm:$0xff]
      %v2691 = vld [vmem:[%s2184 + $0xd] sm:$0xff]
      %v2692 = vld [vmem:[%s2184 + $0x1d] sm:$0xff]
      %v2693 = vld [vmem:[%s2184 + $0x25] sm:$0xff]
      %v2694 = vld [vmem:[%s2184 + $0x35] sm:$0xff]
      %v2695 = vld [vmem:[%s2184 + $0x3d] sm:$0xff]
      %v2696 = vld [vmem:[%s2184 + $0x4d] sm:$0xff]
      %v2697 = vld [vmem:[%s2184 + $0x55] sm:$0xff]
      %v2698 = vld [vmem:[%s2184 + $0x65] sm:$0xff]
      %v2699 = vld [vmem:[%s2184 + $0x6d] sm:$0xff]
      %v2700 = vld [vmem:[%s2184 + $0x7d] sm:$0xff]
      %v2701 = vld [vmem:[%s2184 + $0x85] sm:$0xff]
      %v2702 = vld [vmem:[%s2184 + $0x95] sm:$0xff]
      %v2703 = vld [vmem:[%s2184 + $0x9d] sm:$0xff]
      %v2704 = vld [vmem:[%s2184 + $0xad] sm:$0xff]
      %v2705 = vld [vmem:[%s2184 + $0xb5] sm:$0xff]
      %v2706 = vld [vmem:[%s2184 + $0xc5] sm:$0xff]
      %v2707 = vld [vmem:[%s2184 + $0xcd] sm:$0xff]
      %v2708 = vld [vmem:[%s2184 + $0xdd] sm:$0xff]
      %v2709 = vld [vmem:[%s2184 + $0xe5] sm:$0xff]
      %v2710 = vld [vmem:[%s2184 + $0xf5] sm:$0xff]
      %v2711 = vld [vmem:[%s2184 + $0xfd] sm:$0xff]
      %v2712 = vld [vmem:[%s2184 + $0x10d] sm:$0xff]
      %v2713 = vld [vmem:[%s2184 + $0x115] sm:$0xff]
      %v2714 = vld [vmem:[%s2184 + $0x125] sm:$0xff]
      %v2715 = vld [vmem:[%s2184 + $0x12d] sm:$0xff]
      %v2716 = vld [vmem:[%s2184 + $0x13d] sm:$0xff]
      %v2717 = vld [vmem:[%s2184 + $0x145] sm:$0xff]
      %v2718 = vld [vmem:[%s2184 + $0x155] sm:$0xff]
      %v2719 = vld [vmem:[%s2184 + $0x15d] sm:$0xff]
      %v2720 = vld [vmem:[%s2184 + $0x16d] sm:$0xff]
      %v2721 = vld [vmem:[%s2184 + $0x175] sm:$0xff]
      %s2722 = scalar_lea.vmem %s4, 19
      %v2723 = vld [vmem:[%s2722] sm:$0x1]
      %v2725 = vperm.slane %v2723, 0
      %v2727 = vmul.f32 %v2690, %v2725
      %v2728 = vmul.f32 %v2691, %v2725
      %v2729 = vmul.f32 %v2692, %v2725
      %v2730 = vmul.f32 %v2693, %v2725
      %v2731 = vmul.f32 %v2694, %v2725
      %v2732 = vmul.f32 %v2695, %v2725
      %v2733 = vmul.f32 %v2696, %v2725
      %v2734 = vmul.f32 %v2697, %v2725
      %v2735 = vmul.f32 %v2698, %v2725
      %v2736 = vmul.f32 %v2699, %v2725
      %v2737 = vmul.f32 %v2700, %v2725
      %v2738 = vmul.f32 %v2701, %v2725
      %v2739 = vmul.f32 %v2702, %v2725
      %v2740 = vmul.f32 %v2703, %v2725
      %v2741 = vmul.f32 %v2704, %v2725
      %v2742 = vmul.f32 %v2705, %v2725
      %v2743 = vmul.f32 %v2706, %v2725
      %v2744 = vmul.f32 %v2707, %v2725
      %v2745 = vmul.f32 %v2708, %v2725
      %v2746 = vmul.f32 %v2709, %v2725
      %v2747 = vmul.f32 %v2710, %v2725
      %v2748 = vmul.f32 %v2711, %v2725
      %v2749 = vmul.f32 %v2712, %v2725
      %v2750 = vmul.f32 %v2713, %v2725
      %v2751 = vmul.f32 %v2714, %v2725
      %v2752 = vmul.f32 %v2715, %v2725
      %v2753 = vmul.f32 %v2716, %v2725
      %v2754 = vmul.f32 %v2717, %v2725
      %v2755 = vmul.f32 %v2718, %v2725
      %v2756 = vmul.f32 %v2719, %v2725
      %v2757 = vmul.f32 %v2720, %v2725
      %v2758 = vmul.f32 %v2721, %v2725
      %v2759 = vadd.f32 %v2658, %v2727
      %v2760 = vadd.f32 %v2659, %v2728
      %v2761 = vadd.f32 %v2660, %v2729
      %v2762 = vadd.f32 %v2661, %v2730
      %v2763 = vadd.f32 %v2662, %v2731
      %v2764 = vadd.f32 %v2663, %v2732
      %v2765 = vadd.f32 %v2664, %v2733
      %v2766 = vadd.f32 %v2665, %v2734
      %v2767 = vadd.f32 %v2666, %v2735
      %v2768 = vadd.f32 %v2667, %v2736
      %v2769 = vadd.f32 %v2668, %v2737
      %v2770 = vadd.f32 %v2669, %v2738
      %v2771 = vadd.f32 %v2670, %v2739
      %v2772 = vadd.f32 %v2671, %v2740
      %v2773 = vadd.f32 %v2672, %v2741
      %v2774 = vadd.f32 %v2673, %v2742
      %v2775 = vadd.f32 %v2674, %v2743
      %v2776 = vadd.f32 %v2675, %v2744
      %v2777 = vadd.f32 %v2676, %v2745
      %v2778 = vadd.f32 %v2677, %v2746
      %v2779 = vadd.f32 %v2678, %v2747
      %v2780 = vadd.f32 %v2679, %v2748
      %v2781 = vadd.f32 %v2680, %v2749
      %v2782 = vadd.f32 %v2681, %v2750
      %v2783 = vadd.f32 %v2682, %v2751
      %v2784 = vadd.f32 %v2683, %v2752
      %v2785 = vadd.f32 %v2684, %v2753
      %v2786 = vadd.f32 %v2685, %v2754
      %v2787 = vadd.f32 %v2686, %v2755
      %v2788 = vadd.f32 %v2687, %v2756
      %v2789 = vadd.f32 %v2688, %v2757
      %v2790 = vadd.f32 %v2689, %v2758
      %v2791 = vld [vmem:[%s2184 + $0x6] sm:$0xff]
      %v2792 = vld [vmem:[%s2184 + $0xe] sm:$0xff]
      %v2793 = vld [vmem:[%s2184 + $0x1e] sm:$0xff]
      %v2794 = vld [vmem:[%s2184 + $0x26] sm:$0xff]
      %v2795 = vld [vmem:[%s2184 + $0x36] sm:$0xff]
      %v2796 = vld [vmem:[%s2184 + $0x3e] sm:$0xff]
      %v2797 = vld [vmem:[%s2184 + $0x4e] sm:$0xff]
      %v2798 = vld [vmem:[%s2184 + $0x56] sm:$0xff]
      %v2799 = vld [vmem:[%s2184 + $0x66] sm:$0xff]
      %v2800 = vld [vmem:[%s2184 + $0x6e] sm:$0xff]
      %v2801 = vld [vmem:[%s2184 + $0x7e] sm:$0xff]
      %v2802 = vld [vmem:[%s2184 + $0x86] sm:$0xff]
      %v2803 = vld [vmem:[%s2184 + $0x96] sm:$0xff]
      %v2804 = vld [vmem:[%s2184 + $0x9e] sm:$0xff]
      %v2805 = vld [vmem:[%s2184 + $0xae] sm:$0xff]
      %v2806 = vld [vmem:[%s2184 + $0xb6] sm:$0xff]
      %v2807 = vld [vmem:[%s2184 + $0xc6] sm:$0xff]
      %v2808 = vld [vmem:[%s2184 + $0xce] sm:$0xff]
      %v2809 = vld [vmem:[%s2184 + $0xde] sm:$0xff]
      %v2810 = vld [vmem:[%s2184 + $0xe6] sm:$0xff]
      %v2811 = vld [vmem:[%s2184 + $0xf6] sm:$0xff]
      %v2812 = vld [vmem:[%s2184 + $0xfe] sm:$0xff]
      %v2813 = vld [vmem:[%s2184 + $0x10e] sm:$0xff]
      %v2814 = vld [vmem:[%s2184 + $0x116] sm:$0xff]
      %v2815 = vld [vmem:[%s2184 + $0x126] sm:$0xff]
      %v2816 = vld [vmem:[%s2184 + $0x12e] sm:$0xff]
      %v2817 = vld [vmem:[%s2184 + $0x13e] sm:$0xff]
      %v2818 = vld [vmem:[%s2184 + $0x146] sm:$0xff]
      %v2819 = vld [vmem:[%s2184 + $0x156] sm:$0xff]
      %v2820 = vld [vmem:[%s2184 + $0x15e] sm:$0xff]
      %v2821 = vld [vmem:[%s2184 + $0x16e] sm:$0xff]
      %v2822 = vld [vmem:[%s2184 + $0x176] sm:$0xff]
      %s2823 = scalar_lea.vmem %s4, 20
      %v2824 = vld [vmem:[%s2823] sm:$0x1]
      %v2826 = vperm.slane %v2824, 0
      %v2828 = vmul.f32 %v2791, %v2826
      %v2829 = vmul.f32 %v2792, %v2826
      %v2830 = vmul.f32 %v2793, %v2826
      %v2831 = vmul.f32 %v2794, %v2826
      %v2832 = vmul.f32 %v2795, %v2826
      %v2833 = vmul.f32 %v2796, %v2826
      %v2834 = vmul.f32 %v2797, %v2826
      %v2835 = vmul.f32 %v2798, %v2826
      %v2836 = vmul.f32 %v2799, %v2826
      %v2837 = vmul.f32 %v2800, %v2826
      %v2838 = vmul.f32 %v2801, %v2826
      %v2839 = vmul.f32 %v2802, %v2826
      %v2840 = vmul.f32 %v2803, %v2826
      %v2841 = vmul.f32 %v2804, %v2826
      %v2842 = vmul.f32 %v2805, %v2826
      %v2843 = vmul.f32 %v2806, %v2826
      %v2844 = vmul.f32 %v2807, %v2826
      %v2845 = vmul.f32 %v2808, %v2826
      %v2846 = vmul.f32 %v2809, %v2826
      %v2847 = vmul.f32 %v2810, %v2826
      %v2848 = vmul.f32 %v2811, %v2826
      %v2849 = vmul.f32 %v2812, %v2826
      %v2850 = vmul.f32 %v2813, %v2826
      %v2851 = vmul.f32 %v2814, %v2826
      %v2852 = vmul.f32 %v2815, %v2826
      %v2853 = vmul.f32 %v2816, %v2826
      %v2854 = vmul.f32 %v2817, %v2826
      %v2855 = vmul.f32 %v2818, %v2826
      %v2856 = vmul.f32 %v2819, %v2826
      %v2857 = vmul.f32 %v2820, %v2826
      %v2858 = vmul.f32 %v2821, %v2826
      %v2859 = vmul.f32 %v2822, %v2826
      %v2860 = vadd.f32 %v2759, %v2828
      %v2861 = vadd.f32 %v2760, %v2829
      %v2862 = vadd.f32 %v2761, %v2830
      %v2863 = vadd.f32 %v2762, %v2831
      %v2864 = vadd.f32 %v2763, %v2832
      %v2865 = vadd.f32 %v2764, %v2833
      %v2866 = vadd.f32 %v2765, %v2834
      %v2867 = vadd.f32 %v2766, %v2835
      %v2868 = vadd.f32 %v2767, %v2836
      %v2869 = vadd.f32 %v2768, %v2837
      %v2870 = vadd.f32 %v2769, %v2838
      %v2871 = vadd.f32 %v2770, %v2839
      %v2872 = vadd.f32 %v2771, %v2840
      %v2873 = vadd.f32 %v2772, %v2841
      %v2874 = vadd.f32 %v2773, %v2842
      %v2875 = vadd.f32 %v2774, %v2843
      %v2876 = vadd.f32 %v2775, %v2844
      %v2877 = vadd.f32 %v2776, %v2845
      %v2878 = vadd.f32 %v2777, %v2846
      %v2879 = vadd.f32 %v2778, %v2847
      %v2880 = vadd.f32 %v2779, %v2848
      %v2881 = vadd.f32 %v2780, %v2849
      %v2882 = vadd.f32 %v2781, %v2850
      %v2883 = vadd.f32 %v2782, %v2851
      %v2884 = vadd.f32 %v2783, %v2852
      %v2885 = vadd.f32 %v2784, %v2853
      %v2886 = vadd.f32 %v2785, %v2854
      %v2887 = vadd.f32 %v2786, %v2855
      %v2888 = vadd.f32 %v2787, %v2856
      %v2889 = vadd.f32 %v2788, %v2857
      %v2890 = vadd.f32 %v2789, %v2858
      %v2891 = vadd.f32 %v2790, %v2859
      %v2892 = vld [vmem:[%s354] sm:$0xff]
      %v2893 = vld [vmem:[%s354 + $0x8] sm:$0xff]
      %v2894 = vld [vmem:[%s354 + $0x18] sm:$0xff]
      %v2895 = vld [vmem:[%s354 + $0x20] sm:$0xff]
      %v2896 = vld [vmem:[%s354 + $0x30] sm:$0xff]
      %v2897 = vld [vmem:[%s354 + $0x38] sm:$0xff]
      %v2898 = vld [vmem:[%s354 + $0x48] sm:$0xff]
      %v2899 = vld [vmem:[%s354 + $0x50] sm:$0xff]
      %v2900 = vld [vmem:[%s354 + $0x60] sm:$0xff]
      %v2901 = vld [vmem:[%s354 + $0x68] sm:$0xff]
      %v2902 = vld [vmem:[%s354 + $0x78] sm:$0xff]
      %v2903 = vld [vmem:[%s354 + $0x80] sm:$0xff]
      %v2904 = vld [vmem:[%s354 + $0x90] sm:$0xff]
      %v2905 = vld [vmem:[%s354 + $0x98] sm:$0xff]
      %v2906 = vld [vmem:[%s354 + $0xa8] sm:$0xff]
      %v2907 = vld [vmem:[%s354 + $0xb0] sm:$0xff]
      %v2908 = vld [vmem:[%s354 + $0xc0] sm:$0xff]
      %v2909 = vld [vmem:[%s354 + $0xc8] sm:$0xff]
      %v2910 = vld [vmem:[%s354 + $0xd8] sm:$0xff]
      %v2911 = vld [vmem:[%s354 + $0xe0] sm:$0xff]
      %v2912 = vld [vmem:[%s354 + $0xf0] sm:$0xff]
      %v2913 = vld [vmem:[%s354 + $0xf8] sm:$0xff]
      %v2914 = vld [vmem:[%s354 + $0x108] sm:$0xff]
      %v2915 = vld [vmem:[%s354 + $0x110] sm:$0xff]
      %v2916 = vld [vmem:[%s354 + $0x120] sm:$0xff]
      %v2917 = vld [vmem:[%s354 + $0x128] sm:$0xff]
      %v2918 = vld [vmem:[%s354 + $0x138] sm:$0xff]
      %v2919 = vld [vmem:[%s354 + $0x140] sm:$0xff]
      %v2920 = vld [vmem:[%s354 + $0x150] sm:$0xff]
      %v2921 = vld [vmem:[%s354 + $0x158] sm:$0xff]
      %v2922 = vld [vmem:[%s354 + $0x168] sm:$0xff]
      %v2923 = vld [vmem:[%s354 + $0x170] sm:$0xff]
      %s2924 = scalar_lea.vmem %s4, 21
      %v2925 = vld [vmem:[%s2924] sm:$0x1]
      %v2927 = vperm.slane %v2925, 0
      %v2929 = vmul.f32 %v2892, %v2927
      %v2930 = vmul.f32 %v2893, %v2927
      %v2931 = vmul.f32 %v2894, %v2927
      %v2932 = vmul.f32 %v2895, %v2927
      %v2933 = vmul.f32 %v2896, %v2927
      %v2934 = vmul.f32 %v2897, %v2927
      %v2935 = vmul.f32 %v2898, %v2927
      %v2936 = vmul.f32 %v2899, %v2927
      %v2937 = vmul.f32 %v2900, %v2927
      %v2938 = vmul.f32 %v2901, %v2927
      %v2939 = vmul.f32 %v2902, %v2927
      %v2940 = vmul.f32 %v2903, %v2927
      %v2941 = vmul.f32 %v2904, %v2927
      %v2942 = vmul.f32 %v2905, %v2927
      %v2943 = vmul.f32 %v2906, %v2927
      %v2944 = vmul.f32 %v2907, %v2927
      %v2945 = vmul.f32 %v2908, %v2927
      %v2946 = vmul.f32 %v2909, %v2927
      %v2947 = vmul.f32 %v2910, %v2927
      %v2948 = vmul.f32 %v2911, %v2927
      %v2949 = vmul.f32 %v2912, %v2927
      %v2950 = vmul.f32 %v2913, %v2927
      %v2951 = vmul.f32 %v2914, %v2927
      %v2952 = vmul.f32 %v2915, %v2927
      %v2953 = vmul.f32 %v2916, %v2927
      %v2954 = vmul.f32 %v2917, %v2927
      %v2955 = vmul.f32 %v2918, %v2927
      %v2956 = vmul.f32 %v2919, %v2927
      %v2957 = vmul.f32 %v2920, %v2927
      %v2958 = vmul.f32 %v2921, %v2927
      %v2959 = vmul.f32 %v2922, %v2927
      %v2960 = vmul.f32 %v2923, %v2927
      %v2961 = vadd.f32 %v2860, %v2929
      %v2962 = vadd.f32 %v2861, %v2930
      %v2963 = vadd.f32 %v2862, %v2931
      %v2964 = vadd.f32 %v2863, %v2932
      %v2965 = vadd.f32 %v2864, %v2933
      %v2966 = vadd.f32 %v2865, %v2934
      %v2967 = vadd.f32 %v2866, %v2935
      %v2968 = vadd.f32 %v2867, %v2936
      %v2969 = vadd.f32 %v2868, %v2937
      %v2970 = vadd.f32 %v2869, %v2938
      %v2971 = vadd.f32 %v2870, %v2939
      %v2972 = vadd.f32 %v2871, %v2940
      %v2973 = vadd.f32 %v2872, %v2941
      %v2974 = vadd.f32 %v2873, %v2942
      %v2975 = vadd.f32 %v2874, %v2943
      %v2976 = vadd.f32 %v2875, %v2944
      %v2977 = vadd.f32 %v2876, %v2945
      %v2978 = vadd.f32 %v2877, %v2946
      %v2979 = vadd.f32 %v2878, %v2947
      %v2980 = vadd.f32 %v2879, %v2948
      %v2981 = vadd.f32 %v2880, %v2949
      %v2982 = vadd.f32 %v2881, %v2950
      %v2983 = vadd.f32 %v2882, %v2951
      %v2984 = vadd.f32 %v2883, %v2952
      %v2985 = vadd.f32 %v2884, %v2953
      %v2986 = vadd.f32 %v2885, %v2954
      %v2987 = vadd.f32 %v2886, %v2955
      %v2988 = vadd.f32 %v2887, %v2956
      %v2989 = vadd.f32 %v2888, %v2957
      %v2990 = vadd.f32 %v2889, %v2958
      %v2991 = vadd.f32 %v2890, %v2959
      %v2992 = vadd.f32 %v2891, %v2960
      %v2993 = vld [vmem:[%s354 + $0x1] sm:$0xff]
      %v2994 = vld [vmem:[%s354 + $0x9] sm:$0xff]
      %v2995 = vld [vmem:[%s354 + $0x19] sm:$0xff]
      %v2996 = vld [vmem:[%s354 + $0x21] sm:$0xff]
      %v2997 = vld [vmem:[%s354 + $0x31] sm:$0xff]
      %v2998 = vld [vmem:[%s354 + $0x39] sm:$0xff]
      %v2999 = vld [vmem:[%s354 + $0x49] sm:$0xff]
      %v3000 = vld [vmem:[%s354 + $0x51] sm:$0xff]
      %v3001 = vld [vmem:[%s354 + $0x61] sm:$0xff]
      %v3002 = vld [vmem:[%s354 + $0x69] sm:$0xff]
      %v3003 = vld [vmem:[%s354 + $0x79] sm:$0xff]
      %v3004 = vld [vmem:[%s354 + $0x81] sm:$0xff]
      %v3005 = vld [vmem:[%s354 + $0x91] sm:$0xff]
      %v3006 = vld [vmem:[%s354 + $0x99] sm:$0xff]
      %v3007 = vld [vmem:[%s354 + $0xa9] sm:$0xff]
      %v3008 = vld [vmem:[%s354 + $0xb1] sm:$0xff]
      %v3009 = vld [vmem:[%s354 + $0xc1] sm:$0xff]
      %v3010 = vld [vmem:[%s354 + $0xc9] sm:$0xff]
      %v3011 = vld [vmem:[%s354 + $0xd9] sm:$0xff]
      %v3012 = vld [vmem:[%s354 + $0xe1] sm:$0xff]
      %v3013 = vld [vmem:[%s354 + $0xf1] sm:$0xff]
      %v3014 = vld [vmem:[%s354 + $0xf9] sm:$0xff]
      %v3015 = vld [vmem:[%s354 + $0x109] sm:$0xff]
      %v3016 = vld [vmem:[%s354 + $0x111] sm:$0xff]
      %v3017 = vld [vmem:[%s354 + $0x121] sm:$0xff]
      %v3018 = vld [vmem:[%s354 + $0x129] sm:$0xff]
      %v3019 = vld [vmem:[%s354 + $0x139] sm:$0xff]
      %v3020 = vld [vmem:[%s354 + $0x141] sm:$0xff]
      %v3021 = vld [vmem:[%s354 + $0x151] sm:$0xff]
      %v3022 = vld [vmem:[%s354 + $0x159] sm:$0xff]
      %v3023 = vld [vmem:[%s354 + $0x169] sm:$0xff]
      %v3024 = vld [vmem:[%s354 + $0x171] sm:$0xff]
      %s3025 = scalar_lea.vmem %s4, 22
      %v3026 = vld [vmem:[%s3025] sm:$0x1]
      %v3028 = vperm.slane %v3026, 0
      %v3030 = vmul.f32 %v2993, %v3028
      %v3031 = vmul.f32 %v2994, %v3028
      %v3032 = vmul.f32 %v2995, %v3028
      %v3033 = vmul.f32 %v2996, %v3028
      %v3034 = vmul.f32 %v2997, %v3028
      %v3035 = vmul.f32 %v2998, %v3028
      %v3036 = vmul.f32 %v2999, %v3028
      %v3037 = vmul.f32 %v3000, %v3028
      %v3038 = vmul.f32 %v3001, %v3028
      %v3039 = vmul.f32 %v3002, %v3028
      %v3040 = vmul.f32 %v3003, %v3028
      %v3041 = vmul.f32 %v3004, %v3028
      %v3042 = vmul.f32 %v3005, %v3028
      %v3043 = vmul.f32 %v3006, %v3028
      %v3044 = vmul.f32 %v3007, %v3028
      %v3045 = vmul.f32 %v3008, %v3028
      %v3046 = vmul.f32 %v3009, %v3028
      %v3047 = vmul.f32 %v3010, %v3028
      %v3048 = vmul.f32 %v3011, %v3028
      %v3049 = vmul.f32 %v3012, %v3028
      %v3050 = vmul.f32 %v3013, %v3028
      %v3051 = vmul.f32 %v3014, %v3028
      %v3052 = vmul.f32 %v3015, %v3028
      %v3053 = vmul.f32 %v3016, %v3028
      %v3054 = vmul.f32 %v3017, %v3028
      %v3055 = vmul.f32 %v3018, %v3028
      %v3056 = vmul.f32 %v3019, %v3028
      %v3057 = vmul.f32 %v3020, %v3028
      %v3058 = vmul.f32 %v3021, %v3028
      %v3059 = vmul.f32 %v3022, %v3028
      %v3060 = vmul.f32 %v3023, %v3028
      %v3061 = vmul.f32 %v3024, %v3028
      %v3062 = vadd.f32 %v2961, %v3030
      %v3063 = vadd.f32 %v2962, %v3031
      %v3064 = vadd.f32 %v2963, %v3032
      %v3065 = vadd.f32 %v2964, %v3033
      %v3066 = vadd.f32 %v2965, %v3034
      %v3067 = vadd.f32 %v2966, %v3035
      %v3068 = vadd.f32 %v2967, %v3036
      %v3069 = vadd.f32 %v2968, %v3037
      %v3070 = vadd.f32 %v2969, %v3038
      %v3071 = vadd.f32 %v2970, %v3039
      %v3072 = vadd.f32 %v2971, %v3040
      %v3073 = vadd.f32 %v2972, %v3041
      %v3074 = vadd.f32 %v2973, %v3042
      %v3075 = vadd.f32 %v2974, %v3043
      %v3076 = vadd.f32 %v2975, %v3044
      %v3077 = vadd.f32 %v2976, %v3045
      %v3078 = vadd.f32 %v2977, %v3046
      %v3079 = vadd.f32 %v2978, %v3047
      %v3080 = vadd.f32 %v2979, %v3048
      %v3081 = vadd.f32 %v2980, %v3049
      %v3082 = vadd.f32 %v2981, %v3050
      %v3083 = vadd.f32 %v2982, %v3051
      %v3084 = vadd.f32 %v2983, %v3052
      %v3085 = vadd.f32 %v2984, %v3053
      %v3086 = vadd.f32 %v2985, %v3054
      %v3087 = vadd.f32 %v2986, %v3055
      %v3088 = vadd.f32 %v2987, %v3056
      %v3089 = vadd.f32 %v2988, %v3057
      %v3090 = vadd.f32 %v2989, %v3058
      %v3091 = vadd.f32 %v2990, %v3059
      %v3092 = vadd.f32 %v2991, %v3060
      %v3093 = vadd.f32 %v2992, %v3061
      %v3094 = vld [vmem:[%s354 + $0x2] sm:$0xff]
      %v3095 = vld [vmem:[%s354 + $0xa] sm:$0xff]
      %v3096 = vld [vmem:[%s354 + $0x1a] sm:$0xff]
      %v3097 = vld [vmem:[%s354 + $0x22] sm:$0xff]
      %v3098 = vld [vmem:[%s354 + $0x32] sm:$0xff]
      %v3099 = vld [vmem:[%s354 + $0x3a] sm:$0xff]
      %v3100 = vld [vmem:[%s354 + $0x4a] sm:$0xff]
      %v3101 = vld [vmem:[%s354 + $0x52] sm:$0xff]
      %v3102 = vld [vmem:[%s354 + $0x62] sm:$0xff]
      %v3103 = vld [vmem:[%s354 + $0x6a] sm:$0xff]
      %v3104 = vld [vmem:[%s354 + $0x7a] sm:$0xff]
      %v3105 = vld [vmem:[%s354 + $0x82] sm:$0xff]
      %v3106 = vld [vmem:[%s354 + $0x92] sm:$0xff]
      %v3107 = vld [vmem:[%s354 + $0x9a] sm:$0xff]
      %v3108 = vld [vmem:[%s354 + $0xaa] sm:$0xff]
      %v3109 = vld [vmem:[%s354 + $0xb2] sm:$0xff]
      %v3110 = vld [vmem:[%s354 + $0xc2] sm:$0xff]
      %v3111 = vld [vmem:[%s354 + $0xca] sm:$0xff]
      %v3112 = vld [vmem:[%s354 + $0xda] sm:$0xff]
      %v3113 = vld [vmem:[%s354 + $0xe2] sm:$0xff]
      %v3114 = vld [vmem:[%s354 + $0xf2] sm:$0xff]
      %v3115 = vld [vmem:[%s354 + $0xfa] sm:$0xff]
      %v3116 = vld [vmem:[%s354 + $0x10a] sm:$0xff]
      %v3117 = vld [vmem:[%s354 + $0x112] sm:$0xff]
      %v3118 = vld [vmem:[%s354 + $0x122] sm:$0xff]
      %v3119 = vld [vmem:[%s354 + $0x12a] sm:$0xff]
      %v3120 = vld [vmem:[%s354 + $0x13a] sm:$0xff]
      %v3121 = vld [vmem:[%s354 + $0x142] sm:$0xff]
      %v3122 = vld [vmem:[%s354 + $0x152] sm:$0xff]
      %v3123 = vld [vmem:[%s354 + $0x15a] sm:$0xff]
      %v3124 = vld [vmem:[%s354 + $0x16a] sm:$0xff]
      %v3125 = vld [vmem:[%s354 + $0x172] sm:$0xff]
      %s3126 = scalar_lea.vmem %s4, 23
      %v3127 = vld [vmem:[%s3126] sm:$0x1]
      %v3129 = vperm.slane %v3127, 0
      %v3131 = vmul.f32 %v3094, %v3129
      %v3132 = vmul.f32 %v3095, %v3129
      %v3133 = vmul.f32 %v3096, %v3129
      %v3134 = vmul.f32 %v3097, %v3129
      %v3135 = vmul.f32 %v3098, %v3129
      %v3136 = vmul.f32 %v3099, %v3129
      %v3137 = vmul.f32 %v3100, %v3129
      %v3138 = vmul.f32 %v3101, %v3129
      %v3139 = vmul.f32 %v3102, %v3129
      %v3140 = vmul.f32 %v3103, %v3129
      %v3141 = vmul.f32 %v3104, %v3129
      %v3142 = vmul.f32 %v3105, %v3129
      %v3143 = vmul.f32 %v3106, %v3129
      %v3144 = vmul.f32 %v3107, %v3129
      %v3145 = vmul.f32 %v3108, %v3129
      %v3146 = vmul.f32 %v3109, %v3129
      %v3147 = vmul.f32 %v3110, %v3129
      %v3148 = vmul.f32 %v3111, %v3129
      %v3149 = vmul.f32 %v3112, %v3129
      %v3150 = vmul.f32 %v3113, %v3129
      %v3151 = vmul.f32 %v3114, %v3129
      %v3152 = vmul.f32 %v3115, %v3129
      %v3153 = vmul.f32 %v3116, %v3129
      %v3154 = vmul.f32 %v3117, %v3129
      %v3155 = vmul.f32 %v3118, %v3129
      %v3156 = vmul.f32 %v3119, %v3129
      %v3157 = vmul.f32 %v3120, %v3129
      %v3158 = vmul.f32 %v3121, %v3129
      %v3159 = vmul.f32 %v3122, %v3129
      %v3160 = vmul.f32 %v3123, %v3129
      %v3161 = vmul.f32 %v3124, %v3129
      %v3162 = vmul.f32 %v3125, %v3129
      %v3163 = vadd.f32 %v3062, %v3131
      %v3164 = vadd.f32 %v3063, %v3132
      %v3165 = vadd.f32 %v3064, %v3133
      %v3166 = vadd.f32 %v3065, %v3134
      %v3167 = vadd.f32 %v3066, %v3135
      %v3168 = vadd.f32 %v3067, %v3136
      %v3169 = vadd.f32 %v3068, %v3137
      %v3170 = vadd.f32 %v3069, %v3138
      %v3171 = vadd.f32 %v3070, %v3139
      %v3172 = vadd.f32 %v3071, %v3140
      %v3173 = vadd.f32 %v3072, %v3141
      %v3174 = vadd.f32 %v3073, %v3142
      %v3175 = vadd.f32 %v3074, %v3143
      %v3176 = vadd.f32 %v3075, %v3144
      %v3177 = vadd.f32 %v3076, %v3145
      %v3178 = vadd.f32 %v3077, %v3146
      %v3179 = vadd.f32 %v3078, %v3147
      %v3180 = vadd.f32 %v3079, %v3148
      %v3181 = vadd.f32 %v3080, %v3149
      %v3182 = vadd.f32 %v3081, %v3150
      %v3183 = vadd.f32 %v3082, %v3151
      %v3184 = vadd.f32 %v3083, %v3152
      %v3185 = vadd.f32 %v3084, %v3153
      %v3186 = vadd.f32 %v3085, %v3154
      %v3187 = vadd.f32 %v3086, %v3155
      %v3188 = vadd.f32 %v3087, %v3156
      %v3189 = vadd.f32 %v3088, %v3157
      %v3190 = vadd.f32 %v3089, %v3158
      %v3191 = vadd.f32 %v3090, %v3159
      %v3192 = vadd.f32 %v3091, %v3160
      %v3193 = vadd.f32 %v3092, %v3161
      %v3194 = vadd.f32 %v3093, %v3162
      %v3195 = vld [vmem:[%s354 + $0x3] sm:$0xff]
      %v3196 = vld [vmem:[%s354 + $0xb] sm:$0xff]
      %v3197 = vld [vmem:[%s354 + $0x1b] sm:$0xff]
      %v3198 = vld [vmem:[%s354 + $0x23] sm:$0xff]
      %v3199 = vld [vmem:[%s354 + $0x33] sm:$0xff]
      %v3200 = vld [vmem:[%s354 + $0x3b] sm:$0xff]
      %v3201 = vld [vmem:[%s354 + $0x4b] sm:$0xff]
      %v3202 = vld [vmem:[%s354 + $0x53] sm:$0xff]
      %v3203 = vld [vmem:[%s354 + $0x63] sm:$0xff]
      %v3204 = vld [vmem:[%s354 + $0x6b] sm:$0xff]
      %v3205 = vld [vmem:[%s354 + $0x7b] sm:$0xff]
      %v3206 = vld [vmem:[%s354 + $0x83] sm:$0xff]
      %v3207 = vld [vmem:[%s354 + $0x93] sm:$0xff]
      %v3208 = vld [vmem:[%s354 + $0x9b] sm:$0xff]
      %v3209 = vld [vmem:[%s354 + $0xab] sm:$0xff]
      %v3210 = vld [vmem:[%s354 + $0xb3] sm:$0xff]
      %v3211 = vld [vmem:[%s354 + $0xc3] sm:$0xff]
      %v3212 = vld [vmem:[%s354 + $0xcb] sm:$0xff]
      %v3213 = vld [vmem:[%s354 + $0xdb] sm:$0xff]
      %v3214 = vld [vmem:[%s354 + $0xe3] sm:$0xff]
      %v3215 = vld [vmem:[%s354 + $0xf3] sm:$0xff]
      %v3216 = vld [vmem:[%s354 + $0xfb] sm:$0xff]
      %v3217 = vld [vmem:[%s354 + $0x10b] sm:$0xff]
      %v3218 = vld [vmem:[%s354 + $0x113] sm:$0xff]
      %v3219 = vld [vmem:[%s354 + $0x123] sm:$0xff]
      %v3220 = vld [vmem:[%s354 + $0x12b] sm:$0xff]
      %v3221 = vld [vmem:[%s354 + $0x13b] sm:$0xff]
      %v3222 = vld [vmem:[%s354 + $0x143] sm:$0xff]
      %v3223 = vld [vmem:[%s354 + $0x153] sm:$0xff]
      %v3224 = vld [vmem:[%s354 + $0x15b] sm:$0xff]
      %v3225 = vld [vmem:[%s354 + $0x16b] sm:$0xff]
      %v3226 = vld [vmem:[%s354 + $0x173] sm:$0xff]
      %s3227 = scalar_lea.vmem %s4, 24
      %v3228 = vld [vmem:[%s3227] sm:$0x1]
      %v3230 = vperm.slane %v3228, 0
      %v3232 = vmul.f32 %v3195, %v3230
      %v3233 = vmul.f32 %v3196, %v3230
      %v3234 = vmul.f32 %v3197, %v3230
      %v3235 = vmul.f32 %v3198, %v3230
      %v3236 = vmul.f32 %v3199, %v3230
      %v3237 = vmul.f32 %v3200, %v3230
      %v3238 = vmul.f32 %v3201, %v3230
      %v3239 = vmul.f32 %v3202, %v3230
      %v3240 = vmul.f32 %v3203, %v3230
      %v3241 = vmul.f32 %v3204, %v3230
      %v3242 = vmul.f32 %v3205, %v3230
      %v3243 = vmul.f32 %v3206, %v3230
      %v3244 = vmul.f32 %v3207, %v3230
      %v3245 = vmul.f32 %v3208, %v3230
      %v3246 = vmul.f32 %v3209, %v3230
      %v3247 = vmul.f32 %v3210, %v3230
      %v3248 = vmul.f32 %v3211, %v3230
      %v3249 = vmul.f32 %v3212, %v3230
      %v3250 = vmul.f32 %v3213, %v3230
      %v3251 = vmul.f32 %v3214, %v3230
      %v3252 = vmul.f32 %v3215, %v3230
      %v3253 = vmul.f32 %v3216, %v3230
      %v3254 = vmul.f32 %v3217, %v3230
      %v3255 = vmul.f32 %v3218, %v3230
      %v3256 = vmul.f32 %v3219, %v3230
      %v3257 = vmul.f32 %v3220, %v3230
      %v3258 = vmul.f32 %v3221, %v3230
      %v3259 = vmul.f32 %v3222, %v3230
      %v3260 = vmul.f32 %v3223, %v3230
      %v3261 = vmul.f32 %v3224, %v3230
      %v3262 = vmul.f32 %v3225, %v3230
      %v3263 = vmul.f32 %v3226, %v3230
      %v3264 = vadd.f32 %v3163, %v3232
      %v3265 = vadd.f32 %v3164, %v3233
      %v3266 = vadd.f32 %v3165, %v3234
      %v3267 = vadd.f32 %v3166, %v3235
      %v3268 = vadd.f32 %v3167, %v3236
      %v3269 = vadd.f32 %v3168, %v3237
      %v3270 = vadd.f32 %v3169, %v3238
      %v3271 = vadd.f32 %v3170, %v3239
      %v3272 = vadd.f32 %v3171, %v3240
      %v3273 = vadd.f32 %v3172, %v3241
      %v3274 = vadd.f32 %v3173, %v3242
      %v3275 = vadd.f32 %v3174, %v3243
      %v3276 = vadd.f32 %v3175, %v3244
      %v3277 = vadd.f32 %v3176, %v3245
      %v3278 = vadd.f32 %v3177, %v3246
      %v3279 = vadd.f32 %v3178, %v3247
      %v3280 = vadd.f32 %v3179, %v3248
      %v3281 = vadd.f32 %v3180, %v3249
      %v3282 = vadd.f32 %v3181, %v3250
      %v3283 = vadd.f32 %v3182, %v3251
      %v3284 = vadd.f32 %v3183, %v3252
      %v3285 = vadd.f32 %v3184, %v3253
      %v3286 = vadd.f32 %v3185, %v3254
      %v3287 = vadd.f32 %v3186, %v3255
      %v3288 = vadd.f32 %v3187, %v3256
      %v3289 = vadd.f32 %v3188, %v3257
      %v3290 = vadd.f32 %v3189, %v3258
      %v3291 = vadd.f32 %v3190, %v3259
      %v3292 = vadd.f32 %v3191, %v3260
      %v3293 = vadd.f32 %v3192, %v3261
      %v3294 = vadd.f32 %v3193, %v3262
      %v3295 = vadd.f32 %v3194, %v3263
      %v3296 = vld [vmem:[%s354 + $0x4] sm:$0xff]
      %v3297 = vld [vmem:[%s354 + $0xc] sm:$0xff]
      %v3298 = vld [vmem:[%s354 + $0x1c] sm:$0xff]
      %v3299 = vld [vmem:[%s354 + $0x24] sm:$0xff]
      %v3300 = vld [vmem:[%s354 + $0x34] sm:$0xff]
      %v3301 = vld [vmem:[%s354 + $0x3c] sm:$0xff]
      %v3302 = vld [vmem:[%s354 + $0x4c] sm:$0xff]
      %v3303 = vld [vmem:[%s354 + $0x54] sm:$0xff]
      %v3304 = vld [vmem:[%s354 + $0x64] sm:$0xff]
      %v3305 = vld [vmem:[%s354 + $0x6c] sm:$0xff]
      %v3306 = vld [vmem:[%s354 + $0x7c] sm:$0xff]
      %v3307 = vld [vmem:[%s354 + $0x84] sm:$0xff]
      %v3308 = vld [vmem:[%s354 + $0x94] sm:$0xff]
      %v3309 = vld [vmem:[%s354 + $0x9c] sm:$0xff]
      %v3310 = vld [vmem:[%s354 + $0xac] sm:$0xff]
      %v3311 = vld [vmem:[%s354 + $0xb4] sm:$0xff]
      %v3312 = vld [vmem:[%s354 + $0xc4] sm:$0xff]
      %v3313 = vld [vmem:[%s354 + $0xcc] sm:$0xff]
      %v3314 = vld [vmem:[%s354 + $0xdc] sm:$0xff]
      %v3315 = vld [vmem:[%s354 + $0xe4] sm:$0xff]
      %v3316 = vld [vmem:[%s354 + $0xf4] sm:$0xff]
      %v3317 = vld [vmem:[%s354 + $0xfc] sm:$0xff]
      %v3318 = vld [vmem:[%s354 + $0x10c] sm:$0xff]
      %v3319 = vld [vmem:[%s354 + $0x114] sm:$0xff]
      %v3320 = vld [vmem:[%s354 + $0x124] sm:$0xff]
      %v3321 = vld [vmem:[%s354 + $0x12c] sm:$0xff]
      %v3322 = vld [vmem:[%s354 + $0x13c] sm:$0xff]
      %v3323 = vld [vmem:[%s354 + $0x144] sm:$0xff]
      %v3324 = vld [vmem:[%s354 + $0x154] sm:$0xff]
      %v3325 = vld [vmem:[%s354 + $0x15c] sm:$0xff]
      %v3326 = vld [vmem:[%s354 + $0x16c] sm:$0xff]
      %v3327 = vld [vmem:[%s354 + $0x174] sm:$0xff]
      %s3328 = scalar_lea.vmem %s4, 25
      %v3329 = vld [vmem:[%s3328] sm:$0x1]
      %v3331 = vperm.slane %v3329, 0
      %v3333 = vmul.f32 %v3296, %v3331
      %v3334 = vmul.f32 %v3297, %v3331
      %v3335 = vmul.f32 %v3298, %v3331
      %v3336 = vmul.f32 %v3299, %v3331
      %v3337 = vmul.f32 %v3300, %v3331
      %v3338 = vmul.f32 %v3301, %v3331
      %v3339 = vmul.f32 %v3302, %v3331
      %v3340 = vmul.f32 %v3303, %v3331
      %v3341 = vmul.f32 %v3304, %v3331
      %v3342 = vmul.f32 %v3305, %v3331
      %v3343 = vmul.f32 %v3306, %v3331
      %v3344 = vmul.f32 %v3307, %v3331
      %v3345 = vmul.f32 %v3308, %v3331
      %v3346 = vmul.f32 %v3309, %v3331
      %v3347 = vmul.f32 %v3310, %v3331
      %v3348 = vmul.f32 %v3311, %v3331
      %v3349 = vmul.f32 %v3312, %v3331
      %v3350 = vmul.f32 %v3313, %v3331
      %v3351 = vmul.f32 %v3314, %v3331
      %v3352 = vmul.f32 %v3315, %v3331
      %v3353 = vmul.f32 %v3316, %v3331
      %v3354 = vmul.f32 %v3317, %v3331
      %v3355 = vmul.f32 %v3318, %v3331
      %v3356 = vmul.f32 %v3319, %v3331
      %v3357 = vmul.f32 %v3320, %v3331
      %v3358 = vmul.f32 %v3321, %v3331
      %v3359 = vmul.f32 %v3322, %v3331
      %v3360 = vmul.f32 %v3323, %v3331
      %v3361 = vmul.f32 %v3324, %v3331
      %v3362 = vmul.f32 %v3325, %v3331
      %v3363 = vmul.f32 %v3326, %v3331
      %v3364 = vmul.f32 %v3327, %v3331
      %v3365 = vadd.f32 %v3264, %v3333
      %v3366 = vadd.f32 %v3265, %v3334
      %v3367 = vadd.f32 %v3266, %v3335
      %v3368 = vadd.f32 %v3267, %v3336
      %v3369 = vadd.f32 %v3268, %v3337
      %v3370 = vadd.f32 %v3269, %v3338
      %v3371 = vadd.f32 %v3270, %v3339
      %v3372 = vadd.f32 %v3271, %v3340
      %v3373 = vadd.f32 %v3272, %v3341
      %v3374 = vadd.f32 %v3273, %v3342
      %v3375 = vadd.f32 %v3274, %v3343
      %v3376 = vadd.f32 %v3275, %v3344
      %v3377 = vadd.f32 %v3276, %v3345
      %v3378 = vadd.f32 %v3277, %v3346
      %v3379 = vadd.f32 %v3278, %v3347
      %v3380 = vadd.f32 %v3279, %v3348
      %v3381 = vadd.f32 %v3280, %v3349
      %v3382 = vadd.f32 %v3281, %v3350
      %v3383 = vadd.f32 %v3282, %v3351
      %v3384 = vadd.f32 %v3283, %v3352
      %v3385 = vadd.f32 %v3284, %v3353
      %v3386 = vadd.f32 %v3285, %v3354
      %v3387 = vadd.f32 %v3286, %v3355
      %v3388 = vadd.f32 %v3287, %v3356
      %v3389 = vadd.f32 %v3288, %v3357
      %v3390 = vadd.f32 %v3289, %v3358
      %v3391 = vadd.f32 %v3290, %v3359
      %v3392 = vadd.f32 %v3291, %v3360
      %v3393 = vadd.f32 %v3292, %v3361
      %v3394 = vadd.f32 %v3293, %v3362
      %v3395 = vadd.f32 %v3294, %v3363
      %v3396 = vadd.f32 %v3295, %v3364
      %v3397 = vld [vmem:[%s354 + $0x5] sm:$0xff]
      %v3398 = vld [vmem:[%s354 + $0xd] sm:$0xff]
      %v3399 = vld [vmem:[%s354 + $0x1d] sm:$0xff]
      %v3400 = vld [vmem:[%s354 + $0x25] sm:$0xff]
      %v3401 = vld [vmem:[%s354 + $0x35] sm:$0xff]
      %v3402 = vld [vmem:[%s354 + $0x3d] sm:$0xff]
      %v3403 = vld [vmem:[%s354 + $0x4d] sm:$0xff]
      %v3404 = vld [vmem:[%s354 + $0x55] sm:$0xff]
      %v3405 = vld [vmem:[%s354 + $0x65] sm:$0xff]
      %v3406 = vld [vmem:[%s354 + $0x6d] sm:$0xff]
      %v3407 = vld [vmem:[%s354 + $0x7d] sm:$0xff]
      %v3408 = vld [vmem:[%s354 + $0x85] sm:$0xff]
      %v3409 = vld [vmem:[%s354 + $0x95] sm:$0xff]
      %v3410 = vld [vmem:[%s354 + $0x9d] sm:$0xff]
      %v3411 = vld [vmem:[%s354 + $0xad] sm:$0xff]
      %v3412 = vld [vmem:[%s354 + $0xb5] sm:$0xff]
      %v3413 = vld [vmem:[%s354 + $0xc5] sm:$0xff]
      %v3414 = vld [vmem:[%s354 + $0xcd] sm:$0xff]
      %v3415 = vld [vmem:[%s354 + $0xdd] sm:$0xff]
      %v3416 = vld [vmem:[%s354 + $0xe5] sm:$0xff]
      %v3417 = vld [vmem:[%s354 + $0xf5] sm:$0xff]
      %v3418 = vld [vmem:[%s354 + $0xfd] sm:$0xff]
      %v3419 = vld [vmem:[%s354 + $0x10d] sm:$0xff]
      %v3420 = vld [vmem:[%s354 + $0x115] sm:$0xff]
      %v3421 = vld [vmem:[%s354 + $0x125] sm:$0xff]
      %v3422 = vld [vmem:[%s354 + $0x12d] sm:$0xff]
      %v3423 = vld [vmem:[%s354 + $0x13d] sm:$0xff]
      %v3424 = vld [vmem:[%s354 + $0x145] sm:$0xff]
      %v3425 = vld [vmem:[%s354 + $0x155] sm:$0xff]
      %v3426 = vld [vmem:[%s354 + $0x15d] sm:$0xff]
      %v3427 = vld [vmem:[%s354 + $0x16d] sm:$0xff]
      %v3428 = vld [vmem:[%s354 + $0x175] sm:$0xff]
      %s3429 = scalar_lea.vmem %s4, 26
      %v3430 = vld [vmem:[%s3429] sm:$0x1]
      %v3432 = vperm.slane %v3430, 0
      %v3434 = vmul.f32 %v3397, %v3432
      %v3435 = vmul.f32 %v3398, %v3432
      %v3436 = vmul.f32 %v3399, %v3432
      %v3437 = vmul.f32 %v3400, %v3432
      %v3438 = vmul.f32 %v3401, %v3432
      %v3439 = vmul.f32 %v3402, %v3432
      %v3440 = vmul.f32 %v3403, %v3432
      %v3441 = vmul.f32 %v3404, %v3432
      %v3442 = vmul.f32 %v3405, %v3432
      %v3443 = vmul.f32 %v3406, %v3432
      %v3444 = vmul.f32 %v3407, %v3432
      %v3445 = vmul.f32 %v3408, %v3432
      %v3446 = vmul.f32 %v3409, %v3432
      %v3447 = vmul.f32 %v3410, %v3432
      %v3448 = vmul.f32 %v3411, %v3432
      %v3449 = vmul.f32 %v3412, %v3432
      %v3450 = vmul.f32 %v3413, %v3432
      %v3451 = vmul.f32 %v3414, %v3432
      %v3452 = vmul.f32 %v3415, %v3432
      %v3453 = vmul.f32 %v3416, %v3432
      %v3454 = vmul.f32 %v3417, %v3432
      %v3455 = vmul.f32 %v3418, %v3432
      %v3456 = vmul.f32 %v3419, %v3432
      %v3457 = vmul.f32 %v3420, %v3432
      %v3458 = vmul.f32 %v3421, %v3432
      %v3459 = vmul.f32 %v3422, %v3432
      %v3460 = vmul.f32 %v3423, %v3432
      %v3461 = vmul.f32 %v3424, %v3432
      %v3462 = vmul.f32 %v3425, %v3432
      %v3463 = vmul.f32 %v3426, %v3432
      %v3464 = vmul.f32 %v3427, %v3432
      %v3465 = vmul.f32 %v3428, %v3432
      %v3466 = vadd.f32 %v3365, %v3434
      %v3467 = vadd.f32 %v3366, %v3435
      %v3468 = vadd.f32 %v3367, %v3436
      %v3469 = vadd.f32 %v3368, %v3437
      %v3470 = vadd.f32 %v3369, %v3438
      %v3471 = vadd.f32 %v3370, %v3439
      %v3472 = vadd.f32 %v3371, %v3440
      %v3473 = vadd.f32 %v3372, %v3441
      %v3474 = vadd.f32 %v3373, %v3442
      %v3475 = vadd.f32 %v3374, %v3443
      %v3476 = vadd.f32 %v3375, %v3444
      %v3477 = vadd.f32 %v3376, %v3445
      %v3478 = vadd.f32 %v3377, %v3446
      %v3479 = vadd.f32 %v3378, %v3447
      %v3480 = vadd.f32 %v3379, %v3448
      %v3481 = vadd.f32 %v3380, %v3449
      %v3482 = vadd.f32 %v3381, %v3450
      %v3483 = vadd.f32 %v3382, %v3451
      %v3484 = vadd.f32 %v3383, %v3452
      %v3485 = vadd.f32 %v3384, %v3453
      %v3486 = vadd.f32 %v3385, %v3454
      %v3487 = vadd.f32 %v3386, %v3455
      %v3488 = vadd.f32 %v3387, %v3456
      %v3489 = vadd.f32 %v3388, %v3457
      %v3490 = vadd.f32 %v3389, %v3458
      %v3491 = vadd.f32 %v3390, %v3459
      %v3492 = vadd.f32 %v3391, %v3460
      %v3493 = vadd.f32 %v3392, %v3461
      %v3494 = vadd.f32 %v3393, %v3462
      %v3495 = vadd.f32 %v3394, %v3463
      %v3496 = vadd.f32 %v3395, %v3464
      %v3497 = vadd.f32 %v3396, %v3465
      %v3498 = vld [vmem:[%s354 + $0x6] sm:$0xff]
      %v3499 = vld [vmem:[%s354 + $0xe] sm:$0xff]
      %v3500 = vld [vmem:[%s354 + $0x1e] sm:$0xff]
      %v3501 = vld [vmem:[%s354 + $0x26] sm:$0xff]
      %v3502 = vld [vmem:[%s354 + $0x36] sm:$0xff]
      %v3503 = vld [vmem:[%s354 + $0x3e] sm:$0xff]
      %v3504 = vld [vmem:[%s354 + $0x4e] sm:$0xff]
      %v3505 = vld [vmem:[%s354 + $0x56] sm:$0xff]
      %v3506 = vld [vmem:[%s354 + $0x66] sm:$0xff]
      %v3507 = vld [vmem:[%s354 + $0x6e] sm:$0xff]
      %v3508 = vld [vmem:[%s354 + $0x7e] sm:$0xff]
      %v3509 = vld [vmem:[%s354 + $0x86] sm:$0xff]
      %v3510 = vld [vmem:[%s354 + $0x96] sm:$0xff]
      %v3511 = vld [vmem:[%s354 + $0x9e] sm:$0xff]
      %v3512 = vld [vmem:[%s354 + $0xae] sm:$0xff]
      %v3513 = vld [vmem:[%s354 + $0xb6] sm:$0xff]
      %v3514 = vld [vmem:[%s354 + $0xc6] sm:$0xff]
      %v3515 = vld [vmem:[%s354 + $0xce] sm:$0xff]
      %v3516 = vld [vmem:[%s354 + $0xde] sm:$0xff]
      %v3517 = vld [vmem:[%s354 + $0xe6] sm:$0xff]
      %v3518 = vld [vmem:[%s354 + $0xf6] sm:$0xff]
      %v3519 = vld [vmem:[%s354 + $0xfe] sm:$0xff]
      %v3520 = vld [vmem:[%s354 + $0x10e] sm:$0xff]
      %v3521 = vld [vmem:[%s354 + $0x116] sm:$0xff]
      %v3522 = vld [vmem:[%s354 + $0x126] sm:$0xff]
      %v3523 = vld [vmem:[%s354 + $0x12e] sm:$0xff]
      %v3524 = vld [vmem:[%s354 + $0x13e] sm:$0xff]
      %v3525 = vld [vmem:[%s354 + $0x146] sm:$0xff]
      %v3526 = vld [vmem:[%s354 + $0x156] sm:$0xff]
      %v3527 = vld [vmem:[%s354 + $0x15e] sm:$0xff]
      %v3528 = vld [vmem:[%s354 + $0x16e] sm:$0xff]
      %v3529 = vld [vmem:[%s354 + $0x176] sm:$0xff]
      %s3530 = scalar_lea.vmem %s4, 27
      %v3531 = vld [vmem:[%s3530] sm:$0x1]
      %v3533 = vperm.slane %v3531, 0
      %v3535 = vmul.f32 %v3498, %v3533
      %v3536 = vmul.f32 %v3499, %v3533
      %v3537 = vmul.f32 %v3500, %v3533
      %v3538 = vmul.f32 %v3501, %v3533
      %v3539 = vmul.f32 %v3502, %v3533
      %v3540 = vmul.f32 %v3503, %v3533
      %v3541 = vmul.f32 %v3504, %v3533
      %v3542 = vmul.f32 %v3505, %v3533
      %v3543 = vmul.f32 %v3506, %v3533
      %v3544 = vmul.f32 %v3507, %v3533
      %v3545 = vmul.f32 %v3508, %v3533
      %v3546 = vmul.f32 %v3509, %v3533
      %v3547 = vmul.f32 %v3510, %v3533
      %v3548 = vmul.f32 %v3511, %v3533
      %v3549 = vmul.f32 %v3512, %v3533
      %v3550 = vmul.f32 %v3513, %v3533
      %v3551 = vmul.f32 %v3514, %v3533
      %v3552 = vmul.f32 %v3515, %v3533
      %v3553 = vmul.f32 %v3516, %v3533
      %v3554 = vmul.f32 %v3517, %v3533
      %v3555 = vmul.f32 %v3518, %v3533
      %v3556 = vmul.f32 %v3519, %v3533
      %v3557 = vmul.f32 %v3520, %v3533
      %v3558 = vmul.f32 %v3521, %v3533
      %v3559 = vmul.f32 %v3522, %v3533
      %v3560 = vmul.f32 %v3523, %v3533
      %v3561 = vmul.f32 %v3524, %v3533
      %v3562 = vmul.f32 %v3525, %v3533
      %v3563 = vmul.f32 %v3526, %v3533
      %v3564 = vmul.f32 %v3527, %v3533
      %v3565 = vmul.f32 %v3528, %v3533
      %v3566 = vmul.f32 %v3529, %v3533
      %v3567 = vadd.f32 %v3466, %v3535
      %v3568 = vadd.f32 %v3467, %v3536
      %v3569 = vadd.f32 %v3468, %v3537
      %v3570 = vadd.f32 %v3469, %v3538
      %v3571 = vadd.f32 %v3470, %v3539
      %v3572 = vadd.f32 %v3471, %v3540
      %v3573 = vadd.f32 %v3472, %v3541
      %v3574 = vadd.f32 %v3473, %v3542
      %v3575 = vadd.f32 %v3474, %v3543
      %v3576 = vadd.f32 %v3475, %v3544
      %v3577 = vadd.f32 %v3476, %v3545
      %v3578 = vadd.f32 %v3477, %v3546
      %v3579 = vadd.f32 %v3478, %v3547
      %v3580 = vadd.f32 %v3479, %v3548
      %v3581 = vadd.f32 %v3480, %v3549
      %v3582 = vadd.f32 %v3481, %v3550
      %v3583 = vadd.f32 %v3482, %v3551
      %v3584 = vadd.f32 %v3483, %v3552
      %v3585 = vadd.f32 %v3484, %v3553
      %v3586 = vadd.f32 %v3485, %v3554
      %v3587 = vadd.f32 %v3486, %v3555
      %v3588 = vadd.f32 %v3487, %v3556
      %v3589 = vadd.f32 %v3488, %v3557
      %v3590 = vadd.f32 %v3489, %v3558
      %v3591 = vadd.f32 %v3490, %v3559
      %v3592 = vadd.f32 %v3491, %v3560
      %v3593 = vadd.f32 %v3492, %v3561
      %v3594 = vadd.f32 %v3493, %v3562
      %v3595 = vadd.f32 %v3494, %v3563
      %v3596 = vadd.f32 %v3495, %v3564
      %v3597 = vadd.f32 %v3496, %v3565
      %v3598 = vadd.f32 %v3497, %v3566
      %s3599 = scalar_lea.vmem [#allocation2], 96
      %v3600 = vld [vmem:[%s3599] sm:$0xff]
      %v3601 = vld [vmem:[%s3599 + $0x8] sm:$0xff]
      %v3602 = vld [vmem:[%s3599 + $0x18] sm:$0xff]
      %v3603 = vld [vmem:[%s3599 + $0x20] sm:$0xff]
      %v3604 = vld [vmem:[%s3599 + $0x30] sm:$0xff]
      %v3605 = vld [vmem:[%s3599 + $0x38] sm:$0xff]
      %v3606 = vld [vmem:[%s3599 + $0x48] sm:$0xff]
      %v3607 = vld [vmem:[%s3599 + $0x50] sm:$0xff]
      %v3608 = vld [vmem:[%s3599 + $0x60] sm:$0xff]
      %v3609 = vld [vmem:[%s3599 + $0x68] sm:$0xff]
      %v3610 = vld [vmem:[%s3599 + $0x78] sm:$0xff]
      %v3611 = vld [vmem:[%s3599 + $0x80] sm:$0xff]
      %v3612 = vld [vmem:[%s3599 + $0x90] sm:$0xff]
      %v3613 = vld [vmem:[%s3599 + $0x98] sm:$0xff]
      %v3614 = vld [vmem:[%s3599 + $0xa8] sm:$0xff]
      %v3615 = vld [vmem:[%s3599 + $0xb0] sm:$0xff]
      %v3616 = vld [vmem:[%s3599 + $0xc0] sm:$0xff]
      %v3617 = vld [vmem:[%s3599 + $0xc8] sm:$0xff]
      %v3618 = vld [vmem:[%s3599 + $0xd8] sm:$0xff]
      %v3619 = vld [vmem:[%s3599 + $0xe0] sm:$0xff]
      %v3620 = vld [vmem:[%s3599 + $0xf0] sm:$0xff]
      %v3621 = vld [vmem:[%s3599 + $0xf8] sm:$0xff]
      %v3622 = vld [vmem:[%s3599 + $0x108] sm:$0xff]
      %v3623 = vld [vmem:[%s3599 + $0x110] sm:$0xff]
      %v3624 = vld [vmem:[%s3599 + $0x120] sm:$0xff]
      %v3625 = vld [vmem:[%s3599 + $0x128] sm:$0xff]
      %v3626 = vld [vmem:[%s3599 + $0x138] sm:$0xff]
      %v3627 = vld [vmem:[%s3599 + $0x140] sm:$0xff]
      %v3628 = vld [vmem:[%s3599 + $0x150] sm:$0xff]
      %v3629 = vld [vmem:[%s3599 + $0x158] sm:$0xff]
      %v3630 = vld [vmem:[%s3599 + $0x168] sm:$0xff]
      %v3631 = vld [vmem:[%s3599 + $0x170] sm:$0xff]
      %s3632 = scalar_lea.vmem %s4, 28
      %v3633 = vld [vmem:[%s3632] sm:$0x1]
      %v3635 = vperm.slane %v3633, 0
      %v3637 = vmul.f32 %v3600, %v3635
      %v3638 = vmul.f32 %v3601, %v3635
      %v3639 = vmul.f32 %v3602, %v3635
      %v3640 = vmul.f32 %v3603, %v3635
      %v3641 = vmul.f32 %v3604, %v3635
      %v3642 = vmul.f32 %v3605, %v3635
      %v3643 = vmul.f32 %v3606, %v3635
      %v3644 = vmul.f32 %v3607, %v3635
      %v3645 = vmul.f32 %v3608, %v3635
      %v3646 = vmul.f32 %v3609, %v3635
      %v3647 = vmul.f32 %v3610, %v3635
      %v3648 = vmul.f32 %v3611, %v3635
      %v3649 = vmul.f32 %v3612, %v3635
      %v3650 = vmul.f32 %v3613, %v3635
      %v3651 = vmul.f32 %v3614, %v3635
      %v3652 = vmul.f32 %v3615, %v3635
      %v3653 = vmul.f32 %v3616, %v3635
      %v3654 = vmul.f32 %v3617, %v3635
      %v3655 = vmul.f32 %v3618, %v3635
      %v3656 = vmul.f32 %v3619, %v3635
      %v3657 = vmul.f32 %v3620, %v3635
      %v3658 = vmul.f32 %v3621, %v3635
      %v3659 = vmul.f32 %v3622, %v3635
      %v3660 = vmul.f32 %v3623, %v3635
      %v3661 = vmul.f32 %v3624, %v3635
      %v3662 = vmul.f32 %v3625, %v3635
      %v3663 = vmul.f32 %v3626, %v3635
      %v3664 = vmul.f32 %v3627, %v3635
      %v3665 = vmul.f32 %v3628, %v3635
      %v3666 = vmul.f32 %v3629, %v3635
      %v3667 = vmul.f32 %v3630, %v3635
      %v3668 = vmul.f32 %v3631, %v3635
      %v3669 = vadd.f32 %v3567, %v3637
      %v3670 = vadd.f32 %v3568, %v3638
      %v3671 = vadd.f32 %v3569, %v3639
      %v3672 = vadd.f32 %v3570, %v3640
      %v3673 = vadd.f32 %v3571, %v3641
      %v3674 = vadd.f32 %v3572, %v3642
      %v3675 = vadd.f32 %v3573, %v3643
      %v3676 = vadd.f32 %v3574, %v3644
      %v3677 = vadd.f32 %v3575, %v3645
      %v3678 = vadd.f32 %v3576, %v3646
      %v3679 = vadd.f32 %v3577, %v3647
      %v3680 = vadd.f32 %v3578, %v3648
      %v3681 = vadd.f32 %v3579, %v3649
      %v3682 = vadd.f32 %v3580, %v3650
      %v3683 = vadd.f32 %v3581, %v3651
      %v3684 = vadd.f32 %v3582, %v3652
      %v3685 = vadd.f32 %v3583, %v3653
      %v3686 = vadd.f32 %v3584, %v3654
      %v3687 = vadd.f32 %v3585, %v3655
      %v3688 = vadd.f32 %v3586, %v3656
      %v3689 = vadd.f32 %v3587, %v3657
      %v3690 = vadd.f32 %v3588, %v3658
      %v3691 = vadd.f32 %v3589, %v3659
      %v3692 = vadd.f32 %v3590, %v3660
      %v3693 = vadd.f32 %v3591, %v3661
      %v3694 = vadd.f32 %v3592, %v3662
      %v3695 = vadd.f32 %v3593, %v3663
      %v3696 = vadd.f32 %v3594, %v3664
      %v3697 = vadd.f32 %v3595, %v3665
      %v3698 = vadd.f32 %v3596, %v3666
      %v3699 = vadd.f32 %v3597, %v3667
      %v3700 = vadd.f32 %v3598, %v3668
      %v3701 = vld [vmem:[%s3599 + $0x1] sm:$0xff]
      %v3702 = vld [vmem:[%s3599 + $0x9] sm:$0xff]
      %v3703 = vld [vmem:[%s3599 + $0x19] sm:$0xff]
      %v3704 = vld [vmem:[%s3599 + $0x21] sm:$0xff]
      %v3705 = vld [vmem:[%s3599 + $0x31] sm:$0xff]
      %v3706 = vld [vmem:[%s3599 + $0x39] sm:$0xff]
      %v3707 = vld [vmem:[%s3599 + $0x49] sm:$0xff]
      %v3708 = vld [vmem:[%s3599 + $0x51] sm:$0xff]
      %v3709 = vld [vmem:[%s3599 + $0x61] sm:$0xff]
      %v3710 = vld [vmem:[%s3599 + $0x69] sm:$0xff]
      %v3711 = vld [vmem:[%s3599 + $0x79] sm:$0xff]
      %v3712 = vld [vmem:[%s3599 + $0x81] sm:$0xff]
      %v3713 = vld [vmem:[%s3599 + $0x91] sm:$0xff]
      %v3714 = vld [vmem:[%s3599 + $0x99] sm:$0xff]
      %v3715 = vld [vmem:[%s3599 + $0xa9] sm:$0xff]
      %v3716 = vld [vmem:[%s3599 + $0xb1] sm:$0xff]
      %v3717 = vld [vmem:[%s3599 + $0xc1] sm:$0xff]
      %v3718 = vld [vmem:[%s3599 + $0xc9] sm:$0xff]
      %v3719 = vld [vmem:[%s3599 + $0xd9] sm:$0xff]
      %v3720 = vld [vmem:[%s3599 + $0xe1] sm:$0xff]
      %v3721 = vld [vmem:[%s3599 + $0xf1] sm:$0xff]
      %v3722 = vld [vmem:[%s3599 + $0xf9] sm:$0xff]
      %v3723 = vld [vmem:[%s3599 + $0x109] sm:$0xff]
      %v3724 = vld [vmem:[%s3599 + $0x111] sm:$0xff]
      %v3725 = vld [vmem:[%s3599 + $0x121] sm:$0xff]
      %v3726 = vld [vmem:[%s3599 + $0x129] sm:$0xff]
      %v3727 = vld [vmem:[%s3599 + $0x139] sm:$0xff]
      %v3728 = vld [vmem:[%s3599 + $0x141] sm:$0xff]
      %v3729 = vld [vmem:[%s3599 + $0x151] sm:$0xff]
      %v3730 = vld [vmem:[%s3599 + $0x159] sm:$0xff]
      %v3731 = vld [vmem:[%s3599 + $0x169] sm:$0xff]
      %v3732 = vld [vmem:[%s3599 + $0x171] sm:$0xff]
      %s3733 = scalar_lea.vmem %s4, 29
      %v3734 = vld [vmem:[%s3733] sm:$0x1]
      %v3736 = vperm.slane %v3734, 0
      %v3738 = vmul.f32 %v3701, %v3736
      %v3739 = vmul.f32 %v3702, %v3736
      %v3740 = vmul.f32 %v3703, %v3736
      %v3741 = vmul.f32 %v3704, %v3736
      %v3742 = vmul.f32 %v3705, %v3736
      %v3743 = vmul.f32 %v3706, %v3736
      %v3744 = vmul.f32 %v3707, %v3736
      %v3745 = vmul.f32 %v3708, %v3736
      %v3746 = vmul.f32 %v3709, %v3736
      %v3747 = vmul.f32 %v3710, %v3736
      %v3748 = vmul.f32 %v3711, %v3736
      %v3749 = vmul.f32 %v3712, %v3736
      %v3750 = vmul.f32 %v3713, %v3736
      %v3751 = vmul.f32 %v3714, %v3736
      %v3752 = vmul.f32 %v3715, %v3736
      %v3753 = vmul.f32 %v3716, %v3736
      %v3754 = vmul.f32 %v3717, %v3736
      %v3755 = vmul.f32 %v3718, %v3736
      %v3756 = vmul.f32 %v3719, %v3736
      %v3757 = vmul.f32 %v3720, %v3736
      %v3758 = vmul.f32 %v3721, %v3736
      %v3759 = vmul.f32 %v3722, %v3736
      %v3760 = vmul.f32 %v3723, %v3736
      %v3761 = vmul.f32 %v3724, %v3736
      %v3762 = vmul.f32 %v3725, %v3736
      %v3763 = vmul.f32 %v3726, %v3736
      %v3764 = vmul.f32 %v3727, %v3736
      %v3765 = vmul.f32 %v3728, %v3736
      %v3766 = vmul.f32 %v3729, %v3736
      %v3767 = vmul.f32 %v3730, %v3736
      %v3768 = vmul.f32 %v3731, %v3736
      %v3769 = vmul.f32 %v3732, %v3736
      %v3770 = vadd.f32 %v3669, %v3738
      %v3771 = vadd.f32 %v3670, %v3739
      %v3772 = vadd.f32 %v3671, %v3740
      %v3773 = vadd.f32 %v3672, %v3741
      %v3774 = vadd.f32 %v3673, %v3742
      %v3775 = vadd.f32 %v3674, %v3743
      %v3776 = vadd.f32 %v3675, %v3744
      %v3777 = vadd.f32 %v3676, %v3745
      %v3778 = vadd.f32 %v3677, %v3746
      %v3779 = vadd.f32 %v3678, %v3747
      %v3780 = vadd.f32 %v3679, %v3748
      %v3781 = vadd.f32 %v3680, %v3749
      %v3782 = vadd.f32 %v3681, %v3750
      %v3783 = vadd.f32 %v3682, %v3751
      %v3784 = vadd.f32 %v3683, %v3752
      %v3785 = vadd.f32 %v3684, %v3753
      %v3786 = vadd.f32 %v3685, %v3754
      %v3787 = vadd.f32 %v3686, %v3755
      %v3788 = vadd.f32 %v3687, %v3756
      %v3789 = vadd.f32 %v3688, %v3757
      %v3790 = vadd.f32 %v3689, %v3758
      %v3791 = vadd.f32 %v3690, %v3759
      %v3792 = vadd.f32 %v3691, %v3760
      %v3793 = vadd.f32 %v3692, %v3761
      %v3794 = vadd.f32 %v3693, %v3762
      %v3795 = vadd.f32 %v3694, %v3763
      %v3796 = vadd.f32 %v3695, %v3764
      %v3797 = vadd.f32 %v3696, %v3765
      %v3798 = vadd.f32 %v3697, %v3766
      %v3799 = vadd.f32 %v3698, %v3767
      %v3800 = vadd.f32 %v3699, %v3768
      %v3801 = vadd.f32 %v3700, %v3769
      %v3802 = vld [vmem:[%s3599 + $0x2] sm:$0xff]
      %v3803 = vld [vmem:[%s3599 + $0xa] sm:$0xff]
      %v3804 = vld [vmem:[%s3599 + $0x1a] sm:$0xff]
      %v3805 = vld [vmem:[%s3599 + $0x22] sm:$0xff]
      %v3806 = vld [vmem:[%s3599 + $0x32] sm:$0xff]
      %v3807 = vld [vmem:[%s3599 + $0x3a] sm:$0xff]
      %v3808 = vld [vmem:[%s3599 + $0x4a] sm:$0xff]
      %v3809 = vld [vmem:[%s3599 + $0x52] sm:$0xff]
      %v3810 = vld [vmem:[%s3599 + $0x62] sm:$0xff]
      %v3811 = vld [vmem:[%s3599 + $0x6a] sm:$0xff]
      %v3812 = vld [vmem:[%s3599 + $0x7a] sm:$0xff]
      %v3813 = vld [vmem:[%s3599 + $0x82] sm:$0xff]
      %v3814 = vld [vmem:[%s3599 + $0x92] sm:$0xff]
      %v3815 = vld [vmem:[%s3599 + $0x9a] sm:$0xff]
      %v3816 = vld [vmem:[%s3599 + $0xaa] sm:$0xff]
      %v3817 = vld [vmem:[%s3599 + $0xb2] sm:$0xff]
      %v3818 = vld [vmem:[%s3599 + $0xc2] sm:$0xff]
      %v3819 = vld [vmem:[%s3599 + $0xca] sm:$0xff]
      %v3820 = vld [vmem:[%s3599 + $0xda] sm:$0xff]
      %v3821 = vld [vmem:[%s3599 + $0xe2] sm:$0xff]
      %v3822 = vld [vmem:[%s3599 + $0xf2] sm:$0xff]
      %v3823 = vld [vmem:[%s3599 + $0xfa] sm:$0xff]
      %v3824 = vld [vmem:[%s3599 + $0x10a] sm:$0xff]
      %v3825 = vld [vmem:[%s3599 + $0x112] sm:$0xff]
      %v3826 = vld [vmem:[%s3599 + $0x122] sm:$0xff]
      %v3827 = vld [vmem:[%s3599 + $0x12a] sm:$0xff]
      %v3828 = vld [vmem:[%s3599 + $0x13a] sm:$0xff]
      %v3829 = vld [vmem:[%s3599 + $0x142] sm:$0xff]
      %v3830 = vld [vmem:[%s3599 + $0x152] sm:$0xff]
      %v3831 = vld [vmem:[%s3599 + $0x15a] sm:$0xff]
      %v3832 = vld [vmem:[%s3599 + $0x16a] sm:$0xff]
      %v3833 = vld [vmem:[%s3599 + $0x172] sm:$0xff]
      %s3834 = scalar_lea.vmem %s4, 30
      %v3835 = vld [vmem:[%s3834] sm:$0x1]
      %v3837 = vperm.slane %v3835, 0
      %v3839 = vmul.f32 %v3802, %v3837
      %v3840 = vmul.f32 %v3803, %v3837
      %v3841 = vmul.f32 %v3804, %v3837
      %v3842 = vmul.f32 %v3805, %v3837
      %v3843 = vmul.f32 %v3806, %v3837
      %v3844 = vmul.f32 %v3807, %v3837
      %v3845 = vmul.f32 %v3808, %v3837
      %v3846 = vmul.f32 %v3809, %v3837
      %v3847 = vmul.f32 %v3810, %v3837
      %v3848 = vmul.f32 %v3811, %v3837
      %v3849 = vmul.f32 %v3812, %v3837
      %v3850 = vmul.f32 %v3813, %v3837
      %v3851 = vmul.f32 %v3814, %v3837
      %v3852 = vmul.f32 %v3815, %v3837
      %v3853 = vmul.f32 %v3816, %v3837
      %v3854 = vmul.f32 %v3817, %v3837
      %v3855 = vmul.f32 %v3818, %v3837
      %v3856 = vmul.f32 %v3819, %v3837
      %v3857 = vmul.f32 %v3820, %v3837
      %v3858 = vmul.f32 %v3821, %v3837
      %v3859 = vmul.f32 %v3822, %v3837
      %v3860 = vmul.f32 %v3823, %v3837
      %v3861 = vmul.f32 %v3824, %v3837
      %v3862 = vmul.f32 %v3825, %v3837
      %v3863 = vmul.f32 %v3826, %v3837
      %v3864 = vmul.f32 %v3827, %v3837
      %v3865 = vmul.f32 %v3828, %v3837
      %v3866 = vmul.f32 %v3829, %v3837
      %v3867 = vmul.f32 %v3830, %v3837
      %v3868 = vmul.f32 %v3831, %v3837
      %v3869 = vmul.f32 %v3832, %v3837
      %v3870 = vmul.f32 %v3833, %v3837
      %v3871 = vadd.f32 %v3770, %v3839
      %v3872 = vadd.f32 %v3771, %v3840
      %v3873 = vadd.f32 %v3772, %v3841
      %v3874 = vadd.f32 %v3773, %v3842
      %v3875 = vadd.f32 %v3774, %v3843
      %v3876 = vadd.f32 %v3775, %v3844
      %v3877 = vadd.f32 %v3776, %v3845
      %v3878 = vadd.f32 %v3777, %v3846
      %v3879 = vadd.f32 %v3778, %v3847
      %v3880 = vadd.f32 %v3779, %v3848
      %v3881 = vadd.f32 %v3780, %v3849
      %v3882 = vadd.f32 %v3781, %v3850
      %v3883 = vadd.f32 %v3782, %v3851
      %v3884 = vadd.f32 %v3783, %v3852
      %v3885 = vadd.f32 %v3784, %v3853
      %v3886 = vadd.f32 %v3785, %v3854
      %v3887 = vadd.f32 %v3786, %v3855
      %v3888 = vadd.f32 %v3787, %v3856
      %v3889 = vadd.f32 %v3788, %v3857
      %v3890 = vadd.f32 %v3789, %v3858
      %v3891 = vadd.f32 %v3790, %v3859
      %v3892 = vadd.f32 %v3791, %v3860
      %v3893 = vadd.f32 %v3792, %v3861
      %v3894 = vadd.f32 %v3793, %v3862
      %v3895 = vadd.f32 %v3794, %v3863
      %v3896 = vadd.f32 %v3795, %v3864
      %v3897 = vadd.f32 %v3796, %v3865
      %v3898 = vadd.f32 %v3797, %v3866
      %v3899 = vadd.f32 %v3798, %v3867
      %v3900 = vadd.f32 %v3799, %v3868
      %v3901 = vadd.f32 %v3800, %v3869
      %v3902 = vadd.f32 %v3801, %v3870
      %v3903 = vld [vmem:[%s3599 + $0x3] sm:$0xff]
      %v3904 = vld [vmem:[%s3599 + $0xb] sm:$0xff]
      %v3905 = vld [vmem:[%s3599 + $0x1b] sm:$0xff]
      %v3906 = vld [vmem:[%s3599 + $0x23] sm:$0xff]
      %v3907 = vld [vmem:[%s3599 + $0x33] sm:$0xff]
      %v3908 = vld [vmem:[%s3599 + $0x3b] sm:$0xff]
      %v3909 = vld [vmem:[%s3599 + $0x4b] sm:$0xff]
      %v3910 = vld [vmem:[%s3599 + $0x53] sm:$0xff]
      %v3911 = vld [vmem:[%s3599 + $0x63] sm:$0xff]
      %v3912 = vld [vmem:[%s3599 + $0x6b] sm:$0xff]
      %v3913 = vld [vmem:[%s3599 + $0x7b] sm:$0xff]
      %v3914 = vld [vmem:[%s3599 + $0x83] sm:$0xff]
      %v3915 = vld [vmem:[%s3599 + $0x93] sm:$0xff]
      %v3916 = vld [vmem:[%s3599 + $0x9b] sm:$0xff]
      %v3917 = vld [vmem:[%s3599 + $0xab] sm:$0xff]
      %v3918 = vld [vmem:[%s3599 + $0xb3] sm:$0xff]
      %v3919 = vld [vmem:[%s3599 + $0xc3] sm:$0xff]
      %v3920 = vld [vmem:[%s3599 + $0xcb] sm:$0xff]
      %v3921 = vld [vmem:[%s3599 + $0xdb] sm:$0xff]
      %v3922 = vld [vmem:[%s3599 + $0xe3] sm:$0xff]
      %v3923 = vld [vmem:[%s3599 + $0xf3] sm:$0xff]
      %v3924 = vld [vmem:[%s3599 + $0xfb] sm:$0xff]
      %v3925 = vld [vmem:[%s3599 + $0x10b] sm:$0xff]
      %v3926 = vld [vmem:[%s3599 + $0x113] sm:$0xff]
      %v3927 = vld [vmem:[%s3599 + $0x123] sm:$0xff]
      %v3928 = vld [vmem:[%s3599 + $0x12b] sm:$0xff]
      %v3929 = vld [vmem:[%s3599 + $0x13b] sm:$0xff]
      %v3930 = vld [vmem:[%s3599 + $0x143] sm:$0xff]
      %v3931 = vld [vmem:[%s3599 + $0x153] sm:$0xff]
      %v3932 = vld [vmem:[%s3599 + $0x15b] sm:$0xff]
      %v3933 = vld [vmem:[%s3599 + $0x16b] sm:$0xff]
      %v3934 = vld [vmem:[%s3599 + $0x173] sm:$0xff]
      %s3935 = scalar_lea.vmem %s4, 31
      %v3936 = vld [vmem:[%s3935] sm:$0x1]
      %v3938 = vperm.slane %v3936, 0
      %v3940 = vmul.f32 %v3903, %v3938
      %v3941 = vmul.f32 %v3904, %v3938
      %v3942 = vmul.f32 %v3905, %v3938
      %v3943 = vmul.f32 %v3906, %v3938
      %v3944 = vmul.f32 %v3907, %v3938
      %v3945 = vmul.f32 %v3908, %v3938
      %v3946 = vmul.f32 %v3909, %v3938
      %v3947 = vmul.f32 %v3910, %v3938
      %v3948 = vmul.f32 %v3911, %v3938
      %v3949 = vmul.f32 %v3912, %v3938
      %v3950 = vmul.f32 %v3913, %v3938
      %v3951 = vmul.f32 %v3914, %v3938
      %v3952 = vmul.f32 %v3915, %v3938
      %v3953 = vmul.f32 %v3916, %v3938
      %v3954 = vmul.f32 %v3917, %v3938
      %v3955 = vmul.f32 %v3918, %v3938
      %v3956 = vmul.f32 %v3919, %v3938
      %v3957 = vmul.f32 %v3920, %v3938
      %v3958 = vmul.f32 %v3921, %v3938
      %v3959 = vmul.f32 %v3922, %v3938
      %v3960 = vmul.f32 %v3923, %v3938
      %v3961 = vmul.f32 %v3924, %v3938
      %v3962 = vmul.f32 %v3925, %v3938
      %v3963 = vmul.f32 %v3926, %v3938
      %v3964 = vmul.f32 %v3927, %v3938
      %v3965 = vmul.f32 %v3928, %v3938
      %v3966 = vmul.f32 %v3929, %v3938
      %v3967 = vmul.f32 %v3930, %v3938
      %v3968 = vmul.f32 %v3931, %v3938
      %v3969 = vmul.f32 %v3932, %v3938
      %v3970 = vmul.f32 %v3933, %v3938
      %v3971 = vmul.f32 %v3934, %v3938
      %v3972 = vadd.f32 %v3871, %v3940
      %v3973 = vadd.f32 %v3872, %v3941
      %v3974 = vadd.f32 %v3873, %v3942
      %v3975 = vadd.f32 %v3874, %v3943
      %v3976 = vadd.f32 %v3875, %v3944
      %v3977 = vadd.f32 %v3876, %v3945
      %v3978 = vadd.f32 %v3877, %v3946
      %v3979 = vadd.f32 %v3878, %v3947
      %v3980 = vadd.f32 %v3879, %v3948
      %v3981 = vadd.f32 %v3880, %v3949
      %v3982 = vadd.f32 %v3881, %v3950
      %v3983 = vadd.f32 %v3882, %v3951
      %v3984 = vadd.f32 %v3883, %v3952
      %v3985 = vadd.f32 %v3884, %v3953
      %v3986 = vadd.f32 %v3885, %v3954
      %v3987 = vadd.f32 %v3886, %v3955
      %v3988 = vadd.f32 %v3887, %v3956
      %v3989 = vadd.f32 %v3888, %v3957
      %v3990 = vadd.f32 %v3889, %v3958
      %v3991 = vadd.f32 %v3890, %v3959
      %v3992 = vadd.f32 %v3891, %v3960
      %v3993 = vadd.f32 %v3892, %v3961
      %v3994 = vadd.f32 %v3893, %v3962
      %v3995 = vadd.f32 %v3894, %v3963
      %v3996 = vadd.f32 %v3895, %v3964
      %v3997 = vadd.f32 %v3896, %v3965
      %v3998 = vadd.f32 %v3897, %v3966
      %v3999 = vadd.f32 %v3898, %v3967
      %v4000 = vadd.f32 %v3899, %v3968
      %v4001 = vadd.f32 %v3900, %v3969
      %v4002 = vadd.f32 %v3901, %v3970
      %v4003 = vadd.f32 %v3902, %v3971
      %v4004 = vld [vmem:[%s3599 + $0x4] sm:$0xff]
      %v4005 = vld [vmem:[%s3599 + $0xc] sm:$0xff]
      %v4006 = vld [vmem:[%s3599 + $0x1c] sm:$0xff]
      %v4007 = vld [vmem:[%s3599 + $0x24] sm:$0xff]
      %v4008 = vld [vmem:[%s3599 + $0x34] sm:$0xff]
      %v4009 = vld [vmem:[%s3599 + $0x3c] sm:$0xff]
      %v4010 = vld [vmem:[%s3599 + $0x4c] sm:$0xff]
      %v4011 = vld [vmem:[%s3599 + $0x54] sm:$0xff]
      %v4012 = vld [vmem:[%s3599 + $0x64] sm:$0xff]
      %v4013 = vld [vmem:[%s3599 + $0x6c] sm:$0xff]
      %v4014 = vld [vmem:[%s3599 + $0x7c] sm:$0xff]
      %v4015 = vld [vmem:[%s3599 + $0x84] sm:$0xff]
      %v4016 = vld [vmem:[%s3599 + $0x94] sm:$0xff]
      %v4017 = vld [vmem:[%s3599 + $0x9c] sm:$0xff]
      %v4018 = vld [vmem:[%s3599 + $0xac] sm:$0xff]
      %v4019 = vld [vmem:[%s3599 + $0xb4] sm:$0xff]
      %v4020 = vld [vmem:[%s3599 + $0xc4] sm:$0xff]
      %v4021 = vld [vmem:[%s3599 + $0xcc] sm:$0xff]
      %v4022 = vld [vmem:[%s3599 + $0xdc] sm:$0xff]
      %v4023 = vld [vmem:[%s3599 + $0xe4] sm:$0xff]
      %v4024 = vld [vmem:[%s3599 + $0xf4] sm:$0xff]
      %v4025 = vld [vmem:[%s3599 + $0xfc] sm:$0xff]
      %v4026 = vld [vmem:[%s3599 + $0x10c] sm:$0xff]
      %v4027 = vld [vmem:[%s3599 + $0x114] sm:$0xff]
      %v4028 = vld [vmem:[%s3599 + $0x124] sm:$0xff]
      %v4029 = vld [vmem:[%s3599 + $0x12c] sm:$0xff]
      %v4030 = vld [vmem:[%s3599 + $0x13c] sm:$0xff]
      %v4031 = vld [vmem:[%s3599 + $0x144] sm:$0xff]
      %v4032 = vld [vmem:[%s3599 + $0x154] sm:$0xff]
      %v4033 = vld [vmem:[%s3599 + $0x15c] sm:$0xff]
      %v4034 = vld [vmem:[%s3599 + $0x16c] sm:$0xff]
      %v4035 = vld [vmem:[%s3599 + $0x174] sm:$0xff]
      %s4036 = scalar_lea.vmem %s4, 32
      %v4037 = vld [vmem:[%s4036] sm:$0x1]
      %v4039 = vperm.slane %v4037, 0
      %v4041 = vmul.f32 %v4004, %v4039
      %v4042 = vmul.f32 %v4005, %v4039
      %v4043 = vmul.f32 %v4006, %v4039
      %v4044 = vmul.f32 %v4007, %v4039
      %v4045 = vmul.f32 %v4008, %v4039
      %v4046 = vmul.f32 %v4009, %v4039
      %v4047 = vmul.f32 %v4010, %v4039
      %v4048 = vmul.f32 %v4011, %v4039
      %v4049 = vmul.f32 %v4012, %v4039
      %v4050 = vmul.f32 %v4013, %v4039
      %v4051 = vmul.f32 %v4014, %v4039
      %v4052 = vmul.f32 %v4015, %v4039
      %v4053 = vmul.f32 %v4016, %v4039
      %v4054 = vmul.f32 %v4017, %v4039
      %v4055 = vmul.f32 %v4018, %v4039
      %v4056 = vmul.f32 %v4019, %v4039
      %v4057 = vmul.f32 %v4020, %v4039
      %v4058 = vmul.f32 %v4021, %v4039
      %v4059 = vmul.f32 %v4022, %v4039
      %v4060 = vmul.f32 %v4023, %v4039
      %v4061 = vmul.f32 %v4024, %v4039
      %v4062 = vmul.f32 %v4025, %v4039
      %v4063 = vmul.f32 %v4026, %v4039
      %v4064 = vmul.f32 %v4027, %v4039
      %v4065 = vmul.f32 %v4028, %v4039
      %v4066 = vmul.f32 %v4029, %v4039
      %v4067 = vmul.f32 %v4030, %v4039
      %v4068 = vmul.f32 %v4031, %v4039
      %v4069 = vmul.f32 %v4032, %v4039
      %v4070 = vmul.f32 %v4033, %v4039
      %v4071 = vmul.f32 %v4034, %v4039
      %v4072 = vmul.f32 %v4035, %v4039
      %v4073 = vadd.f32 %v3972, %v4041
      %v4074 = vadd.f32 %v3973, %v4042
      %v4075 = vadd.f32 %v3974, %v4043
      %v4076 = vadd.f32 %v3975, %v4044
      %v4077 = vadd.f32 %v3976, %v4045
      %v4078 = vadd.f32 %v3977, %v4046
      %v4079 = vadd.f32 %v3978, %v4047
      %v4080 = vadd.f32 %v3979, %v4048
      %v4081 = vadd.f32 %v3980, %v4049
      %v4082 = vadd.f32 %v3981, %v4050
      %v4083 = vadd.f32 %v3982, %v4051
      %v4084 = vadd.f32 %v3983, %v4052
      %v4085 = vadd.f32 %v3984, %v4053
      %v4086 = vadd.f32 %v3985, %v4054
      %v4087 = vadd.f32 %v3986, %v4055
      %v4088 = vadd.f32 %v3987, %v4056
      %v4089 = vadd.f32 %v3988, %v4057
      %v4090 = vadd.f32 %v3989, %v4058
      %v4091 = vadd.f32 %v3990, %v4059
      %v4092 = vadd.f32 %v3991, %v4060
      %v4093 = vadd.f32 %v3992, %v4061
      %v4094 = vadd.f32 %v3993, %v4062
      %v4095 = vadd.f32 %v3994, %v4063
      %v4096 = vadd.f32 %v3995, %v4064
      %v4097 = vadd.f32 %v3996, %v4065
      %v4098 = vadd.f32 %v3997, %v4066
      %v4099 = vadd.f32 %v3998, %v4067
      %v4100 = vadd.f32 %v3999, %v4068
      %v4101 = vadd.f32 %v4000, %v4069
      %v4102 = vadd.f32 %v4001, %v4070
      %v4103 = vadd.f32 %v4002, %v4071
      %v4104 = vadd.f32 %v4003, %v4072
      %v4105 = vld [vmem:[%s3599 + $0x5] sm:$0xff]
      %v4106 = vld [vmem:[%s3599 + $0xd] sm:$0xff]
      %v4107 = vld [vmem:[%s3599 + $0x1d] sm:$0xff]
      %v4108 = vld [vmem:[%s3599 + $0x25] sm:$0xff]
      %v4109 = vld [vmem:[%s3599 + $0x35] sm:$0xff]
      %v4110 = vld [vmem:[%s3599 + $0x3d] sm:$0xff]
      %v4111 = vld [vmem:[%s3599 + $0x4d] sm:$0xff]
      %v4112 = vld [vmem:[%s3599 + $0x55] sm:$0xff]
      %v4113 = vld [vmem:[%s3599 + $0x65] sm:$0xff]
      %v4114 = vld [vmem:[%s3599 + $0x6d] sm:$0xff]
      %v4115 = vld [vmem:[%s3599 + $0x7d] sm:$0xff]
      %v4116 = vld [vmem:[%s3599 + $0x85] sm:$0xff]
      %v4117 = vld [vmem:[%s3599 + $0x95] sm:$0xff]
      %v4118 = vld [vmem:[%s3599 + $0x9d] sm:$0xff]
      %v4119 = vld [vmem:[%s3599 + $0xad] sm:$0xff]
      %v4120 = vld [vmem:[%s3599 + $0xb5] sm:$0xff]
      %v4121 = vld [vmem:[%s3599 + $0xc5] sm:$0xff]
      %v4122 = vld [vmem:[%s3599 + $0xcd] sm:$0xff]
      %v4123 = vld [vmem:[%s3599 + $0xdd] sm:$0xff]
      %v4124 = vld [vmem:[%s3599 + $0xe5] sm:$0xff]
      %v4125 = vld [vmem:[%s3599 + $0xf5] sm:$0xff]
      %v4126 = vld [vmem:[%s3599 + $0xfd] sm:$0xff]
      %v4127 = vld [vmem:[%s3599 + $0x10d] sm:$0xff]
      %v4128 = vld [vmem:[%s3599 + $0x115] sm:$0xff]
      %v4129 = vld [vmem:[%s3599 + $0x125] sm:$0xff]
      %v4130 = vld [vmem:[%s3599 + $0x12d] sm:$0xff]
      %v4131 = vld [vmem:[%s3599 + $0x13d] sm:$0xff]
      %v4132 = vld [vmem:[%s3599 + $0x145] sm:$0xff]
      %v4133 = vld [vmem:[%s3599 + $0x155] sm:$0xff]
      %v4134 = vld [vmem:[%s3599 + $0x15d] sm:$0xff]
      %v4135 = vld [vmem:[%s3599 + $0x16d] sm:$0xff]
      %v4136 = vld [vmem:[%s3599 + $0x175] sm:$0xff]
      %s4137 = scalar_lea.vmem %s4, 33
      %v4138 = vld [vmem:[%s4137] sm:$0x1]
      %v4140 = vperm.slane %v4138, 0
      %v4142 = vmul.f32 %v4105, %v4140
      %v4143 = vmul.f32 %v4106, %v4140
      %v4144 = vmul.f32 %v4107, %v4140
      %v4145 = vmul.f32 %v4108, %v4140
      %v4146 = vmul.f32 %v4109, %v4140
      %v4147 = vmul.f32 %v4110, %v4140
      %v4148 = vmul.f32 %v4111, %v4140
      %v4149 = vmul.f32 %v4112, %v4140
      %v4150 = vmul.f32 %v4113, %v4140
      %v4151 = vmul.f32 %v4114, %v4140
      %v4152 = vmul.f32 %v4115, %v4140
      %v4153 = vmul.f32 %v4116, %v4140
      %v4154 = vmul.f32 %v4117, %v4140
      %v4155 = vmul.f32 %v4118, %v4140
      %v4156 = vmul.f32 %v4119, %v4140
      %v4157 = vmul.f32 %v4120, %v4140
      %v4158 = vmul.f32 %v4121, %v4140
      %v4159 = vmul.f32 %v4122, %v4140
      %v4160 = vmul.f32 %v4123, %v4140
      %v4161 = vmul.f32 %v4124, %v4140
      %v4162 = vmul.f32 %v4125, %v4140
      %v4163 = vmul.f32 %v4126, %v4140
      %v4164 = vmul.f32 %v4127, %v4140
      %v4165 = vmul.f32 %v4128, %v4140
      %v4166 = vmul.f32 %v4129, %v4140
      %v4167 = vmul.f32 %v4130, %v4140
      %v4168 = vmul.f32 %v4131, %v4140
      %v4169 = vmul.f32 %v4132, %v4140
      %v4170 = vmul.f32 %v4133, %v4140
      %v4171 = vmul.f32 %v4134, %v4140
      %v4172 = vmul.f32 %v4135, %v4140
      %v4173 = vmul.f32 %v4136, %v4140
      %v4174 = vadd.f32 %v4073, %v4142
      %v4175 = vadd.f32 %v4074, %v4143
      %v4176 = vadd.f32 %v4075, %v4144
      %v4177 = vadd.f32 %v4076, %v4145
      %v4178 = vadd.f32 %v4077, %v4146
      %v4179 = vadd.f32 %v4078, %v4147
      %v4180 = vadd.f32 %v4079, %v4148
      %v4181 = vadd.f32 %v4080, %v4149
      %v4182 = vadd.f32 %v4081, %v4150
      %v4183 = vadd.f32 %v4082, %v4151
      %v4184 = vadd.f32 %v4083, %v4152
      %v4185 = vadd.f32 %v4084, %v4153
      %v4186 = vadd.f32 %v4085, %v4154
      %v4187 = vadd.f32 %v4086, %v4155
      %v4188 = vadd.f32 %v4087, %v4156
      %v4189 = vadd.f32 %v4088, %v4157
      %v4190 = vadd.f32 %v4089, %v4158
      %v4191 = vadd.f32 %v4090, %v4159
      %v4192 = vadd.f32 %v4091, %v4160
      %v4193 = vadd.f32 %v4092, %v4161
      %v4194 = vadd.f32 %v4093, %v4162
      %v4195 = vadd.f32 %v4094, %v4163
      %v4196 = vadd.f32 %v4095, %v4164
      %v4197 = vadd.f32 %v4096, %v4165
      %v4198 = vadd.f32 %v4097, %v4166
      %v4199 = vadd.f32 %v4098, %v4167
      %v4200 = vadd.f32 %v4099, %v4168
      %v4201 = vadd.f32 %v4100, %v4169
      %v4202 = vadd.f32 %v4101, %v4170
      %v4203 = vadd.f32 %v4102, %v4171
      %v4204 = vadd.f32 %v4103, %v4172
      %v4205 = vadd.f32 %v4104, %v4173
      %v4206 = vld [vmem:[%s3599 + $0x6] sm:$0xff]
      %v4207 = vld [vmem:[%s3599 + $0xe] sm:$0xff]
      %v4208 = vld [vmem:[%s3599 + $0x1e] sm:$0xff]
      %v4209 = vld [vmem:[%s3599 + $0x26] sm:$0xff]
      %v4210 = vld [vmem:[%s3599 + $0x36] sm:$0xff]
      %v4211 = vld [vmem:[%s3599 + $0x3e] sm:$0xff]
      %v4212 = vld [vmem:[%s3599 + $0x4e] sm:$0xff]
      %v4213 = vld [vmem:[%s3599 + $0x56] sm:$0xff]
      %v4214 = vld [vmem:[%s3599 + $0x66] sm:$0xff]
      %v4215 = vld [vmem:[%s3599 + $0x6e] sm:$0xff]
      %v4216 = vld [vmem:[%s3599 + $0x7e] sm:$0xff]
      %v4217 = vld [vmem:[%s3599 + $0x86] sm:$0xff]
      %v4218 = vld [vmem:[%s3599 + $0x96] sm:$0xff]
      %v4219 = vld [vmem:[%s3599 + $0x9e] sm:$0xff]
      %v4220 = vld [vmem:[%s3599 + $0xae] sm:$0xff]
      %v4221 = vld [vmem:[%s3599 + $0xb6] sm:$0xff]
      %v4222 = vld [vmem:[%s3599 + $0xc6] sm:$0xff]
      %v4223 = vld [vmem:[%s3599 + $0xce] sm:$0xff]
      %v4224 = vld [vmem:[%s3599 + $0xde] sm:$0xff]
      %v4225 = vld [vmem:[%s3599 + $0xe6] sm:$0xff]
      %v4226 = vld [vmem:[%s3599 + $0xf6] sm:$0xff]
      %v4227 = vld [vmem:[%s3599 + $0xfe] sm:$0xff]
      %v4228 = vld [vmem:[%s3599 + $0x10e] sm:$0xff]
      %v4229 = vld [vmem:[%s3599 + $0x116] sm:$0xff]
      %v4230 = vld [vmem:[%s3599 + $0x126] sm:$0xff]
      %v4231 = vld [vmem:[%s3599 + $0x12e] sm:$0xff]
      %v4232 = vld [vmem:[%s3599 + $0x13e] sm:$0xff]
      %v4233 = vld [vmem:[%s3599 + $0x146] sm:$0xff]
      %v4234 = vld [vmem:[%s3599 + $0x156] sm:$0xff]
      %v4235 = vld [vmem:[%s3599 + $0x15e] sm:$0xff]
      %v4236 = vld [vmem:[%s3599 + $0x16e] sm:$0xff]
      %v4237 = vld [vmem:[%s3599 + $0x176] sm:$0xff]
      %s4238 = scalar_lea.vmem %s4, 34
      %v4239 = vld [vmem:[%s4238] sm:$0x1]
      %v4241 = vperm.slane %v4239, 0
      %v4243 = vmul.f32 %v4206, %v4241
      %v4244 = vmul.f32 %v4207, %v4241
      %v4245 = vmul.f32 %v4208, %v4241
      %v4246 = vmul.f32 %v4209, %v4241
      %v4247 = vmul.f32 %v4210, %v4241
      %v4248 = vmul.f32 %v4211, %v4241
      %v4249 = vmul.f32 %v4212, %v4241
      %v4250 = vmul.f32 %v4213, %v4241
      %v4251 = vmul.f32 %v4214, %v4241
      %v4252 = vmul.f32 %v4215, %v4241
      %v4253 = vmul.f32 %v4216, %v4241
      %v4254 = vmul.f32 %v4217, %v4241
      %v4255 = vmul.f32 %v4218, %v4241
      %v4256 = vmul.f32 %v4219, %v4241
      %v4257 = vmul.f32 %v4220, %v4241
      %v4258 = vmul.f32 %v4221, %v4241
      %v4259 = vmul.f32 %v4222, %v4241
      %v4260 = vmul.f32 %v4223, %v4241
      %v4261 = vmul.f32 %v4224, %v4241
      %v4262 = vmul.f32 %v4225, %v4241
      %v4263 = vmul.f32 %v4226, %v4241
      %v4264 = vmul.f32 %v4227, %v4241
      %v4265 = vmul.f32 %v4228, %v4241
      %v4266 = vmul.f32 %v4229, %v4241
      %v4267 = vmul.f32 %v4230, %v4241
      %v4268 = vmul.f32 %v4231, %v4241
      %v4269 = vmul.f32 %v4232, %v4241
      %v4270 = vmul.f32 %v4233, %v4241
      %v4271 = vmul.f32 %v4234, %v4241
      %v4272 = vmul.f32 %v4235, %v4241
      %v4273 = vmul.f32 %v4236, %v4241
      %v4274 = vmul.f32 %v4237, %v4241
      %v4275 = vadd.f32 %v4174, %v4243
      %v4276 = vadd.f32 %v4175, %v4244
      %v4277 = vadd.f32 %v4176, %v4245
      %v4278 = vadd.f32 %v4177, %v4246
      %v4279 = vadd.f32 %v4178, %v4247
      %v4280 = vadd.f32 %v4179, %v4248
      %v4281 = vadd.f32 %v4180, %v4249
      %v4282 = vadd.f32 %v4181, %v4250
      %v4283 = vadd.f32 %v4182, %v4251
      %v4284 = vadd.f32 %v4183, %v4252
      %v4285 = vadd.f32 %v4184, %v4253
      %v4286 = vadd.f32 %v4185, %v4254
      %v4287 = vadd.f32 %v4186, %v4255
      %v4288 = vadd.f32 %v4187, %v4256
      %v4289 = vadd.f32 %v4188, %v4257
      %v4290 = vadd.f32 %v4189, %v4258
      %v4291 = vadd.f32 %v4190, %v4259
      %v4292 = vadd.f32 %v4191, %v4260
      %v4293 = vadd.f32 %v4192, %v4261
      %v4294 = vadd.f32 %v4193, %v4262
      %v4295 = vadd.f32 %v4194, %v4263
      %v4296 = vadd.f32 %v4195, %v4264
      %v4297 = vadd.f32 %v4196, %v4265
      %v4298 = vadd.f32 %v4197, %v4266
      %v4299 = vadd.f32 %v4198, %v4267
      %v4300 = vadd.f32 %v4199, %v4268
      %v4301 = vadd.f32 %v4200, %v4269
      %v4302 = vadd.f32 %v4201, %v4270
      %v4303 = vadd.f32 %v4202, %v4271
      %v4304 = vadd.f32 %v4203, %v4272
      %v4305 = vadd.f32 %v4204, %v4273
      %v4306 = vadd.f32 %v4205, %v4274
      %s4307 = scalar_lea.vmem [#allocation2], 120
      %v4308 = vld [vmem:[%s4307] sm:$0xff]
      %v4309 = vld [vmem:[%s4307 + $0x8] sm:$0xff]
      %v4310 = vld [vmem:[%s4307 + $0x18] sm:$0xff]
      %v4311 = vld [vmem:[%s4307 + $0x20] sm:$0xff]
      %v4312 = vld [vmem:[%s4307 + $0x30] sm:$0xff]
      %v4313 = vld [vmem:[%s4307 + $0x38] sm:$0xff]
      %v4314 = vld [vmem:[%s4307 + $0x48] sm:$0xff]
      %v4315 = vld [vmem:[%s4307 + $0x50] sm:$0xff]
      %v4316 = vld [vmem:[%s4307 + $0x60] sm:$0xff]
      %v4317 = vld [vmem:[%s4307 + $0x68] sm:$0xff]
      %v4318 = vld [vmem:[%s4307 + $0x78] sm:$0xff]
      %v4319 = vld [vmem:[%s4307 + $0x80] sm:$0xff]
      %v4320 = vld [vmem:[%s4307 + $0x90] sm:$0xff]
      %v4321 = vld [vmem:[%s4307 + $0x98] sm:$0xff]
      %v4322 = vld [vmem:[%s4307 + $0xa8] sm:$0xff]
      %v4323 = vld [vmem:[%s4307 + $0xb0] sm:$0xff]
      %v4324 = vld [vmem:[%s4307 + $0xc0] sm:$0xff]
      %v4325 = vld [vmem:[%s4307 + $0xc8] sm:$0xff]
      %v4326 = vld [vmem:[%s4307 + $0xd8] sm:$0xff]
      %v4327 = vld [vmem:[%s4307 + $0xe0] sm:$0xff]
      %v4328 = vld [vmem:[%s4307 + $0xf0] sm:$0xff]
      %v4329 = vld [vmem:[%s4307 + $0xf8] sm:$0xff]
      %v4330 = vld [vmem:[%s4307 + $0x108] sm:$0xff]
      %v4331 = vld [vmem:[%s4307 + $0x110] sm:$0xff]
      %v4332 = vld [vmem:[%s4307 + $0x120] sm:$0xff]
      %v4333 = vld [vmem:[%s4307 + $0x128] sm:$0xff]
      %v4334 = vld [vmem:[%s4307 + $0x138] sm:$0xff]
      %v4335 = vld [vmem:[%s4307 + $0x140] sm:$0xff]
      %v4336 = vld [vmem:[%s4307 + $0x150] sm:$0xff]
      %v4337 = vld [vmem:[%s4307 + $0x158] sm:$0xff]
      %v4338 = vld [vmem:[%s4307 + $0x168] sm:$0xff]
      %v4339 = vld [vmem:[%s4307 + $0x170] sm:$0xff]
      %s4340 = scalar_lea.vmem %s4, 35
      %v4341 = vld [vmem:[%s4340] sm:$0x1]
      %v4343 = vperm.slane %v4341, 0
      %v4345 = vmul.f32 %v4308, %v4343
      %v4346 = vmul.f32 %v4309, %v4343
      %v4347 = vmul.f32 %v4310, %v4343
      %v4348 = vmul.f32 %v4311, %v4343
      %v4349 = vmul.f32 %v4312, %v4343
      %v4350 = vmul.f32 %v4313, %v4343
      %v4351 = vmul.f32 %v4314, %v4343
      %v4352 = vmul.f32 %v4315, %v4343
      %v4353 = vmul.f32 %v4316, %v4343
      %v4354 = vmul.f32 %v4317, %v4343
      %v4355 = vmul.f32 %v4318, %v4343
      %v4356 = vmul.f32 %v4319, %v4343
      %v4357 = vmul.f32 %v4320, %v4343
      %v4358 = vmul.f32 %v4321, %v4343
      %v4359 = vmul.f32 %v4322, %v4343
      %v4360 = vmul.f32 %v4323, %v4343
      %v4361 = vmul.f32 %v4324, %v4343
      %v4362 = vmul.f32 %v4325, %v4343
      %v4363 = vmul.f32 %v4326, %v4343
      %v4364 = vmul.f32 %v4327, %v4343
      %v4365 = vmul.f32 %v4328, %v4343
      %v4366 = vmul.f32 %v4329, %v4343
      %v4367 = vmul.f32 %v4330, %v4343
      %v4368 = vmul.f32 %v4331, %v4343
      %v4369 = vmul.f32 %v4332, %v4343
      %v4370 = vmul.f32 %v4333, %v4343
      %v4371 = vmul.f32 %v4334, %v4343
      %v4372 = vmul.f32 %v4335, %v4343
      %v4373 = vmul.f32 %v4336, %v4343
      %v4374 = vmul.f32 %v4337, %v4343
      %v4375 = vmul.f32 %v4338, %v4343
      %v4376 = vmul.f32 %v4339, %v4343
      %v4377 = vadd.f32 %v4275, %v4345
      %v4378 = vadd.f32 %v4276, %v4346
      %v4379 = vadd.f32 %v4277, %v4347
      %v4380 = vadd.f32 %v4278, %v4348
      %v4381 = vadd.f32 %v4279, %v4349
      %v4382 = vadd.f32 %v4280, %v4350
      %v4383 = vadd.f32 %v4281, %v4351
      %v4384 = vadd.f32 %v4282, %v4352
      %v4385 = vadd.f32 %v4283, %v4353
      %v4386 = vadd.f32 %v4284, %v4354
      %v4387 = vadd.f32 %v4285, %v4355
      %v4388 = vadd.f32 %v4286, %v4356
      %v4389 = vadd.f32 %v4287, %v4357
      %v4390 = vadd.f32 %v4288, %v4358
      %v4391 = vadd.f32 %v4289, %v4359
      %v4392 = vadd.f32 %v4290, %v4360
      %v4393 = vadd.f32 %v4291, %v4361
      %v4394 = vadd.f32 %v4292, %v4362
      %v4395 = vadd.f32 %v4293, %v4363
      %v4396 = vadd.f32 %v4294, %v4364
      %v4397 = vadd.f32 %v4295, %v4365
      %v4398 = vadd.f32 %v4296, %v4366
      %v4399 = vadd.f32 %v4297, %v4367
      %v4400 = vadd.f32 %v4298, %v4368
      %v4401 = vadd.f32 %v4299, %v4369
      %v4402 = vadd.f32 %v4300, %v4370
      %v4403 = vadd.f32 %v4301, %v4371
      %v4404 = vadd.f32 %v4302, %v4372
      %v4405 = vadd.f32 %v4303, %v4373
      %v4406 = vadd.f32 %v4304, %v4374
      %v4407 = vadd.f32 %v4305, %v4375
      %v4408 = vadd.f32 %v4306, %v4376
      %v4409 = vld [vmem:[%s4307 + $0x1] sm:$0xff]
      %v4410 = vld [vmem:[%s4307 + $0x9] sm:$0xff]
      %v4411 = vld [vmem:[%s4307 + $0x19] sm:$0xff]
      %v4412 = vld [vmem:[%s4307 + $0x21] sm:$0xff]
      %v4413 = vld [vmem:[%s4307 + $0x31] sm:$0xff]
      %v4414 = vld [vmem:[%s4307 + $0x39] sm:$0xff]
      %v4415 = vld [vmem:[%s4307 + $0x49] sm:$0xff]
      %v4416 = vld [vmem:[%s4307 + $0x51] sm:$0xff]
      %v4417 = vld [vmem:[%s4307 + $0x61] sm:$0xff]
      %v4418 = vld [vmem:[%s4307 + $0x69] sm:$0xff]
      %v4419 = vld [vmem:[%s4307 + $0x79] sm:$0xff]
      %v4420 = vld [vmem:[%s4307 + $0x81] sm:$0xff]
      %v4421 = vld [vmem:[%s4307 + $0x91] sm:$0xff]
      %v4422 = vld [vmem:[%s4307 + $0x99] sm:$0xff]
      %v4423 = vld [vmem:[%s4307 + $0xa9] sm:$0xff]
      %v4424 = vld [vmem:[%s4307 + $0xb1] sm:$0xff]
      %v4425 = vld [vmem:[%s4307 + $0xc1] sm:$0xff]
      %v4426 = vld [vmem:[%s4307 + $0xc9] sm:$0xff]
      %v4427 = vld [vmem:[%s4307 + $0xd9] sm:$0xff]
      %v4428 = vld [vmem:[%s4307 + $0xe1] sm:$0xff]
      %v4429 = vld [vmem:[%s4307 + $0xf1] sm:$0xff]
      %v4430 = vld [vmem:[%s4307 + $0xf9] sm:$0xff]
      %v4431 = vld [vmem:[%s4307 + $0x109] sm:$0xff]
      %v4432 = vld [vmem:[%s4307 + $0x111] sm:$0xff]
      %v4433 = vld [vmem:[%s4307 + $0x121] sm:$0xff]
      %v4434 = vld [vmem:[%s4307 + $0x129] sm:$0xff]
      %v4435 = vld [vmem:[%s4307 + $0x139] sm:$0xff]
      %v4436 = vld [vmem:[%s4307 + $0x141] sm:$0xff]
      %v4437 = vld [vmem:[%s4307 + $0x151] sm:$0xff]
      %v4438 = vld [vmem:[%s4307 + $0x159] sm:$0xff]
      %v4439 = vld [vmem:[%s4307 + $0x169] sm:$0xff]
      %v4440 = vld [vmem:[%s4307 + $0x171] sm:$0xff]
      %s4441 = scalar_lea.vmem %s4, 36
      %v4442 = vld [vmem:[%s4441] sm:$0x1]
      %v4444 = vperm.slane %v4442, 0
      %v4446 = vmul.f32 %v4409, %v4444
      %v4447 = vmul.f32 %v4410, %v4444
      %v4448 = vmul.f32 %v4411, %v4444
      %v4449 = vmul.f32 %v4412, %v4444
      %v4450 = vmul.f32 %v4413, %v4444
      %v4451 = vmul.f32 %v4414, %v4444
      %v4452 = vmul.f32 %v4415, %v4444
      %v4453 = vmul.f32 %v4416, %v4444
      %v4454 = vmul.f32 %v4417, %v4444
      %v4455 = vmul.f32 %v4418, %v4444
      %v4456 = vmul.f32 %v4419, %v4444
      %v4457 = vmul.f32 %v4420, %v4444
      %v4458 = vmul.f32 %v4421, %v4444
      %v4459 = vmul.f32 %v4422, %v4444
      %v4460 = vmul.f32 %v4423, %v4444
      %v4461 = vmul.f32 %v4424, %v4444
      %v4462 = vmul.f32 %v4425, %v4444
      %v4463 = vmul.f32 %v4426, %v4444
      %v4464 = vmul.f32 %v4427, %v4444
      %v4465 = vmul.f32 %v4428, %v4444
      %v4466 = vmul.f32 %v4429, %v4444
      %v4467 = vmul.f32 %v4430, %v4444
      %v4468 = vmul.f32 %v4431, %v4444
      %v4469 = vmul.f32 %v4432, %v4444
      %v4470 = vmul.f32 %v4433, %v4444
      %v4471 = vmul.f32 %v4434, %v4444
      %v4472 = vmul.f32 %v4435, %v4444
      %v4473 = vmul.f32 %v4436, %v4444
      %v4474 = vmul.f32 %v4437, %v4444
      %v4475 = vmul.f32 %v4438, %v4444
      %v4476 = vmul.f32 %v4439, %v4444
      %v4477 = vmul.f32 %v4440, %v4444
      %v4478 = vadd.f32 %v4377, %v4446
      %v4479 = vadd.f32 %v4378, %v4447
      %v4480 = vadd.f32 %v4379, %v4448
      %v4481 = vadd.f32 %v4380, %v4449
      %v4482 = vadd.f32 %v4381, %v4450
      %v4483 = vadd.f32 %v4382, %v4451
      %v4484 = vadd.f32 %v4383, %v4452
      %v4485 = vadd.f32 %v4384, %v4453
      %v4486 = vadd.f32 %v4385, %v4454
      %v4487 = vadd.f32 %v4386, %v4455
      %v4488 = vadd.f32 %v4387, %v4456
      %v4489 = vadd.f32 %v4388, %v4457
      %v4490 = vadd.f32 %v4389, %v4458
      %v4491 = vadd.f32 %v4390, %v4459
      %v4492 = vadd.f32 %v4391, %v4460
      %v4493 = vadd.f32 %v4392, %v4461
      %v4494 = vadd.f32 %v4393, %v4462
      %v4495 = vadd.f32 %v4394, %v4463
      %v4496 = vadd.f32 %v4395, %v4464
      %v4497 = vadd.f32 %v4396, %v4465
      %v4498 = vadd.f32 %v4397, %v4466
      %v4499 = vadd.f32 %v4398, %v4467
      %v4500 = vadd.f32 %v4399, %v4468
      %v4501 = vadd.f32 %v4400, %v4469
      %v4502 = vadd.f32 %v4401, %v4470
      %v4503 = vadd.f32 %v4402, %v4471
      %v4504 = vadd.f32 %v4403, %v4472
      %v4505 = vadd.f32 %v4404, %v4473
      %v4506 = vadd.f32 %v4405, %v4474
      %v4507 = vadd.f32 %v4406, %v4475
      %v4508 = vadd.f32 %v4407, %v4476
      %v4509 = vadd.f32 %v4408, %v4477
      %v4510 = vld [vmem:[%s4307 + $0x2] sm:$0xff]
      %v4511 = vld [vmem:[%s4307 + $0xa] sm:$0xff]
      %v4512 = vld [vmem:[%s4307 + $0x1a] sm:$0xff]
      %v4513 = vld [vmem:[%s4307 + $0x22] sm:$0xff]
      %v4514 = vld [vmem:[%s4307 + $0x32] sm:$0xff]
      %v4515 = vld [vmem:[%s4307 + $0x3a] sm:$0xff]
      %v4516 = vld [vmem:[%s4307 + $0x4a] sm:$0xff]
      %v4517 = vld [vmem:[%s4307 + $0x52] sm:$0xff]
      %v4518 = vld [vmem:[%s4307 + $0x62] sm:$0xff]
      %v4519 = vld [vmem:[%s4307 + $0x6a] sm:$0xff]
      %v4520 = vld [vmem:[%s4307 + $0x7a] sm:$0xff]
      %v4521 = vld [vmem:[%s4307 + $0x82] sm:$0xff]
      %v4522 = vld [vmem:[%s4307 + $0x92] sm:$0xff]
      %v4523 = vld [vmem:[%s4307 + $0x9a] sm:$0xff]
      %v4524 = vld [vmem:[%s4307 + $0xaa] sm:$0xff]
      %v4525 = vld [vmem:[%s4307 + $0xb2] sm:$0xff]
      %v4526 = vld [vmem:[%s4307 + $0xc2] sm:$0xff]
      %v4527 = vld [vmem:[%s4307 + $0xca] sm:$0xff]
      %v4528 = vld [vmem:[%s4307 + $0xda] sm:$0xff]
      %v4529 = vld [vmem:[%s4307 + $0xe2] sm:$0xff]
      %v4530 = vld [vmem:[%s4307 + $0xf2] sm:$0xff]
      %v4531 = vld [vmem:[%s4307 + $0xfa] sm:$0xff]
      %v4532 = vld [vmem:[%s4307 + $0x10a] sm:$0xff]
      %v4533 = vld [vmem:[%s4307 + $0x112] sm:$0xff]
      %v4534 = vld [vmem:[%s4307 + $0x122] sm:$0xff]
      %v4535 = vld [vmem:[%s4307 + $0x12a] sm:$0xff]
      %v4536 = vld [vmem:[%s4307 + $0x13a] sm:$0xff]
      %v4537 = vld [vmem:[%s4307 + $0x142] sm:$0xff]
      %v4538 = vld [vmem:[%s4307 + $0x152] sm:$0xff]
      %v4539 = vld [vmem:[%s4307 + $0x15a] sm:$0xff]
      %v4540 = vld [vmem:[%s4307 + $0x16a] sm:$0xff]
      %v4541 = vld [vmem:[%s4307 + $0x172] sm:$0xff]
      %s4542 = scalar_lea.vmem %s4, 37
      %v4543 = vld [vmem:[%s4542] sm:$0x1]
      %v4545 = vperm.slane %v4543, 0
      %v4547 = vmul.f32 %v4510, %v4545
      %v4548 = vmul.f32 %v4511, %v4545
      %v4549 = vmul.f32 %v4512, %v4545
      %v4550 = vmul.f32 %v4513, %v4545
      %v4551 = vmul.f32 %v4514, %v4545
      %v4552 = vmul.f32 %v4515, %v4545
      %v4553 = vmul.f32 %v4516, %v4545
      %v4554 = vmul.f32 %v4517, %v4545
      %v4555 = vmul.f32 %v4518, %v4545
      %v4556 = vmul.f32 %v4519, %v4545
      %v4557 = vmul.f32 %v4520, %v4545
      %v4558 = vmul.f32 %v4521, %v4545
      %v4559 = vmul.f32 %v4522, %v4545
      %v4560 = vmul.f32 %v4523, %v4545
      %v4561 = vmul.f32 %v4524, %v4545
      %v4562 = vmul.f32 %v4525, %v4545
      %v4563 = vmul.f32 %v4526, %v4545
      %v4564 = vmul.f32 %v4527, %v4545
      %v4565 = vmul.f32 %v4528, %v4545
      %v4566 = vmul.f32 %v4529, %v4545
      %v4567 = vmul.f32 %v4530, %v4545
      %v4568 = vmul.f32 %v4531, %v4545
      %v4569 = vmul.f32 %v4532, %v4545
      %v4570 = vmul.f32 %v4533, %v4545
      %v4571 = vmul.f32 %v4534, %v4545
      %v4572 = vmul.f32 %v4535, %v4545
      %v4573 = vmul.f32 %v4536, %v4545
      %v4574 = vmul.f32 %v4537, %v4545
      %v4575 = vmul.f32 %v4538, %v4545
      %v4576 = vmul.f32 %v4539, %v4545
      %v4577 = vmul.f32 %v4540, %v4545
      %v4578 = vmul.f32 %v4541, %v4545
      %v4579 = vadd.f32 %v4478, %v4547
      %v4580 = vadd.f32 %v4479, %v4548
      %v4581 = vadd.f32 %v4480, %v4549
      %v4582 = vadd.f32 %v4481, %v4550
      %v4583 = vadd.f32 %v4482, %v4551
      %v4584 = vadd.f32 %v4483, %v4552
      %v4585 = vadd.f32 %v4484, %v4553
      %v4586 = vadd.f32 %v4485, %v4554
      %v4587 = vadd.f32 %v4486, %v4555
      %v4588 = vadd.f32 %v4487, %v4556
      %v4589 = vadd.f32 %v4488, %v4557
      %v4590 = vadd.f32 %v4489, %v4558
      %v4591 = vadd.f32 %v4490, %v4559
      %v4592 = vadd.f32 %v4491, %v4560
      %v4593 = vadd.f32 %v4492, %v4561
      %v4594 = vadd.f32 %v4493, %v4562
      %v4595 = vadd.f32 %v4494, %v4563
      %v4596 = vadd.f32 %v4495, %v4564
      %v4597 = vadd.f32 %v4496, %v4565
      %v4598 = vadd.f32 %v4497, %v4566
      %v4599 = vadd.f32 %v4498, %v4567
      %v4600 = vadd.f32 %v4499, %v4568
      %v4601 = vadd.f32 %v4500, %v4569
      %v4602 = vadd.f32 %v4501, %v4570
      %v4603 = vadd.f32 %v4502, %v4571
      %v4604 = vadd.f32 %v4503, %v4572
      %v4605 = vadd.f32 %v4504, %v4573
      %v4606 = vadd.f32 %v4505, %v4574
      %v4607 = vadd.f32 %v4506, %v4575
      %v4608 = vadd.f32 %v4507, %v4576
      %v4609 = vadd.f32 %v4508, %v4577
      %v4610 = vadd.f32 %v4509, %v4578
      %v4611 = vld [vmem:[%s4307 + $0x3] sm:$0xff]
      %v4612 = vld [vmem:[%s4307 + $0xb] sm:$0xff]
      %v4613 = vld [vmem:[%s4307 + $0x1b] sm:$0xff]
      %v4614 = vld [vmem:[%s4307 + $0x23] sm:$0xff]
      %v4615 = vld [vmem:[%s4307 + $0x33] sm:$0xff]
      %v4616 = vld [vmem:[%s4307 + $0x3b] sm:$0xff]
      %v4617 = vld [vmem:[%s4307 + $0x4b] sm:$0xff]
      %v4618 = vld [vmem:[%s4307 + $0x53] sm:$0xff]
      %v4619 = vld [vmem:[%s4307 + $0x63] sm:$0xff]
      %v4620 = vld [vmem:[%s4307 + $0x6b] sm:$0xff]
      %v4621 = vld [vmem:[%s4307 + $0x7b] sm:$0xff]
      %v4622 = vld [vmem:[%s4307 + $0x83] sm:$0xff]
      %v4623 = vld [vmem:[%s4307 + $0x93] sm:$0xff]
      %v4624 = vld [vmem:[%s4307 + $0x9b] sm:$0xff]
      %v4625 = vld [vmem:[%s4307 + $0xab] sm:$0xff]
      %v4626 = vld [vmem:[%s4307 + $0xb3] sm:$0xff]
      %v4627 = vld [vmem:[%s4307 + $0xc3] sm:$0xff]
      %v4628 = vld [vmem:[%s4307 + $0xcb] sm:$0xff]
      %v4629 = vld [vmem:[%s4307 + $0xdb] sm:$0xff]
      %v4630 = vld [vmem:[%s4307 + $0xe3] sm:$0xff]
      %v4631 = vld [vmem:[%s4307 + $0xf3] sm:$0xff]
      %v4632 = vld [vmem:[%s4307 + $0xfb] sm:$0xff]
      %v4633 = vld [vmem:[%s4307 + $0x10b] sm:$0xff]
      %v4634 = vld [vmem:[%s4307 + $0x113] sm:$0xff]
      %v4635 = vld [vmem:[%s4307 + $0x123] sm:$0xff]
      %v4636 = vld [vmem:[%s4307 + $0x12b] sm:$0xff]
      %v4637 = vld [vmem:[%s4307 + $0x13b] sm:$0xff]
      %v4638 = vld [vmem:[%s4307 + $0x143] sm:$0xff]
      %v4639 = vld [vmem:[%s4307 + $0x153] sm:$0xff]
      %v4640 = vld [vmem:[%s4307 + $0x15b] sm:$0xff]
      %v4641 = vld [vmem:[%s4307 + $0x16b] sm:$0xff]
      %v4642 = vld [vmem:[%s4307 + $0x173] sm:$0xff]
      %s4643 = scalar_lea.vmem %s4, 38
      %v4644 = vld [vmem:[%s4643] sm:$0x1]
      %v4646 = vperm.slane %v4644, 0
      %v4648 = vmul.f32 %v4611, %v4646
      %v4649 = vmul.f32 %v4612, %v4646
      %v4650 = vmul.f32 %v4613, %v4646
      %v4651 = vmul.f32 %v4614, %v4646
      %v4652 = vmul.f32 %v4615, %v4646
      %v4653 = vmul.f32 %v4616, %v4646
      %v4654 = vmul.f32 %v4617, %v4646
      %v4655 = vmul.f32 %v4618, %v4646
      %v4656 = vmul.f32 %v4619, %v4646
      %v4657 = vmul.f32 %v4620, %v4646
      %v4658 = vmul.f32 %v4621, %v4646
      %v4659 = vmul.f32 %v4622, %v4646
      %v4660 = vmul.f32 %v4623, %v4646
      %v4661 = vmul.f32 %v4624, %v4646
      %v4662 = vmul.f32 %v4625, %v4646
      %v4663 = vmul.f32 %v4626, %v4646
      %v4664 = vmul.f32 %v4627, %v4646
      %v4665 = vmul.f32 %v4628, %v4646
      %v4666 = vmul.f32 %v4629, %v4646
      %v4667 = vmul.f32 %v4630, %v4646
      %v4668 = vmul.f32 %v4631, %v4646
      %v4669 = vmul.f32 %v4632, %v4646
      %v4670 = vmul.f32 %v4633, %v4646
      %v4671 = vmul.f32 %v4634, %v4646
      %v4672 = vmul.f32 %v4635, %v4646
      %v4673 = vmul.f32 %v4636, %v4646
      %v4674 = vmul.f32 %v4637, %v4646
      %v4675 = vmul.f32 %v4638, %v4646
      %v4676 = vmul.f32 %v4639, %v4646
      %v4677 = vmul.f32 %v4640, %v4646
      %v4678 = vmul.f32 %v4641, %v4646
      %v4679 = vmul.f32 %v4642, %v4646
      %v4680 = vadd.f32 %v4579, %v4648
      %v4681 = vadd.f32 %v4580, %v4649
      %v4682 = vadd.f32 %v4581, %v4650
      %v4683 = vadd.f32 %v4582, %v4651
      %v4684 = vadd.f32 %v4583, %v4652
      %v4685 = vadd.f32 %v4584, %v4653
      %v4686 = vadd.f32 %v4585, %v4654
      %v4687 = vadd.f32 %v4586, %v4655
      %v4688 = vadd.f32 %v4587, %v4656
      %v4689 = vadd.f32 %v4588, %v4657
      %v4690 = vadd.f32 %v4589, %v4658
      %v4691 = vadd.f32 %v4590, %v4659
      %v4692 = vadd.f32 %v4591, %v4660
      %v4693 = vadd.f32 %v4592, %v4661
      %v4694 = vadd.f32 %v4593, %v4662
      %v4695 = vadd.f32 %v4594, %v4663
      %v4696 = vadd.f32 %v4595, %v4664
      %v4697 = vadd.f32 %v4596, %v4665
      %v4698 = vadd.f32 %v4597, %v4666
      %v4699 = vadd.f32 %v4598, %v4667
      %v4700 = vadd.f32 %v4599, %v4668
      %v4701 = vadd.f32 %v4600, %v4669
      %v4702 = vadd.f32 %v4601, %v4670
      %v4703 = vadd.f32 %v4602, %v4671
      %v4704 = vadd.f32 %v4603, %v4672
      %v4705 = vadd.f32 %v4604, %v4673
      %v4706 = vadd.f32 %v4605, %v4674
      %v4707 = vadd.f32 %v4606, %v4675
      %v4708 = vadd.f32 %v4607, %v4676
      %v4709 = vadd.f32 %v4608, %v4677
      %v4710 = vadd.f32 %v4609, %v4678
      %v4711 = vadd.f32 %v4610, %v4679
      %v4712 = vld [vmem:[%s4307 + $0x4] sm:$0xff]
      %v4713 = vld [vmem:[%s4307 + $0xc] sm:$0xff]
      %v4714 = vld [vmem:[%s4307 + $0x1c] sm:$0xff]
      %v4715 = vld [vmem:[%s4307 + $0x24] sm:$0xff]
      %v4716 = vld [vmem:[%s4307 + $0x34] sm:$0xff]
      %v4717 = vld [vmem:[%s4307 + $0x3c] sm:$0xff]
      %v4718 = vld [vmem:[%s4307 + $0x4c] sm:$0xff]
      %v4719 = vld [vmem:[%s4307 + $0x54] sm:$0xff]
      %v4720 = vld [vmem:[%s4307 + $0x64] sm:$0xff]
      %v4721 = vld [vmem:[%s4307 + $0x6c] sm:$0xff]
      %v4722 = vld [vmem:[%s4307 + $0x7c] sm:$0xff]
      %v4723 = vld [vmem:[%s4307 + $0x84] sm:$0xff]
      %v4724 = vld [vmem:[%s4307 + $0x94] sm:$0xff]
      %v4725 = vld [vmem:[%s4307 + $0x9c] sm:$0xff]
      %v4726 = vld [vmem:[%s4307 + $0xac] sm:$0xff]
      %v4727 = vld [vmem:[%s4307 + $0xb4] sm:$0xff]
      %v4728 = vld [vmem:[%s4307 + $0xc4] sm:$0xff]
      %v4729 = vld [vmem:[%s4307 + $0xcc] sm:$0xff]
      %v4730 = vld [vmem:[%s4307 + $0xdc] sm:$0xff]
      %v4731 = vld [vmem:[%s4307 + $0xe4] sm:$0xff]
      %v4732 = vld [vmem:[%s4307 + $0xf4] sm:$0xff]
      %v4733 = vld [vmem:[%s4307 + $0xfc] sm:$0xff]
      %v4734 = vld [vmem:[%s4307 + $0x10c] sm:$0xff]
      %v4735 = vld [vmem:[%s4307 + $0x114] sm:$0xff]
      %v4736 = vld [vmem:[%s4307 + $0x124] sm:$0xff]
      %v4737 = vld [vmem:[%s4307 + $0x12c] sm:$0xff]
      %v4738 = vld [vmem:[%s4307 + $0x13c] sm:$0xff]
      %v4739 = vld [vmem:[%s4307 + $0x144] sm:$0xff]
      %v4740 = vld [vmem:[%s4307 + $0x154] sm:$0xff]
      %v4741 = vld [vmem:[%s4307 + $0x15c] sm:$0xff]
      %v4742 = vld [vmem:[%s4307 + $0x16c] sm:$0xff]
      %v4743 = vld [vmem:[%s4307 + $0x174] sm:$0xff]
      %s4744 = scalar_lea.vmem %s4, 39
      %v4745 = vld [vmem:[%s4744] sm:$0x1]
      %v4747 = vperm.slane %v4745, 0
      %v4749 = vmul.f32 %v4712, %v4747
      %v4750 = vmul.f32 %v4713, %v4747
      %v4751 = vmul.f32 %v4714, %v4747
      %v4752 = vmul.f32 %v4715, %v4747
      %v4753 = vmul.f32 %v4716, %v4747
      %v4754 = vmul.f32 %v4717, %v4747
      %v4755 = vmul.f32 %v4718, %v4747
      %v4756 = vmul.f32 %v4719, %v4747
      %v4757 = vmul.f32 %v4720, %v4747
      %v4758 = vmul.f32 %v4721, %v4747
      %v4759 = vmul.f32 %v4722, %v4747
      %v4760 = vmul.f32 %v4723, %v4747
      %v4761 = vmul.f32 %v4724, %v4747
      %v4762 = vmul.f32 %v4725, %v4747
      %v4763 = vmul.f32 %v4726, %v4747
      %v4764 = vmul.f32 %v4727, %v4747
      %v4765 = vmul.f32 %v4728, %v4747
      %v4766 = vmul.f32 %v4729, %v4747
      %v4767 = vmul.f32 %v4730, %v4747
      %v4768 = vmul.f32 %v4731, %v4747
      %v4769 = vmul.f32 %v4732, %v4747
      %v4770 = vmul.f32 %v4733, %v4747
      %v4771 = vmul.f32 %v4734, %v4747
      %v4772 = vmul.f32 %v4735, %v4747
      %v4773 = vmul.f32 %v4736, %v4747
      %v4774 = vmul.f32 %v4737, %v4747
      %v4775 = vmul.f32 %v4738, %v4747
      %v4776 = vmul.f32 %v4739, %v4747
      %v4777 = vmul.f32 %v4740, %v4747
      %v4778 = vmul.f32 %v4741, %v4747
      %v4779 = vmul.f32 %v4742, %v4747
      %v4780 = vmul.f32 %v4743, %v4747
      %v4781 = vadd.f32 %v4680, %v4749
      %v4782 = vadd.f32 %v4681, %v4750
      %v4783 = vadd.f32 %v4682, %v4751
      %v4784 = vadd.f32 %v4683, %v4752
      %v4785 = vadd.f32 %v4684, %v4753
      %v4786 = vadd.f32 %v4685, %v4754
      %v4787 = vadd.f32 %v4686, %v4755
      %v4788 = vadd.f32 %v4687, %v4756
      %v4789 = vadd.f32 %v4688, %v4757
      %v4790 = vadd.f32 %v4689, %v4758
      %v4791 = vadd.f32 %v4690, %v4759
      %v4792 = vadd.f32 %v4691, %v4760
      %v4793 = vadd.f32 %v4692, %v4761
      %v4794 = vadd.f32 %v4693, %v4762
      %v4795 = vadd.f32 %v4694, %v4763
      %v4796 = vadd.f32 %v4695, %v4764
      %v4797 = vadd.f32 %v4696, %v4765
      %v4798 = vadd.f32 %v4697, %v4766
      %v4799 = vadd.f32 %v4698, %v4767
      %v4800 = vadd.f32 %v4699, %v4768
      %v4801 = vadd.f32 %v4700, %v4769
      %v4802 = vadd.f32 %v4701, %v4770
      %v4803 = vadd.f32 %v4702, %v4771
      %v4804 = vadd.f32 %v4703, %v4772
      %v4805 = vadd.f32 %v4704, %v4773
      %v4806 = vadd.f32 %v4705, %v4774
      %v4807 = vadd.f32 %v4706, %v4775
      %v4808 = vadd.f32 %v4707, %v4776
      %v4809 = vadd.f32 %v4708, %v4777
      %v4810 = vadd.f32 %v4709, %v4778
      %v4811 = vadd.f32 %v4710, %v4779
      %v4812 = vadd.f32 %v4711, %v4780
      %v4813 = vld [vmem:[%s4307 + $0x5] sm:$0xff]
      %v4814 = vld [vmem:[%s4307 + $0xd] sm:$0xff]
      %v4815 = vld [vmem:[%s4307 + $0x1d] sm:$0xff]
      %v4816 = vld [vmem:[%s4307 + $0x25] sm:$0xff]
      %v4817 = vld [vmem:[%s4307 + $0x35] sm:$0xff]
      %v4818 = vld [vmem:[%s4307 + $0x3d] sm:$0xff]
      %v4819 = vld [vmem:[%s4307 + $0x4d] sm:$0xff]
      %v4820 = vld [vmem:[%s4307 + $0x55] sm:$0xff]
      %v4821 = vld [vmem:[%s4307 + $0x65] sm:$0xff]
      %v4822 = vld [vmem:[%s4307 + $0x6d] sm:$0xff]
      %v4823 = vld [vmem:[%s4307 + $0x7d] sm:$0xff]
      %v4824 = vld [vmem:[%s4307 + $0x85] sm:$0xff]
      %v4825 = vld [vmem:[%s4307 + $0x95] sm:$0xff]
      %v4826 = vld [vmem:[%s4307 + $0x9d] sm:$0xff]
      %v4827 = vld [vmem:[%s4307 + $0xad] sm:$0xff]
      %v4828 = vld [vmem:[%s4307 + $0xb5] sm:$0xff]
      %v4829 = vld [vmem:[%s4307 + $0xc5] sm:$0xff]
      %v4830 = vld [vmem:[%s4307 + $0xcd] sm:$0xff]
      %v4831 = vld [vmem:[%s4307 + $0xdd] sm:$0xff]
      %v4832 = vld [vmem:[%s4307 + $0xe5] sm:$0xff]
      %v4833 = vld [vmem:[%s4307 + $0xf5] sm:$0xff]
      %v4834 = vld [vmem:[%s4307 + $0xfd] sm:$0xff]
      %v4835 = vld [vmem:[%s4307 + $0x10d] sm:$0xff]
      %v4836 = vld [vmem:[%s4307 + $0x115] sm:$0xff]
      %v4837 = vld [vmem:[%s4307 + $0x125] sm:$0xff]
      %v4838 = vld [vmem:[%s4307 + $0x12d] sm:$0xff]
      %v4839 = vld [vmem:[%s4307 + $0x13d] sm:$0xff]
      %v4840 = vld [vmem:[%s4307 + $0x145] sm:$0xff]
      %v4841 = vld [vmem:[%s4307 + $0x155] sm:$0xff]
      %v4842 = vld [vmem:[%s4307 + $0x15d] sm:$0xff]
      %v4843 = vld [vmem:[%s4307 + $0x16d] sm:$0xff]
      %v4844 = vld [vmem:[%s4307 + $0x175] sm:$0xff]
      %s4845 = scalar_lea.vmem %s4, 40
      %v4846 = vld [vmem:[%s4845] sm:$0x1]
      %v4848 = vperm.slane %v4846, 0
      %v4850 = vmul.f32 %v4813, %v4848
      %v4851 = vmul.f32 %v4814, %v4848
      %v4852 = vmul.f32 %v4815, %v4848
      %v4853 = vmul.f32 %v4816, %v4848
      %v4854 = vmul.f32 %v4817, %v4848
      %v4855 = vmul.f32 %v4818, %v4848
      %v4856 = vmul.f32 %v4819, %v4848
      %v4857 = vmul.f32 %v4820, %v4848
      %v4858 = vmul.f32 %v4821, %v4848
      %v4859 = vmul.f32 %v4822, %v4848
      %v4860 = vmul.f32 %v4823, %v4848
      %v4861 = vmul.f32 %v4824, %v4848
      %v4862 = vmul.f32 %v4825, %v4848
      %v4863 = vmul.f32 %v4826, %v4848
      %v4864 = vmul.f32 %v4827, %v4848
      %v4865 = vmul.f32 %v4828, %v4848
      %v4866 = vmul.f32 %v4829, %v4848
      %v4867 = vmul.f32 %v4830, %v4848
      %v4868 = vmul.f32 %v4831, %v4848
      %v4869 = vmul.f32 %v4832, %v4848
      %v4870 = vmul.f32 %v4833, %v4848
      %v4871 = vmul.f32 %v4834, %v4848
      %v4872 = vmul.f32 %v4835, %v4848
      %v4873 = vmul.f32 %v4836, %v4848
      %v4874 = vmul.f32 %v4837, %v4848
      %v4875 = vmul.f32 %v4838, %v4848
      %v4876 = vmul.f32 %v4839, %v4848
      %v4877 = vmul.f32 %v4840, %v4848
      %v4878 = vmul.f32 %v4841, %v4848
      %v4879 = vmul.f32 %v4842, %v4848
      %v4880 = vmul.f32 %v4843, %v4848
      %v4881 = vmul.f32 %v4844, %v4848
      %v4882 = vadd.f32 %v4781, %v4850
      %v4883 = vadd.f32 %v4782, %v4851
      %v4884 = vadd.f32 %v4783, %v4852
      %v4885 = vadd.f32 %v4784, %v4853
      %v4886 = vadd.f32 %v4785, %v4854
      %v4887 = vadd.f32 %v4786, %v4855
      %v4888 = vadd.f32 %v4787, %v4856
      %v4889 = vadd.f32 %v4788, %v4857
      %v4890 = vadd.f32 %v4789, %v4858
      %v4891 = vadd.f32 %v4790, %v4859
      %v4892 = vadd.f32 %v4791, %v4860
      %v4893 = vadd.f32 %v4792, %v4861
      %v4894 = vadd.f32 %v4793, %v4862
      %v4895 = vadd.f32 %v4794, %v4863
      %v4896 = vadd.f32 %v4795, %v4864
      %v4897 = vadd.f32 %v4796, %v4865
      %v4898 = vadd.f32 %v4797, %v4866
      %v4899 = vadd.f32 %v4798, %v4867
      %v4900 = vadd.f32 %v4799, %v4868
      %v4901 = vadd.f32 %v4800, %v4869
      %v4902 = vadd.f32 %v4801, %v4870
      %v4903 = vadd.f32 %v4802, %v4871
      %v4904 = vadd.f32 %v4803, %v4872
      %v4905 = vadd.f32 %v4804, %v4873
      %v4906 = vadd.f32 %v4805, %v4874
      %v4907 = vadd.f32 %v4806, %v4875
      %v4908 = vadd.f32 %v4807, %v4876
      %v4909 = vadd.f32 %v4808, %v4877
      %v4910 = vadd.f32 %v4809, %v4878
      %v4911 = vadd.f32 %v4810, %v4879
      %v4912 = vadd.f32 %v4811, %v4880
      %v4913 = vadd.f32 %v4812, %v4881
      %v4914 = vld [vmem:[%s4307 + $0x6] sm:$0xff]
      %v4915 = vld [vmem:[%s4307 + $0xe] sm:$0xff]
      %v4916 = vld [vmem:[%s4307 + $0x1e] sm:$0xff]
      %v4917 = vld [vmem:[%s4307 + $0x26] sm:$0xff]
      %v4918 = vld [vmem:[%s4307 + $0x36] sm:$0xff]
      %v4919 = vld [vmem:[%s4307 + $0x3e] sm:$0xff]
      %v4920 = vld [vmem:[%s4307 + $0x4e] sm:$0xff]
      %v4921 = vld [vmem:[%s4307 + $0x56] sm:$0xff]
      %v4922 = vld [vmem:[%s4307 + $0x66] sm:$0xff]
      %v4923 = vld [vmem:[%s4307 + $0x6e] sm:$0xff]
      %v4924 = vld [vmem:[%s4307 + $0x7e] sm:$0xff]
      %v4925 = vld [vmem:[%s4307 + $0x86] sm:$0xff]
      %v4926 = vld [vmem:[%s4307 + $0x96] sm:$0xff]
      %v4927 = vld [vmem:[%s4307 + $0x9e] sm:$0xff]
      %v4928 = vld [vmem:[%s4307 + $0xae] sm:$0xff]
      %v4929 = vld [vmem:[%s4307 + $0xb6] sm:$0xff]
      %v4930 = vld [vmem:[%s4307 + $0xc6] sm:$0xff]
      %v4931 = vld [vmem:[%s4307 + $0xce] sm:$0xff]
      %v4932 = vld [vmem:[%s4307 + $0xde] sm:$0xff]
      %v4933 = vld [vmem:[%s4307 + $0xe6] sm:$0xff]
      %v4934 = vld [vmem:[%s4307 + $0xf6] sm:$0xff]
      %v4935 = vld [vmem:[%s4307 + $0xfe] sm:$0xff]
      %v4936 = vld [vmem:[%s4307 + $0x10e] sm:$0xff]
      %v4937 = vld [vmem:[%s4307 + $0x116] sm:$0xff]
      %v4938 = vld [vmem:[%s4307 + $0x126] sm:$0xff]
      %v4939 = vld [vmem:[%s4307 + $0x12e] sm:$0xff]
      %v4940 = vld [vmem:[%s4307 + $0x13e] sm:$0xff]
      %v4941 = vld [vmem:[%s4307 + $0x146] sm:$0xff]
      %v4942 = vld [vmem:[%s4307 + $0x156] sm:$0xff]
      %v4943 = vld [vmem:[%s4307 + $0x15e] sm:$0xff]
      %v4944 = vld [vmem:[%s4307 + $0x16e] sm:$0xff]
      %v4945 = vld [vmem:[%s4307 + $0x176] sm:$0xff]
      %s4946 = scalar_lea.vmem %s4, 41
      %v4947 = vld [vmem:[%s4946] sm:$0x1]
      %v4949 = vperm.slane %v4947, 0
      %v4951 = vmul.f32 %v4914, %v4949
      %v4952 = vmul.f32 %v4915, %v4949
      %v4953 = vmul.f32 %v4916, %v4949
      %v4954 = vmul.f32 %v4917, %v4949
      %v4955 = vmul.f32 %v4918, %v4949
      %v4956 = vmul.f32 %v4919, %v4949
      %v4957 = vmul.f32 %v4920, %v4949
      %v4958 = vmul.f32 %v4921, %v4949
      %v4959 = vmul.f32 %v4922, %v4949
      %v4960 = vmul.f32 %v4923, %v4949
      %v4961 = vmul.f32 %v4924, %v4949
      %v4962 = vmul.f32 %v4925, %v4949
      %v4963 = vmul.f32 %v4926, %v4949
      %v4964 = vmul.f32 %v4927, %v4949
      %v4965 = vmul.f32 %v4928, %v4949
      %v4966 = vmul.f32 %v4929, %v4949
      %v4967 = vmul.f32 %v4930, %v4949
      %v4968 = vmul.f32 %v4931, %v4949
      %v4969 = vmul.f32 %v4932, %v4949
      %v4970 = vmul.f32 %v4933, %v4949
      %v4971 = vmul.f32 %v4934, %v4949
      %v4972 = vmul.f32 %v4935, %v4949
      %v4973 = vmul.f32 %v4936, %v4949
      %v4974 = vmul.f32 %v4937, %v4949
      %v4975 = vmul.f32 %v4938, %v4949
      %v4976 = vmul.f32 %v4939, %v4949
      %v4977 = vmul.f32 %v4940, %v4949
      %v4978 = vmul.f32 %v4941, %v4949
      %v4979 = vmul.f32 %v4942, %v4949
      %v4980 = vmul.f32 %v4943, %v4949
      %v4981 = vmul.f32 %v4944, %v4949
      %v4982 = vmul.f32 %v4945, %v4949
      %v4983 = vadd.f32 %v4882, %v4951
      %v4984 = vadd.f32 %v4883, %v4952
      %v4985 = vadd.f32 %v4884, %v4953
      %v4986 = vadd.f32 %v4885, %v4954
      %v4987 = vadd.f32 %v4886, %v4955
      %v4988 = vadd.f32 %v4887, %v4956
      %v4989 = vadd.f32 %v4888, %v4957
      %v4990 = vadd.f32 %v4889, %v4958
      %v4991 = vadd.f32 %v4890, %v4959
      %v4992 = vadd.f32 %v4891, %v4960
      %v4993 = vadd.f32 %v4892, %v4961
      %v4994 = vadd.f32 %v4893, %v4962
      %v4995 = vadd.f32 %v4894, %v4963
      %v4996 = vadd.f32 %v4895, %v4964
      %v4997 = vadd.f32 %v4896, %v4965
      %v4998 = vadd.f32 %v4897, %v4966
      %v4999 = vadd.f32 %v4898, %v4967
      %v5000 = vadd.f32 %v4899, %v4968
      %v5001 = vadd.f32 %v4900, %v4969
      %v5002 = vadd.f32 %v4901, %v4970
      %v5003 = vadd.f32 %v4902, %v4971
      %v5004 = vadd.f32 %v4903, %v4972
      %v5005 = vadd.f32 %v4904, %v4973
      %v5006 = vadd.f32 %v4905, %v4974
      %v5007 = vadd.f32 %v4906, %v4975
      %v5008 = vadd.f32 %v4907, %v4976
      %v5009 = vadd.f32 %v4908, %v4977
      %v5010 = vadd.f32 %v4909, %v4978
      %v5011 = vadd.f32 %v4910, %v4979
      %v5012 = vadd.f32 %v4911, %v4980
      %v5013 = vadd.f32 %v4912, %v4981
      %v5014 = vadd.f32 %v4913, %v4982
      %s5015 = scalar_lea.vmem [#allocation2], 144
      %v5016 = vld [vmem:[%s5015] sm:$0xff]
      %v5017 = vld [vmem:[%s5015 + $0x8] sm:$0xff]
      %v5018 = vld [vmem:[%s5015 + $0x18] sm:$0xff]
      %v5019 = vld [vmem:[%s5015 + $0x20] sm:$0xff]
      %v5020 = vld [vmem:[%s5015 + $0x30] sm:$0xff]
      %v5021 = vld [vmem:[%s5015 + $0x38] sm:$0xff]
      %v5022 = vld [vmem:[%s5015 + $0x48] sm:$0xff]
      %v5023 = vld [vmem:[%s5015 + $0x50] sm:$0xff]
      %v5024 = vld [vmem:[%s5015 + $0x60] sm:$0xff]
      %v5025 = vld [vmem:[%s5015 + $0x68] sm:$0xff]
      %v5026 = vld [vmem:[%s5015 + $0x78] sm:$0xff]
      %v5027 = vld [vmem:[%s5015 + $0x80] sm:$0xff]
      %v5028 = vld [vmem:[%s5015 + $0x90] sm:$0xff]
      %v5029 = vld [vmem:[%s5015 + $0x98] sm:$0xff]
      %v5030 = vld [vmem:[%s5015 + $0xa8] sm:$0xff]
      %v5031 = vld [vmem:[%s5015 + $0xb0] sm:$0xff]
      %v5032 = vld [vmem:[%s5015 + $0xc0] sm:$0xff]
      %v5033 = vld [vmem:[%s5015 + $0xc8] sm:$0xff]
      %v5034 = vld [vmem:[%s5015 + $0xd8] sm:$0xff]
      %v5035 = vld [vmem:[%s5015 + $0xe0] sm:$0xff]
      %v5036 = vld [vmem:[%s5015 + $0xf0] sm:$0xff]
      %v5037 = vld [vmem:[%s5015 + $0xf8] sm:$0xff]
      %v5038 = vld [vmem:[%s5015 + $0x108] sm:$0xff]
      %v5039 = vld [vmem:[%s5015 + $0x110] sm:$0xff]
      %v5040 = vld [vmem:[%s5015 + $0x120] sm:$0xff]
      %v5041 = vld [vmem:[%s5015 + $0x128] sm:$0xff]
      %v5042 = vld [vmem:[%s5015 + $0x138] sm:$0xff]
      %v5043 = vld [vmem:[%s5015 + $0x140] sm:$0xff]
      %v5044 = vld [vmem:[%s5015 + $0x150] sm:$0xff]
      %v5045 = vld [vmem:[%s5015 + $0x158] sm:$0xff]
      %v5046 = vld [vmem:[%s5015 + $0x168] sm:$0xff]
      %v5047 = vld [vmem:[%s5015 + $0x170] sm:$0xff]
      %s5048 = scalar_lea.vmem %s4, 42
      %v5049 = vld [vmem:[%s5048] sm:$0x1]
      %v5051 = vperm.slane %v5049, 0
      %v5053 = vmul.f32 %v5016, %v5051
      %v5054 = vmul.f32 %v5017, %v5051
      %v5055 = vmul.f32 %v5018, %v5051
      %v5056 = vmul.f32 %v5019, %v5051
      %v5057 = vmul.f32 %v5020, %v5051
      %v5058 = vmul.f32 %v5021, %v5051
      %v5059 = vmul.f32 %v5022, %v5051
      %v5060 = vmul.f32 %v5023, %v5051
      %v5061 = vmul.f32 %v5024, %v5051
      %v5062 = vmul.f32 %v5025, %v5051
      %v5063 = vmul.f32 %v5026, %v5051
      %v5064 = vmul.f32 %v5027, %v5051
      %v5065 = vmul.f32 %v5028, %v5051
      %v5066 = vmul.f32 %v5029, %v5051
      %v5067 = vmul.f32 %v5030, %v5051
      %v5068 = vmul.f32 %v5031, %v5051
      %v5069 = vmul.f32 %v5032, %v5051
      %v5070 = vmul.f32 %v5033, %v5051
      %v5071 = vmul.f32 %v5034, %v5051
      %v5072 = vmul.f32 %v5035, %v5051
      %v5073 = vmul.f32 %v5036, %v5051
      %v5074 = vmul.f32 %v5037, %v5051
      %v5075 = vmul.f32 %v5038, %v5051
      %v5076 = vmul.f32 %v5039, %v5051
      %v5077 = vmul.f32 %v5040, %v5051
      %v5078 = vmul.f32 %v5041, %v5051
      %v5079 = vmul.f32 %v5042, %v5051
      %v5080 = vmul.f32 %v5043, %v5051
      %v5081 = vmul.f32 %v5044, %v5051
      %v5082 = vmul.f32 %v5045, %v5051
      %v5083 = vmul.f32 %v5046, %v5051
      %v5084 = vmul.f32 %v5047, %v5051
      %v5085 = vadd.f32 %v4983, %v5053
      %v5086 = vadd.f32 %v4984, %v5054
      %v5087 = vadd.f32 %v4985, %v5055
      %v5088 = vadd.f32 %v4986, %v5056
      %v5089 = vadd.f32 %v4987, %v5057
      %v5090 = vadd.f32 %v4988, %v5058
      %v5091 = vadd.f32 %v4989, %v5059
      %v5092 = vadd.f32 %v4990, %v5060
      %v5093 = vadd.f32 %v4991, %v5061
      %v5094 = vadd.f32 %v4992, %v5062
      %v5095 = vadd.f32 %v4993, %v5063
      %v5096 = vadd.f32 %v4994, %v5064
      %v5097 = vadd.f32 %v4995, %v5065
      %v5098 = vadd.f32 %v4996, %v5066
      %v5099 = vadd.f32 %v4997, %v5067
      %v5100 = vadd.f32 %v4998, %v5068
      %v5101 = vadd.f32 %v4999, %v5069
      %v5102 = vadd.f32 %v5000, %v5070
      %v5103 = vadd.f32 %v5001, %v5071
      %v5104 = vadd.f32 %v5002, %v5072
      %v5105 = vadd.f32 %v5003, %v5073
      %v5106 = vadd.f32 %v5004, %v5074
      %v5107 = vadd.f32 %v5005, %v5075
      %v5108 = vadd.f32 %v5006, %v5076
      %v5109 = vadd.f32 %v5007, %v5077
      %v5110 = vadd.f32 %v5008, %v5078
      %v5111 = vadd.f32 %v5009, %v5079
      %v5112 = vadd.f32 %v5010, %v5080
      %v5113 = vadd.f32 %v5011, %v5081
      %v5114 = vadd.f32 %v5012, %v5082
      %v5115 = vadd.f32 %v5013, %v5083
      %v5116 = vadd.f32 %v5014, %v5084
      %v5117 = vld [vmem:[%s5015 + $0x1] sm:$0xff]
      %v5118 = vld [vmem:[%s5015 + $0x9] sm:$0xff]
      %v5119 = vld [vmem:[%s5015 + $0x19] sm:$0xff]
      %v5120 = vld [vmem:[%s5015 + $0x21] sm:$0xff]
      %v5121 = vld [vmem:[%s5015 + $0x31] sm:$0xff]
      %v5122 = vld [vmem:[%s5015 + $0x39] sm:$0xff]
      %v5123 = vld [vmem:[%s5015 + $0x49] sm:$0xff]
      %v5124 = vld [vmem:[%s5015 + $0x51] sm:$0xff]
      %v5125 = vld [vmem:[%s5015 + $0x61] sm:$0xff]
      %v5126 = vld [vmem:[%s5015 + $0x69] sm:$0xff]
      %v5127 = vld [vmem:[%s5015 + $0x79] sm:$0xff]
      %v5128 = vld [vmem:[%s5015 + $0x81] sm:$0xff]
      %v5129 = vld [vmem:[%s5015 + $0x91] sm:$0xff]
      %v5130 = vld [vmem:[%s5015 + $0x99] sm:$0xff]
      %v5131 = vld [vmem:[%s5015 + $0xa9] sm:$0xff]
      %v5132 = vld [vmem:[%s5015 + $0xb1] sm:$0xff]
      %v5133 = vld [vmem:[%s5015 + $0xc1] sm:$0xff]
      %v5134 = vld [vmem:[%s5015 + $0xc9] sm:$0xff]
      %v5135 = vld [vmem:[%s5015 + $0xd9] sm:$0xff]
      %v5136 = vld [vmem:[%s5015 + $0xe1] sm:$0xff]
      %v5137 = vld [vmem:[%s5015 + $0xf1] sm:$0xff]
      %v5138 = vld [vmem:[%s5015 + $0xf9] sm:$0xff]
      %v5139 = vld [vmem:[%s5015 + $0x109] sm:$0xff]
      %v5140 = vld [vmem:[%s5015 + $0x111] sm:$0xff]
      %v5141 = vld [vmem:[%s5015 + $0x121] sm:$0xff]
      %v5142 = vld [vmem:[%s5015 + $0x129] sm:$0xff]
      %v5143 = vld [vmem:[%s5015 + $0x139] sm:$0xff]
      %v5144 = vld [vmem:[%s5015 + $0x141] sm:$0xff]
      %v5145 = vld [vmem:[%s5015 + $0x151] sm:$0xff]
      %v5146 = vld [vmem:[%s5015 + $0x159] sm:$0xff]
      %v5147 = vld [vmem:[%s5015 + $0x169] sm:$0xff]
      %v5148 = vld [vmem:[%s5015 + $0x171] sm:$0xff]
      %s5149 = scalar_lea.vmem %s4, 43
      %v5150 = vld [vmem:[%s5149] sm:$0x1]
      %v5152 = vperm.slane %v5150, 0
      %v5154 = vmul.f32 %v5117, %v5152
      %v5155 = vmul.f32 %v5118, %v5152
      %v5156 = vmul.f32 %v5119, %v5152
      %v5157 = vmul.f32 %v5120, %v5152
      %v5158 = vmul.f32 %v5121, %v5152
      %v5159 = vmul.f32 %v5122, %v5152
      %v5160 = vmul.f32 %v5123, %v5152
      %v5161 = vmul.f32 %v5124, %v5152
      %v5162 = vmul.f32 %v5125, %v5152
      %v5163 = vmul.f32 %v5126, %v5152
      %v5164 = vmul.f32 %v5127, %v5152
      %v5165 = vmul.f32 %v5128, %v5152
      %v5166 = vmul.f32 %v5129, %v5152
      %v5167 = vmul.f32 %v5130, %v5152
      %v5168 = vmul.f32 %v5131, %v5152
      %v5169 = vmul.f32 %v5132, %v5152
      %v5170 = vmul.f32 %v5133, %v5152
      %v5171 = vmul.f32 %v5134, %v5152
      %v5172 = vmul.f32 %v5135, %v5152
      %v5173 = vmul.f32 %v5136, %v5152
      %v5174 = vmul.f32 %v5137, %v5152
      %v5175 = vmul.f32 %v5138, %v5152
      %v5176 = vmul.f32 %v5139, %v5152
      %v5177 = vmul.f32 %v5140, %v5152
      %v5178 = vmul.f32 %v5141, %v5152
      %v5179 = vmul.f32 %v5142, %v5152
      %v5180 = vmul.f32 %v5143, %v5152
      %v5181 = vmul.f32 %v5144, %v5152
      %v5182 = vmul.f32 %v5145, %v5152
      %v5183 = vmul.f32 %v5146, %v5152
      %v5184 = vmul.f32 %v5147, %v5152
      %v5185 = vmul.f32 %v5148, %v5152
      %v5186 = vadd.f32 %v5085, %v5154
      %v5187 = vadd.f32 %v5086, %v5155
      %v5188 = vadd.f32 %v5087, %v5156
      %v5189 = vadd.f32 %v5088, %v5157
      %v5190 = vadd.f32 %v5089, %v5158
      %v5191 = vadd.f32 %v5090, %v5159
      %v5192 = vadd.f32 %v5091, %v5160
      %v5193 = vadd.f32 %v5092, %v5161
      %v5194 = vadd.f32 %v5093, %v5162
      %v5195 = vadd.f32 %v5094, %v5163
      %v5196 = vadd.f32 %v5095, %v5164
      %v5197 = vadd.f32 %v5096, %v5165
      %v5198 = vadd.f32 %v5097, %v5166
      %v5199 = vadd.f32 %v5098, %v5167
      %v5200 = vadd.f32 %v5099, %v5168
      %v5201 = vadd.f32 %v5100, %v5169
      %v5202 = vadd.f32 %v5101, %v5170
      %v5203 = vadd.f32 %v5102, %v5171
      %v5204 = vadd.f32 %v5103, %v5172
      %v5205 = vadd.f32 %v5104, %v5173
      %v5206 = vadd.f32 %v5105, %v5174
      %v5207 = vadd.f32 %v5106, %v5175
      %v5208 = vadd.f32 %v5107, %v5176
      %v5209 = vadd.f32 %v5108, %v5177
      %v5210 = vadd.f32 %v5109, %v5178
      %v5211 = vadd.f32 %v5110, %v5179
      %v5212 = vadd.f32 %v5111, %v5180
      %v5213 = vadd.f32 %v5112, %v5181
      %v5214 = vadd.f32 %v5113, %v5182
      %v5215 = vadd.f32 %v5114, %v5183
      %v5216 = vadd.f32 %v5115, %v5184
      %v5217 = vadd.f32 %v5116, %v5185
      %v5218 = vld [vmem:[%s5015 + $0x2] sm:$0xff]
      %v5219 = vld [vmem:[%s5015 + $0xa] sm:$0xff]
      %v5220 = vld [vmem:[%s5015 + $0x1a] sm:$0xff]
      %v5221 = vld [vmem:[%s5015 + $0x22] sm:$0xff]
      %v5222 = vld [vmem:[%s5015 + $0x32] sm:$0xff]
      %v5223 = vld [vmem:[%s5015 + $0x3a] sm:$0xff]
      %v5224 = vld [vmem:[%s5015 + $0x4a] sm:$0xff]
      %v5225 = vld [vmem:[%s5015 + $0x52] sm:$0xff]
      %v5226 = vld [vmem:[%s5015 + $0x62] sm:$0xff]
      %v5227 = vld [vmem:[%s5015 + $0x6a] sm:$0xff]
      %v5228 = vld [vmem:[%s5015 + $0x7a] sm:$0xff]
      %v5229 = vld [vmem:[%s5015 + $0x82] sm:$0xff]
      %v5230 = vld [vmem:[%s5015 + $0x92] sm:$0xff]
      %v5231 = vld [vmem:[%s5015 + $0x9a] sm:$0xff]
      %v5232 = vld [vmem:[%s5015 + $0xaa] sm:$0xff]
      %v5233 = vld [vmem:[%s5015 + $0xb2] sm:$0xff]
      %v5234 = vld [vmem:[%s5015 + $0xc2] sm:$0xff]
      %v5235 = vld [vmem:[%s5015 + $0xca] sm:$0xff]
      %v5236 = vld [vmem:[%s5015 + $0xda] sm:$0xff]
      %v5237 = vld [vmem:[%s5015 + $0xe2] sm:$0xff]
      %v5238 = vld [vmem:[%s5015 + $0xf2] sm:$0xff]
      %v5239 = vld [vmem:[%s5015 + $0xfa] sm:$0xff]
      %v5240 = vld [vmem:[%s5015 + $0x10a] sm:$0xff]
      %v5241 = vld [vmem:[%s5015 + $0x112] sm:$0xff]
      %v5242 = vld [vmem:[%s5015 + $0x122] sm:$0xff]
      %v5243 = vld [vmem:[%s5015 + $0x12a] sm:$0xff]
      %v5244 = vld [vmem:[%s5015 + $0x13a] sm:$0xff]
      %v5245 = vld [vmem:[%s5015 + $0x142] sm:$0xff]
      %v5246 = vld [vmem:[%s5015 + $0x152] sm:$0xff]
      %v5247 = vld [vmem:[%s5015 + $0x15a] sm:$0xff]
      %v5248 = vld [vmem:[%s5015 + $0x16a] sm:$0xff]
      %v5249 = vld [vmem:[%s5015 + $0x172] sm:$0xff]
      %s5250 = scalar_lea.vmem %s4, 44
      %v5251 = vld [vmem:[%s5250] sm:$0x1]
      %v5253 = vperm.slane %v5251, 0
      %v5255 = vmul.f32 %v5218, %v5253
      %v5256 = vmul.f32 %v5219, %v5253
      %v5257 = vmul.f32 %v5220, %v5253
      %v5258 = vmul.f32 %v5221, %v5253
      %v5259 = vmul.f32 %v5222, %v5253
      %v5260 = vmul.f32 %v5223, %v5253
      %v5261 = vmul.f32 %v5224, %v5253
      %v5262 = vmul.f32 %v5225, %v5253
      %v5263 = vmul.f32 %v5226, %v5253
      %v5264 = vmul.f32 %v5227, %v5253
      %v5265 = vmul.f32 %v5228, %v5253
      %v5266 = vmul.f32 %v5229, %v5253
      %v5267 = vmul.f32 %v5230, %v5253
      %v5268 = vmul.f32 %v5231, %v5253
      %v5269 = vmul.f32 %v5232, %v5253
      %v5270 = vmul.f32 %v5233, %v5253
      %v5271 = vmul.f32 %v5234, %v5253
      %v5272 = vmul.f32 %v5235, %v5253
      %v5273 = vmul.f32 %v5236, %v5253
      %v5274 = vmul.f32 %v5237, %v5253
      %v5275 = vmul.f32 %v5238, %v5253
      %v5276 = vmul.f32 %v5239, %v5253
      %v5277 = vmul.f32 %v5240, %v5253
      %v5278 = vmul.f32 %v5241, %v5253
      %v5279 = vmul.f32 %v5242, %v5253
      %v5280 = vmul.f32 %v5243, %v5253
      %v5281 = vmul.f32 %v5244, %v5253
      %v5282 = vmul.f32 %v5245, %v5253
      %v5283 = vmul.f32 %v5246, %v5253
      %v5284 = vmul.f32 %v5247, %v5253
      %v5285 = vmul.f32 %v5248, %v5253
      %v5286 = vmul.f32 %v5249, %v5253
      %v5287 = vadd.f32 %v5186, %v5255
      %v5288 = vadd.f32 %v5187, %v5256
      %v5289 = vadd.f32 %v5188, %v5257
      %v5290 = vadd.f32 %v5189, %v5258
      %v5291 = vadd.f32 %v5190, %v5259
      %v5292 = vadd.f32 %v5191, %v5260
      %v5293 = vadd.f32 %v5192, %v5261
      %v5294 = vadd.f32 %v5193, %v5262
      %v5295 = vadd.f32 %v5194, %v5263
      %v5296 = vadd.f32 %v5195, %v5264
      %v5297 = vadd.f32 %v5196, %v5265
      %v5298 = vadd.f32 %v5197, %v5266
      %v5299 = vadd.f32 %v5198, %v5267
      %v5300 = vadd.f32 %v5199, %v5268
      %v5301 = vadd.f32 %v5200, %v5269
      %v5302 = vadd.f32 %v5201, %v5270
      %v5303 = vadd.f32 %v5202, %v5271
      %v5304 = vadd.f32 %v5203, %v5272
      %v5305 = vadd.f32 %v5204, %v5273
      %v5306 = vadd.f32 %v5205, %v5274
      %v5307 = vadd.f32 %v5206, %v5275
      %v5308 = vadd.f32 %v5207, %v5276
      %v5309 = vadd.f32 %v5208, %v5277
      %v5310 = vadd.f32 %v5209, %v5278
      %v5311 = vadd.f32 %v5210, %v5279
      %v5312 = vadd.f32 %v5211, %v5280
      %v5313 = vadd.f32 %v5212, %v5281
      %v5314 = vadd.f32 %v5213, %v5282
      %v5315 = vadd.f32 %v5214, %v5283
      %v5316 = vadd.f32 %v5215, %v5284
      %v5317 = vadd.f32 %v5216, %v5285
      %v5318 = vadd.f32 %v5217, %v5286
      %v5319 = vld [vmem:[%s5015 + $0x3] sm:$0xff]
      %v5320 = vld [vmem:[%s5015 + $0xb] sm:$0xff]
      %v5321 = vld [vmem:[%s5015 + $0x1b] sm:$0xff]
      %v5322 = vld [vmem:[%s5015 + $0x23] sm:$0xff]
      %v5323 = vld [vmem:[%s5015 + $0x33] sm:$0xff]
      %v5324 = vld [vmem:[%s5015 + $0x3b] sm:$0xff]
      %v5325 = vld [vmem:[%s5015 + $0x4b] sm:$0xff]
      %v5326 = vld [vmem:[%s5015 + $0x53] sm:$0xff]
      %v5327 = vld [vmem:[%s5015 + $0x63] sm:$0xff]
      %v5328 = vld [vmem:[%s5015 + $0x6b] sm:$0xff]
      %v5329 = vld [vmem:[%s5015 + $0x7b] sm:$0xff]
      %v5330 = vld [vmem:[%s5015 + $0x83] sm:$0xff]
      %v5331 = vld [vmem:[%s5015 + $0x93] sm:$0xff]
      %v5332 = vld [vmem:[%s5015 + $0x9b] sm:$0xff]
      %v5333 = vld [vmem:[%s5015 + $0xab] sm:$0xff]
      %v5334 = vld [vmem:[%s5015 + $0xb3] sm:$0xff]
      %v5335 = vld [vmem:[%s5015 + $0xc3] sm:$0xff]
      %v5336 = vld [vmem:[%s5015 + $0xcb] sm:$0xff]
      %v5337 = vld [vmem:[%s5015 + $0xdb] sm:$0xff]
      %v5338 = vld [vmem:[%s5015 + $0xe3] sm:$0xff]
      %v5339 = vld [vmem:[%s5015 + $0xf3] sm:$0xff]
      %v5340 = vld [vmem:[%s5015 + $0xfb] sm:$0xff]
      %v5341 = vld [vmem:[%s5015 + $0x10b] sm:$0xff]
      %v5342 = vld [vmem:[%s5015 + $0x113] sm:$0xff]
      %v5343 = vld [vmem:[%s5015 + $0x123] sm:$0xff]
      %v5344 = vld [vmem:[%s5015 + $0x12b] sm:$0xff]
      %v5345 = vld [vmem:[%s5015 + $0x13b] sm:$0xff]
      %v5346 = vld [vmem:[%s5015 + $0x143] sm:$0xff]
      %v5347 = vld [vmem:[%s5015 + $0x153] sm:$0xff]
      %v5348 = vld [vmem:[%s5015 + $0x15b] sm:$0xff]
      %v5349 = vld [vmem:[%s5015 + $0x16b] sm:$0xff]
      %v5350 = vld [vmem:[%s5015 + $0x173] sm:$0xff]
      %s5351 = scalar_lea.vmem %s4, 45
      %v5352 = vld [vmem:[%s5351] sm:$0x1]
      %v5354 = vperm.slane %v5352, 0
      %v5356 = vmul.f32 %v5319, %v5354
      %v5357 = vmul.f32 %v5320, %v5354
      %v5358 = vmul.f32 %v5321, %v5354
      %v5359 = vmul.f32 %v5322, %v5354
      %v5360 = vmul.f32 %v5323, %v5354
      %v5361 = vmul.f32 %v5324, %v5354
      %v5362 = vmul.f32 %v5325, %v5354
      %v5363 = vmul.f32 %v5326, %v5354
      %v5364 = vmul.f32 %v5327, %v5354
      %v5365 = vmul.f32 %v5328, %v5354
      %v5366 = vmul.f32 %v5329, %v5354
      %v5367 = vmul.f32 %v5330, %v5354
      %v5368 = vmul.f32 %v5331, %v5354
      %v5369 = vmul.f32 %v5332, %v5354
      %v5370 = vmul.f32 %v5333, %v5354
      %v5371 = vmul.f32 %v5334, %v5354
      %v5372 = vmul.f32 %v5335, %v5354
      %v5373 = vmul.f32 %v5336, %v5354
      %v5374 = vmul.f32 %v5337, %v5354
      %v5375 = vmul.f32 %v5338, %v5354
      %v5376 = vmul.f32 %v5339, %v5354
      %v5377 = vmul.f32 %v5340, %v5354
      %v5378 = vmul.f32 %v5341, %v5354
      %v5379 = vmul.f32 %v5342, %v5354
      %v5380 = vmul.f32 %v5343, %v5354
      %v5381 = vmul.f32 %v5344, %v5354
      %v5382 = vmul.f32 %v5345, %v5354
      %v5383 = vmul.f32 %v5346, %v5354
      %v5384 = vmul.f32 %v5347, %v5354
      %v5385 = vmul.f32 %v5348, %v5354
      %v5386 = vmul.f32 %v5349, %v5354
      %v5387 = vmul.f32 %v5350, %v5354
      %v5388 = vadd.f32 %v5287, %v5356
      %v5389 = vadd.f32 %v5288, %v5357
      %v5390 = vadd.f32 %v5289, %v5358
      %v5391 = vadd.f32 %v5290, %v5359
      %v5392 = vadd.f32 %v5291, %v5360
      %v5393 = vadd.f32 %v5292, %v5361
      %v5394 = vadd.f32 %v5293, %v5362
      %v5395 = vadd.f32 %v5294, %v5363
      %v5396 = vadd.f32 %v5295, %v5364
      %v5397 = vadd.f32 %v5296, %v5365
      %v5398 = vadd.f32 %v5297, %v5366
      %v5399 = vadd.f32 %v5298, %v5367
      %v5400 = vadd.f32 %v5299, %v5368
      %v5401 = vadd.f32 %v5300, %v5369
      %v5402 = vadd.f32 %v5301, %v5370
      %v5403 = vadd.f32 %v5302, %v5371
      %v5404 = vadd.f32 %v5303, %v5372
      %v5405 = vadd.f32 %v5304, %v5373
      %v5406 = vadd.f32 %v5305, %v5374
      %v5407 = vadd.f32 %v5306, %v5375
      %v5408 = vadd.f32 %v5307, %v5376
      %v5409 = vadd.f32 %v5308, %v5377
      %v5410 = vadd.f32 %v5309, %v5378
      %v5411 = vadd.f32 %v5310, %v5379
      %v5412 = vadd.f32 %v5311, %v5380
      %v5413 = vadd.f32 %v5312, %v5381
      %v5414 = vadd.f32 %v5313, %v5382
      %v5415 = vadd.f32 %v5314, %v5383
      %v5416 = vadd.f32 %v5315, %v5384
      %v5417 = vadd.f32 %v5316, %v5385
      %v5418 = vadd.f32 %v5317, %v5386
      %v5419 = vadd.f32 %v5318, %v5387
      %v5420 = vld [vmem:[%s5015 + $0x4] sm:$0xff]
      %v5421 = vld [vmem:[%s5015 + $0xc] sm:$0xff]
      %v5422 = vld [vmem:[%s5015 + $0x1c] sm:$0xff]
      %v5423 = vld [vmem:[%s5015 + $0x24] sm:$0xff]
      %v5424 = vld [vmem:[%s5015 + $0x34] sm:$0xff]
      %v5425 = vld [vmem:[%s5015 + $0x3c] sm:$0xff]
      %v5426 = vld [vmem:[%s5015 + $0x4c] sm:$0xff]
      %v5427 = vld [vmem:[%s5015 + $0x54] sm:$0xff]
      %v5428 = vld [vmem:[%s5015 + $0x64] sm:$0xff]
      %v5429 = vld [vmem:[%s5015 + $0x6c] sm:$0xff]
      %v5430 = vld [vmem:[%s5015 + $0x7c] sm:$0xff]
      %v5431 = vld [vmem:[%s5015 + $0x84] sm:$0xff]
      %v5432 = vld [vmem:[%s5015 + $0x94] sm:$0xff]
      %v5433 = vld [vmem:[%s5015 + $0x9c] sm:$0xff]
      %v5434 = vld [vmem:[%s5015 + $0xac] sm:$0xff]
      %v5435 = vld [vmem:[%s5015 + $0xb4] sm:$0xff]
      %v5436 = vld [vmem:[%s5015 + $0xc4] sm:$0xff]
      %v5437 = vld [vmem:[%s5015 + $0xcc] sm:$0xff]
      %v5438 = vld [vmem:[%s5015 + $0xdc] sm:$0xff]
      %v5439 = vld [vmem:[%s5015 + $0xe4] sm:$0xff]
      %v5440 = vld [vmem:[%s5015 + $0xf4] sm:$0xff]
      %v5441 = vld [vmem:[%s5015 + $0xfc] sm:$0xff]
      %v5442 = vld [vmem:[%s5015 + $0x10c] sm:$0xff]
      %v5443 = vld [vmem:[%s5015 + $0x114] sm:$0xff]
      %v5444 = vld [vmem:[%s5015 + $0x124] sm:$0xff]
      %v5445 = vld [vmem:[%s5015 + $0x12c] sm:$0xff]
      %v5446 = vld [vmem:[%s5015 + $0x13c] sm:$0xff]
      %v5447 = vld [vmem:[%s5015 + $0x144] sm:$0xff]
      %v5448 = vld [vmem:[%s5015 + $0x154] sm:$0xff]
      %v5449 = vld [vmem:[%s5015 + $0x15c] sm:$0xff]
      %v5450 = vld [vmem:[%s5015 + $0x16c] sm:$0xff]
      %v5451 = vld [vmem:[%s5015 + $0x174] sm:$0xff]
      %s5452 = scalar_lea.vmem %s4, 46
      %v5453 = vld [vmem:[%s5452] sm:$0x1]
      %v5455 = vperm.slane %v5453, 0
      %v5457 = vmul.f32 %v5420, %v5455
      %v5458 = vmul.f32 %v5421, %v5455
      %v5459 = vmul.f32 %v5422, %v5455
      %v5460 = vmul.f32 %v5423, %v5455
      %v5461 = vmul.f32 %v5424, %v5455
      %v5462 = vmul.f32 %v5425, %v5455
      %v5463 = vmul.f32 %v5426, %v5455
      %v5464 = vmul.f32 %v5427, %v5455
      %v5465 = vmul.f32 %v5428, %v5455
      %v5466 = vmul.f32 %v5429, %v5455
      %v5467 = vmul.f32 %v5430, %v5455
      %v5468 = vmul.f32 %v5431, %v5455
      %v5469 = vmul.f32 %v5432, %v5455
      %v5470 = vmul.f32 %v5433, %v5455
      %v5471 = vmul.f32 %v5434, %v5455
      %v5472 = vmul.f32 %v5435, %v5455
      %v5473 = vmul.f32 %v5436, %v5455
      %v5474 = vmul.f32 %v5437, %v5455
      %v5475 = vmul.f32 %v5438, %v5455
      %v5476 = vmul.f32 %v5439, %v5455
      %v5477 = vmul.f32 %v5440, %v5455
      %v5478 = vmul.f32 %v5441, %v5455
      %v5479 = vmul.f32 %v5442, %v5455
      %v5480 = vmul.f32 %v5443, %v5455
      %v5481 = vmul.f32 %v5444, %v5455
      %v5482 = vmul.f32 %v5445, %v5455
      %v5483 = vmul.f32 %v5446, %v5455
      %v5484 = vmul.f32 %v5447, %v5455
      %v5485 = vmul.f32 %v5448, %v5455
      %v5486 = vmul.f32 %v5449, %v5455
      %v5487 = vmul.f32 %v5450, %v5455
      %v5488 = vmul.f32 %v5451, %v5455
      %v5489 = vadd.f32 %v5388, %v5457
      %v5490 = vadd.f32 %v5389, %v5458
      %v5491 = vadd.f32 %v5390, %v5459
      %v5492 = vadd.f32 %v5391, %v5460
      %v5493 = vadd.f32 %v5392, %v5461
      %v5494 = vadd.f32 %v5393, %v5462
      %v5495 = vadd.f32 %v5394, %v5463
      %v5496 = vadd.f32 %v5395, %v5464
      %v5497 = vadd.f32 %v5396, %v5465
      %v5498 = vadd.f32 %v5397, %v5466
      %v5499 = vadd.f32 %v5398, %v5467
      %v5500 = vadd.f32 %v5399, %v5468
      %v5501 = vadd.f32 %v5400, %v5469
      %v5502 = vadd.f32 %v5401, %v5470
      %v5503 = vadd.f32 %v5402, %v5471
      %v5504 = vadd.f32 %v5403, %v5472
      %v5505 = vadd.f32 %v5404, %v5473
      %v5506 = vadd.f32 %v5405, %v5474
      %v5507 = vadd.f32 %v5406, %v5475
      %v5508 = vadd.f32 %v5407, %v5476
      %v5509 = vadd.f32 %v5408, %v5477
      %v5510 = vadd.f32 %v5409, %v5478
      %v5511 = vadd.f32 %v5410, %v5479
      %v5512 = vadd.f32 %v5411, %v5480
      %v5513 = vadd.f32 %v5412, %v5481
      %v5514 = vadd.f32 %v5413, %v5482
      %v5515 = vadd.f32 %v5414, %v5483
      %v5516 = vadd.f32 %v5415, %v5484
      %v5517 = vadd.f32 %v5416, %v5485
      %v5518 = vadd.f32 %v5417, %v5486
      %v5519 = vadd.f32 %v5418, %v5487
      %v5520 = vadd.f32 %v5419, %v5488
      %v5521 = vld [vmem:[%s5015 + $0x5] sm:$0xff]
      %v5522 = vld [vmem:[%s5015 + $0xd] sm:$0xff]
      %v5523 = vld [vmem:[%s5015 + $0x1d] sm:$0xff]
      %v5524 = vld [vmem:[%s5015 + $0x25] sm:$0xff]
      %v5525 = vld [vmem:[%s5015 + $0x35] sm:$0xff]
      %v5526 = vld [vmem:[%s5015 + $0x3d] sm:$0xff]
      %v5527 = vld [vmem:[%s5015 + $0x4d] sm:$0xff]
      %v5528 = vld [vmem:[%s5015 + $0x55] sm:$0xff]
      %v5529 = vld [vmem:[%s5015 + $0x65] sm:$0xff]
      %v5530 = vld [vmem:[%s5015 + $0x6d] sm:$0xff]
      %v5531 = vld [vmem:[%s5015 + $0x7d] sm:$0xff]
      %v5532 = vld [vmem:[%s5015 + $0x85] sm:$0xff]
      %v5533 = vld [vmem:[%s5015 + $0x95] sm:$0xff]
      %v5534 = vld [vmem:[%s5015 + $0x9d] sm:$0xff]
      %v5535 = vld [vmem:[%s5015 + $0xad] sm:$0xff]
      %v5536 = vld [vmem:[%s5015 + $0xb5] sm:$0xff]
      %v5537 = vld [vmem:[%s5015 + $0xc5] sm:$0xff]
      %v5538 = vld [vmem:[%s5015 + $0xcd] sm:$0xff]
      %v5539 = vld [vmem:[%s5015 + $0xdd] sm:$0xff]
      %v5540 = vld [vmem:[%s5015 + $0xe5] sm:$0xff]
      %v5541 = vld [vmem:[%s5015 + $0xf5] sm:$0xff]
      %v5542 = vld [vmem:[%s5015 + $0xfd] sm:$0xff]
      %v5543 = vld [vmem:[%s5015 + $0x10d] sm:$0xff]
      %v5544 = vld [vmem:[%s5015 + $0x115] sm:$0xff]
      %v5545 = vld [vmem:[%s5015 + $0x125] sm:$0xff]
      %v5546 = vld [vmem:[%s5015 + $0x12d] sm:$0xff]
      %v5547 = vld [vmem:[%s5015 + $0x13d] sm:$0xff]
      %v5548 = vld [vmem:[%s5015 + $0x145] sm:$0xff]
      %v5549 = vld [vmem:[%s5015 + $0x155] sm:$0xff]
      %v5550 = vld [vmem:[%s5015 + $0x15d] sm:$0xff]
      %v5551 = vld [vmem:[%s5015 + $0x16d] sm:$0xff]
      %v5552 = vld [vmem:[%s5015 + $0x175] sm:$0xff]
      %s5553 = scalar_lea.vmem %s4, 47
      %v5554 = vld [vmem:[%s5553] sm:$0x1]
      %v5556 = vperm.slane %v5554, 0
      %v5558 = vmul.f32 %v5521, %v5556
      %v5559 = vmul.f32 %v5522, %v5556
      %v5560 = vmul.f32 %v5523, %v5556
      %v5561 = vmul.f32 %v5524, %v5556
      %v5562 = vmul.f32 %v5525, %v5556
      %v5563 = vmul.f32 %v5526, %v5556
      %v5564 = vmul.f32 %v5527, %v5556
      %v5565 = vmul.f32 %v5528, %v5556
      %v5566 = vmul.f32 %v5529, %v5556
      %v5567 = vmul.f32 %v5530, %v5556
      %v5568 = vmul.f32 %v5531, %v5556
      %v5569 = vmul.f32 %v5532, %v5556
      %v5570 = vmul.f32 %v5533, %v5556
      %v5571 = vmul.f32 %v5534, %v5556
      %v5572 = vmul.f32 %v5535, %v5556
      %v5573 = vmul.f32 %v5536, %v5556
      %v5574 = vmul.f32 %v5537, %v5556
      %v5575 = vmul.f32 %v5538, %v5556
      %v5576 = vmul.f32 %v5539, %v5556
      %v5577 = vmul.f32 %v5540, %v5556
      %v5578 = vmul.f32 %v5541, %v5556
      %v5579 = vmul.f32 %v5542, %v5556
      %v5580 = vmul.f32 %v5543, %v5556
      %v5581 = vmul.f32 %v5544, %v5556
      %v5582 = vmul.f32 %v5545, %v5556
      %v5583 = vmul.f32 %v5546, %v5556
      %v5584 = vmul.f32 %v5547, %v5556
      %v5585 = vmul.f32 %v5548, %v5556
      %v5586 = vmul.f32 %v5549, %v5556
      %v5587 = vmul.f32 %v5550, %v5556
      %v5588 = vmul.f32 %v5551, %v5556
      %v5589 = vmul.f32 %v5552, %v5556
      %v5590 = vadd.f32 %v5489, %v5558
      %v5591 = vadd.f32 %v5490, %v5559
      %v5592 = vadd.f32 %v5491, %v5560
      %v5593 = vadd.f32 %v5492, %v5561
      %v5594 = vadd.f32 %v5493, %v5562
      %v5595 = vadd.f32 %v5494, %v5563
      %v5596 = vadd.f32 %v5495, %v5564
      %v5597 = vadd.f32 %v5496, %v5565
      %v5598 = vadd.f32 %v5497, %v5566
      %v5599 = vadd.f32 %v5498, %v5567
      %v5600 = vadd.f32 %v5499, %v5568
      %v5601 = vadd.f32 %v5500, %v5569
      %v5602 = vadd.f32 %v5501, %v5570
      %v5603 = vadd.f32 %v5502, %v5571
      %v5604 = vadd.f32 %v5503, %v5572
      %v5605 = vadd.f32 %v5504, %v5573
      %v5606 = vadd.f32 %v5505, %v5574
      %v5607 = vadd.f32 %v5506, %v5575
      %v5608 = vadd.f32 %v5507, %v5576
      %v5609 = vadd.f32 %v5508, %v5577
      %v5610 = vadd.f32 %v5509, %v5578
      %v5611 = vadd.f32 %v5510, %v5579
      %v5612 = vadd.f32 %v5511, %v5580
      %v5613 = vadd.f32 %v5512, %v5581
      %v5614 = vadd.f32 %v5513, %v5582
      %v5615 = vadd.f32 %v5514, %v5583
      %v5616 = vadd.f32 %v5515, %v5584
      %v5617 = vadd.f32 %v5516, %v5585
      %v5618 = vadd.f32 %v5517, %v5586
      %v5619 = vadd.f32 %v5518, %v5587
      %v5620 = vadd.f32 %v5519, %v5588
      %v5621 = vadd.f32 %v5520, %v5589
      %v5622 = vld [vmem:[%s5015 + $0x6] sm:$0xff]
      %v5623 = vld [vmem:[%s5015 + $0xe] sm:$0xff]
      %v5624 = vld [vmem:[%s5015 + $0x1e] sm:$0xff]
      %v5625 = vld [vmem:[%s5015 + $0x26] sm:$0xff]
      %v5626 = vld [vmem:[%s5015 + $0x36] sm:$0xff]
      %v5627 = vld [vmem:[%s5015 + $0x3e] sm:$0xff]
      %v5628 = vld [vmem:[%s5015 + $0x4e] sm:$0xff]
      %v5629 = vld [vmem:[%s5015 + $0x56] sm:$0xff]
      %v5630 = vld [vmem:[%s5015 + $0x66] sm:$0xff]
      %v5631 = vld [vmem:[%s5015 + $0x6e] sm:$0xff]
      %v5632 = vld [vmem:[%s5015 + $0x7e] sm:$0xff]
      %v5633 = vld [vmem:[%s5015 + $0x86] sm:$0xff]
      %v5634 = vld [vmem:[%s5015 + $0x96] sm:$0xff]
      %v5635 = vld [vmem:[%s5015 + $0x9e] sm:$0xff]
      %v5636 = vld [vmem:[%s5015 + $0xae] sm:$0xff]
      %v5637 = vld [vmem:[%s5015 + $0xb6] sm:$0xff]
      %v5638 = vld [vmem:[%s5015 + $0xc6] sm:$0xff]
      %v5639 = vld [vmem:[%s5015 + $0xce] sm:$0xff]
      %v5640 = vld [vmem:[%s5015 + $0xde] sm:$0xff]
      %v5641 = vld [vmem:[%s5015 + $0xe6] sm:$0xff]
      %v5642 = vld [vmem:[%s5015 + $0xf6] sm:$0xff]
      %v5643 = vld [vmem:[%s5015 + $0xfe] sm:$0xff]
      %v5644 = vld [vmem:[%s5015 + $0x10e] sm:$0xff]
      %v5645 = vld [vmem:[%s5015 + $0x116] sm:$0xff]
      %v5646 = vld [vmem:[%s5015 + $0x126] sm:$0xff]
      %v5647 = vld [vmem:[%s5015 + $0x12e] sm:$0xff]
      %v5648 = vld [vmem:[%s5015 + $0x13e] sm:$0xff]
      %v5649 = vld [vmem:[%s5015 + $0x146] sm:$0xff]
      %v5650 = vld [vmem:[%s5015 + $0x156] sm:$0xff]
      %v5651 = vld [vmem:[%s5015 + $0x15e] sm:$0xff]
      %v5652 = vld [vmem:[%s5015 + $0x16e] sm:$0xff]
      %v5653 = vld [vmem:[%s5015 + $0x176] sm:$0xff]
      %s5654 = scalar_lea.vmem %s4, 48
      %v5655 = vld [vmem:[%s5654] sm:$0x1]
      %v5657 = vperm.slane %v5655, 0
      %v5659 = vmul.f32 %v5622, %v5657
      %v5660 = vmul.f32 %v5623, %v5657
      %v5661 = vmul.f32 %v5624, %v5657
      %v5662 = vmul.f32 %v5625, %v5657
      %v5663 = vmul.f32 %v5626, %v5657
      %v5664 = vmul.f32 %v5627, %v5657
      %v5665 = vmul.f32 %v5628, %v5657
      %v5666 = vmul.f32 %v5629, %v5657
      %v5667 = vmul.f32 %v5630, %v5657
      %v5668 = vmul.f32 %v5631, %v5657
      %v5669 = vmul.f32 %v5632, %v5657
      %v5670 = vmul.f32 %v5633, %v5657
      %v5671 = vmul.f32 %v5634, %v5657
      %v5672 = vmul.f32 %v5635, %v5657
      %v5673 = vmul.f32 %v5636, %v5657
      %v5674 = vmul.f32 %v5637, %v5657
      %v5675 = vmul.f32 %v5638, %v5657
      %v5676 = vmul.f32 %v5639, %v5657
      %v5677 = vmul.f32 %v5640, %v5657
      %v5678 = vmul.f32 %v5641, %v5657
      %v5679 = vmul.f32 %v5642, %v5657
      %v5680 = vmul.f32 %v5643, %v5657
      %v5681 = vmul.f32 %v5644, %v5657
      %v5682 = vmul.f32 %v5645, %v5657
      %v5683 = vmul.f32 %v5646, %v5657
      %v5684 = vmul.f32 %v5647, %v5657
      %v5685 = vmul.f32 %v5648, %v5657
      %v5686 = vmul.f32 %v5649, %v5657
      %v5687 = vmul.f32 %v5650, %v5657
      %v5688 = vmul.f32 %v5651, %v5657
      %v5689 = vmul.f32 %v5652, %v5657
      %v5690 = vmul.f32 %v5653, %v5657
      %v5691 = vadd.f32 %v5590, %v5659
      %v5692 = vadd.f32 %v5591, %v5660
      %v5693 = vadd.f32 %v5592, %v5661
      %v5694 = vadd.f32 %v5593, %v5662
      %v5695 = vadd.f32 %v5594, %v5663
      %v5696 = vadd.f32 %v5595, %v5664
      %v5697 = vadd.f32 %v5596, %v5665
      %v5698 = vadd.f32 %v5597, %v5666
      %v5699 = vadd.f32 %v5598, %v5667
      %v5700 = vadd.f32 %v5599, %v5668
      %v5701 = vadd.f32 %v5600, %v5669
      %v5702 = vadd.f32 %v5601, %v5670
      %v5703 = vadd.f32 %v5602, %v5671
      %v5704 = vadd.f32 %v5603, %v5672
      %v5705 = vadd.f32 %v5604, %v5673
      %v5706 = vadd.f32 %v5605, %v5674
      %v5707 = vadd.f32 %v5606, %v5675
      %v5708 = vadd.f32 %v5607, %v5676
      %v5709 = vadd.f32 %v5608, %v5677
      %v5710 = vadd.f32 %v5609, %v5678
      %v5711 = vadd.f32 %v5610, %v5679
      %v5712 = vadd.f32 %v5611, %v5680
      %v5713 = vadd.f32 %v5612, %v5681
      %v5714 = vadd.f32 %v5613, %v5682
      %v5715 = vadd.f32 %v5614, %v5683
      %v5716 = vadd.f32 %v5615, %v5684
      %v5717 = vadd.f32 %v5616, %v5685
      %v5718 = vadd.f32 %v5617, %v5686
      %v5719 = vadd.f32 %v5618, %v5687
      %v5720 = vadd.f32 %v5619, %v5688
      %v5721 = vadd.f32 %v5620, %v5689
      %v5722 = vadd.f32 %v5621, %v5690
      %v5723 = vld [vmem:[%s5] sm:$0x1]
      %v5725 = vperm.slane %v5723, 0
      %v5727 = vadd.f32 %v5691, %v5725
      %v5728 = vadd.f32 %v5692, %v5725
      %v5729 = vadd.f32 %v5693, %v5725
      %v5730 = vadd.f32 %v5694, %v5725
      %v5731 = vadd.f32 %v5695, %v5725
      %v5732 = vadd.f32 %v5696, %v5725
      %v5733 = vadd.f32 %v5697, %v5725
      %v5734 = vadd.f32 %v5698, %v5725
      %v5735 = vadd.f32 %v5699, %v5725
      %v5736 = vadd.f32 %v5700, %v5725
      %v5737 = vadd.f32 %v5701, %v5725
      %v5738 = vadd.f32 %v5702, %v5725
      %v5739 = vadd.f32 %v5703, %v5725
      %v5740 = vadd.f32 %v5704, %v5725
      %v5741 = vadd.f32 %v5705, %v5725
      %v5742 = vadd.f32 %v5706, %v5725
      %v5743 = vadd.f32 %v5707, %v5725
      %v5744 = vadd.f32 %v5708, %v5725
      %v5745 = vadd.f32 %v5709, %v5725
      %v5746 = vadd.f32 %v5710, %v5725
      %v5747 = vadd.f32 %v5711, %v5725
      %v5748 = vadd.f32 %v5712, %v5725
      %v5749 = vadd.f32 %v5713, %v5725
      %v5750 = vadd.f32 %v5714, %v5725
      %v5751 = vadd.f32 %v5715, %v5725
      %v5752 = vadd.f32 %v5716, %v5725
      %v5753 = vadd.f32 %v5717, %v5725
      %v5754 = vadd.f32 %v5718, %v5725
      %v5755 = vadd.f32 %v5719, %v5725
      %v5756 = vadd.f32 %v5720, %v5725
      %v5757 = vadd.f32 %v5721, %v5725
      %v5758 = vadd.f32 %v5722, %v5725
      %v5759 = vld [vmem:[%s6] sm:$0x3]
      %v5761 = vsel %vm333, %v5727, 0
      %v5764 = vsel %vm333, %v5728, 0
      %v5767 = vsel %vm333, %v5729, 0
      %v5770 = vsel %vm333, %v5730, 0
      %v5773 = vsel %vm333, %v5731, 0
      %v5776 = vsel %vm333, %v5732, 0
      %v5779 = vsel %vm333, %v5733, 0
      %v5782 = vsel %vm333, %v5734, 0
      %v5785 = vsel %vm333, %v5735, 0
      %v5788 = vsel %vm333, %v5736, 0
      %v5791 = vsel %vm333, %v5737, 0
      %v5794 = vsel %vm333, %v5738, 0
      %v5797 = vsel %vm333, %v5739, 0
      %v5800 = vsel %vm333, %v5740, 0
      %v5803 = vsel %vm333, %v5741, 0
      %v5806 = vsel %vm333, %v5742, 0
      %v5809 = vsel %vm333, %v5743, 0
      %v5812 = vsel %vm333, %v5744, 0
      %v5815 = vsel %vm333, %v5745, 0
      %v5818 = vsel %vm333, %v5746, 0
      %v5821 = vsel %vm333, %v5747, 0
      %v5824 = vsel %vm333, %v5748, 0
      %v5827 = vsel %vm333, %v5749, 0
      %v5830 = vsel %vm333, %v5750, 0
      %v5833 = vsel %vm333, %v5751, 0
      %v5836 = vsel %vm333, %v5752, 0
      %v5839 = vsel %vm333, %v5753, 0
      %v5842 = vsel %vm333, %v5754, 0
      %v5845 = vsel %vm333, %v5755, 0
      %v5848 = vsel %vm333, %v5756, 0
      %v5851 = vsel %vm333, %v5757, 0
      %v5854 = vsel %vm333, %v5758, 0
      %v5857 = vsel %vm517, %v5759, 0
      %5859 = vmatpush.msra.mxu0 0.0
      %5860 = vmatpush.msra.mxu0 0.0
      %5861 = vmatpush.msra.mxu0 0.0
      %5862 = vmatpush.msra.mxu0 0.0
      %5863 = vmatpush.msra.mxu0 0.0
      %5864 = vmatpush.msra.mxu0 0.0
      %5865 = vmatpush.msra.mxu0 0.0
      %5866 = vmatpush.msra.mxu0 0.0
      %5867 = vmatpush.msra.mxu0 0.0
      %5868 = vmatpush.msra.mxu0 0.0
      %5869 = vmatpush.msra.mxu0 0.0
      %5870 = vmatpush.msra.mxu0 0.0
      %5871 = vmatpush.msra.mxu0 0.0
      %5872 = vmatpush.msra.mxu0 0.0
      %5873 = vmatpush.msra.mxu0 0.0
      %5874 = vmatpush.msra.mxu0 %v5857
      %5875 = vmatmul.f32.gmra.mxu0 %v5761
      %v5876 = vpop.f32.mrf.mxu0
      %v5877 = vadd.f32 0.0, %v5876
      %5878 = vmatmul.f32.gmra.mxu0 %v5764
      %v5879 = vpop.f32.mrf.mxu0
      %v5880 = vadd.f32 0.0, %v5879
      %5881 = vmatmul.f32.gmra.mxu0 %v5767
      %v5882 = vpop.f32.mrf.mxu0
      %v5883 = vadd.f32 0.0, %v5882
      %5884 = vmatmul.f32.gmra.mxu0 %v5770
      %v5885 = vpop.f32.mrf.mxu0
      %v5886 = vadd.f32 0.0, %v5885
      %5887 = vmatmul.f32.gmra.mxu0 %v5773
      %v5888 = vpop.f32.mrf.mxu0
      %v5889 = vadd.f32 0.0, %v5888
      %5890 = vmatmul.f32.gmra.mxu0 %v5776
      %v5891 = vpop.f32.mrf.mxu0
      %v5892 = vadd.f32 0.0, %v5891
      %5893 = vmatmul.f32.gmra.mxu0 %v5779
      %v5894 = vpop.f32.mrf.mxu0
      %v5895 = vadd.f32 0.0, %v5894
      %5896 = vmatmul.f32.gmra.mxu0 %v5782
      %v5897 = vpop.f32.mrf.mxu0
      %v5898 = vadd.f32 0.0, %v5897
      %5899 = vmatmul.f32.gmra.mxu0 %v5785
      %v5900 = vpop.f32.mrf.mxu0
      %v5901 = vadd.f32 0.0, %v5900
      %5902 = vmatmul.f32.gmra.mxu0 %v5788
      %v5903 = vpop.f32.mrf.mxu0
      %v5904 = vadd.f32 0.0, %v5903
      %5905 = vmatmul.f32.gmra.mxu0 %v5791
      %v5906 = vpop.f32.mrf.mxu0
      %v5907 = vadd.f32 0.0, %v5906
      %5908 = vmatmul.f32.gmra.mxu0 %v5794
      %v5909 = vpop.f32.mrf.mxu0
      %v5910 = vadd.f32 0.0, %v5909
      %5911 = vmatmul.f32.gmra.mxu0 %v5797
      %v5912 = vpop.f32.mrf.mxu0
      %v5913 = vadd.f32 0.0, %v5912
      %5914 = vmatmul.f32.gmra.mxu0 %v5800
      %v5915 = vpop.f32.mrf.mxu0
      %v5916 = vadd.f32 0.0, %v5915
      %5917 = vmatmul.f32.gmra.mxu0 %v5803
      %v5918 = vpop.f32.mrf.mxu0
      %v5919 = vadd.f32 0.0, %v5918
      %5920 = vmatmul.f32.gmra.mxu0 %v5806
      %v5921 = vpop.f32.mrf.mxu0
      %v5922 = vadd.f32 0.0, %v5921
      %5923 = vmatmul.f32.gmra.mxu0 %v5809
      %v5924 = vpop.f32.mrf.mxu0
      %v5925 = vadd.f32 0.0, %v5924
      %5926 = vmatmul.f32.gmra.mxu0 %v5812
      %v5927 = vpop.f32.mrf.mxu0
      %v5928 = vadd.f32 0.0, %v5927
      %5929 = vmatmul.f32.gmra.mxu0 %v5815
      %v5930 = vpop.f32.mrf.mxu0
      %v5931 = vadd.f32 0.0, %v5930
      %5932 = vmatmul.f32.gmra.mxu0 %v5818
      %v5933 = vpop.f32.mrf.mxu0
      %v5934 = vadd.f32 0.0, %v5933
      %5935 = vmatmul.f32.gmra.mxu0 %v5821
      %v5936 = vpop.f32.mrf.mxu0
      %v5937 = vadd.f32 0.0, %v5936
      %5938 = vmatmul.f32.gmra.mxu0 %v5824
      %v5939 = vpop.f32.mrf.mxu0
      %v5940 = vadd.f32 0.0, %v5939
      %5941 = vmatmul.f32.gmra.mxu0 %v5827
      %v5942 = vpop.f32.mrf.mxu0
      %v5943 = vadd.f32 0.0, %v5942
      %5944 = vmatmul.f32.gmra.mxu0 %v5830
      %v5945 = vpop.f32.mrf.mxu0
      %v5946 = vadd.f32 0.0, %v5945
      %5947 = vmatmul.f32.gmra.mxu0 %v5833
      %v5948 = vpop.f32.mrf.mxu0
      %v5949 = vadd.f32 0.0, %v5948
      %5950 = vmatmul.f32.gmra.mxu0 %v5836
      %v5951 = vpop.f32.mrf.mxu0
      %v5952 = vadd.f32 0.0, %v5951
      %5953 = vmatmul.f32.gmra.mxu0 %v5839
      %v5954 = vpop.f32.mrf.mxu0
      %v5955 = vadd.f32 0.0, %v5954
      %5956 = vmatmul.f32.gmra.mxu0 %v5842
      %v5957 = vpop.f32.mrf.mxu0
      %v5958 = vadd.f32 0.0, %v5957
      %5959 = vmatmul.f32.gmra.mxu0 %v5845
      %v5960 = vpop.f32.mrf.mxu0
      %v5961 = vadd.f32 0.0, %v5960
      %5962 = vmatmul.f32.gmra.mxu0 %v5848
      %v5963 = vpop.f32.mrf.mxu0
      %v5964 = vadd.f32 0.0, %v5963
      %5965 = vmatmul.f32.gmra.mxu0 %v5851
      %v5966 = vpop.f32.mrf.mxu0
      %v5967 = vadd.f32 0.0, %v5966
      %5968 = vmatmul.f32.gmra.mxu0 %v5854
      %v5969 = vpop.f32.mrf.mxu0
      %v5970 = vadd.f32 0.0, %v5969
      %5971 = vdwg.mxu0
      %v5972 = vld [vmem:[%s7] sm:$0x1]
      %v5974 = vperm.slane %v5972, 0
      %v5976 = vmul.f32 %v5877, %v5974
      %v5977 = vmul.f32 %v5880, %v5974
      %v5978 = vmul.f32 %v5883, %v5974
      %v5979 = vmul.f32 %v5886, %v5974
      %v5980 = vmul.f32 %v5889, %v5974
      %v5981 = vmul.f32 %v5892, %v5974
      %v5982 = vmul.f32 %v5895, %v5974
      %v5983 = vmul.f32 %v5898, %v5974
      %v5984 = vmul.f32 %v5901, %v5974
      %v5985 = vmul.f32 %v5904, %v5974
      %v5986 = vmul.f32 %v5907, %v5974
      %v5987 = vmul.f32 %v5910, %v5974
      %v5988 = vmul.f32 %v5913, %v5974
      %v5989 = vmul.f32 %v5916, %v5974
      %v5990 = vmul.f32 %v5919, %v5974
      %v5991 = vmul.f32 %v5922, %v5974
      %v5992 = vmul.f32 %v5925, %v5974
      %v5993 = vmul.f32 %v5928, %v5974
      %v5994 = vmul.f32 %v5931, %v5974
      %v5995 = vmul.f32 %v5934, %v5974
      %v5996 = vmul.f32 %v5937, %v5974
      %v5997 = vmul.f32 %v5940, %v5974
      %v5998 = vmul.f32 %v5943, %v5974
      %v5999 = vmul.f32 %v5946, %v5974
      %v6000 = vmul.f32 %v5949, %v5974
      %v6001 = vmul.f32 %v5952, %v5974
      %v6002 = vmul.f32 %v5955, %v5974
      %v6003 = vmul.f32 %v5958, %v5974
      %v6004 = vmul.f32 %v5961, %v5974
      %v6005 = vmul.f32 %v5964, %v5974
      %v6006 = vmul.f32 %v5967, %v5974
      %v6007 = vmul.f32 %v5970, %v5974
      %v6008 = vld [vmem:[%s8] sm:$0x1]
      %v6010 = vperm.slane %v6008, 0
      %v6012 = vadd.f32 %v5976, %v6010
      %v6013 = vadd.f32 %v5977, %v6010
      %v6014 = vadd.f32 %v5978, %v6010
      %v6015 = vadd.f32 %v5979, %v6010
      %v6016 = vadd.f32 %v5980, %v6010
      %v6017 = vadd.f32 %v5981, %v6010
      %v6018 = vadd.f32 %v5982, %v6010
      %v6019 = vadd.f32 %v5983, %v6010
      %v6020 = vadd.f32 %v5984, %v6010
      %v6021 = vadd.f32 %v5985, %v6010
      %v6022 = vadd.f32 %v5986, %v6010
      %v6023 = vadd.f32 %v5987, %v6010
      %v6024 = vadd.f32 %v5988, %v6010
      %v6025 = vadd.f32 %v5989, %v6010
      %v6026 = vadd.f32 %v5990, %v6010
      %v6027 = vadd.f32 %v5991, %v6010
      %v6028 = vadd.f32 %v5992, %v6010
      %v6029 = vadd.f32 %v5993, %v6010
      %v6030 = vadd.f32 %v5994, %v6010
      %v6031 = vadd.f32 %v5995, %v6010
      %v6032 = vadd.f32 %v5996, %v6010
      %v6033 = vadd.f32 %v5997, %v6010
      %v6034 = vadd.f32 %v5998, %v6010
      %v6035 = vadd.f32 %v5999, %v6010
      %v6036 = vadd.f32 %v6000, %v6010
      %v6037 = vadd.f32 %v6001, %v6010
      %v6038 = vadd.f32 %v6002, %v6010
      %v6039 = vadd.f32 %v6003, %v6010
      %v6040 = vadd.f32 %v6004, %v6010
      %v6041 = vadd.f32 %v6005, %v6010
      %v6042 = vadd.f32 %v6006, %v6010
      %v6043 = vadd.f32 %v6007, %v6010
      %v6044 = vmax.f32 %v6012, 0.0
      %v6045 = vmax.f32 %v6013, 0.0
      %v6046 = vmax.f32 %v6014, 0.0
      %v6047 = vmax.f32 %v6015, 0.0
      %v6048 = vmax.f32 %v6016, 0.0
      %v6049 = vmax.f32 %v6017, 0.0
      %v6050 = vmax.f32 %v6018, 0.0
      %v6051 = vmax.f32 %v6019, 0.0
      %v6052 = vmax.f32 %v6020, 0.0
      %v6053 = vmax.f32 %v6021, 0.0
      %v6054 = vmax.f32 %v6022, 0.0
      %v6055 = vmax.f32 %v6023, 0.0
      %v6056 = vmax.f32 %v6024, 0.0
      %v6057 = vmax.f32 %v6025, 0.0
      %v6058 = vmax.f32 %v6026, 0.0
      %v6059 = vmax.f32 %v6027, 0.0
      %v6060 = vmax.f32 %v6028, 0.0
      %v6061 = vmax.f32 %v6029, 0.0
      %v6062 = vmax.f32 %v6030, 0.0
      %v6063 = vmax.f32 %v6031, 0.0
      %v6064 = vmax.f32 %v6032, 0.0
      %v6065 = vmax.f32 %v6033, 0.0
      %v6066 = vmax.f32 %v6034, 0.0
      %v6067 = vmax.f32 %v6035, 0.0
      %v6068 = vmax.f32 %v6036, 0.0
      %v6069 = vmax.f32 %v6037, 0.0
      %v6070 = vmax.f32 %v6038, 0.0
      %v6071 = vmax.f32 %v6039, 0.0
      %v6072 = vmax.f32 %v6040, 0.0
      %v6073 = vmax.f32 %v6041, 0.0
      %v6074 = vmax.f32 %v6042, 0.0
      %v6075 = vmax.f32 %v6043, 0.0
      %6076 = vst.msk [vmem:[%s332] sm:$0xff] %vm333, %v6044
      %6077 = vst.msk [vmem:[%s332 + $0x8] sm:$0xff] %vm333, %v6045
      %6078 = vst.msk [vmem:[%s332 + $0x10] sm:$0xff] %vm333, %v6046
      %6079 = vst.msk [vmem:[%s332 + $0x18] sm:$0xff] %vm333, %v6047
      %6080 = vst.msk [vmem:[%s332 + $0x20] sm:$0xff] %vm333, %v6048
      %6081 = vst.msk [vmem:[%s332 + $0x28] sm:$0xff] %vm333, %v6049
      %6082 = vst.msk [vmem:[%s332 + $0x30] sm:$0xff] %vm333, %v6050
      %6083 = vst.msk [vmem:[%s332 + $0x38] sm:$0xff] %vm333, %v6051
      %6084 = vst.msk [vmem:[%s332 + $0x40] sm:$0xff] %vm333, %v6052
      %6085 = vst.msk [vmem:[%s332 + $0x48] sm:$0xff] %vm333, %v6053
      %6086 = vst.msk [vmem:[%s332 + $0x50] sm:$0xff] %vm333, %v6054
      %6087 = vst.msk [vmem:[%s332 + $0x58] sm:$0xff] %vm333, %v6055
      %6088 = vst.msk [vmem:[%s332 + $0x60] sm:$0xff] %vm333, %v6056
      %6089 = vst.msk [vmem:[%s332 + $0x68] sm:$0xff] %vm333, %v6057
      %6090 = vst.msk [vmem:[%s332 + $0x70] sm:$0xff] %vm333, %v6058
      %6091 = vst.msk [vmem:[%s332 + $0x78] sm:$0xff] %vm333, %v6059
      %6092 = vst.msk [vmem:[%s332 + $0x80] sm:$0xff] %vm333, %v6060
      %6093 = vst.msk [vmem:[%s332 + $0x88] sm:$0xff] %vm333, %v6061
      %6094 = vst.msk [vmem:[%s332 + $0x90] sm:$0xff] %vm333, %v6062
      %6095 = vst.msk [vmem:[%s332 + $0x98] sm:$0xff] %vm333, %v6063
      %6096 = vst.msk [vmem:[%s332 + $0xa0] sm:$0xff] %vm333, %v6064
      %6097 = vst.msk [vmem:[%s332 + $0xa8] sm:$0xff] %vm333, %v6065
      %6098 = vst.msk [vmem:[%s332 + $0xb0] sm:$0xff] %vm333, %v6066
      %6099 = vst.msk [vmem:[%s332 + $0xb8] sm:$0xff] %vm333, %v6067
      %6100 = vst.msk [vmem:[%s332 + $0xc0] sm:$0xff] %vm333, %v6068
      %6101 = vst.msk [vmem:[%s332 + $0xc8] sm:$0xff] %vm333, %v6069
      %6102 = vst.msk [vmem:[%s332 + $0xd0] sm:$0xff] %vm333, %v6070
      %6103 = vst.msk [vmem:[%s332 + $0xd8] sm:$0xff] %vm333, %v6071
      %6104 = vst.msk [vmem:[%s332 + $0xe0] sm:$0xff] %vm333, %v6072
      %6105 = vst.msk [vmem:[%s332 + $0xe8] sm:$0xff] %vm333, %v6073
      %6106 = vst.msk [vmem:[%s332 + $0xf0] sm:$0xff] %vm333, %v6074
      %6107 = vst.msk [vmem:[%s332 + $0xf8] sm:$0xff] %vm333, %v6075
      %p6108 = scmp.lt.s32.totalorder %s20, 1
      %s6109 = scalar_select %p6108, %s20, 1
      %s6110 = smul.addr %s6109, 32
      %s6111 = smul.addr %s6110, 8
      %s6112 = scalar_lea.vmem %s9, %s6111
      // Predicated region
      $region57: #{tpu_custom_call.1} parent=55 // pred_check
        %p6113 = pneg %p232
      $region58: #{tpu_custom_call.1} parent=55 // pred_check_branch
        %6115 = sbr.rel (%p6113) target = $region60
      $region59: #{tpu_custom_call.1} parent=55 // pred_region
        _
      $region60: #{tpu_custom_call.1} parent=55 // pred_fallthru
        _
    $region56: #{tpu_custom_call.1} parent=5 // pred_fallthru
      _
    %p6116 = scmp.le.s32.totalorder 2, %s15
    // Predicated region
    $region61: #{tpu_custom_call.1} parent=5 // pred_check
      %p6117 = pneg %p6116
    $region62: #{tpu_custom_call.1} parent=5 // pred_check_branch
      %6119 = sbr.rel (%p6117) target = $region64
    $region63: #{tpu_custom_call.1} parent=5 // pred_region
      %s6120 = ssub.s32 %s15, 2
      // Predicated region
      $region65: #{tpu_custom_call.1} parent=63 // pred_check
        %p6121 = pneg %p238
      $region66: #{tpu_custom_call.1} parent=63 // pred_check_branch
        %6123 = sbr.rel (%p6121) target = $region68
      $region67: #{tpu_custom_call.1} parent=63 // pred_region
        %p6124 = scmp.lt.s32.totalorder %s21, 1
        %s6125 = scalar_select %p6124, %s21, 1
        %s6126 = smul.addr %s6125, 32
        %s6127 = smul.addr %s6126, 8
        %s6128 = scalar_lea.vmem %s9, %s6127
      $region68: #{tpu_custom_call.1} parent=63 // pred_fallthru
        _
    $region64: #{tpu_custom_call.1} parent=5 // pred_fallthru
      _
  $region6: #{tpu_custom_call.1} parent=0 // loop_footer
    %s19 = sadd.s32 1, %s15
  $region7: #{tpu_custom_call.1} parent=0 // loop_footer_branch
    %14 = sbr.rel target = $region3
  $region8: #{tpu_custom_call.1} parent=0 // loop_exit
    _

</llo_original>
